<compile_context>
chip_gen: v7x
topology: tpu7x:2x2x1
jax: 0.10.0
libtpu: 0.0.40
codegen_flags: <defaults>
</compile_context>

<pallas_src>
import math
import functools

import jax
import jax.numpy as jnp
from jax.experimental import pallas as pl
from jax.experimental.pallas import tpu as pltpu


MXU_DTYPE = jnp.bfloat16    # MXU operand dtype; accumulation is always f32
LN_EPS = 1e-5
NEG_INF = jnp.float32(-1e30)

# Stacked-weight ordering (leading axis = layer index) used for both the
# pallas_call argument list and the in-kernel unpacking.
ENC_KEYS = ('w_q', 'w_k', 'w_v', 'b_q', 'b_k', 'b_v', 'w_o', 'b_o',
            'ln1_g', 'ln1_b', 'w1', 'b1', 'w2', 'b2', 'ln2_g', 'ln2_b')

DEC_KEYS = ('w_q1', 'w_k1', 'w_v1', 'b_q1', 'b_k1', 'b_v1', 'w_o1', 'b_o1',
            'ln1_g', 'ln1_b',
            'w_q2', 'w_k2', 'w_v2', 'b_q2', 'b_k2', 'b_v2', 'w_o2', 'b_o2',
            'ln2_g', 'ln2_b',
            'w1', 'b1', 'w2', 'b2', 'ln3_g', 'ln3_b')


# ----------------------------- in-kernel helpers ----------------------------

def _layernorm(h, g, b):
    """LayerNorm over the last axis, f32 math, eps/biased-variance as PyTorch."""
    mean = jnp.mean(h, axis=-1, keepdims=True)
    var = jnp.mean(jnp.square(h - mean), axis=-1, keepdims=True)
    return (h - mean) * jax.lax.rsqrt(var + LN_EPS) * g + b


def _matmul(x, w, bias=None):
    """bf16-operand / f32-accumulate matmul with optional bias epilogue."""
    out = jnp.dot(x.astype(MXU_DTYPE), w.astype(MXU_DTYPE),
                  preferred_element_type=jnp.float32)
    if bias is not None:
        out = out + bias
    return out


def _mha(q, k, v, add_mask, *, H, Dh):
    """Multi-head attention on flattened (B*L, E) slabs.

    The 1/sqrt(Dh) scale is pre-folded into W_q.  For each head the score and
    context matmuls cover ALL batches at once; `add_mask` is an additive
    block-diagonal (-1e30 off-block) mask killing cross-batch attention.  Head
    contexts stay in registers and are concatenated into one lane-dense
    (B*Lq, E) value — no scratch, no masked partial stores.
    """
    ctx_heads = []
    for h in range(H):
        cols = slice(h * Dh, (h + 1) * Dh)
        qh = q[:, cols].astype(MXU_DTYPE)                      # (B*Lq, Dh)
        kh = k[:, cols].astype(MXU_DTYPE)                      # (B*Lk, Dh)
        vh = v[:, cols].astype(MXU_DTYPE)                      # (B*Lk, Dh)
        # scores: q @ k^T via dot_general (no transposed copy materialized)
        s = jax.lax.dot_general(qh, kh, (((1,), (1,)), ((), ())),
                                preferred_element_type=jnp.float32)
        s = s + add_mask                                       # kill cross-batch
        s = s - jnp.max(s, axis=-1, keepdims=True)
        p = jnp.exp(s)
        p = p * pl.reciprocal(jnp.sum(p, axis=-1, keepdims=True), approx=True)
        ctx_heads.append(jnp.dot(p.astype(MXU_DTYPE), vh,
                                 preferred_element_type=jnp.float32))
    return jnp.concatenate(ctx_heads, axis=-1)                 # (B*Lq, E)


def _encoder_layer(x, p, mask, *, H, Dh):
    # separate Q/K/V matmuls (tile-aligned: no slicing of a fused QKV output)
    q = _matmul(x, p['w_q'], p['b_q'])       # scale folded into w_q at init
    k = _matmul(x, p['w_k'], p['b_k'])
    v = _matmul(x, p['w_v'], p['b_v'])
    ctx = _mha(q, k, v, mask, H=H, Dh=Dh)
    out1 = _layernorm(x + _matmul(ctx, p['w_o'], p['b_o']),
                      p['ln1_g'], p['ln1_b'])
    hid = jnp.maximum(_matmul(out1, p['w1'], p['b1']), 0.0)
    return _layernorm(out1 + _matmul(hid, p['w2'], p['b2']),
                      p['ln2_g'], p['ln2_b'])


def _decoder_layer(y, enc, p, mask_self, mask_cross, *, H, Dh):
    # self-attention (no causal mask: reference passes tgt_mask=None)
    q = _matmul(y, p['w_q1'], p['b_q1'])
    k = _matmul(y, p['w_k1'], p['b_k1'])
    v = _matmul(y, p['w_v1'], p['b_v1'])
    ctx = _mha(q, k, v, mask_self, H=H, Dh=Dh)
    out1 = _layernorm(y + _matmul(ctx, p['w_o1'], p['b_o1']),
                      p['ln1_g'], p['ln1_b'])

    # cross-attention on the (VMEM-resident) encoder output
    q2 = _matmul(out1, p['w_q2'], p['b_q2'])
    k2 = _matmul(enc, p['w_k2'], p['b_k2'])
    v2 = _matmul(enc, p['w_v2'], p['b_v2'])
    ctx2 = _mha(q2, k2, v2, mask_cross, H=H, Dh=Dh)
    out2 = _layernorm(out1 + _matmul(ctx2, p['w_o2'], p['b_o2']),
                      p['ln2_g'], p['ln2_b'])

    hid = jnp.maximum(_matmul(out2, p['w1'], p['b1']), 0.0)
    return _layernorm(out2 + _matmul(hid, p['w2'], p['b2']),
                      p['ln3_g'], p['ln3_b'])


# ------------------------------ fused whole-model kernel --------------------

def _transformer_kernel(*refs, num_layers, H, Dh):
    n_enc, n_dec = len(ENC_KEYS), len(DEC_KEYS)
    src_ref, tgt_ref, mee_ref, mdd_ref, mde_ref = refs[:5]
    enc_refs = dict(zip(ENC_KEYS, refs[5:5 + n_enc]))
    dec_refs = dict(zip(DEC_KEYS, refs[5 + n_enc:5 + n_enc + n_dec]))
    o_ref = refs[5 + n_enc + n_dec]

    # additive block-diagonal batch masks, loaded once and reused by every layer
    mee = mee_ref[...]
    mdd = mdd_ref[...]
    mde = mde_ref[...]

    # ---- encoder stack (activations stay f32 in VMEM/registers) ----
    x = src_ref[...].astype(jnp.float32)                       # (B*S, E)
    for l in range(num_layers):
        p = {name: r[l] for name, r in enc_refs.items()}       # leading-dim loads
        x = _encoder_layer(x, p, mee, H=H, Dh=Dh)
    enc = x

    # ---- decoder stack ----
    y = tgt_ref[...].astype(jnp.float32)                       # (B*T, E)
    for l in range(num_layers):
        p = {name: r[l] for name, r in dec_refs.items()}
        y = _decoder_layer(y, enc, p, mdd, mde, H=H, Dh=Dh)

    o_ref[...] = y.astype(o_ref.dtype)


# ------------------------------ pallas_call wrapper --------------------------

def _full_spec(a):
    """Whole-array block (satisfies the (8,128) rule: equals full array dims)."""
    nd = a.ndim
    return pl.BlockSpec(a.shape, lambda i, _nd=nd: (0,) * _nd)


def transformer_stack_pallas(src_slab, tgt_slab, masks, enc_w, dec_w, *, H):
    num_layers = enc_w['w_q'].shape[0]
    E = src_slab.shape[1]
    Dh = E // H
    Mt = tgt_slab.shape[0]

    args = ((src_slab, tgt_slab, masks['ee'], masks['dd'], masks['de'])
            + tuple(enc_w[k] for k in ENC_KEYS)
            + tuple(dec_w[k] for k in DEC_KEYS))

    kern = functools.partial(_transformer_kernel,
                             num_layers=num_layers, H=H, Dh=Dh)
    return pl.pallas_call(
        kern,
        out_shape=jax.ShapeDtypeStruct((Mt, E), jnp.float32),
        grid=(1,),
        in_specs=[_full_spec(a) for a in args],
        out_specs=pl.BlockSpec((Mt, E), lambda i: (0, 0)),
        compiler_params=pltpu.CompilerParams(
            dimension_semantics=("arbitrary",)),
    )(*args)


# ------------------------------ model forward --------------------------------

def _batch_block_mask(B, Lq, Lk):
    """Additive mask: 0 within the same batch's block, -1e30 across batches."""
    rb = jnp.repeat(jnp.arange(B), Lq)
    cb = jnp.repeat(jnp.arange(B), Lk)
    return jnp.where(rb[:, None] == cb[None, :], 0.0, NEG_INF).astype(jnp.float32)


def transformer_forward(src, tgt, params, num_heads):
    """src: (S, B, E), tgt: (T, B, E) seq-first (PyTorch MHA default)."""
    S, B, E = src.shape
    T = tgt.shape[0]

    # Faithful to the reference quirk: x + pe[:, :x.size(1), :] where x is
    # (S, B, E) -> slices the first B positions and broadcasts over S.
    src = src + params['pe'][:B, :][None, :, :]

    # One layout change into row-contiguous (B*L, E) slabs; boundary activations
    # are passed to the kernel in bf16 (all residual/LN/softmax math inside the
    # kernel is f32).
    src_slab = src.transpose(1, 0, 2).reshape(B * S, E).astype(MXU_DTYPE)
    tgt_slab = tgt.transpose(1, 0, 2).reshape(B * T, E).astype(MXU_DTYPE)

    masks = {'ee': _batch_block_mask(B, S, S),      # encoder self-attn
             'dd': _batch_block_mask(B, T, T),      # decoder self-attn
             'de': _batch_block_mask(B, T, S)}      # decoder cross-attn

    dec = transformer_stack_pallas(src_slab, tgt_slab, masks,
                                   params['enc'], params['dec'], H=num_heads)

    # Final d_model -> 1 projection in plain JAX (a 1-lane Pallas output would
    # be a fully masked, lane-sparse store).
    out = dec.reshape(B, T, E) @ params['out_w'] + params['out_b']   # (B, T, 1)
    return out.transpose(1, 0, 2)                                    # (T, B, 1)


# ------------------------------ parameter init -------------------------------

def _positional_encoding_table(max_len, d_model):
    position = jnp.arange(max_len, dtype=jnp.float32)[:, None]
    div_term = jnp.exp(jnp.arange(0, d_model, 2, dtype=jnp.float32)
                       * (-math.log(10000.0) / d_model))
    pe = jnp.zeros((max_len, d_model), jnp.float32)
    pe = pe.at[:, 0::2].set(jnp.sin(position * div_term))
    pe = pe.at[:, 1::2].set(jnp.cos(position * div_term))
    return pe


def _stacked_w(key, L, shape, scale=1.0):
    # Pre-transposed (x @ W) weights in bf16 (MXU operand dtype), stacked over
    # layers; `scale` folds the attention 1/sqrt(Dh) into W_q at init time.
    return (jax.random.normal(key, (L,) + shape, jnp.float32) * 0.02 * scale
            ).astype(MXU_DTYPE)


def init_params(key, num_layers, E, F, H, max_len=5000):
    Dh = E // H
    q_scale = 1.0 / math.sqrt(Dh)   # folded into W_q (b_q is zero, so unchanged)
    L = num_layers

    def zeros(*shape):
        return jnp.zeros((L,) + shape, jnp.float32)

    def ones(*shape):
        return jnp.ones((L,) + shape, jnp.float32)

    ek = jax.random.split(key, 16)
    enc = {
        'w_q': _stacked_w(ek[0], L, (E, E), q_scale),
        'w_k': _stacked_w(ek[1], L, (E, E)),
        'w_v': _stacked_w(ek[2], L, (E, E)),
        'b_q': zeros(1, E), 'b_k': zeros(1, E), 'b_v': zeros(1, E),
        'w_o': _stacked_w(ek[3], L, (E, E)), 'b_o': zeros(1, E),
        'ln1_g': ones(1, E), 'ln1_b': zeros(1, E),
        'w1': _stacked_w(ek[4], L, (E, F)), 'b1': zeros(1, F),
        'w2': _stacked_w(ek[5], L, (F, E)), 'b2': zeros(1, E),
        'ln2_g': ones(1, E), 'ln2_b': zeros(1, E),
    }

    dk = jax.random.split(ek[15], 16)
    dec = {
        'w_q1': _stacked_w(dk[0], L, (E, E), q_scale),
        'w_k1': _stacked_w(dk[1], L, (E, E)),
        'w_v1': _stacked_w(dk[2], L, (E, E)),
        'b_q1': zeros(1, E), 'b_k1': zeros(1, E), 'b_v1': zeros(1, E),
        'w_o1': _stacked_w(dk[3], L, (E, E)), 'b_o1': zeros(1, E),
        'ln1_g': ones(1, E), 'ln1_b': zeros(1, E),
        'w_q2': _stacked_w(dk[4], L, (E, E), q_scale),
        'w_k2': _stacked_w(dk[5], L, (E, E)),
        'w_v2': _stacked_w(dk[6], L, (E, E)),
        'b_q2': zeros(1, E), 'b_k2': zeros(1, E), 'b_v2': zeros(1, E),
        'w_o2': _stacked_w(dk[7], L, (E, E)), 'b_o2': zeros(1, E),
        'ln2_g': ones(1, E), 'ln2_b': zeros(1, E),
        'w1': _stacked_w(dk[8], L, (E, F)), 'b1': zeros(1, F),
        'w2': _stacked_w(dk[9], L, (F, E)), 'b2': zeros(1, E),
        'ln3_g': ones(1, E), 'ln3_b': zeros(1, E),
    }

    return {
        'pe': _positional_encoding_table(max_len, E),
        'enc': enc,
        'dec': dec,
        'out_w': jax.random.normal(dk[10], (E, 1), jnp.float32) * 0.02,
        'out_b': jnp.zeros((1,), jnp.float32),
    }


# ----------------------------------- main ------------------------------------

if __name__ == "__main__":
    # Small shapes consistent with the module's forward semantics.
    num_layers, d_model, num_heads, d_ff = 2, 32, 4, 64
    S_src, S_tgt, batch = 8, 6, 2

    root = jax.random.PRNGKey(0)
    k_src, k_tgt, k_par = jax.random.split(root, 3)
    src = jax.random.normal(k_src, (S_src, batch, d_model), jnp.float32)
    tgt = jax.random.normal(k_tgt, (S_tgt, batch, d_model), jnp.float32)

    params = init_params(k_par, num_layers, d_model, d_ff, num_heads)

    # TODO(synk): dropout layers are modeled as identity (eval-mode forward).
    fwd = jax.jit(functools.partial(transformer_forward, num_heads=num_heads))
    out = fwd(src, tgt, params)
    jax.block_until_ready(out)

    assert out.shape == (S_tgt, batch, 1)
    assert bool(jnp.all(jnp.isfinite(out)))
    print("KERNEL_OK")
</pallas_src>

<mosaic_0001>
module attributes {stable_mosaic.version = 11 : i64} {
  func.func @_transformer_kernel(%arg0: i32, %arg1: memref<16x32xbf16, #tpu.memory_space<vmem>>, %arg2: memref<12x32xbf16, #tpu.memory_space<vmem>>, %arg3: memref<16x16xf32, #tpu.memory_space<vmem>>, %arg4: memref<12x12xf32, #tpu.memory_space<vmem>>, %arg5: memref<12x16xf32, #tpu.memory_space<vmem>>, %arg6: memref<2x32x32xbf16, #tpu.memory_space<vmem>>, %arg7: memref<2x32x32xbf16, #tpu.memory_space<vmem>>, %arg8: memref<2x32x32xbf16, #tpu.memory_space<vmem>>, %arg9: memref<2x1x32xf32, #tpu.memory_space<vmem>>, %arg10: memref<2x1x32xf32, #tpu.memory_space<vmem>>, %arg11: memref<2x1x32xf32, #tpu.memory_space<vmem>>, %arg12: memref<2x32x32xbf16, #tpu.memory_space<vmem>>, %arg13: memref<2x1x32xf32, #tpu.memory_space<vmem>>, %arg14: memref<2x1x32xf32, #tpu.memory_space<vmem>>, %arg15: memref<2x1x32xf32, #tpu.memory_space<vmem>>, %arg16: memref<2x32x64xbf16, #tpu.memory_space<vmem>>, %arg17: memref<2x1x64xf32, #tpu.memory_space<vmem>>, %arg18: memref<2x64x32xbf16, #tpu.memory_space<vmem>>, %arg19: memref<2x1x32xf32, #tpu.memory_space<vmem>>, %arg20: memref<2x1x32xf32, #tpu.memory_space<vmem>>, %arg21: memref<2x1x32xf32, #tpu.memory_space<vmem>>, %arg22: memref<2x32x32xbf16, #tpu.memory_space<vmem>>, %arg23: memref<2x32x32xbf16, #tpu.memory_space<vmem>>, %arg24: memref<2x32x32xbf16, #tpu.memory_space<vmem>>, %arg25: memref<2x1x32xf32, #tpu.memory_space<vmem>>, %arg26: memref<2x1x32xf32, #tpu.memory_space<vmem>>, %arg27: memref<2x1x32xf32, #tpu.memory_space<vmem>>, %arg28: memref<2x32x32xbf16, #tpu.memory_space<vmem>>, %arg29: memref<2x1x32xf32, #tpu.memory_space<vmem>>, %arg30: memref<2x1x32xf32, #tpu.memory_space<vmem>>, %arg31: memref<2x1x32xf32, #tpu.memory_space<vmem>>, %arg32: memref<2x32x32xbf16, #tpu.memory_space<vmem>>, %arg33: memref<2x32x32xbf16, #tpu.memory_space<vmem>>, %arg34: memref<2x32x32xbf16, #tpu.memory_space<vmem>>, %arg35: memref<2x1x32xf32, #tpu.memory_space<vmem>>, %arg36: memref<2x1x32xf32, #tpu.memory_space<vmem>>, %arg37: memref<2x1x32xf32, #tpu.memory_space<vmem>>, %arg38: memref<2x32x32xbf16, #tpu.memory_space<vmem>>, %arg39: memref<2x1x32xf32, #tpu.memory_space<vmem>>, %arg40: memref<2x1x32xf32, #tpu.memory_space<vmem>>, %arg41: memref<2x1x32xf32, #tpu.memory_space<vmem>>, %arg42: memref<2x32x64xbf16, #tpu.memory_space<vmem>>, %arg43: memref<2x1x64xf32, #tpu.memory_space<vmem>>, %arg44: memref<2x64x32xbf16, #tpu.memory_space<vmem>>, %arg45: memref<2x1x32xf32, #tpu.memory_space<vmem>>, %arg46: memref<2x1x32xf32, #tpu.memory_space<vmem>>, %arg47: memref<2x1x32xf32, #tpu.memory_space<vmem>>, %arg48: memref<12x32xf32, #tpu.memory_space<vmem>>) attributes {dimension_semantics = [#tpu.dimension_semantics<arbitrary>], iteration_bounds = array<i64: 1>, scalar_prefetch = 0 : i64, scratch_operands = 0 : i64, tpu.core_type = #tpu.core_type<tc>, window_params = [{pipeline_mode = #tpu.pipeline_mode<synchronous>, transform_indices = @transform_0, window_bounds = array<i64: 16, 32>}, {pipeline_mode = #tpu.pipeline_mode<synchronous>, transform_indices = @transform_1, window_bounds = array<i64: 12, 32>}, {pipeline_mode = #tpu.pipeline_mode<synchronous>, transform_indices = @transform_2, window_bounds = array<i64: 16, 16>}, {pipeline_mode = #tpu.pipeline_mode<synchronous>, transform_indices = @transform_3, window_bounds = array<i64: 12, 12>}, {pipeline_mode = #tpu.pipeline_mode<synchronous>, transform_indices = @transform_4, window_bounds = array<i64: 12, 16>}, {pipeline_mode = #tpu.pipeline_mode<synchronous>, transform_indices = @transform_5, window_bounds = array<i64: 2, 32, 32>}, {pipeline_mode = #tpu.pipeline_mode<synchronous>, transform_indices = @transform_6, window_bounds = array<i64: 2, 32, 32>}, {pipeline_mode = #tpu.pipeline_mode<synchronous>, transform_indices = @transform_7, window_bounds = array<i64: 2, 32, 32>}, {pipeline_mode = #tpu.pipeline_mode<synchronous>, transform_indices = @transform_8, window_bounds = array<i64: 2, 1, 32>}, {pipeline_mode = #tpu.pipeline_mode<synchronous>, transform_indices = @transform_9, window_bounds = array<i64: 2, 1, 32>}, {pipeline_mode = #tpu.pipeline_mode<synchronous>, transform_indices = @transform_10, window_bounds = array<i64: 2, 1, 32>}, {pipeline_mode = #tpu.pipeline_mode<synchronous>, transform_indices = @transform_11, window_bounds = array<i64: 2, 32, 32>}, {pipeline_mode = #tpu.pipeline_mode<synchronous>, transform_indices = @transform_12, window_bounds = array<i64: 2, 1, 32>}, {pipeline_mode = #tpu.pipeline_mode<synchronous>, transform_indices = @transform_13, window_bounds = array<i64: 2, 1, 32>}, {pipeline_mode = #tpu.pipeline_mode<synchronous>, transform_indices = @transform_14, window_bounds = array<i64: 2, 1, 32>}, {pipeline_mode = #tpu.pipeline_mode<synchronous>, transform_indices = @transform_15, window_bounds = array<i64: 2, 32, 64>}, {pipeline_mode = #tpu.pipeline_mode<synchronous>, transform_indices = @transform_16, window_bounds = array<i64: 2, 1, 64>}, {pipeline_mode = #tpu.pipeline_mode<synchronous>, transform_indices = @transform_17, window_bounds = array<i64: 2, 64, 32>}, {pipeline_mode = #tpu.pipeline_mode<synchronous>, transform_indices = @transform_18, window_bounds = array<i64: 2, 1, 32>}, {pipeline_mode = #tpu.pipeline_mode<synchronous>, transform_indices = @transform_19, window_bounds = array<i64: 2, 1, 32>}, {pipeline_mode = #tpu.pipeline_mode<synchronous>, transform_indices = @transform_20, window_bounds = array<i64: 2, 1, 32>}, {pipeline_mode = #tpu.pipeline_mode<synchronous>, transform_indices = @transform_21, window_bounds = array<i64: 2, 32, 32>}, {pipeline_mode = #tpu.pipeline_mode<synchronous>, transform_indices = @transform_22, window_bounds = array<i64: 2, 32, 32>}, {pipeline_mode = #tpu.pipeline_mode<synchronous>, transform_indices = @transform_23, window_bounds = array<i64: 2, 32, 32>}, {pipeline_mode = #tpu.pipeline_mode<synchronous>, transform_indices = @transform_24, window_bounds = array<i64: 2, 1, 32>}, {pipeline_mode = #tpu.pipeline_mode<synchronous>, transform_indices = @transform_25, window_bounds = array<i64: 2, 1, 32>}, {pipeline_mode = #tpu.pipeline_mode<synchronous>, transform_indices = @transform_26, window_bounds = array<i64: 2, 1, 32>}, {pipeline_mode = #tpu.pipeline_mode<synchronous>, transform_indices = @transform_27, window_bounds = array<i64: 2, 32, 32>}, {pipeline_mode = #tpu.pipeline_mode<synchronous>, transform_indices = @transform_28, window_bounds = array<i64: 2, 1, 32>}, {pipeline_mode = #tpu.pipeline_mode<synchronous>, transform_indices = @transform_29, window_bounds = array<i64: 2, 1, 32>}, {pipeline_mode = #tpu.pipeline_mode<synchronous>, transform_indices = @transform_30, window_bounds = array<i64: 2, 1, 32>}, {pipeline_mode = #tpu.pipeline_mode<synchronous>, transform_indices = @transform_31, window_bounds = array<i64: 2, 32, 32>}, {pipeline_mode = #tpu.pipeline_mode<synchronous>, transform_indices = @transform_32, window_bounds = array<i64: 2, 32, 32>}, {pipeline_mode = #tpu.pipeline_mode<synchronous>, transform_indices = @transform_33, window_bounds = array<i64: 2, 32, 32>}, {pipeline_mode = #tpu.pipeline_mode<synchronous>, transform_indices = @transform_34, window_bounds = array<i64: 2, 1, 32>}, {pipeline_mode = #tpu.pipeline_mode<synchronous>, transform_indices = @transform_35, window_bounds = array<i64: 2, 1, 32>}, {pipeline_mode = #tpu.pipeline_mode<synchronous>, transform_indices = @transform_36, window_bounds = array<i64: 2, 1, 32>}, {pipeline_mode = #tpu.pipeline_mode<synchronous>, transform_indices = @transform_37, window_bounds = array<i64: 2, 32, 32>}, {pipeline_mode = #tpu.pipeline_mode<synchronous>, transform_indices = @transform_38, window_bounds = array<i64: 2, 1, 32>}, {pipeline_mode = #tpu.pipeline_mode<synchronous>, transform_indices = @transform_39, window_bounds = array<i64: 2, 1, 32>}, {pipeline_mode = #tpu.pipeline_mode<synchronous>, transform_indices = @transform_40, window_bounds = array<i64: 2, 1, 32>}, {pipeline_mode = #tpu.pipeline_mode<synchronous>, transform_indices = @transform_41, window_bounds = array<i64: 2, 32, 64>}, {pipeline_mode = #tpu.pipeline_mode<synchronous>, transform_indices = @transform_42, window_bounds = array<i64: 2, 1, 64>}, {pipeline_mode = #tpu.pipeline_mode<synchronous>, transform_indices = @transform_43, window_bounds = array<i64: 2, 64, 32>}, {pipeline_mode = #tpu.pipeline_mode<synchronous>, transform_indices = @transform_44, window_bounds = array<i64: 2, 1, 32>}, {pipeline_mode = #tpu.pipeline_mode<synchronous>, transform_indices = @transform_45, window_bounds = array<i64: 2, 1, 32>}, {pipeline_mode = #tpu.pipeline_mode<synchronous>, transform_indices = @transform_46, window_bounds = array<i64: 2, 1, 32>}, {pipeline_mode = #tpu.pipeline_mode<synchronous>, transform_indices = @transform_47, window_bounds = array<i64: 12, 32>}]} {
    %c0 = arith.constant 0 : index
    %c0_0 = arith.constant 0 : index
    %0 = vector.load %arg3[%c0, %c0_0] : memref<16x16xf32, #tpu.memory_space<vmem>>, vector<16x16xf32>
    %c0_1 = arith.constant 0 : index
    %c0_2 = arith.constant 0 : index
    %1 = vector.load %arg4[%c0_1, %c0_2] : memref<12x12xf32, #tpu.memory_space<vmem>>, vector<12x12xf32>
    %c0_3 = arith.constant 0 : index
    %c0_4 = arith.constant 0 : index
    %2 = vector.load %arg5[%c0_3, %c0_4] : memref<12x16xf32, #tpu.memory_space<vmem>>, vector<12x16xf32>
    %c0_5 = arith.constant 0 : index
    %c0_6 = arith.constant 0 : index
    %3 = vector.load %arg1[%c0_5, %c0_6] : memref<16x32xbf16, #tpu.memory_space<vmem>>, vector<16x32xbf16>
    %4 = arith.extf %3 : vector<16x32xbf16> to vector<16x32xf32>
    %c0_7 = arith.constant 0 : index
    %c0_8 = arith.constant 0 : index
    %c0_9 = arith.constant 0 : index
    %5 = vector.load %arg6[%c0_7, %c0_8, %c0_9] : memref<2x32x32xbf16, #tpu.memory_space<vmem>>, vector<1x32x32xbf16>
    %6 = vector.shape_cast %5 : vector<1x32x32xbf16> to vector<32x32xbf16>
    %c0_10 = arith.constant 0 : index
    %c0_11 = arith.constant 0 : index
    %c0_12 = arith.constant 0 : index
    %7 = vector.load %arg7[%c0_10, %c0_11, %c0_12] : memref<2x32x32xbf16, #tpu.memory_space<vmem>>, vector<1x32x32xbf16>
    %8 = vector.shape_cast %7 : vector<1x32x32xbf16> to vector<32x32xbf16>
    %c0_13 = arith.constant 0 : index
    %c0_14 = arith.constant 0 : index
    %c0_15 = arith.constant 0 : index
    %9 = vector.load %arg8[%c0_13, %c0_14, %c0_15] : memref<2x32x32xbf16, #tpu.memory_space<vmem>>, vector<1x32x32xbf16>
    %10 = vector.shape_cast %9 : vector<1x32x32xbf16> to vector<32x32xbf16>
    %c0_16 = arith.constant 0 : index
    %c0_17 = arith.constant 0 : index
    %c0_18 = arith.constant 0 : index
    %11 = vector.load %arg9[%c0_16, %c0_17, %c0_18] : memref<2x1x32xf32, #tpu.memory_space<vmem>>, vector<1x1x32xf32>
    %12 = vector.shape_cast %11 : vector<1x1x32xf32> to vector<1x32xf32>
    %c0_19 = arith.constant 0 : index
    %c0_20 = arith.constant 0 : index
    %c0_21 = arith.constant 0 : index
    %13 = vector.load %arg10[%c0_19, %c0_20, %c0_21] : memref<2x1x32xf32, #tpu.memory_space<vmem>>, vector<1x1x32xf32>
    %14 = vector.shape_cast %13 : vector<1x1x32xf32> to vector<1x32xf32>
    %c0_22 = arith.constant 0 : index
    %c0_23 = arith.constant 0 : index
    %c0_24 = arith.constant 0 : index
    %15 = vector.load %arg11[%c0_22, %c0_23, %c0_24] : memref<2x1x32xf32, #tpu.memory_space<vmem>>, vector<1x1x32xf32>
    %16 = vector.shape_cast %15 : vector<1x1x32xf32> to vector<1x32xf32>
    %c0_25 = arith.constant 0 : index
    %c0_26 = arith.constant 0 : index
    %c0_27 = arith.constant 0 : index
    %17 = vector.load %arg12[%c0_25, %c0_26, %c0_27] : memref<2x32x32xbf16, #tpu.memory_space<vmem>>, vector<1x32x32xbf16>
    %18 = vector.shape_cast %17 : vector<1x32x32xbf16> to vector<32x32xbf16>
    %c0_28 = arith.constant 0 : index
    %c0_29 = arith.constant 0 : index
    %c0_30 = arith.constant 0 : index
    %19 = vector.load %arg13[%c0_28, %c0_29, %c0_30] : memref<2x1x32xf32, #tpu.memory_space<vmem>>, vector<1x1x32xf32>
    %20 = vector.shape_cast %19 : vector<1x1x32xf32> to vector<1x32xf32>
    %c0_31 = arith.constant 0 : index
    %c0_32 = arith.constant 0 : index
    %c0_33 = arith.constant 0 : index
    %21 = vector.load %arg14[%c0_31, %c0_32, %c0_33] : memref<2x1x32xf32, #tpu.memory_space<vmem>>, vector<1x1x32xf32>
    %22 = vector.shape_cast %21 : vector<1x1x32xf32> to vector<1x32xf32>
    %c0_34 = arith.constant 0 : index
    %c0_35 = arith.constant 0 : index
    %c0_36 = arith.constant 0 : index
    %23 = vector.load %arg15[%c0_34, %c0_35, %c0_36] : memref<2x1x32xf32, #tpu.memory_space<vmem>>, vector<1x1x32xf32>
    %24 = vector.shape_cast %23 : vector<1x1x32xf32> to vector<1x32xf32>
    %c0_37 = arith.constant 0 : index
    %c0_38 = arith.constant 0 : index
    %c0_39 = arith.constant 0 : index
    %25 = vector.load %arg16[%c0_37, %c0_38, %c0_39] : memref<2x32x64xbf16, #tpu.memory_space<vmem>>, vector<1x32x64xbf16>
    %26 = vector.shape_cast %25 : vector<1x32x64xbf16> to vector<32x64xbf16>
    %c0_40 = arith.constant 0 : index
    %c0_41 = arith.constant 0 : index
    %c0_42 = arith.constant 0 : index
    %27 = vector.load %arg17[%c0_40, %c0_41, %c0_42] : memref<2x1x64xf32, #tpu.memory_space<vmem>>, vector<1x1x64xf32>
    %28 = vector.shape_cast %27 : vector<1x1x64xf32> to vector<1x64xf32>
    %c0_43 = arith.constant 0 : index
    %c0_44 = arith.constant 0 : index
    %c0_45 = arith.constant 0 : index
    %29 = vector.load %arg18[%c0_43, %c0_44, %c0_45] : memref<2x64x32xbf16, #tpu.memory_space<vmem>>, vector<1x64x32xbf16>
    %30 = vector.shape_cast %29 : vector<1x64x32xbf16> to vector<64x32xbf16>
    %c0_46 = arith.constant 0 : index
    %c0_47 = arith.constant 0 : index
    %c0_48 = arith.constant 0 : index
    %31 = vector.load %arg19[%c0_46, %c0_47, %c0_48] : memref<2x1x32xf32, #tpu.memory_space<vmem>>, vector<1x1x32xf32>
    %32 = vector.shape_cast %31 : vector<1x1x32xf32> to vector<1x32xf32>
    %c0_49 = arith.constant 0 : index
    %c0_50 = arith.constant 0 : index
    %c0_51 = arith.constant 0 : index
    %33 = vector.load %arg20[%c0_49, %c0_50, %c0_51] : memref<2x1x32xf32, #tpu.memory_space<vmem>>, vector<1x1x32xf32>
    %34 = vector.shape_cast %33 : vector<1x1x32xf32> to vector<1x32xf32>
    %c0_52 = arith.constant 0 : index
    %c0_53 = arith.constant 0 : index
    %c0_54 = arith.constant 0 : index
    %35 = vector.load %arg21[%c0_52, %c0_53, %c0_54] : memref<2x1x32xf32, #tpu.memory_space<vmem>>, vector<1x1x32xf32>
    %36 = vector.shape_cast %35 : vector<1x1x32xf32> to vector<1x32xf32>
    %37 = arith.truncf %4 : vector<16x32xf32> to vector<16x32xbf16>
    %cst = arith.constant dense<0.000000e+00> : vector<16x32xf32>
    %38 = tpu.matmul %37, %6, %cst {dimension_numbers = #tpu.dot_dimension_numbers<[1], [0], [0], [1], [0, 0, 1, 1], [], []>} : vector<16x32xbf16>, vector<32x32xbf16>, vector<16x32xf32> -> vector<16x32xf32>
    %39 = vector.broadcast %12 : vector<1x32xf32> to vector<16x32xf32>
    %40 = arith.addf %38, %39 : vector<16x32xf32>
    %41 = arith.truncf %4 : vector<16x32xf32> to vector<16x32xbf16>
    %cst_55 = arith.constant dense<0.000000e+00> : vector<16x32xf32>
    %42 = tpu.matmul %41, %8, %cst_55 {dimension_numbers = #tpu.dot_dimension_numbers<[1], [0], [0], [1], [0, 0, 1, 1], [], []>} : vector<16x32xbf16>, vector<32x32xbf16>, vector<16x32xf32> -> vector<16x32xf32>
    %43 = vector.broadcast %14 : vector<1x32xf32> to vector<16x32xf32>
    %44 = arith.addf %42, %43 : vector<16x32xf32>
    %45 = arith.truncf %4 : vector<16x32xf32> to vector<16x32xbf16>
    %cst_56 = arith.constant dense<0.000000e+00> : vector<16x32xf32>
    %46 = tpu.matmul %45, %10, %cst_56 {dimension_numbers = #tpu.dot_dimension_numbers<[1], [0], [0], [1], [0, 0, 1, 1], [], []>} : vector<16x32xbf16>, vector<32x32xbf16>, vector<16x32xf32> -> vector<16x32xf32>
    %47 = vector.broadcast %16 : vector<1x32xf32> to vector<16x32xf32>
    %48 = arith.addf %46, %47 : vector<16x32xf32>
    %49 = vector.extract_strided_slice %40 {offsets = [0, 0], sizes = [16, 8], strides = [1, 1]} : vector<16x32xf32> to vector<16x8xf32>
    %50 = arith.truncf %49 : vector<16x8xf32> to vector<16x8xbf16>
    %51 = vector.extract_strided_slice %44 {offsets = [0, 0], sizes = [16, 8], strides = [1, 1]} : vector<16x32xf32> to vector<16x8xf32>
    %52 = arith.truncf %51 : vector<16x8xf32> to vector<16x8xbf16>
    %53 = vector.extract_strided_slice %48 {offsets = [0, 0], sizes = [16, 8], strides = [1, 1]} : vector<16x32xf32> to vector<16x8xf32>
    %54 = arith.truncf %53 : vector<16x8xf32> to vector<16x8xbf16>
    %cst_57 = arith.constant dense<0.000000e+00> : vector<16x16xf32>
    %55 = tpu.matmul %50, %52, %cst_57 {dimension_numbers = #tpu.dot_dimension_numbers<[1], [1], [0], [0], [0, 0, 1, 0], [], []>} : vector<16x8xbf16>, vector<16x8xbf16>, vector<16x16xf32> -> vector<16x16xf32>
    %56 = arith.addf %55, %0 : vector<16x16xf32>
    %cst_58 = arith.constant dense<0xFF800000> : vector<16xf32>
    %57 = vector.multi_reduction <maximumf>, %56, %cst_58 [1] : vector<16x16xf32> to vector<16xf32>
    %58 = vector.shape_cast %57 : vector<16xf32> to vector<16x1xf32>
    %59 = vector.broadcast %58 : vector<16x1xf32> to vector<16x16xf32>
    %60 = arith.subf %56, %59 : vector<16x16xf32>
    %61 = math.exp %60 : vector<16x16xf32>
    %cst_59 = arith.constant dense<0.000000e+00> : vector<16xf32>
    %62 = vector.multi_reduction <add>, %61, %cst_59 [1] : vector<16x16xf32> to vector<16xf32>
    %63 = vector.shape_cast %62 : vector<16xf32> to vector<16x1xf32>
    %64 = tpu.reciprocal %63 {approx = true} : vector<16x1xf32> -> vector<16x1xf32>
    %65 = vector.broadcast %64 : vector<16x1xf32> to vector<16x16xf32>
    %66 = arith.mulf %61, %65 : vector<16x16xf32>
    %67 = arith.truncf %66 : vector<16x16xf32> to vector<16x16xbf16>
    %cst_60 = arith.constant dense<0.000000e+00> : vector<16x8xf32>
    %68 = tpu.matmul %67, %54, %cst_60 {dimension_numbers = #tpu.dot_dimension_numbers<[1], [0], [0], [1], [0, 0, 1, 1], [], []>} : vector<16x16xbf16>, vector<16x8xbf16>, vector<16x8xf32> -> vector<16x8xf32>
    %69 = vector.extract_strided_slice %40 {offsets = [0, 8], sizes = [16, 8], strides = [1, 1]} : vector<16x32xf32> to vector<16x8xf32>
    %70 = arith.truncf %69 : vector<16x8xf32> to vector<16x8xbf16>
    %71 = vector.extract_strided_slice %44 {offsets = [0, 8], sizes = [16, 8], strides = [1, 1]} : vector<16x32xf32> to vector<16x8xf32>
    %72 = arith.truncf %71 : vector<16x8xf32> to vector<16x8xbf16>
    %73 = vector.extract_strided_slice %48 {offsets = [0, 8], sizes = [16, 8], strides = [1, 1]} : vector<16x32xf32> to vector<16x8xf32>
    %74 = arith.truncf %73 : vector<16x8xf32> to vector<16x8xbf16>
    %cst_61 = arith.constant dense<0.000000e+00> : vector<16x16xf32>
    %75 = tpu.matmul %70, %72, %cst_61 {dimension_numbers = #tpu.dot_dimension_numbers<[1], [1], [0], [0], [0, 0, 1, 0], [], []>} : vector<16x8xbf16>, vector<16x8xbf16>, vector<16x16xf32> -> vector<16x16xf32>
    %76 = arith.addf %75, %0 : vector<16x16xf32>
    %cst_62 = arith.constant dense<0xFF800000> : vector<16xf32>
    %77 = vector.multi_reduction <maximumf>, %76, %cst_62 [1] : vector<16x16xf32> to vector<16xf32>
    %78 = vector.shape_cast %77 : vector<16xf32> to vector<16x1xf32>
    %79 = vector.broadcast %78 : vector<16x1xf32> to vector<16x16xf32>
    %80 = arith.subf %76, %79 : vector<16x16xf32>
    %81 = math.exp %80 : vector<16x16xf32>
    %cst_63 = arith.constant dense<0.000000e+00> : vector<16xf32>
    %82 = vector.multi_reduction <add>, %81, %cst_63 [1] : vector<16x16xf32> to vector<16xf32>
    %83 = vector.shape_cast %82 : vector<16xf32> to vector<16x1xf32>
    %84 = tpu.reciprocal %83 {approx = true} : vector<16x1xf32> -> vector<16x1xf32>
    %85 = vector.broadcast %84 : vector<16x1xf32> to vector<16x16xf32>
    %86 = arith.mulf %81, %85 : vector<16x16xf32>
    %87 = arith.truncf %86 : vector<16x16xf32> to vector<16x16xbf16>
    %cst_64 = arith.constant dense<0.000000e+00> : vector<16x8xf32>
    %88 = tpu.matmul %87, %74, %cst_64 {dimension_numbers = #tpu.dot_dimension_numbers<[1], [0], [0], [1], [0, 0, 1, 1], [], []>} : vector<16x16xbf16>, vector<16x8xbf16>, vector<16x8xf32> -> vector<16x8xf32>
    %89 = vector.extract_strided_slice %40 {offsets = [0, 16], sizes = [16, 8], strides = [1, 1]} : vector<16x32xf32> to vector<16x8xf32>
    %90 = arith.truncf %89 : vector<16x8xf32> to vector<16x8xbf16>
    %91 = vector.extract_strided_slice %44 {offsets = [0, 16], sizes = [16, 8], strides = [1, 1]} : vector<16x32xf32> to vector<16x8xf32>
    %92 = arith.truncf %91 : vector<16x8xf32> to vector<16x8xbf16>
    %93 = vector.extract_strided_slice %48 {offsets = [0, 16], sizes = [16, 8], strides = [1, 1]} : vector<16x32xf32> to vector<16x8xf32>
    %94 = arith.truncf %93 : vector<16x8xf32> to vector<16x8xbf16>
    %cst_65 = arith.constant dense<0.000000e+00> : vector<16x16xf32>
    %95 = tpu.matmul %90, %92, %cst_65 {dimension_numbers = #tpu.dot_dimension_numbers<[1], [1], [0], [0], [0, 0, 1, 0], [], []>} : vector<16x8xbf16>, vector<16x8xbf16>, vector<16x16xf32> -> vector<16x16xf32>
    %96 = arith.addf %95, %0 : vector<16x16xf32>
    %cst_66 = arith.constant dense<0xFF800000> : vector<16xf32>
    %97 = vector.multi_reduction <maximumf>, %96, %cst_66 [1] : vector<16x16xf32> to vector<16xf32>
    %98 = vector.shape_cast %97 : vector<16xf32> to vector<16x1xf32>
    %99 = vector.broadcast %98 : vector<16x1xf32> to vector<16x16xf32>
    %100 = arith.subf %96, %99 : vector<16x16xf32>
    %101 = math.exp %100 : vector<16x16xf32>
    %cst_67 = arith.constant dense<0.000000e+00> : vector<16xf32>
    %102 = vector.multi_reduction <add>, %101, %cst_67 [1] : vector<16x16xf32> to vector<16xf32>
    %103 = vector.shape_cast %102 : vector<16xf32> to vector<16x1xf32>
    %104 = tpu.reciprocal %103 {approx = true} : vector<16x1xf32> -> vector<16x1xf32>
    %105 = vector.broadcast %104 : vector<16x1xf32> to vector<16x16xf32>
    %106 = arith.mulf %101, %105 : vector<16x16xf32>
    %107 = arith.truncf %106 : vector<16x16xf32> to vector<16x16xbf16>
    %cst_68 = arith.constant dense<0.000000e+00> : vector<16x8xf32>
    %108 = tpu.matmul %107, %94, %cst_68 {dimension_numbers = #tpu.dot_dimension_numbers<[1], [0], [0], [1], [0, 0, 1, 1], [], []>} : vector<16x16xbf16>, vector<16x8xbf16>, vector<16x8xf32> -> vector<16x8xf32>
    %109 = vector.extract_strided_slice %40 {offsets = [0, 24], sizes = [16, 8], strides = [1, 1]} : vector<16x32xf32> to vector<16x8xf32>
    %110 = arith.truncf %109 : vector<16x8xf32> to vector<16x8xbf16>
    %111 = vector.extract_strided_slice %44 {offsets = [0, 24], sizes = [16, 8], strides = [1, 1]} : vector<16x32xf32> to vector<16x8xf32>
    %112 = arith.truncf %111 : vector<16x8xf32> to vector<16x8xbf16>
    %113 = vector.extract_strided_slice %48 {offsets = [0, 24], sizes = [16, 8], strides = [1, 1]} : vector<16x32xf32> to vector<16x8xf32>
    %114 = arith.truncf %113 : vector<16x8xf32> to vector<16x8xbf16>
    %cst_69 = arith.constant dense<0.000000e+00> : vector<16x16xf32>
    %115 = tpu.matmul %110, %112, %cst_69 {dimension_numbers = #tpu.dot_dimension_numbers<[1], [1], [0], [0], [0, 0, 1, 0], [], []>} : vector<16x8xbf16>, vector<16x8xbf16>, vector<16x16xf32> -> vector<16x16xf32>
    %116 = arith.addf %115, %0 : vector<16x16xf32>
    %cst_70 = arith.constant dense<0xFF800000> : vector<16xf32>
    %117 = vector.multi_reduction <maximumf>, %116, %cst_70 [1] : vector<16x16xf32> to vector<16xf32>
    %118 = vector.shape_cast %117 : vector<16xf32> to vector<16x1xf32>
    %119 = vector.broadcast %118 : vector<16x1xf32> to vector<16x16xf32>
    %120 = arith.subf %116, %119 : vector<16x16xf32>
    %121 = math.exp %120 : vector<16x16xf32>
    %cst_71 = arith.constant dense<0.000000e+00> : vector<16xf32>
    %122 = vector.multi_reduction <add>, %121, %cst_71 [1] : vector<16x16xf32> to vector<16xf32>
    %123 = vector.shape_cast %122 : vector<16xf32> to vector<16x1xf32>
    %124 = tpu.reciprocal %123 {approx = true} : vector<16x1xf32> -> vector<16x1xf32>
    %125 = vector.broadcast %124 : vector<16x1xf32> to vector<16x16xf32>
    %126 = arith.mulf %121, %125 : vector<16x16xf32>
    %127 = arith.truncf %126 : vector<16x16xf32> to vector<16x16xbf16>
    %cst_72 = arith.constant dense<0.000000e+00> : vector<16x8xf32>
    %128 = tpu.matmul %127, %114, %cst_72 {dimension_numbers = #tpu.dot_dimension_numbers<[1], [0], [0], [1], [0, 0, 1, 1], [], []>} : vector<16x16xbf16>, vector<16x8xbf16>, vector<16x8xf32> -> vector<16x8xf32>
    %129 = tpu.concatenate %68, %88, %108, %128 in 1 : vector<16x8xf32>, vector<16x8xf32>, vector<16x8xf32>, vector<16x8xf32> -> vector<16x32xf32>
    %130 = arith.truncf %129 : vector<16x32xf32> to vector<16x32xbf16>
    %cst_73 = arith.constant dense<0.000000e+00> : vector<16x32xf32>
    %131 = tpu.matmul %130, %18, %cst_73 {dimension_numbers = #tpu.dot_dimension_numbers<[1], [0], [0], [1], [0, 0, 1, 1], [], []>} : vector<16x32xbf16>, vector<32x32xbf16>, vector<16x32xf32> -> vector<16x32xf32>
    %132 = vector.broadcast %20 : vector<1x32xf32> to vector<16x32xf32>
    %133 = arith.addf %131, %132 : vector<16x32xf32>
    %134 = arith.addf %4, %133 : vector<16x32xf32>
    %cst_74 = arith.constant dense<0.000000e+00> : vector<16xf32>
    %135 = vector.multi_reduction <add>, %134, %cst_74 [1] : vector<16x32xf32> to vector<16xf32>
    %136 = vector.shape_cast %135 : vector<16xf32> to vector<16x1xf32>
    %cst_75 = arith.constant 3.200000e+01 : f32
    %137 = vector.broadcast %cst_75 : f32 to vector<16x1xf32>
    %138 = arith.divf %136, %137 : vector<16x1xf32>
    %139 = vector.broadcast %138 : vector<16x1xf32> to vector<16x32xf32>
    %140 = arith.subf %134, %139 : vector<16x32xf32>
    %141 = arith.mulf %140, %140 : vector<16x32xf32>
    %cst_76 = arith.constant dense<0.000000e+00> : vector<16xf32>
    %142 = vector.multi_reduction <add>, %141, %cst_76 [1] : vector<16x32xf32> to vector<16xf32>
    %143 = vector.shape_cast %142 : vector<16xf32> to vector<16x1xf32>
    %cst_77 = arith.constant 3.200000e+01 : f32
    %144 = vector.broadcast %cst_77 : f32 to vector<16x1xf32>
    %145 = arith.divf %143, %144 : vector<16x1xf32>
    %146 = vector.broadcast %138 : vector<16x1xf32> to vector<16x32xf32>
    %147 = arith.subf %134, %146 : vector<16x32xf32>
    %cst_78 = arith.constant 9.99999974E-6 : f32
    %148 = vector.broadcast %cst_78 : f32 to vector<16x1xf32>
    %149 = arith.addf %145, %148 : vector<16x1xf32>
    %150 = math.rsqrt %149 : vector<16x1xf32>
    %151 = vector.broadcast %150 : vector<16x1xf32> to vector<16x32xf32>
    %152 = arith.mulf %147, %151 : vector<16x32xf32>
    %153 = vector.broadcast %22 : vector<1x32xf32> to vector<16x32xf32>
    %154 = arith.mulf %152, %153 : vector<16x32xf32>
    %155 = vector.broadcast %24 : vector<1x32xf32> to vector<16x32xf32>
    %156 = arith.addf %154, %155 : vector<16x32xf32>
    %157 = arith.truncf %156 : vector<16x32xf32> to vector<16x32xbf16>
    %cst_79 = arith.constant dense<0.000000e+00> : vector<16x64xf32>
    %158 = tpu.matmul %157, %26, %cst_79 {dimension_numbers = #tpu.dot_dimension_numbers<[1], [0], [0], [1], [0, 0, 1, 1], [], []>} : vector<16x32xbf16>, vector<32x64xbf16>, vector<16x64xf32> -> vector<16x64xf32>
    %159 = vector.broadcast %28 : vector<1x64xf32> to vector<16x64xf32>
    %160 = arith.addf %158, %159 : vector<16x64xf32>
    %cst_80 = arith.constant 0.000000e+00 : f32
    %161 = vector.broadcast %cst_80 : f32 to vector<16x64xf32>
    %162 = arith.maximumf %160, %161 : vector<16x64xf32>
    %163 = arith.truncf %162 : vector<16x64xf32> to vector<16x64xbf16>
    %cst_81 = arith.constant dense<0.000000e+00> : vector<16x32xf32>
    %164 = tpu.matmul %163, %30, %cst_81 {dimension_numbers = #tpu.dot_dimension_numbers<[1], [0], [0], [1], [0, 0, 1, 1], [], []>} : vector<16x64xbf16>, vector<64x32xbf16>, vector<16x32xf32> -> vector<16x32xf32>
    %165 = vector.broadcast %32 : vector<1x32xf32> to vector<16x32xf32>
    %166 = arith.addf %164, %165 : vector<16x32xf32>
    %167 = arith.addf %156, %166 : vector<16x32xf32>
    %cst_82 = arith.constant dense<0.000000e+00> : vector<16xf32>
    %168 = vector.multi_reduction <add>, %167, %cst_82 [1] : vector<16x32xf32> to vector<16xf32>
    %169 = vector.shape_cast %168 : vector<16xf32> to vector<16x1xf32>
    %cst_83 = arith.constant 3.200000e+01 : f32
    %170 = vector.broadcast %cst_83 : f32 to vector<16x1xf32>
    %171 = arith.divf %169, %170 : vector<16x1xf32>
    %172 = vector.broadcast %171 : vector<16x1xf32> to vector<16x32xf32>
    %173 = arith.subf %167, %172 : vector<16x32xf32>
    %174 = arith.mulf %173, %173 : vector<16x32xf32>
    %cst_84 = arith.constant dense<0.000000e+00> : vector<16xf32>
    %175 = vector.multi_reduction <add>, %174, %cst_84 [1] : vector<16x32xf32> to vector<16xf32>
    %176 = vector.shape_cast %175 : vector<16xf32> to vector<16x1xf32>
    %cst_85 = arith.constant 3.200000e+01 : f32
    %177 = vector.broadcast %cst_85 : f32 to vector<16x1xf32>
    %178 = arith.divf %176, %177 : vector<16x1xf32>
    %179 = vector.broadcast %171 : vector<16x1xf32> to vector<16x32xf32>
    %180 = arith.subf %167, %179 : vector<16x32xf32>
    %cst_86 = arith.constant 9.99999974E-6 : f32
    %181 = vector.broadcast %cst_86 : f32 to vector<16x1xf32>
    %182 = arith.addf %178, %181 : vector<16x1xf32>
    %183 = math.rsqrt %182 : vector<16x1xf32>
    %184 = vector.broadcast %183 : vector<16x1xf32> to vector<16x32xf32>
    %185 = arith.mulf %180, %184 : vector<16x32xf32>
    %186 = vector.broadcast %34 : vector<1x32xf32> to vector<16x32xf32>
    %187 = arith.mulf %185, %186 : vector<16x32xf32>
    %188 = vector.broadcast %36 : vector<1x32xf32> to vector<16x32xf32>
    %189 = arith.addf %187, %188 : vector<16x32xf32>
    %c1 = arith.constant 1 : index
    %c0_87 = arith.constant 0 : index
    %c0_88 = arith.constant 0 : index
    %190 = vector.load %arg6[%c1, %c0_87, %c0_88] : memref<2x32x32xbf16, #tpu.memory_space<vmem>>, vector<1x32x32xbf16>
    %191 = vector.shape_cast %190 : vector<1x32x32xbf16> to vector<32x32xbf16>
    %c1_89 = arith.constant 1 : index
    %c0_90 = arith.constant 0 : index
    %c0_91 = arith.constant 0 : index
    %192 = vector.load %arg7[%c1_89, %c0_90, %c0_91] : memref<2x32x32xbf16, #tpu.memory_space<vmem>>, vector<1x32x32xbf16>
    %193 = vector.shape_cast %192 : vector<1x32x32xbf16> to vector<32x32xbf16>
    %c1_92 = arith.constant 1 : index
    %c0_93 = arith.constant 0 : index
    %c0_94 = arith.constant 0 : index
    %194 = vector.load %arg8[%c1_92, %c0_93, %c0_94] : memref<2x32x32xbf16, #tpu.memory_space<vmem>>, vector<1x32x32xbf16>
    %195 = vector.shape_cast %194 : vector<1x32x32xbf16> to vector<32x32xbf16>
    %c1_95 = arith.constant 1 : index
    %c0_96 = arith.constant 0 : index
    %c0_97 = arith.constant 0 : index
    %196 = vector.load %arg9[%c1_95, %c0_96, %c0_97] : memref<2x1x32xf32, #tpu.memory_space<vmem>>, vector<1x1x32xf32>
    %197 = vector.shape_cast %196 : vector<1x1x32xf32> to vector<1x32xf32>
    %c1_98 = arith.constant 1 : index
    %c0_99 = arith.constant 0 : index
    %c0_100 = arith.constant 0 : index
    %198 = vector.load %arg10[%c1_98, %c0_99, %c0_100] : memref<2x1x32xf32, #tpu.memory_space<vmem>>, vector<1x1x32xf32>
    %199 = vector.shape_cast %198 : vector<1x1x32xf32> to vector<1x32xf32>
    %c1_101 = arith.constant 1 : index
    %c0_102 = arith.constant 0 : index
    %c0_103 = arith.constant 0 : index
    %200 = vector.load %arg11[%c1_101, %c0_102, %c0_103] : memref<2x1x32xf32, #tpu.memory_space<vmem>>, vector<1x1x32xf32>
    %201 = vector.shape_cast %200 : vector<1x1x32xf32> to vector<1x32xf32>
    %c1_104 = arith.constant 1 : index
    %c0_105 = arith.constant 0 : index
    %c0_106 = arith.constant 0 : index
    %202 = vector.load %arg12[%c1_104, %c0_105, %c0_106] : memref<2x32x32xbf16, #tpu.memory_space<vmem>>, vector<1x32x32xbf16>
    %203 = vector.shape_cast %202 : vector<1x32x32xbf16> to vector<32x32xbf16>
    %c1_107 = arith.constant 1 : index
    %c0_108 = arith.constant 0 : index
    %c0_109 = arith.constant 0 : index
    %204 = vector.load %arg13[%c1_107, %c0_108, %c0_109] : memref<2x1x32xf32, #tpu.memory_space<vmem>>, vector<1x1x32xf32>
    %205 = vector.shape_cast %204 : vector<1x1x32xf32> to vector<1x32xf32>
    %c1_110 = arith.constant 1 : index
    %c0_111 = arith.constant 0 : index
    %c0_112 = arith.constant 0 : index
    %206 = vector.load %arg14[%c1_110, %c0_111, %c0_112] : memref<2x1x32xf32, #tpu.memory_space<vmem>>, vector<1x1x32xf32>
    %207 = vector.shape_cast %206 : vector<1x1x32xf32> to vector<1x32xf32>
    %c1_113 = arith.constant 1 : index
    %c0_114 = arith.constant 0 : index
    %c0_115 = arith.constant 0 : index
    %208 = vector.load %arg15[%c1_113, %c0_114, %c0_115] : memref<2x1x32xf32, #tpu.memory_space<vmem>>, vector<1x1x32xf32>
    %209 = vector.shape_cast %208 : vector<1x1x32xf32> to vector<1x32xf32>
    %c1_116 = arith.constant 1 : index
    %c0_117 = arith.constant 0 : index
    %c0_118 = arith.constant 0 : index
    %210 = vector.load %arg16[%c1_116, %c0_117, %c0_118] : memref<2x32x64xbf16, #tpu.memory_space<vmem>>, vector<1x32x64xbf16>
    %211 = vector.shape_cast %210 : vector<1x32x64xbf16> to vector<32x64xbf16>
    %c1_119 = arith.constant 1 : index
    %c0_120 = arith.constant 0 : index
    %c0_121 = arith.constant 0 : index
    %212 = vector.load %arg17[%c1_119, %c0_120, %c0_121] : memref<2x1x64xf32, #tpu.memory_space<vmem>>, vector<1x1x64xf32>
    %213 = vector.shape_cast %212 : vector<1x1x64xf32> to vector<1x64xf32>
    %c1_122 = arith.constant 1 : index
    %c0_123 = arith.constant 0 : index
    %c0_124 = arith.constant 0 : index
    %214 = vector.load %arg18[%c1_122, %c0_123, %c0_124] : memref<2x64x32xbf16, #tpu.memory_space<vmem>>, vector<1x64x32xbf16>
    %215 = vector.shape_cast %214 : vector<1x64x32xbf16> to vector<64x32xbf16>
    %c1_125 = arith.constant 1 : index
    %c0_126 = arith.constant 0 : index
    %c0_127 = arith.constant 0 : index
    %216 = vector.load %arg19[%c1_125, %c0_126, %c0_127] : memref<2x1x32xf32, #tpu.memory_space<vmem>>, vector<1x1x32xf32>
    %217 = vector.shape_cast %216 : vector<1x1x32xf32> to vector<1x32xf32>
    %c1_128 = arith.constant 1 : index
    %c0_129 = arith.constant 0 : index
    %c0_130 = arith.constant 0 : index
    %218 = vector.load %arg20[%c1_128, %c0_129, %c0_130] : memref<2x1x32xf32, #tpu.memory_space<vmem>>, vector<1x1x32xf32>
    %219 = vector.shape_cast %218 : vector<1x1x32xf32> to vector<1x32xf32>
    %c1_131 = arith.constant 1 : index
    %c0_132 = arith.constant 0 : index
    %c0_133 = arith.constant 0 : index
    %220 = vector.load %arg21[%c1_131, %c0_132, %c0_133] : memref<2x1x32xf32, #tpu.memory_space<vmem>>, vector<1x1x32xf32>
    %221 = vector.shape_cast %220 : vector<1x1x32xf32> to vector<1x32xf32>
    %222 = arith.truncf %189 : vector<16x32xf32> to vector<16x32xbf16>
    %cst_134 = arith.constant dense<0.000000e+00> : vector<16x32xf32>
    %223 = tpu.matmul %222, %191, %cst_134 {dimension_numbers = #tpu.dot_dimension_numbers<[1], [0], [0], [1], [0, 0, 1, 1], [], []>} : vector<16x32xbf16>, vector<32x32xbf16>, vector<16x32xf32> -> vector<16x32xf32>
    %224 = vector.broadcast %197 : vector<1x32xf32> to vector<16x32xf32>
    %225 = arith.addf %223, %224 : vector<16x32xf32>
    %226 = arith.truncf %189 : vector<16x32xf32> to vector<16x32xbf16>
    %cst_135 = arith.constant dense<0.000000e+00> : vector<16x32xf32>
    %227 = tpu.matmul %226, %193, %cst_135 {dimension_numbers = #tpu.dot_dimension_numbers<[1], [0], [0], [1], [0, 0, 1, 1], [], []>} : vector<16x32xbf16>, vector<32x32xbf16>, vector<16x32xf32> -> vector<16x32xf32>
    %228 = vector.broadcast %199 : vector<1x32xf32> to vector<16x32xf32>
    %229 = arith.addf %227, %228 : vector<16x32xf32>
    %230 = arith.truncf %189 : vector<16x32xf32> to vector<16x32xbf16>
    %cst_136 = arith.constant dense<0.000000e+00> : vector<16x32xf32>
    %231 = tpu.matmul %230, %195, %cst_136 {dimension_numbers = #tpu.dot_dimension_numbers<[1], [0], [0], [1], [0, 0, 1, 1], [], []>} : vector<16x32xbf16>, vector<32x32xbf16>, vector<16x32xf32> -> vector<16x32xf32>
    %232 = vector.broadcast %201 : vector<1x32xf32> to vector<16x32xf32>
    %233 = arith.addf %231, %232 : vector<16x32xf32>
    %234 = vector.extract_strided_slice %225 {offsets = [0, 0], sizes = [16, 8], strides = [1, 1]} : vector<16x32xf32> to vector<16x8xf32>
    %235 = arith.truncf %234 : vector<16x8xf32> to vector<16x8xbf16>
    %236 = vector.extract_strided_slice %229 {offsets = [0, 0], sizes = [16, 8], strides = [1, 1]} : vector<16x32xf32> to vector<16x8xf32>
    %237 = arith.truncf %236 : vector<16x8xf32> to vector<16x8xbf16>
    %238 = vector.extract_strided_slice %233 {offsets = [0, 0], sizes = [16, 8], strides = [1, 1]} : vector<16x32xf32> to vector<16x8xf32>
    %239 = arith.truncf %238 : vector<16x8xf32> to vector<16x8xbf16>
    %cst_137 = arith.constant dense<0.000000e+00> : vector<16x16xf32>
    %240 = tpu.matmul %235, %237, %cst_137 {dimension_numbers = #tpu.dot_dimension_numbers<[1], [1], [0], [0], [0, 0, 1, 0], [], []>} : vector<16x8xbf16>, vector<16x8xbf16>, vector<16x16xf32> -> vector<16x16xf32>
    %241 = arith.addf %240, %0 : vector<16x16xf32>
    %cst_138 = arith.constant dense<0xFF800000> : vector<16xf32>
    %242 = vector.multi_reduction <maximumf>, %241, %cst_138 [1] : vector<16x16xf32> to vector<16xf32>
    %243 = vector.shape_cast %242 : vector<16xf32> to vector<16x1xf32>
    %244 = vector.broadcast %243 : vector<16x1xf32> to vector<16x16xf32>
    %245 = arith.subf %241, %244 : vector<16x16xf32>
    %246 = math.exp %245 : vector<16x16xf32>
    %cst_139 = arith.constant dense<0.000000e+00> : vector<16xf32>
    %247 = vector.multi_reduction <add>, %246, %cst_139 [1] : vector<16x16xf32> to vector<16xf32>
    %248 = vector.shape_cast %247 : vector<16xf32> to vector<16x1xf32>
    %249 = tpu.reciprocal %248 {approx = true} : vector<16x1xf32> -> vector<16x1xf32>
    %250 = vector.broadcast %249 : vector<16x1xf32> to vector<16x16xf32>
    %251 = arith.mulf %246, %250 : vector<16x16xf32>
    %252 = arith.truncf %251 : vector<16x16xf32> to vector<16x16xbf16>
    %cst_140 = arith.constant dense<0.000000e+00> : vector<16x8xf32>
    %253 = tpu.matmul %252, %239, %cst_140 {dimension_numbers = #tpu.dot_dimension_numbers<[1], [0], [0], [1], [0, 0, 1, 1], [], []>} : vector<16x16xbf16>, vector<16x8xbf16>, vector<16x8xf32> -> vector<16x8xf32>
    %254 = vector.extract_strided_slice %225 {offsets = [0, 8], sizes = [16, 8], strides = [1, 1]} : vector<16x32xf32> to vector<16x8xf32>
    %255 = arith.truncf %254 : vector<16x8xf32> to vector<16x8xbf16>
    %256 = vector.extract_strided_slice %229 {offsets = [0, 8], sizes = [16, 8], strides = [1, 1]} : vector<16x32xf32> to vector<16x8xf32>
    %257 = arith.truncf %256 : vector<16x8xf32> to vector<16x8xbf16>
    %258 = vector.extract_strided_slice %233 {offsets = [0, 8], sizes = [16, 8], strides = [1, 1]} : vector<16x32xf32> to vector<16x8xf32>
    %259 = arith.truncf %258 : vector<16x8xf32> to vector<16x8xbf16>
    %cst_141 = arith.constant dense<0.000000e+00> : vector<16x16xf32>
    %260 = tpu.matmul %255, %257, %cst_141 {dimension_numbers = #tpu.dot_dimension_numbers<[1], [1], [0], [0], [0, 0, 1, 0], [], []>} : vector<16x8xbf16>, vector<16x8xbf16>, vector<16x16xf32> -> vector<16x16xf32>
    %261 = arith.addf %260, %0 : vector<16x16xf32>
    %cst_142 = arith.constant dense<0xFF800000> : vector<16xf32>
    %262 = vector.multi_reduction <maximumf>, %261, %cst_142 [1] : vector<16x16xf32> to vector<16xf32>
    %263 = vector.shape_cast %262 : vector<16xf32> to vector<16x1xf32>
    %264 = vector.broadcast %263 : vector<16x1xf32> to vector<16x16xf32>
    %265 = arith.subf %261, %264 : vector<16x16xf32>
    %266 = math.exp %265 : vector<16x16xf32>
    %cst_143 = arith.constant dense<0.000000e+00> : vector<16xf32>
    %267 = vector.multi_reduction <add>, %266, %cst_143 [1] : vector<16x16xf32> to vector<16xf32>
    %268 = vector.shape_cast %267 : vector<16xf32> to vector<16x1xf32>
    %269 = tpu.reciprocal %268 {approx = true} : vector<16x1xf32> -> vector<16x1xf32>
    %270 = vector.broadcast %269 : vector<16x1xf32> to vector<16x16xf32>
    %271 = arith.mulf %266, %270 : vector<16x16xf32>
    %272 = arith.truncf %271 : vector<16x16xf32> to vector<16x16xbf16>
    %cst_144 = arith.constant dense<0.000000e+00> : vector<16x8xf32>
    %273 = tpu.matmul %272, %259, %cst_144 {dimension_numbers = #tpu.dot_dimension_numbers<[1], [0], [0], [1], [0, 0, 1, 1], [], []>} : vector<16x16xbf16>, vector<16x8xbf16>, vector<16x8xf32> -> vector<16x8xf32>
    %274 = vector.extract_strided_slice %225 {offsets = [0, 16], sizes = [16, 8], strides = [1, 1]} : vector<16x32xf32> to vector<16x8xf32>
    %275 = arith.truncf %274 : vector<16x8xf32> to vector<16x8xbf16>
    %276 = vector.extract_strided_slice %229 {offsets = [0, 16], sizes = [16, 8], strides = [1, 1]} : vector<16x32xf32> to vector<16x8xf32>
    %277 = arith.truncf %276 : vector<16x8xf32> to vector<16x8xbf16>
    %278 = vector.extract_strided_slice %233 {offsets = [0, 16], sizes = [16, 8], strides = [1, 1]} : vector<16x32xf32> to vector<16x8xf32>
    %279 = arith.truncf %278 : vector<16x8xf32> to vector<16x8xbf16>
    %cst_145 = arith.constant dense<0.000000e+00> : vector<16x16xf32>
    %280 = tpu.matmul %275, %277, %cst_145 {dimension_numbers = #tpu.dot_dimension_numbers<[1], [1], [0], [0], [0, 0, 1, 0], [], []>} : vector<16x8xbf16>, vector<16x8xbf16>, vector<16x16xf32> -> vector<16x16xf32>
    %281 = arith.addf %280, %0 : vector<16x16xf32>
    %cst_146 = arith.constant dense<0xFF800000> : vector<16xf32>
    %282 = vector.multi_reduction <maximumf>, %281, %cst_146 [1] : vector<16x16xf32> to vector<16xf32>
    %283 = vector.shape_cast %282 : vector<16xf32> to vector<16x1xf32>
    %284 = vector.broadcast %283 : vector<16x1xf32> to vector<16x16xf32>
    %285 = arith.subf %281, %284 : vector<16x16xf32>
    %286 = math.exp %285 : vector<16x16xf32>
    %cst_147 = arith.constant dense<0.000000e+00> : vector<16xf32>
    %287 = vector.multi_reduction <add>, %286, %cst_147 [1] : vector<16x16xf32> to vector<16xf32>
    %288 = vector.shape_cast %287 : vector<16xf32> to vector<16x1xf32>
    %289 = tpu.reciprocal %288 {approx = true} : vector<16x1xf32> -> vector<16x1xf32>
    %290 = vector.broadcast %289 : vector<16x1xf32> to vector<16x16xf32>
    %291 = arith.mulf %286, %290 : vector<16x16xf32>
    %292 = arith.truncf %291 : vector<16x16xf32> to vector<16x16xbf16>
    %cst_148 = arith.constant dense<0.000000e+00> : vector<16x8xf32>
    %293 = tpu.matmul %292, %279, %cst_148 {dimension_numbers = #tpu.dot_dimension_numbers<[1], [0], [0], [1], [0, 0, 1, 1], [], []>} : vector<16x16xbf16>, vector<16x8xbf16>, vector<16x8xf32> -> vector<16x8xf32>
    %294 = vector.extract_strided_slice %225 {offsets = [0, 24], sizes = [16, 8], strides = [1, 1]} : vector<16x32xf32> to vector<16x8xf32>
    %295 = arith.truncf %294 : vector<16x8xf32> to vector<16x8xbf16>
    %296 = vector.extract_strided_slice %229 {offsets = [0, 24], sizes = [16, 8], strides = [1, 1]} : vector<16x32xf32> to vector<16x8xf32>
    %297 = arith.truncf %296 : vector<16x8xf32> to vector<16x8xbf16>
    %298 = vector.extract_strided_slice %233 {offsets = [0, 24], sizes = [16, 8], strides = [1, 1]} : vector<16x32xf32> to vector<16x8xf32>
    %299 = arith.truncf %298 : vector<16x8xf32> to vector<16x8xbf16>
    %cst_149 = arith.constant dense<0.000000e+00> : vector<16x16xf32>
    %300 = tpu.matmul %295, %297, %cst_149 {dimension_numbers = #tpu.dot_dimension_numbers<[1], [1], [0], [0], [0, 0, 1, 0], [], []>} : vector<16x8xbf16>, vector<16x8xbf16>, vector<16x16xf32> -> vector<16x16xf32>
    %301 = arith.addf %300, %0 : vector<16x16xf32>
    %cst_150 = arith.constant dense<0xFF800000> : vector<16xf32>
    %302 = vector.multi_reduction <maximumf>, %301, %cst_150 [1] : vector<16x16xf32> to vector<16xf32>
    %303 = vector.shape_cast %302 : vector<16xf32> to vector<16x1xf32>
    %304 = vector.broadcast %303 : vector<16x1xf32> to vector<16x16xf32>
    %305 = arith.subf %301, %304 : vector<16x16xf32>
    %306 = math.exp %305 : vector<16x16xf32>
    %cst_151 = arith.constant dense<0.000000e+00> : vector<16xf32>
    %307 = vector.multi_reduction <add>, %306, %cst_151 [1] : vector<16x16xf32> to vector<16xf32>
    %308 = vector.shape_cast %307 : vector<16xf32> to vector<16x1xf32>
    %309 = tpu.reciprocal %308 {approx = true} : vector<16x1xf32> -> vector<16x1xf32>
    %310 = vector.broadcast %309 : vector<16x1xf32> to vector<16x16xf32>
    %311 = arith.mulf %306, %310 : vector<16x16xf32>
    %312 = arith.truncf %311 : vector<16x16xf32> to vector<16x16xbf16>
    %cst_152 = arith.constant dense<0.000000e+00> : vector<16x8xf32>
    %313 = tpu.matmul %312, %299, %cst_152 {dimension_numbers = #tpu.dot_dimension_numbers<[1], [0], [0], [1], [0, 0, 1, 1], [], []>} : vector<16x16xbf16>, vector<16x8xbf16>, vector<16x8xf32> -> vector<16x8xf32>
    %314 = tpu.concatenate %253, %273, %293, %313 in 1 : vector<16x8xf32>, vector<16x8xf32>, vector<16x8xf32>, vector<16x8xf32> -> vector<16x32xf32>
    %315 = arith.truncf %314 : vector<16x32xf32> to vector<16x32xbf16>
    %cst_153 = arith.constant dense<0.000000e+00> : vector<16x32xf32>
    %316 = tpu.matmul %315, %203, %cst_153 {dimension_numbers = #tpu.dot_dimension_numbers<[1], [0], [0], [1], [0, 0, 1, 1], [], []>} : vector<16x32xbf16>, vector<32x32xbf16>, vector<16x32xf32> -> vector<16x32xf32>
    %317 = vector.broadcast %205 : vector<1x32xf32> to vector<16x32xf32>
    %318 = arith.addf %316, %317 : vector<16x32xf32>
    %319 = arith.addf %189, %318 : vector<16x32xf32>
    %cst_154 = arith.constant dense<0.000000e+00> : vector<16xf32>
    %320 = vector.multi_reduction <add>, %319, %cst_154 [1] : vector<16x32xf32> to vector<16xf32>
    %321 = vector.shape_cast %320 : vector<16xf32> to vector<16x1xf32>
    %cst_155 = arith.constant 3.200000e+01 : f32
    %322 = vector.broadcast %cst_155 : f32 to vector<16x1xf32>
    %323 = arith.divf %321, %322 : vector<16x1xf32>
    %324 = vector.broadcast %323 : vector<16x1xf32> to vector<16x32xf32>
    %325 = arith.subf %319, %324 : vector<16x32xf32>
    %326 = arith.mulf %325, %325 : vector<16x32xf32>
    %cst_156 = arith.constant dense<0.000000e+00> : vector<16xf32>
    %327 = vector.multi_reduction <add>, %326, %cst_156 [1] : vector<16x32xf32> to vector<16xf32>
    %328 = vector.shape_cast %327 : vector<16xf32> to vector<16x1xf32>
    %cst_157 = arith.constant 3.200000e+01 : f32
    %329 = vector.broadcast %cst_157 : f32 to vector<16x1xf32>
    %330 = arith.divf %328, %329 : vector<16x1xf32>
    %331 = vector.broadcast %323 : vector<16x1xf32> to vector<16x32xf32>
    %332 = arith.subf %319, %331 : vector<16x32xf32>
    %cst_158 = arith.constant 9.99999974E-6 : f32
    %333 = vector.broadcast %cst_158 : f32 to vector<16x1xf32>
    %334 = arith.addf %330, %333 : vector<16x1xf32>
    %335 = math.rsqrt %334 : vector<16x1xf32>
    %336 = vector.broadcast %335 : vector<16x1xf32> to vector<16x32xf32>
    %337 = arith.mulf %332, %336 : vector<16x32xf32>
    %338 = vector.broadcast %207 : vector<1x32xf32> to vector<16x32xf32>
    %339 = arith.mulf %337, %338 : vector<16x32xf32>
    %340 = vector.broadcast %209 : vector<1x32xf32> to vector<16x32xf32>
    %341 = arith.addf %339, %340 : vector<16x32xf32>
    %342 = arith.truncf %341 : vector<16x32xf32> to vector<16x32xbf16>
    %cst_159 = arith.constant dense<0.000000e+00> : vector<16x64xf32>
    %343 = tpu.matmul %342, %211, %cst_159 {dimension_numbers = #tpu.dot_dimension_numbers<[1], [0], [0], [1], [0, 0, 1, 1], [], []>} : vector<16x32xbf16>, vector<32x64xbf16>, vector<16x64xf32> -> vector<16x64xf32>
    %344 = vector.broadcast %213 : vector<1x64xf32> to vector<16x64xf32>
    %345 = arith.addf %343, %344 : vector<16x64xf32>
    %cst_160 = arith.constant 0.000000e+00 : f32
    %346 = vector.broadcast %cst_160 : f32 to vector<16x64xf32>
    %347 = arith.maximumf %345, %346 : vector<16x64xf32>
    %348 = arith.truncf %347 : vector<16x64xf32> to vector<16x64xbf16>
    %cst_161 = arith.constant dense<0.000000e+00> : vector<16x32xf32>
    %349 = tpu.matmul %348, %215, %cst_161 {dimension_numbers = #tpu.dot_dimension_numbers<[1], [0], [0], [1], [0, 0, 1, 1], [], []>} : vector<16x64xbf16>, vector<64x32xbf16>, vector<16x32xf32> -> vector<16x32xf32>
    %350 = vector.broadcast %217 : vector<1x32xf32> to vector<16x32xf32>
    %351 = arith.addf %349, %350 : vector<16x32xf32>
    %352 = arith.addf %341, %351 : vector<16x32xf32>
    %cst_162 = arith.constant dense<0.000000e+00> : vector<16xf32>
    %353 = vector.multi_reduction <add>, %352, %cst_162 [1] : vector<16x32xf32> to vector<16xf32>
    %354 = vector.shape_cast %353 : vector<16xf32> to vector<16x1xf32>
    %cst_163 = arith.constant 3.200000e+01 : f32
    %355 = vector.broadcast %cst_163 : f32 to vector<16x1xf32>
    %356 = arith.divf %354, %355 : vector<16x1xf32>
    %357 = vector.broadcast %356 : vector<16x1xf32> to vector<16x32xf32>
    %358 = arith.subf %352, %357 : vector<16x32xf32>
    %359 = arith.mulf %358, %358 : vector<16x32xf32>
    %cst_164 = arith.constant dense<0.000000e+00> : vector<16xf32>
    %360 = vector.multi_reduction <add>, %359, %cst_164 [1] : vector<16x32xf32> to vector<16xf32>
    %361 = vector.shape_cast %360 : vector<16xf32> to vector<16x1xf32>
    %cst_165 = arith.constant 3.200000e+01 : f32
    %362 = vector.broadcast %cst_165 : f32 to vector<16x1xf32>
    %363 = arith.divf %361, %362 : vector<16x1xf32>
    %364 = vector.broadcast %356 : vector<16x1xf32> to vector<16x32xf32>
    %365 = arith.subf %352, %364 : vector<16x32xf32>
    %cst_166 = arith.constant 9.99999974E-6 : f32
    %366 = vector.broadcast %cst_166 : f32 to vector<16x1xf32>
    %367 = arith.addf %363, %366 : vector<16x1xf32>
    %368 = math.rsqrt %367 : vector<16x1xf32>
    %369 = vector.broadcast %368 : vector<16x1xf32> to vector<16x32xf32>
    %370 = arith.mulf %365, %369 : vector<16x32xf32>
    %371 = vector.broadcast %219 : vector<1x32xf32> to vector<16x32xf32>
    %372 = arith.mulf %370, %371 : vector<16x32xf32>
    %373 = vector.broadcast %221 : vector<1x32xf32> to vector<16x32xf32>
    %374 = arith.addf %372, %373 : vector<16x32xf32>
    %c0_167 = arith.constant 0 : index
    %c0_168 = arith.constant 0 : index
    %375 = vector.load %arg2[%c0_167, %c0_168] : memref<12x32xbf16, #tpu.memory_space<vmem>>, vector<12x32xbf16>
    %376 = arith.extf %375 : vector<12x32xbf16> to vector<12x32xf32>
    %c0_169 = arith.constant 0 : index
    %c0_170 = arith.constant 0 : index
    %c0_171 = arith.constant 0 : index
    %377 = vector.load %arg22[%c0_169, %c0_170, %c0_171] : memref<2x32x32xbf16, #tpu.memory_space<vmem>>, vector<1x32x32xbf16>
    %378 = vector.shape_cast %377 : vector<1x32x32xbf16> to vector<32x32xbf16>
    %c0_172 = arith.constant 0 : index
    %c0_173 = arith.constant 0 : index
    %c0_174 = arith.constant 0 : index
    %379 = vector.load %arg23[%c0_172, %c0_173, %c0_174] : memref<2x32x32xbf16, #tpu.memory_space<vmem>>, vector<1x32x32xbf16>
    %380 = vector.shape_cast %379 : vector<1x32x32xbf16> to vector<32x32xbf16>
    %c0_175 = arith.constant 0 : index
    %c0_176 = arith.constant 0 : index
    %c0_177 = arith.constant 0 : index
    %381 = vector.load %arg24[%c0_175, %c0_176, %c0_177] : memref<2x32x32xbf16, #tpu.memory_space<vmem>>, vector<1x32x32xbf16>
    %382 = vector.shape_cast %381 : vector<1x32x32xbf16> to vector<32x32xbf16>
    %c0_178 = arith.constant 0 : index
    %c0_179 = arith.constant 0 : index
    %c0_180 = arith.constant 0 : index
    %383 = vector.load %arg25[%c0_178, %c0_179, %c0_180] : memref<2x1x32xf32, #tpu.memory_space<vmem>>, vector<1x1x32xf32>
    %384 = vector.shape_cast %383 : vector<1x1x32xf32> to vector<1x32xf32>
    %c0_181 = arith.constant 0 : index
    %c0_182 = arith.constant 0 : index
    %c0_183 = arith.constant 0 : index
    %385 = vector.load %arg26[%c0_181, %c0_182, %c0_183] : memref<2x1x32xf32, #tpu.memory_space<vmem>>, vector<1x1x32xf32>
    %386 = vector.shape_cast %385 : vector<1x1x32xf32> to vector<1x32xf32>
    %c0_184 = arith.constant 0 : index
    %c0_185 = arith.constant 0 : index
    %c0_186 = arith.constant 0 : index
    %387 = vector.load %arg27[%c0_184, %c0_185, %c0_186] : memref<2x1x32xf32, #tpu.memory_space<vmem>>, vector<1x1x32xf32>
    %388 = vector.shape_cast %387 : vector<1x1x32xf32> to vector<1x32xf32>
    %c0_187 = arith.constant 0 : index
    %c0_188 = arith.constant 0 : index
    %c0_189 = arith.constant 0 : index
    %389 = vector.load %arg28[%c0_187, %c0_188, %c0_189] : memref<2x32x32xbf16, #tpu.memory_space<vmem>>, vector<1x32x32xbf16>
    %390 = vector.shape_cast %389 : vector<1x32x32xbf16> to vector<32x32xbf16>
    %c0_190 = arith.constant 0 : index
    %c0_191 = arith.constant 0 : index
    %c0_192 = arith.constant 0 : index
    %391 = vector.load %arg29[%c0_190, %c0_191, %c0_192] : memref<2x1x32xf32, #tpu.memory_space<vmem>>, vector<1x1x32xf32>
    %392 = vector.shape_cast %391 : vector<1x1x32xf32> to vector<1x32xf32>
    %c0_193 = arith.constant 0 : index
    %c0_194 = arith.constant 0 : index
    %c0_195 = arith.constant 0 : index
    %393 = vector.load %arg30[%c0_193, %c0_194, %c0_195] : memref<2x1x32xf32, #tpu.memory_space<vmem>>, vector<1x1x32xf32>
    %394 = vector.shape_cast %393 : vector<1x1x32xf32> to vector<1x32xf32>
    %c0_196 = arith.constant 0 : index
    %c0_197 = arith.constant 0 : index
    %c0_198 = arith.constant 0 : index
    %395 = vector.load %arg31[%c0_196, %c0_197, %c0_198] : memref<2x1x32xf32, #tpu.memory_space<vmem>>, vector<1x1x32xf32>
    %396 = vector.shape_cast %395 : vector<1x1x32xf32> to vector<1x32xf32>
    %c0_199 = arith.constant 0 : index
    %c0_200 = arith.constant 0 : index
    %c0_201 = arith.constant 0 : index
    %397 = vector.load %arg32[%c0_199, %c0_200, %c0_201] : memref<2x32x32xbf16, #tpu.memory_space<vmem>>, vector<1x32x32xbf16>
    %398 = vector.shape_cast %397 : vector<1x32x32xbf16> to vector<32x32xbf16>
    %c0_202 = arith.constant 0 : index
    %c0_203 = arith.constant 0 : index
    %c0_204 = arith.constant 0 : index
    %399 = vector.load %arg33[%c0_202, %c0_203, %c0_204] : memref<2x32x32xbf16, #tpu.memory_space<vmem>>, vector<1x32x32xbf16>
    %400 = vector.shape_cast %399 : vector<1x32x32xbf16> to vector<32x32xbf16>
    %c0_205 = arith.constant 0 : index
    %c0_206 = arith.constant 0 : index
    %c0_207 = arith.constant 0 : index
    %401 = vector.load %arg34[%c0_205, %c0_206, %c0_207] : memref<2x32x32xbf16, #tpu.memory_space<vmem>>, vector<1x32x32xbf16>
    %402 = vector.shape_cast %401 : vector<1x32x32xbf16> to vector<32x32xbf16>
    %c0_208 = arith.constant 0 : index
    %c0_209 = arith.constant 0 : index
    %c0_210 = arith.constant 0 : index
    %403 = vector.load %arg35[%c0_208, %c0_209, %c0_210] : memref<2x1x32xf32, #tpu.memory_space<vmem>>, vector<1x1x32xf32>
    %404 = vector.shape_cast %403 : vector<1x1x32xf32> to vector<1x32xf32>
    %c0_211 = arith.constant 0 : index
    %c0_212 = arith.constant 0 : index
    %c0_213 = arith.constant 0 : index
    %405 = vector.load %arg36[%c0_211, %c0_212, %c0_213] : memref<2x1x32xf32, #tpu.memory_space<vmem>>, vector<1x1x32xf32>
    %406 = vector.shape_cast %405 : vector<1x1x32xf32> to vector<1x32xf32>
    %c0_214 = arith.constant 0 : index
    %c0_215 = arith.constant 0 : index
    %c0_216 = arith.constant 0 : index
    %407 = vector.load %arg37[%c0_214, %c0_215, %c0_216] : memref<2x1x32xf32, #tpu.memory_space<vmem>>, vector<1x1x32xf32>
    %408 = vector.shape_cast %407 : vector<1x1x32xf32> to vector<1x32xf32>
    %c0_217 = arith.constant 0 : index
    %c0_218 = arith.constant 0 : index
    %c0_219 = arith.constant 0 : index
    %409 = vector.load %arg38[%c0_217, %c0_218, %c0_219] : memref<2x32x32xbf16, #tpu.memory_space<vmem>>, vector<1x32x32xbf16>
    %410 = vector.shape_cast %409 : vector<1x32x32xbf16> to vector<32x32xbf16>
    %c0_220 = arith.constant 0 : index
    %c0_221 = arith.constant 0 : index
    %c0_222 = arith.constant 0 : index
    %411 = vector.load %arg39[%c0_220, %c0_221, %c0_222] : memref<2x1x32xf32, #tpu.memory_space<vmem>>, vector<1x1x32xf32>
    %412 = vector.shape_cast %411 : vector<1x1x32xf32> to vector<1x32xf32>
    %c0_223 = arith.constant 0 : index
    %c0_224 = arith.constant 0 : index
    %c0_225 = arith.constant 0 : index
    %413 = vector.load %arg40[%c0_223, %c0_224, %c0_225] : memref<2x1x32xf32, #tpu.memory_space<vmem>>, vector<1x1x32xf32>
    %414 = vector.shape_cast %413 : vector<1x1x32xf32> to vector<1x32xf32>
    %c0_226 = arith.constant 0 : index
    %c0_227 = arith.constant 0 : index
    %c0_228 = arith.constant 0 : index
    %415 = vector.load %arg41[%c0_226, %c0_227, %c0_228] : memref<2x1x32xf32, #tpu.memory_space<vmem>>, vector<1x1x32xf32>
    %416 = vector.shape_cast %415 : vector<1x1x32xf32> to vector<1x32xf32>
    %c0_229 = arith.constant 0 : index
    %c0_230 = arith.constant 0 : index
    %c0_231 = arith.constant 0 : index
    %417 = vector.load %arg42[%c0_229, %c0_230, %c0_231] : memref<2x32x64xbf16, #tpu.memory_space<vmem>>, vector<1x32x64xbf16>
    %418 = vector.shape_cast %417 : vector<1x32x64xbf16> to vector<32x64xbf16>
    %c0_232 = arith.constant 0 : index
    %c0_233 = arith.constant 0 : index
    %c0_234 = arith.constant 0 : index
    %419 = vector.load %arg43[%c0_232, %c0_233, %c0_234] : memref<2x1x64xf32, #tpu.memory_space<vmem>>, vector<1x1x64xf32>
    %420 = vector.shape_cast %419 : vector<1x1x64xf32> to vector<1x64xf32>
    %c0_235 = arith.constant 0 : index
    %c0_236 = arith.constant 0 : index
    %c0_237 = arith.constant 0 : index
    %421 = vector.load %arg44[%c0_235, %c0_236, %c0_237] : memref<2x64x32xbf16, #tpu.memory_space<vmem>>, vector<1x64x32xbf16>
    %422 = vector.shape_cast %421 : vector<1x64x32xbf16> to vector<64x32xbf16>
    %c0_238 = arith.constant 0 : index
    %c0_239 = arith.constant 0 : index
    %c0_240 = arith.constant 0 : index
    %423 = vector.load %arg45[%c0_238, %c0_239, %c0_240] : memref<2x1x32xf32, #tpu.memory_space<vmem>>, vector<1x1x32xf32>
    %424 = vector.shape_cast %423 : vector<1x1x32xf32> to vector<1x32xf32>
    %c0_241 = arith.constant 0 : index
    %c0_242 = arith.constant 0 : index
    %c0_243 = arith.constant 0 : index
    %425 = vector.load %arg46[%c0_241, %c0_242, %c0_243] : memref<2x1x32xf32, #tpu.memory_space<vmem>>, vector<1x1x32xf32>
    %426 = vector.shape_cast %425 : vector<1x1x32xf32> to vector<1x32xf32>
    %c0_244 = arith.constant 0 : index
    %c0_245 = arith.constant 0 : index
    %c0_246 = arith.constant 0 : index
    %427 = vector.load %arg47[%c0_244, %c0_245, %c0_246] : memref<2x1x32xf32, #tpu.memory_space<vmem>>, vector<1x1x32xf32>
    %428 = vector.shape_cast %427 : vector<1x1x32xf32> to vector<1x32xf32>
    %429 = arith.truncf %376 : vector<12x32xf32> to vector<12x32xbf16>
    %cst_247 = arith.constant dense<0.000000e+00> : vector<12x32xf32>
    %430 = tpu.matmul %429, %378, %cst_247 {dimension_numbers = #tpu.dot_dimension_numbers<[1], [0], [0], [1], [0, 0, 1, 1], [], []>} : vector<12x32xbf16>, vector<32x32xbf16>, vector<12x32xf32> -> vector<12x32xf32>
    %431 = vector.broadcast %384 : vector<1x32xf32> to vector<12x32xf32>
    %432 = arith.addf %430, %431 : vector<12x32xf32>
    %433 = arith.truncf %376 : vector<12x32xf32> to vector<12x32xbf16>
    %cst_248 = arith.constant dense<0.000000e+00> : vector<12x32xf32>
    %434 = tpu.matmul %433, %380, %cst_248 {dimension_numbers = #tpu.dot_dimension_numbers<[1], [0], [0], [1], [0, 0, 1, 1], [], []>} : vector<12x32xbf16>, vector<32x32xbf16>, vector<12x32xf32> -> vector<12x32xf32>
    %435 = vector.broadcast %386 : vector<1x32xf32> to vector<12x32xf32>
    %436 = arith.addf %434, %435 : vector<12x32xf32>
    %437 = arith.truncf %376 : vector<12x32xf32> to vector<12x32xbf16>
    %cst_249 = arith.constant dense<0.000000e+00> : vector<12x32xf32>
    %438 = tpu.matmul %437, %382, %cst_249 {dimension_numbers = #tpu.dot_dimension_numbers<[1], [0], [0], [1], [0, 0, 1, 1], [], []>} : vector<12x32xbf16>, vector<32x32xbf16>, vector<12x32xf32> -> vector<12x32xf32>
    %439 = vector.broadcast %388 : vector<1x32xf32> to vector<12x32xf32>
    %440 = arith.addf %438, %439 : vector<12x32xf32>
    %441 = vector.extract_strided_slice %432 {offsets = [0, 0], sizes = [12, 8], strides = [1, 1]} : vector<12x32xf32> to vector<12x8xf32>
    %442 = arith.truncf %441 : vector<12x8xf32> to vector<12x8xbf16>
    %443 = vector.extract_strided_slice %436 {offsets = [0, 0], sizes = [12, 8], strides = [1, 1]} : vector<12x32xf32> to vector<12x8xf32>
    %444 = arith.truncf %443 : vector<12x8xf32> to vector<12x8xbf16>
    %445 = vector.extract_strided_slice %440 {offsets = [0, 0], sizes = [12, 8], strides = [1, 1]} : vector<12x32xf32> to vector<12x8xf32>
    %446 = arith.truncf %445 : vector<12x8xf32> to vector<12x8xbf16>
    %cst_250 = arith.constant dense<0.000000e+00> : vector<12x12xf32>
    %447 = tpu.matmul %442, %444, %cst_250 {dimension_numbers = #tpu.dot_dimension_numbers<[1], [1], [0], [0], [0, 0, 1, 0], [], []>} : vector<12x8xbf16>, vector<12x8xbf16>, vector<12x12xf32> -> vector<12x12xf32>
    %448 = arith.addf %447, %1 : vector<12x12xf32>
    %cst_251 = arith.constant dense<0xFF800000> : vector<12xf32>
    %449 = vector.multi_reduction <maximumf>, %448, %cst_251 [1] : vector<12x12xf32> to vector<12xf32>
    %450 = vector.shape_cast %449 : vector<12xf32> to vector<12x1xf32>
    %451 = vector.broadcast %450 : vector<12x1xf32> to vector<12x12xf32>
    %452 = arith.subf %448, %451 : vector<12x12xf32>
    %453 = math.exp %452 : vector<12x12xf32>
    %cst_252 = arith.constant dense<0.000000e+00> : vector<12xf32>
    %454 = vector.multi_reduction <add>, %453, %cst_252 [1] : vector<12x12xf32> to vector<12xf32>
    %455 = vector.shape_cast %454 : vector<12xf32> to vector<12x1xf32>
    %456 = tpu.reciprocal %455 {approx = true} : vector<12x1xf32> -> vector<12x1xf32>
    %457 = vector.broadcast %456 : vector<12x1xf32> to vector<12x12xf32>
    %458 = arith.mulf %453, %457 : vector<12x12xf32>
    %459 = arith.truncf %458 : vector<12x12xf32> to vector<12x12xbf16>
    %cst_253 = arith.constant dense<0.000000e+00> : vector<12x8xf32>
    %460 = tpu.matmul %459, %446, %cst_253 {dimension_numbers = #tpu.dot_dimension_numbers<[1], [0], [0], [1], [0, 0, 1, 1], [], []>} : vector<12x12xbf16>, vector<12x8xbf16>, vector<12x8xf32> -> vector<12x8xf32>
    %461 = vector.extract_strided_slice %432 {offsets = [0, 8], sizes = [12, 8], strides = [1, 1]} : vector<12x32xf32> to vector<12x8xf32>
    %462 = arith.truncf %461 : vector<12x8xf32> to vector<12x8xbf16>
    %463 = vector.extract_strided_slice %436 {offsets = [0, 8], sizes = [12, 8], strides = [1, 1]} : vector<12x32xf32> to vector<12x8xf32>
    %464 = arith.truncf %463 : vector<12x8xf32> to vector<12x8xbf16>
    %465 = vector.extract_strided_slice %440 {offsets = [0, 8], sizes = [12, 8], strides = [1, 1]} : vector<12x32xf32> to vector<12x8xf32>
    %466 = arith.truncf %465 : vector<12x8xf32> to vector<12x8xbf16>
    %cst_254 = arith.constant dense<0.000000e+00> : vector<12x12xf32>
    %467 = tpu.matmul %462, %464, %cst_254 {dimension_numbers = #tpu.dot_dimension_numbers<[1], [1], [0], [0], [0, 0, 1, 0], [], []>} : vector<12x8xbf16>, vector<12x8xbf16>, vector<12x12xf32> -> vector<12x12xf32>
    %468 = arith.addf %467, %1 : vector<12x12xf32>
    %cst_255 = arith.constant dense<0xFF800000> : vector<12xf32>
    %469 = vector.multi_reduction <maximumf>, %468, %cst_255 [1] : vector<12x12xf32> to vector<12xf32>
    %470 = vector.shape_cast %469 : vector<12xf32> to vector<12x1xf32>
    %471 = vector.broadcast %470 : vector<12x1xf32> to vector<12x12xf32>
    %472 = arith.subf %468, %471 : vector<12x12xf32>
    %473 = math.exp %472 : vector<12x12xf32>
    %cst_256 = arith.constant dense<0.000000e+00> : vector<12xf32>
    %474 = vector.multi_reduction <add>, %473, %cst_256 [1] : vector<12x12xf32> to vector<12xf32>
    %475 = vector.shape_cast %474 : vector<12xf32> to vector<12x1xf32>
    %476 = tpu.reciprocal %475 {approx = true} : vector<12x1xf32> -> vector<12x1xf32>
    %477 = vector.broadcast %476 : vector<12x1xf32> to vector<12x12xf32>
    %478 = arith.mulf %473, %477 : vector<12x12xf32>
    %479 = arith.truncf %478 : vector<12x12xf32> to vector<12x12xbf16>
    %cst_257 = arith.constant dense<0.000000e+00> : vector<12x8xf32>
    %480 = tpu.matmul %479, %466, %cst_257 {dimension_numbers = #tpu.dot_dimension_numbers<[1], [0], [0], [1], [0, 0, 1, 1], [], []>} : vector<12x12xbf16>, vector<12x8xbf16>, vector<12x8xf32> -> vector<12x8xf32>
    %481 = vector.extract_strided_slice %432 {offsets = [0, 16], sizes = [12, 8], strides = [1, 1]} : vector<12x32xf32> to vector<12x8xf32>
    %482 = arith.truncf %481 : vector<12x8xf32> to vector<12x8xbf16>
    %483 = vector.extract_strided_slice %436 {offsets = [0, 16], sizes = [12, 8], strides = [1, 1]} : vector<12x32xf32> to vector<12x8xf32>
    %484 = arith.truncf %483 : vector<12x8xf32> to vector<12x8xbf16>
    %485 = vector.extract_strided_slice %440 {offsets = [0, 16], sizes = [12, 8], strides = [1, 1]} : vector<12x32xf32> to vector<12x8xf32>
    %486 = arith.truncf %485 : vector<12x8xf32> to vector<12x8xbf16>
    %cst_258 = arith.constant dense<0.000000e+00> : vector<12x12xf32>
    %487 = tpu.matmul %482, %484, %cst_258 {dimension_numbers = #tpu.dot_dimension_numbers<[1], [1], [0], [0], [0, 0, 1, 0], [], []>} : vector<12x8xbf16>, vector<12x8xbf16>, vector<12x12xf32> -> vector<12x12xf32>
    %488 = arith.addf %487, %1 : vector<12x12xf32>
    %cst_259 = arith.constant dense<0xFF800000> : vector<12xf32>
    %489 = vector.multi_reduction <maximumf>, %488, %cst_259 [1] : vector<12x12xf32> to vector<12xf32>
    %490 = vector.shape_cast %489 : vector<12xf32> to vector<12x1xf32>
    %491 = vector.broadcast %490 : vector<12x1xf32> to vector<12x12xf32>
    %492 = arith.subf %488, %491 : vector<12x12xf32>
    %493 = math.exp %492 : vector<12x12xf32>
    %cst_260 = arith.constant dense<0.000000e+00> : vector<12xf32>
    %494 = vector.multi_reduction <add>, %493, %cst_260 [1] : vector<12x12xf32> to vector<12xf32>
    %495 = vector.shape_cast %494 : vector<12xf32> to vector<12x1xf32>
    %496 = tpu.reciprocal %495 {approx = true} : vector<12x1xf32> -> vector<12x1xf32>
    %497 = vector.broadcast %496 : vector<12x1xf32> to vector<12x12xf32>
    %498 = arith.mulf %493, %497 : vector<12x12xf32>
    %499 = arith.truncf %498 : vector<12x12xf32> to vector<12x12xbf16>
    %cst_261 = arith.constant dense<0.000000e+00> : vector<12x8xf32>
    %500 = tpu.matmul %499, %486, %cst_261 {dimension_numbers = #tpu.dot_dimension_numbers<[1], [0], [0], [1], [0, 0, 1, 1], [], []>} : vector<12x12xbf16>, vector<12x8xbf16>, vector<12x8xf32> -> vector<12x8xf32>
    %501 = vector.extract_strided_slice %432 {offsets = [0, 24], sizes = [12, 8], strides = [1, 1]} : vector<12x32xf32> to vector<12x8xf32>
    %502 = arith.truncf %501 : vector<12x8xf32> to vector<12x8xbf16>
    %503 = vector.extract_strided_slice %436 {offsets = [0, 24], sizes = [12, 8], strides = [1, 1]} : vector<12x32xf32> to vector<12x8xf32>
    %504 = arith.truncf %503 : vector<12x8xf32> to vector<12x8xbf16>
    %505 = vector.extract_strided_slice %440 {offsets = [0, 24], sizes = [12, 8], strides = [1, 1]} : vector<12x32xf32> to vector<12x8xf32>
    %506 = arith.truncf %505 : vector<12x8xf32> to vector<12x8xbf16>
    %cst_262 = arith.constant dense<0.000000e+00> : vector<12x12xf32>
    %507 = tpu.matmul %502, %504, %cst_262 {dimension_numbers = #tpu.dot_dimension_numbers<[1], [1], [0], [0], [0, 0, 1, 0], [], []>} : vector<12x8xbf16>, vector<12x8xbf16>, vector<12x12xf32> -> vector<12x12xf32>
    %508 = arith.addf %507, %1 : vector<12x12xf32>
    %cst_263 = arith.constant dense<0xFF800000> : vector<12xf32>
    %509 = vector.multi_reduction <maximumf>, %508, %cst_263 [1] : vector<12x12xf32> to vector<12xf32>
    %510 = vector.shape_cast %509 : vector<12xf32> to vector<12x1xf32>
    %511 = vector.broadcast %510 : vector<12x1xf32> to vector<12x12xf32>
    %512 = arith.subf %508, %511 : vector<12x12xf32>
    %513 = math.exp %512 : vector<12x12xf32>
    %cst_264 = arith.constant dense<0.000000e+00> : vector<12xf32>
    %514 = vector.multi_reduction <add>, %513, %cst_264 [1] : vector<12x12xf32> to vector<12xf32>
    %515 = vector.shape_cast %514 : vector<12xf32> to vector<12x1xf32>
    %516 = tpu.reciprocal %515 {approx = true} : vector<12x1xf32> -> vector<12x1xf32>
    %517 = vector.broadcast %516 : vector<12x1xf32> to vector<12x12xf32>
    %518 = arith.mulf %513, %517 : vector<12x12xf32>
    %519 = arith.truncf %518 : vector<12x12xf32> to vector<12x12xbf16>
    %cst_265 = arith.constant dense<0.000000e+00> : vector<12x8xf32>
    %520 = tpu.matmul %519, %506, %cst_265 {dimension_numbers = #tpu.dot_dimension_numbers<[1], [0], [0], [1], [0, 0, 1, 1], [], []>} : vector<12x12xbf16>, vector<12x8xbf16>, vector<12x8xf32> -> vector<12x8xf32>
    %521 = tpu.concatenate %460, %480, %500, %520 in 1 : vector<12x8xf32>, vector<12x8xf32>, vector<12x8xf32>, vector<12x8xf32> -> vector<12x32xf32>
    %522 = arith.truncf %521 : vector<12x32xf32> to vector<12x32xbf16>
    %cst_266 = arith.constant dense<0.000000e+00> : vector<12x32xf32>
    %523 = tpu.matmul %522, %390, %cst_266 {dimension_numbers = #tpu.dot_dimension_numbers<[1], [0], [0], [1], [0, 0, 1, 1], [], []>} : vector<12x32xbf16>, vector<32x32xbf16>, vector<12x32xf32> -> vector<12x32xf32>
    %524 = vector.broadcast %392 : vector<1x32xf32> to vector<12x32xf32>
    %525 = arith.addf %523, %524 : vector<12x32xf32>
    %526 = arith.addf %376, %525 : vector<12x32xf32>
    %cst_267 = arith.constant dense<0.000000e+00> : vector<12xf32>
    %527 = vector.multi_reduction <add>, %526, %cst_267 [1] : vector<12x32xf32> to vector<12xf32>
    %528 = vector.shape_cast %527 : vector<12xf32> to vector<12x1xf32>
    %cst_268 = arith.constant 3.200000e+01 : f32
    %529 = vector.broadcast %cst_268 : f32 to vector<12x1xf32>
    %530 = arith.divf %528, %529 : vector<12x1xf32>
    %531 = vector.broadcast %530 : vector<12x1xf32> to vector<12x32xf32>
    %532 = arith.subf %526, %531 : vector<12x32xf32>
    %533 = arith.mulf %532, %532 : vector<12x32xf32>
    %cst_269 = arith.constant dense<0.000000e+00> : vector<12xf32>
    %534 = vector.multi_reduction <add>, %533, %cst_269 [1] : vector<12x32xf32> to vector<12xf32>
    %535 = vector.shape_cast %534 : vector<12xf32> to vector<12x1xf32>
    %cst_270 = arith.constant 3.200000e+01 : f32
    %536 = vector.broadcast %cst_270 : f32 to vector<12x1xf32>
    %537 = arith.divf %535, %536 : vector<12x1xf32>
    %538 = vector.broadcast %530 : vector<12x1xf32> to vector<12x32xf32>
    %539 = arith.subf %526, %538 : vector<12x32xf32>
    %cst_271 = arith.constant 9.99999974E-6 : f32
    %540 = vector.broadcast %cst_271 : f32 to vector<12x1xf32>
    %541 = arith.addf %537, %540 : vector<12x1xf32>
    %542 = math.rsqrt %541 : vector<12x1xf32>
    %543 = vector.broadcast %542 : vector<12x1xf32> to vector<12x32xf32>
    %544 = arith.mulf %539, %543 : vector<12x32xf32>
    %545 = vector.broadcast %394 : vector<1x32xf32> to vector<12x32xf32>
    %546 = arith.mulf %544, %545 : vector<12x32xf32>
    %547 = vector.broadcast %396 : vector<1x32xf32> to vector<12x32xf32>
    %548 = arith.addf %546, %547 : vector<12x32xf32>
    %549 = arith.truncf %548 : vector<12x32xf32> to vector<12x32xbf16>
    %cst_272 = arith.constant dense<0.000000e+00> : vector<12x32xf32>
    %550 = tpu.matmul %549, %398, %cst_272 {dimension_numbers = #tpu.dot_dimension_numbers<[1], [0], [0], [1], [0, 0, 1, 1], [], []>} : vector<12x32xbf16>, vector<32x32xbf16>, vector<12x32xf32> -> vector<12x32xf32>
    %551 = vector.broadcast %404 : vector<1x32xf32> to vector<12x32xf32>
    %552 = arith.addf %550, %551 : vector<12x32xf32>
    %553 = arith.truncf %374 : vector<16x32xf32> to vector<16x32xbf16>
    %cst_273 = arith.constant dense<0.000000e+00> : vector<16x32xf32>
    %554 = tpu.matmul %553, %400, %cst_273 {dimension_numbers = #tpu.dot_dimension_numbers<[1], [0], [0], [1], [0, 0, 1, 1], [], []>} : vector<16x32xbf16>, vector<32x32xbf16>, vector<16x32xf32> -> vector<16x32xf32>
    %555 = vector.broadcast %406 : vector<1x32xf32> to vector<16x32xf32>
    %556 = arith.addf %554, %555 : vector<16x32xf32>
    %557 = arith.truncf %374 : vector<16x32xf32> to vector<16x32xbf16>
    %cst_274 = arith.constant dense<0.000000e+00> : vector<16x32xf32>
    %558 = tpu.matmul %557, %402, %cst_274 {dimension_numbers = #tpu.dot_dimension_numbers<[1], [0], [0], [1], [0, 0, 1, 1], [], []>} : vector<16x32xbf16>, vector<32x32xbf16>, vector<16x32xf32> -> vector<16x32xf32>
    %559 = vector.broadcast %408 : vector<1x32xf32> to vector<16x32xf32>
    %560 = arith.addf %558, %559 : vector<16x32xf32>
    %561 = vector.extract_strided_slice %552 {offsets = [0, 0], sizes = [12, 8], strides = [1, 1]} : vector<12x32xf32> to vector<12x8xf32>
    %562 = arith.truncf %561 : vector<12x8xf32> to vector<12x8xbf16>
    %563 = vector.extract_strided_slice %556 {offsets = [0, 0], sizes = [16, 8], strides = [1, 1]} : vector<16x32xf32> to vector<16x8xf32>
    %564 = arith.truncf %563 : vector<16x8xf32> to vector<16x8xbf16>
    %565 = vector.extract_strided_slice %560 {offsets = [0, 0], sizes = [16, 8], strides = [1, 1]} : vector<16x32xf32> to vector<16x8xf32>
    %566 = arith.truncf %565 : vector<16x8xf32> to vector<16x8xbf16>
    %cst_275 = arith.constant dense<0.000000e+00> : vector<12x16xf32>
    %567 = tpu.matmul %562, %564, %cst_275 {dimension_numbers = #tpu.dot_dimension_numbers<[1], [1], [0], [0], [0, 0, 1, 0], [], []>} : vector<12x8xbf16>, vector<16x8xbf16>, vector<12x16xf32> -> vector<12x16xf32>
    %568 = arith.addf %567, %2 : vector<12x16xf32>
    %cst_276 = arith.constant dense<0xFF800000> : vector<12xf32>
    %569 = vector.multi_reduction <maximumf>, %568, %cst_276 [1] : vector<12x16xf32> to vector<12xf32>
    %570 = vector.shape_cast %569 : vector<12xf32> to vector<12x1xf32>
    %571 = vector.broadcast %570 : vector<12x1xf32> to vector<12x16xf32>
    %572 = arith.subf %568, %571 : vector<12x16xf32>
    %573 = math.exp %572 : vector<12x16xf32>
    %cst_277 = arith.constant dense<0.000000e+00> : vector<12xf32>
    %574 = vector.multi_reduction <add>, %573, %cst_277 [1] : vector<12x16xf32> to vector<12xf32>
    %575 = vector.shape_cast %574 : vector<12xf32> to vector<12x1xf32>
    %576 = tpu.reciprocal %575 {approx = true} : vector<12x1xf32> -> vector<12x1xf32>
    %577 = vector.broadcast %576 : vector<12x1xf32> to vector<12x16xf32>
    %578 = arith.mulf %573, %577 : vector<12x16xf32>
    %579 = arith.truncf %578 : vector<12x16xf32> to vector<12x16xbf16>
    %cst_278 = arith.constant dense<0.000000e+00> : vector<12x8xf32>
    %580 = tpu.matmul %579, %566, %cst_278 {dimension_numbers = #tpu.dot_dimension_numbers<[1], [0], [0], [1], [0, 0, 1, 1], [], []>} : vector<12x16xbf16>, vector<16x8xbf16>, vector<12x8xf32> -> vector<12x8xf32>
    %581 = vector.extract_strided_slice %552 {offsets = [0, 8], sizes = [12, 8], strides = [1, 1]} : vector<12x32xf32> to vector<12x8xf32>
    %582 = arith.truncf %581 : vector<12x8xf32> to vector<12x8xbf16>
    %583 = vector.extract_strided_slice %556 {offsets = [0, 8], sizes = [16, 8], strides = [1, 1]} : vector<16x32xf32> to vector<16x8xf32>
    %584 = arith.truncf %583 : vector<16x8xf32> to vector<16x8xbf16>
    %585 = vector.extract_strided_slice %560 {offsets = [0, 8], sizes = [16, 8], strides = [1, 1]} : vector<16x32xf32> to vector<16x8xf32>
    %586 = arith.truncf %585 : vector<16x8xf32> to vector<16x8xbf16>
    %cst_279 = arith.constant dense<0.000000e+00> : vector<12x16xf32>
    %587 = tpu.matmul %582, %584, %cst_279 {dimension_numbers = #tpu.dot_dimension_numbers<[1], [1], [0], [0], [0, 0, 1, 0], [], []>} : vector<12x8xbf16>, vector<16x8xbf16>, vector<12x16xf32> -> vector<12x16xf32>
    %588 = arith.addf %587, %2 : vector<12x16xf32>
    %cst_280 = arith.constant dense<0xFF800000> : vector<12xf32>
    %589 = vector.multi_reduction <maximumf>, %588, %cst_280 [1] : vector<12x16xf32> to vector<12xf32>
    %590 = vector.shape_cast %589 : vector<12xf32> to vector<12x1xf32>
    %591 = vector.broadcast %590 : vector<12x1xf32> to vector<12x16xf32>
    %592 = arith.subf %588, %591 : vector<12x16xf32>
    %593 = math.exp %592 : vector<12x16xf32>
    %cst_281 = arith.constant dense<0.000000e+00> : vector<12xf32>
    %594 = vector.multi_reduction <add>, %593, %cst_281 [1] : vector<12x16xf32> to vector<12xf32>
    %595 = vector.shape_cast %594 : vector<12xf32> to vector<12x1xf32>
    %596 = tpu.reciprocal %595 {approx = true} : vector<12x1xf32> -> vector<12x1xf32>
    %597 = vector.broadcast %596 : vector<12x1xf32> to vector<12x16xf32>
    %598 = arith.mulf %593, %597 : vector<12x16xf32>
    %599 = arith.truncf %598 : vector<12x16xf32> to vector<12x16xbf16>
    %cst_282 = arith.constant dense<0.000000e+00> : vector<12x8xf32>
    %600 = tpu.matmul %599, %586, %cst_282 {dimension_numbers = #tpu.dot_dimension_numbers<[1], [0], [0], [1], [0, 0, 1, 1], [], []>} : vector<12x16xbf16>, vector<16x8xbf16>, vector<12x8xf32> -> vector<12x8xf32>
    %601 = vector.extract_strided_slice %552 {offsets = [0, 16], sizes = [12, 8], strides = [1, 1]} : vector<12x32xf32> to vector<12x8xf32>
    %602 = arith.truncf %601 : vector<12x8xf32> to vector<12x8xbf16>
    %603 = vector.extract_strided_slice %556 {offsets = [0, 16], sizes = [16, 8], strides = [1, 1]} : vector<16x32xf32> to vector<16x8xf32>
    %604 = arith.truncf %603 : vector<16x8xf32> to vector<16x8xbf16>
    %605 = vector.extract_strided_slice %560 {offsets = [0, 16], sizes = [16, 8], strides = [1, 1]} : vector<16x32xf32> to vector<16x8xf32>
    %606 = arith.truncf %605 : vector<16x8xf32> to vector<16x8xbf16>
    %cst_283 = arith.constant dense<0.000000e+00> : vector<12x16xf32>
    %607 = tpu.matmul %602, %604, %cst_283 {dimension_numbers = #tpu.dot_dimension_numbers<[1], [1], [0], [0], [0, 0, 1, 0], [], []>} : vector<12x8xbf16>, vector<16x8xbf16>, vector<12x16xf32> -> vector<12x16xf32>
    %608 = arith.addf %607, %2 : vector<12x16xf32>
    %cst_284 = arith.constant dense<0xFF800000> : vector<12xf32>
    %609 = vector.multi_reduction <maximumf>, %608, %cst_284 [1] : vector<12x16xf32> to vector<12xf32>
    %610 = vector.shape_cast %609 : vector<12xf32> to vector<12x1xf32>
    %611 = vector.broadcast %610 : vector<12x1xf32> to vector<12x16xf32>
    %612 = arith.subf %608, %611 : vector<12x16xf32>
    %613 = math.exp %612 : vector<12x16xf32>
    %cst_285 = arith.constant dense<0.000000e+00> : vector<12xf32>
    %614 = vector.multi_reduction <add>, %613, %cst_285 [1] : vector<12x16xf32> to vector<12xf32>
    %615 = vector.shape_cast %614 : vector<12xf32> to vector<12x1xf32>
    %616 = tpu.reciprocal %615 {approx = true} : vector<12x1xf32> -> vector<12x1xf32>
    %617 = vector.broadcast %616 : vector<12x1xf32> to vector<12x16xf32>
    %618 = arith.mulf %613, %617 : vector<12x16xf32>
    %619 = arith.truncf %618 : vector<12x16xf32> to vector<12x16xbf16>
    %cst_286 = arith.constant dense<0.000000e+00> : vector<12x8xf32>
    %620 = tpu.matmul %619, %606, %cst_286 {dimension_numbers = #tpu.dot_dimension_numbers<[1], [0], [0], [1], [0, 0, 1, 1], [], []>} : vector<12x16xbf16>, vector<16x8xbf16>, vector<12x8xf32> -> vector<12x8xf32>
    %621 = vector.extract_strided_slice %552 {offsets = [0, 24], sizes = [12, 8], strides = [1, 1]} : vector<12x32xf32> to vector<12x8xf32>
    %622 = arith.truncf %621 : vector<12x8xf32> to vector<12x8xbf16>
    %623 = vector.extract_strided_slice %556 {offsets = [0, 24], sizes = [16, 8], strides = [1, 1]} : vector<16x32xf32> to vector<16x8xf32>
    %624 = arith.truncf %623 : vector<16x8xf32> to vector<16x8xbf16>
    %625 = vector.extract_strided_slice %560 {offsets = [0, 24], sizes = [16, 8], strides = [1, 1]} : vector<16x32xf32> to vector<16x8xf32>
    %626 = arith.truncf %625 : vector<16x8xf32> to vector<16x8xbf16>
    %cst_287 = arith.constant dense<0.000000e+00> : vector<12x16xf32>
    %627 = tpu.matmul %622, %624, %cst_287 {dimension_numbers = #tpu.dot_dimension_numbers<[1], [1], [0], [0], [0, 0, 1, 0], [], []>} : vector<12x8xbf16>, vector<16x8xbf16>, vector<12x16xf32> -> vector<12x16xf32>
    %628 = arith.addf %627, %2 : vector<12x16xf32>
    %cst_288 = arith.constant dense<0xFF800000> : vector<12xf32>
    %629 = vector.multi_reduction <maximumf>, %628, %cst_288 [1] : vector<12x16xf32> to vector<12xf32>
    %630 = vector.shape_cast %629 : vector<12xf32> to vector<12x1xf32>
    %631 = vector.broadcast %630 : vector<12x1xf32> to vector<12x16xf32>
    %632 = arith.subf %628, %631 : vector<12x16xf32>
    %633 = math.exp %632 : vector<12x16xf32>
    %cst_289 = arith.constant dense<0.000000e+00> : vector<12xf32>
    %634 = vector.multi_reduction <add>, %633, %cst_289 [1] : vector<12x16xf32> to vector<12xf32>
    %635 = vector.shape_cast %634 : vector<12xf32> to vector<12x1xf32>
    %636 = tpu.reciprocal %635 {approx = true} : vector<12x1xf32> -> vector<12x1xf32>
    %637 = vector.broadcast %636 : vector<12x1xf32> to vector<12x16xf32>
    %638 = arith.mulf %633, %637 : vector<12x16xf32>
    %639 = arith.truncf %638 : vector<12x16xf32> to vector<12x16xbf16>
    %cst_290 = arith.constant dense<0.000000e+00> : vector<12x8xf32>
    %640 = tpu.matmul %639, %626, %cst_290 {dimension_numbers = #tpu.dot_dimension_numbers<[1], [0], [0], [1], [0, 0, 1, 1], [], []>} : vector<12x16xbf16>, vector<16x8xbf16>, vector<12x8xf32> -> vector<12x8xf32>
    %641 = tpu.concatenate %580, %600, %620, %640 in 1 : vector<12x8xf32>, vector<12x8xf32>, vector<12x8xf32>, vector<12x8xf32> -> vector<12x32xf32>
    %642 = arith.truncf %641 : vector<12x32xf32> to vector<12x32xbf16>
    %cst_291 = arith.constant dense<0.000000e+00> : vector<12x32xf32>
    %643 = tpu.matmul %642, %410, %cst_291 {dimension_numbers = #tpu.dot_dimension_numbers<[1], [0], [0], [1], [0, 0, 1, 1], [], []>} : vector<12x32xbf16>, vector<32x32xbf16>, vector<12x32xf32> -> vector<12x32xf32>
    %644 = vector.broadcast %412 : vector<1x32xf32> to vector<12x32xf32>
    %645 = arith.addf %643, %644 : vector<12x32xf32>
    %646 = arith.addf %548, %645 : vector<12x32xf32>
    %cst_292 = arith.constant dense<0.000000e+00> : vector<12xf32>
    %647 = vector.multi_reduction <add>, %646, %cst_292 [1] : vector<12x32xf32> to vector<12xf32>
    %648 = vector.shape_cast %647 : vector<12xf32> to vector<12x1xf32>
    %cst_293 = arith.constant 3.200000e+01 : f32
    %649 = vector.broadcast %cst_293 : f32 to vector<12x1xf32>
    %650 = arith.divf %648, %649 : vector<12x1xf32>
    %651 = vector.broadcast %650 : vector<12x1xf32> to vector<12x32xf32>
    %652 = arith.subf %646, %651 : vector<12x32xf32>
    %653 = arith.mulf %652, %652 : vector<12x32xf32>
    %cst_294 = arith.constant dense<0.000000e+00> : vector<12xf32>
    %654 = vector.multi_reduction <add>, %653, %cst_294 [1] : vector<12x32xf32> to vector<12xf32>
    %655 = vector.shape_cast %654 : vector<12xf32> to vector<12x1xf32>
    %cst_295 = arith.constant 3.200000e+01 : f32
    %656 = vector.broadcast %cst_295 : f32 to vector<12x1xf32>
    %657 = arith.divf %655, %656 : vector<12x1xf32>
    %658 = vector.broadcast %650 : vector<12x1xf32> to vector<12x32xf32>
    %659 = arith.subf %646, %658 : vector<12x32xf32>
    %cst_296 = arith.constant 9.99999974E-6 : f32
    %660 = vector.broadcast %cst_296 : f32 to vector<12x1xf32>
    %661 = arith.addf %657, %660 : vector<12x1xf32>
    %662 = math.rsqrt %661 : vector<12x1xf32>
    %663 = vector.broadcast %662 : vector<12x1xf32> to vector<12x32xf32>
    %664 = arith.mulf %659, %663 : vector<12x32xf32>
    %665 = vector.broadcast %414 : vector<1x32xf32> to vector<12x32xf32>
    %666 = arith.mulf %664, %665 : vector<12x32xf32>
    %667 = vector.broadcast %416 : vector<1x32xf32> to vector<12x32xf32>
    %668 = arith.addf %666, %667 : vector<12x32xf32>
    %669 = arith.truncf %668 : vector<12x32xf32> to vector<12x32xbf16>
    %cst_297 = arith.constant dense<0.000000e+00> : vector<12x64xf32>
    %670 = tpu.matmul %669, %418, %cst_297 {dimension_numbers = #tpu.dot_dimension_numbers<[1], [0], [0], [1], [0, 0, 1, 1], [], []>} : vector<12x32xbf16>, vector<32x64xbf16>, vector<12x64xf32> -> vector<12x64xf32>
    %671 = vector.broadcast %420 : vector<1x64xf32> to vector<12x64xf32>
    %672 = arith.addf %670, %671 : vector<12x64xf32>
    %cst_298 = arith.constant 0.000000e+00 : f32
    %673 = vector.broadcast %cst_298 : f32 to vector<12x64xf32>
    %674 = arith.maximumf %672, %673 : vector<12x64xf32>
    %675 = arith.truncf %674 : vector<12x64xf32> to vector<12x64xbf16>
    %cst_299 = arith.constant dense<0.000000e+00> : vector<12x32xf32>
    %676 = tpu.matmul %675, %422, %cst_299 {dimension_numbers = #tpu.dot_dimension_numbers<[1], [0], [0], [1], [0, 0, 1, 1], [], []>} : vector<12x64xbf16>, vector<64x32xbf16>, vector<12x32xf32> -> vector<12x32xf32>
    %677 = vector.broadcast %424 : vector<1x32xf32> to vector<12x32xf32>
    %678 = arith.addf %676, %677 : vector<12x32xf32>
    %679 = arith.addf %668, %678 : vector<12x32xf32>
    %cst_300 = arith.constant dense<0.000000e+00> : vector<12xf32>
    %680 = vector.multi_reduction <add>, %679, %cst_300 [1] : vector<12x32xf32> to vector<12xf32>
    %681 = vector.shape_cast %680 : vector<12xf32> to vector<12x1xf32>
    %cst_301 = arith.constant 3.200000e+01 : f32
    %682 = vector.broadcast %cst_301 : f32 to vector<12x1xf32>
    %683 = arith.divf %681, %682 : vector<12x1xf32>
    %684 = vector.broadcast %683 : vector<12x1xf32> to vector<12x32xf32>
    %685 = arith.subf %679, %684 : vector<12x32xf32>
    %686 = arith.mulf %685, %685 : vector<12x32xf32>
    %cst_302 = arith.constant dense<0.000000e+00> : vector<12xf32>
    %687 = vector.multi_reduction <add>, %686, %cst_302 [1] : vector<12x32xf32> to vector<12xf32>
    %688 = vector.shape_cast %687 : vector<12xf32> to vector<12x1xf32>
    %cst_303 = arith.constant 3.200000e+01 : f32
    %689 = vector.broadcast %cst_303 : f32 to vector<12x1xf32>
    %690 = arith.divf %688, %689 : vector<12x1xf32>
    %691 = vector.broadcast %683 : vector<12x1xf32> to vector<12x32xf32>
    %692 = arith.subf %679, %691 : vector<12x32xf32>
    %cst_304 = arith.constant 9.99999974E-6 : f32
    %693 = vector.broadcast %cst_304 : f32 to vector<12x1xf32>
    %694 = arith.addf %690, %693 : vector<12x1xf32>
    %695 = math.rsqrt %694 : vector<12x1xf32>
    %696 = vector.broadcast %695 : vector<12x1xf32> to vector<12x32xf32>
    %697 = arith.mulf %692, %696 : vector<12x32xf32>
    %698 = vector.broadcast %426 : vector<1x32xf32> to vector<12x32xf32>
    %699 = arith.mulf %697, %698 : vector<12x32xf32>
    %700 = vector.broadcast %428 : vector<1x32xf32> to vector<12x32xf32>
    %701 = arith.addf %699, %700 : vector<12x32xf32>
    %c1_305 = arith.constant 1 : index
    %c0_306 = arith.constant 0 : index
    %c0_307 = arith.constant 0 : index
    %702 = vector.load %arg22[%c1_305, %c0_306, %c0_307] : memref<2x32x32xbf16, #tpu.memory_space<vmem>>, vector<1x32x32xbf16>
    %703 = vector.shape_cast %702 : vector<1x32x32xbf16> to vector<32x32xbf16>
    %c1_308 = arith.constant 1 : index
    %c0_309 = arith.constant 0 : index
    %c0_310 = arith.constant 0 : index
    %704 = vector.load %arg23[%c1_308, %c0_309, %c0_310] : memref<2x32x32xbf16, #tpu.memory_space<vmem>>, vector<1x32x32xbf16>
    %705 = vector.shape_cast %704 : vector<1x32x32xbf16> to vector<32x32xbf16>
    %c1_311 = arith.constant 1 : index
    %c0_312 = arith.constant 0 : index
    %c0_313 = arith.constant 0 : index
    %706 = vector.load %arg24[%c1_311, %c0_312, %c0_313] : memref<2x32x32xbf16, #tpu.memory_space<vmem>>, vector<1x32x32xbf16>
    %707 = vector.shape_cast %706 : vector<1x32x32xbf16> to vector<32x32xbf16>
    %c1_314 = arith.constant 1 : index
    %c0_315 = arith.constant 0 : index
    %c0_316 = arith.constant 0 : index
    %708 = vector.load %arg25[%c1_314, %c0_315, %c0_316] : memref<2x1x32xf32, #tpu.memory_space<vmem>>, vector<1x1x32xf32>
    %709 = vector.shape_cast %708 : vector<1x1x32xf32> to vector<1x32xf32>
    %c1_317 = arith.constant 1 : index
    %c0_318 = arith.constant 0 : index
    %c0_319 = arith.constant 0 : index
    %710 = vector.load %arg26[%c1_317, %c0_318, %c0_319] : memref<2x1x32xf32, #tpu.memory_space<vmem>>, vector<1x1x32xf32>
    %711 = vector.shape_cast %710 : vector<1x1x32xf32> to vector<1x32xf32>
    %c1_320 = arith.constant 1 : index
    %c0_321 = arith.constant 0 : index
    %c0_322 = arith.constant 0 : index
    %712 = vector.load %arg27[%c1_320, %c0_321, %c0_322] : memref<2x1x32xf32, #tpu.memory_space<vmem>>, vector<1x1x32xf32>
    %713 = vector.shape_cast %712 : vector<1x1x32xf32> to vector<1x32xf32>
    %c1_323 = arith.constant 1 : index
    %c0_324 = arith.constant 0 : index
    %c0_325 = arith.constant 0 : index
    %714 = vector.load %arg28[%c1_323, %c0_324, %c0_325] : memref<2x32x32xbf16, #tpu.memory_space<vmem>>, vector<1x32x32xbf16>
    %715 = vector.shape_cast %714 : vector<1x32x32xbf16> to vector<32x32xbf16>
    %c1_326 = arith.constant 1 : index
    %c0_327 = arith.constant 0 : index
    %c0_328 = arith.constant 0 : index
    %716 = vector.load %arg29[%c1_326, %c0_327, %c0_328] : memref<2x1x32xf32, #tpu.memory_space<vmem>>, vector<1x1x32xf32>
    %717 = vector.shape_cast %716 : vector<1x1x32xf32> to vector<1x32xf32>
    %c1_329 = arith.constant 1 : index
    %c0_330 = arith.constant 0 : index
    %c0_331 = arith.constant 0 : index
    %718 = vector.load %arg30[%c1_329, %c0_330, %c0_331] : memref<2x1x32xf32, #tpu.memory_space<vmem>>, vector<1x1x32xf32>
    %719 = vector.shape_cast %718 : vector<1x1x32xf32> to vector<1x32xf32>
    %c1_332 = arith.constant 1 : index
    %c0_333 = arith.constant 0 : index
    %c0_334 = arith.constant 0 : index
    %720 = vector.load %arg31[%c1_332, %c0_333, %c0_334] : memref<2x1x32xf32, #tpu.memory_space<vmem>>, vector<1x1x32xf32>
    %721 = vector.shape_cast %720 : vector<1x1x32xf32> to vector<1x32xf32>
    %c1_335 = arith.constant 1 : index
    %c0_336 = arith.constant 0 : index
    %c0_337 = arith.constant 0 : index
    %722 = vector.load %arg32[%c1_335, %c0_336, %c0_337] : memref<2x32x32xbf16, #tpu.memory_space<vmem>>, vector<1x32x32xbf16>
    %723 = vector.shape_cast %722 : vector<1x32x32xbf16> to vector<32x32xbf16>
    %c1_338 = arith.constant 1 : index
    %c0_339 = arith.constant 0 : index
    %c0_340 = arith.constant 0 : index
    %724 = vector.load %arg33[%c1_338, %c0_339, %c0_340] : memref<2x32x32xbf16, #tpu.memory_space<vmem>>, vector<1x32x32xbf16>
    %725 = vector.shape_cast %724 : vector<1x32x32xbf16> to vector<32x32xbf16>
    %c1_341 = arith.constant 1 : index
    %c0_342 = arith.constant 0 : index
    %c0_343 = arith.constant 0 : index
    %726 = vector.load %arg34[%c1_341, %c0_342, %c0_343] : memref<2x32x32xbf16, #tpu.memory_space<vmem>>, vector<1x32x32xbf16>
    %727 = vector.shape_cast %726 : vector<1x32x32xbf16> to vector<32x32xbf16>
    %c1_344 = arith.constant 1 : index
    %c0_345 = arith.constant 0 : index
    %c0_346 = arith.constant 0 : index
    %728 = vector.load %arg35[%c1_344, %c0_345, %c0_346] : memref<2x1x32xf32, #tpu.memory_space<vmem>>, vector<1x1x32xf32>
    %729 = vector.shape_cast %728 : vector<1x1x32xf32> to vector<1x32xf32>
    %c1_347 = arith.constant 1 : index
    %c0_348 = arith.constant 0 : index
    %c0_349 = arith.constant 0 : index
    %730 = vector.load %arg36[%c1_347, %c0_348, %c0_349] : memref<2x1x32xf32, #tpu.memory_space<vmem>>, vector<1x1x32xf32>
    %731 = vector.shape_cast %730 : vector<1x1x32xf32> to vector<1x32xf32>
    %c1_350 = arith.constant 1 : index
    %c0_351 = arith.constant 0 : index
    %c0_352 = arith.constant 0 : index
    %732 = vector.load %arg37[%c1_350, %c0_351, %c0_352] : memref<2x1x32xf32, #tpu.memory_space<vmem>>, vector<1x1x32xf32>
    %733 = vector.shape_cast %732 : vector<1x1x32xf32> to vector<1x32xf32>
    %c1_353 = arith.constant 1 : index
    %c0_354 = arith.constant 0 : index
    %c0_355 = arith.constant 0 : index
    %734 = vector.load %arg38[%c1_353, %c0_354, %c0_355] : memref<2x32x32xbf16, #tpu.memory_space<vmem>>, vector<1x32x32xbf16>
    %735 = vector.shape_cast %734 : vector<1x32x32xbf16> to vector<32x32xbf16>
    %c1_356 = arith.constant 1 : index
    %c0_357 = arith.constant 0 : index
    %c0_358 = arith.constant 0 : index
    %736 = vector.load %arg39[%c1_356, %c0_357, %c0_358] : memref<2x1x32xf32, #tpu.memory_space<vmem>>, vector<1x1x32xf32>
    %737 = vector.shape_cast %736 : vector<1x1x32xf32> to vector<1x32xf32>
    %c1_359 = arith.constant 1 : index
    %c0_360 = arith.constant 0 : index
    %c0_361 = arith.constant 0 : index
    %738 = vector.load %arg40[%c1_359, %c0_360, %c0_361] : memref<2x1x32xf32, #tpu.memory_space<vmem>>, vector<1x1x32xf32>
    %739 = vector.shape_cast %738 : vector<1x1x32xf32> to vector<1x32xf32>
    %c1_362 = arith.constant 1 : index
    %c0_363 = arith.constant 0 : index
    %c0_364 = arith.constant 0 : index
    %740 = vector.load %arg41[%c1_362, %c0_363, %c0_364] : memref<2x1x32xf32, #tpu.memory_space<vmem>>, vector<1x1x32xf32>
    %741 = vector.shape_cast %740 : vector<1x1x32xf32> to vector<1x32xf32>
    %c1_365 = arith.constant 1 : index
    %c0_366 = arith.constant 0 : index
    %c0_367 = arith.constant 0 : index
    %742 = vector.load %arg42[%c1_365, %c0_366, %c0_367] : memref<2x32x64xbf16, #tpu.memory_space<vmem>>, vector<1x32x64xbf16>
    %743 = vector.shape_cast %742 : vector<1x32x64xbf16> to vector<32x64xbf16>
    %c1_368 = arith.constant 1 : index
    %c0_369 = arith.constant 0 : index
    %c0_370 = arith.constant 0 : index
    %744 = vector.load %arg43[%c1_368, %c0_369, %c0_370] : memref<2x1x64xf32, #tpu.memory_space<vmem>>, vector<1x1x64xf32>
    %745 = vector.shape_cast %744 : vector<1x1x64xf32> to vector<1x64xf32>
    %c1_371 = arith.constant 1 : index
    %c0_372 = arith.constant 0 : index
    %c0_373 = arith.constant 0 : index
    %746 = vector.load %arg44[%c1_371, %c0_372, %c0_373] : memref<2x64x32xbf16, #tpu.memory_space<vmem>>, vector<1x64x32xbf16>
    %747 = vector.shape_cast %746 : vector<1x64x32xbf16> to vector<64x32xbf16>
    %c1_374 = arith.constant 1 : index
    %c0_375 = arith.constant 0 : index
    %c0_376 = arith.constant 0 : index
    %748 = vector.load %arg45[%c1_374, %c0_375, %c0_376] : memref<2x1x32xf32, #tpu.memory_space<vmem>>, vector<1x1x32xf32>
    %749 = vector.shape_cast %748 : vector<1x1x32xf32> to vector<1x32xf32>
    %c1_377 = arith.constant 1 : index
    %c0_378 = arith.constant 0 : index
    %c0_379 = arith.constant 0 : index
    %750 = vector.load %arg46[%c1_377, %c0_378, %c0_379] : memref<2x1x32xf32, #tpu.memory_space<vmem>>, vector<1x1x32xf32>
    %751 = vector.shape_cast %750 : vector<1x1x32xf32> to vector<1x32xf32>
    %c1_380 = arith.constant 1 : index
    %c0_381 = arith.constant 0 : index
    %c0_382 = arith.constant 0 : index
    %752 = vector.load %arg47[%c1_380, %c0_381, %c0_382] : memref<2x1x32xf32, #tpu.memory_space<vmem>>, vector<1x1x32xf32>
    %753 = vector.shape_cast %752 : vector<1x1x32xf32> to vector<1x32xf32>
    %754 = arith.truncf %701 : vector<12x32xf32> to vector<12x32xbf16>
    %cst_383 = arith.constant dense<0.000000e+00> : vector<12x32xf32>
    %755 = tpu.matmul %754, %703, %cst_383 {dimension_numbers = #tpu.dot_dimension_numbers<[1], [0], [0], [1], [0, 0, 1, 1], [], []>} : vector<12x32xbf16>, vector<32x32xbf16>, vector<12x32xf32> -> vector<12x32xf32>
    %756 = vector.broadcast %709 : vector<1x32xf32> to vector<12x32xf32>
    %757 = arith.addf %755, %756 : vector<12x32xf32>
    %758 = arith.truncf %701 : vector<12x32xf32> to vector<12x32xbf16>
    %cst_384 = arith.constant dense<0.000000e+00> : vector<12x32xf32>
    %759 = tpu.matmul %758, %705, %cst_384 {dimension_numbers = #tpu.dot_dimension_numbers<[1], [0], [0], [1], [0, 0, 1, 1], [], []>} : vector<12x32xbf16>, vector<32x32xbf16>, vector<12x32xf32> -> vector<12x32xf32>
    %760 = vector.broadcast %711 : vector<1x32xf32> to vector<12x32xf32>
    %761 = arith.addf %759, %760 : vector<12x32xf32>
    %762 = arith.truncf %701 : vector<12x32xf32> to vector<12x32xbf16>
    %cst_385 = arith.constant dense<0.000000e+00> : vector<12x32xf32>
    %763 = tpu.matmul %762, %707, %cst_385 {dimension_numbers = #tpu.dot_dimension_numbers<[1], [0], [0], [1], [0, 0, 1, 1], [], []>} : vector<12x32xbf16>, vector<32x32xbf16>, vector<12x32xf32> -> vector<12x32xf32>
    %764 = vector.broadcast %713 : vector<1x32xf32> to vector<12x32xf32>
    %765 = arith.addf %763, %764 : vector<12x32xf32>
    %766 = vector.extract_strided_slice %757 {offsets = [0, 0], sizes = [12, 8], strides = [1, 1]} : vector<12x32xf32> to vector<12x8xf32>
    %767 = arith.truncf %766 : vector<12x8xf32> to vector<12x8xbf16>
    %768 = vector.extract_strided_slice %761 {offsets = [0, 0], sizes = [12, 8], strides = [1, 1]} : vector<12x32xf32> to vector<12x8xf32>
    %769 = arith.truncf %768 : vector<12x8xf32> to vector<12x8xbf16>
    %770 = vector.extract_strided_slice %765 {offsets = [0, 0], sizes = [12, 8], strides = [1, 1]} : vector<12x32xf32> to vector<12x8xf32>
    %771 = arith.truncf %770 : vector<12x8xf32> to vector<12x8xbf16>
    %cst_386 = arith.constant dense<0.000000e+00> : vector<12x12xf32>
    %772 = tpu.matmul %767, %769, %cst_386 {dimension_numbers = #tpu.dot_dimension_numbers<[1], [1], [0], [0], [0, 0, 1, 0], [], []>} : vector<12x8xbf16>, vector<12x8xbf16>, vector<12x12xf32> -> vector<12x12xf32>
    %773 = arith.addf %772, %1 : vector<12x12xf32>
    %cst_387 = arith.constant dense<0xFF800000> : vector<12xf32>
    %774 = vector.multi_reduction <maximumf>, %773, %cst_387 [1] : vector<12x12xf32> to vector<12xf32>
    %775 = vector.shape_cast %774 : vector<12xf32> to vector<12x1xf32>
    %776 = vector.broadcast %775 : vector<12x1xf32> to vector<12x12xf32>
    %777 = arith.subf %773, %776 : vector<12x12xf32>
    %778 = math.exp %777 : vector<12x12xf32>
    %cst_388 = arith.constant dense<0.000000e+00> : vector<12xf32>
    %779 = vector.multi_reduction <add>, %778, %cst_388 [1] : vector<12x12xf32> to vector<12xf32>
    %780 = vector.shape_cast %779 : vector<12xf32> to vector<12x1xf32>
    %781 = tpu.reciprocal %780 {approx = true} : vector<12x1xf32> -> vector<12x1xf32>
    %782 = vector.broadcast %781 : vector<12x1xf32> to vector<12x12xf32>
    %783 = arith.mulf %778, %782 : vector<12x12xf32>
    %784 = arith.truncf %783 : vector<12x12xf32> to vector<12x12xbf16>
    %cst_389 = arith.constant dense<0.000000e+00> : vector<12x8xf32>
    %785 = tpu.matmul %784, %771, %cst_389 {dimension_numbers = #tpu.dot_dimension_numbers<[1], [0], [0], [1], [0, 0, 1, 1], [], []>} : vector<12x12xbf16>, vector<12x8xbf16>, vector<12x8xf32> -> vector<12x8xf32>
    %786 = vector.extract_strided_slice %757 {offsets = [0, 8], sizes = [12, 8], strides = [1, 1]} : vector<12x32xf32> to vector<12x8xf32>
    %787 = arith.truncf %786 : vector<12x8xf32> to vector<12x8xbf16>
    %788 = vector.extract_strided_slice %761 {offsets = [0, 8], sizes = [12, 8], strides = [1, 1]} : vector<12x32xf32> to vector<12x8xf32>
    %789 = arith.truncf %788 : vector<12x8xf32> to vector<12x8xbf16>
    %790 = vector.extract_strided_slice %765 {offsets = [0, 8], sizes = [12, 8], strides = [1, 1]} : vector<12x32xf32> to vector<12x8xf32>
    %791 = arith.truncf %790 : vector<12x8xf32> to vector<12x8xbf16>
    %cst_390 = arith.constant dense<0.000000e+00> : vector<12x12xf32>
    %792 = tpu.matmul %787, %789, %cst_390 {dimension_numbers = #tpu.dot_dimension_numbers<[1], [1], [0], [0], [0, 0, 1, 0], [], []>} : vector<12x8xbf16>, vector<12x8xbf16>, vector<12x12xf32> -> vector<12x12xf32>
    %793 = arith.addf %792, %1 : vector<12x12xf32>
    %cst_391 = arith.constant dense<0xFF800000> : vector<12xf32>
    %794 = vector.multi_reduction <maximumf>, %793, %cst_391 [1] : vector<12x12xf32> to vector<12xf32>
    %795 = vector.shape_cast %794 : vector<12xf32> to vector<12x1xf32>
    %796 = vector.broadcast %795 : vector<12x1xf32> to vector<12x12xf32>
    %797 = arith.subf %793, %796 : vector<12x12xf32>
    %798 = math.exp %797 : vector<12x12xf32>
    %cst_392 = arith.constant dense<0.000000e+00> : vector<12xf32>
    %799 = vector.multi_reduction <add>, %798, %cst_392 [1] : vector<12x12xf32> to vector<12xf32>
    %800 = vector.shape_cast %799 : vector<12xf32> to vector<12x1xf32>
    %801 = tpu.reciprocal %800 {approx = true} : vector<12x1xf32> -> vector<12x1xf32>
    %802 = vector.broadcast %801 : vector<12x1xf32> to vector<12x12xf32>
    %803 = arith.mulf %798, %802 : vector<12x12xf32>
    %804 = arith.truncf %803 : vector<12x12xf32> to vector<12x12xbf16>
    %cst_393 = arith.constant dense<0.000000e+00> : vector<12x8xf32>
    %805 = tpu.matmul %804, %791, %cst_393 {dimension_numbers = #tpu.dot_dimension_numbers<[1], [0], [0], [1], [0, 0, 1, 1], [], []>} : vector<12x12xbf16>, vector<12x8xbf16>, vector<12x8xf32> -> vector<12x8xf32>
    %806 = vector.extract_strided_slice %757 {offsets = [0, 16], sizes = [12, 8], strides = [1, 1]} : vector<12x32xf32> to vector<12x8xf32>
    %807 = arith.truncf %806 : vector<12x8xf32> to vector<12x8xbf16>
    %808 = vector.extract_strided_slice %761 {offsets = [0, 16], sizes = [12, 8], strides = [1, 1]} : vector<12x32xf32> to vector<12x8xf32>
    %809 = arith.truncf %808 : vector<12x8xf32> to vector<12x8xbf16>
    %810 = vector.extract_strided_slice %765 {offsets = [0, 16], sizes = [12, 8], strides = [1, 1]} : vector<12x32xf32> to vector<12x8xf32>
    %811 = arith.truncf %810 : vector<12x8xf32> to vector<12x8xbf16>
    %cst_394 = arith.constant dense<0.000000e+00> : vector<12x12xf32>
    %812 = tpu.matmul %807, %809, %cst_394 {dimension_numbers = #tpu.dot_dimension_numbers<[1], [1], [0], [0], [0, 0, 1, 0], [], []>} : vector<12x8xbf16>, vector<12x8xbf16>, vector<12x12xf32> -> vector<12x12xf32>
    %813 = arith.addf %812, %1 : vector<12x12xf32>
    %cst_395 = arith.constant dense<0xFF800000> : vector<12xf32>
    %814 = vector.multi_reduction <maximumf>, %813, %cst_395 [1] : vector<12x12xf32> to vector<12xf32>
    %815 = vector.shape_cast %814 : vector<12xf32> to vector<12x1xf32>
    %816 = vector.broadcast %815 : vector<12x1xf32> to vector<12x12xf32>
    %817 = arith.subf %813, %816 : vector<12x12xf32>
    %818 = math.exp %817 : vector<12x12xf32>
    %cst_396 = arith.constant dense<0.000000e+00> : vector<12xf32>
    %819 = vector.multi_reduction <add>, %818, %cst_396 [1] : vector<12x12xf32> to vector<12xf32>
    %820 = vector.shape_cast %819 : vector<12xf32> to vector<12x1xf32>
    %821 = tpu.reciprocal %820 {approx = true} : vector<12x1xf32> -> vector<12x1xf32>
    %822 = vector.broadcast %821 : vector<12x1xf32> to vector<12x12xf32>
    %823 = arith.mulf %818, %822 : vector<12x12xf32>
    %824 = arith.truncf %823 : vector<12x12xf32> to vector<12x12xbf16>
    %cst_397 = arith.constant dense<0.000000e+00> : vector<12x8xf32>
    %825 = tpu.matmul %824, %811, %cst_397 {dimension_numbers = #tpu.dot_dimension_numbers<[1], [0], [0], [1], [0, 0, 1, 1], [], []>} : vector<12x12xbf16>, vector<12x8xbf16>, vector<12x8xf32> -> vector<12x8xf32>
    %826 = vector.extract_strided_slice %757 {offsets = [0, 24], sizes = [12, 8], strides = [1, 1]} : vector<12x32xf32> to vector<12x8xf32>
    %827 = arith.truncf %826 : vector<12x8xf32> to vector<12x8xbf16>
    %828 = vector.extract_strided_slice %761 {offsets = [0, 24], sizes = [12, 8], strides = [1, 1]} : vector<12x32xf32> to vector<12x8xf32>
    %829 = arith.truncf %828 : vector<12x8xf32> to vector<12x8xbf16>
    %830 = vector.extract_strided_slice %765 {offsets = [0, 24], sizes = [12, 8], strides = [1, 1]} : vector<12x32xf32> to vector<12x8xf32>
    %831 = arith.truncf %830 : vector<12x8xf32> to vector<12x8xbf16>
    %cst_398 = arith.constant dense<0.000000e+00> : vector<12x12xf32>
    %832 = tpu.matmul %827, %829, %cst_398 {dimension_numbers = #tpu.dot_dimension_numbers<[1], [1], [0], [0], [0, 0, 1, 0], [], []>} : vector<12x8xbf16>, vector<12x8xbf16>, vector<12x12xf32> -> vector<12x12xf32>
    %833 = arith.addf %832, %1 : vector<12x12xf32>
    %cst_399 = arith.constant dense<0xFF800000> : vector<12xf32>
    %834 = vector.multi_reduction <maximumf>, %833, %cst_399 [1] : vector<12x12xf32> to vector<12xf32>
    %835 = vector.shape_cast %834 : vector<12xf32> to vector<12x1xf32>
    %836 = vector.broadcast %835 : vector<12x1xf32> to vector<12x12xf32>
    %837 = arith.subf %833, %836 : vector<12x12xf32>
    %838 = math.exp %837 : vector<12x12xf32>
    %cst_400 = arith.constant dense<0.000000e+00> : vector<12xf32>
    %839 = vector.multi_reduction <add>, %838, %cst_400 [1] : vector<12x12xf32> to vector<12xf32>
    %840 = vector.shape_cast %839 : vector<12xf32> to vector<12x1xf32>
    %841 = tpu.reciprocal %840 {approx = true} : vector<12x1xf32> -> vector<12x1xf32>
    %842 = vector.broadcast %841 : vector<12x1xf32> to vector<12x12xf32>
    %843 = arith.mulf %838, %842 : vector<12x12xf32>
    %844 = arith.truncf %843 : vector<12x12xf32> to vector<12x12xbf16>
    %cst_401 = arith.constant dense<0.000000e+00> : vector<12x8xf32>
    %845 = tpu.matmul %844, %831, %cst_401 {dimension_numbers = #tpu.dot_dimension_numbers<[1], [0], [0], [1], [0, 0, 1, 1], [], []>} : vector<12x12xbf16>, vector<12x8xbf16>, vector<12x8xf32> -> vector<12x8xf32>
    %846 = tpu.concatenate %785, %805, %825, %845 in 1 : vector<12x8xf32>, vector<12x8xf32>, vector<12x8xf32>, vector<12x8xf32> -> vector<12x32xf32>
    %847 = arith.truncf %846 : vector<12x32xf32> to vector<12x32xbf16>
    %cst_402 = arith.constant dense<0.000000e+00> : vector<12x32xf32>
    %848 = tpu.matmul %847, %715, %cst_402 {dimension_numbers = #tpu.dot_dimension_numbers<[1], [0], [0], [1], [0, 0, 1, 1], [], []>} : vector<12x32xbf16>, vector<32x32xbf16>, vector<12x32xf32> -> vector<12x32xf32>
    %849 = vector.broadcast %717 : vector<1x32xf32> to vector<12x32xf32>
    %850 = arith.addf %848, %849 : vector<12x32xf32>
    %851 = arith.addf %701, %850 : vector<12x32xf32>
    %cst_403 = arith.constant dense<0.000000e+00> : vector<12xf32>
    %852 = vector.multi_reduction <add>, %851, %cst_403 [1] : vector<12x32xf32> to vector<12xf32>
    %853 = vector.shape_cast %852 : vector<12xf32> to vector<12x1xf32>
    %cst_404 = arith.constant 3.200000e+01 : f32
    %854 = vector.broadcast %cst_404 : f32 to vector<12x1xf32>
    %855 = arith.divf %853, %854 : vector<12x1xf32>
    %856 = vector.broadcast %855 : vector<12x1xf32> to vector<12x32xf32>
    %857 = arith.subf %851, %856 : vector<12x32xf32>
    %858 = arith.mulf %857, %857 : vector<12x32xf32>
    %cst_405 = arith.constant dense<0.000000e+00> : vector<12xf32>
    %859 = vector.multi_reduction <add>, %858, %cst_405 [1] : vector<12x32xf32> to vector<12xf32>
    %860 = vector.shape_cast %859 : vector<12xf32> to vector<12x1xf32>
    %cst_406 = arith.constant 3.200000e+01 : f32
    %861 = vector.broadcast %cst_406 : f32 to vector<12x1xf32>
    %862 = arith.divf %860, %861 : vector<12x1xf32>
    %863 = vector.broadcast %855 : vector<12x1xf32> to vector<12x32xf32>
    %864 = arith.subf %851, %863 : vector<12x32xf32>
    %cst_407 = arith.constant 9.99999974E-6 : f32
    %865 = vector.broadcast %cst_407 : f32 to vector<12x1xf32>
    %866 = arith.addf %862, %865 : vector<12x1xf32>
    %867 = math.rsqrt %866 : vector<12x1xf32>
    %868 = vector.broadcast %867 : vector<12x1xf32> to vector<12x32xf32>
    %869 = arith.mulf %864, %868 : vector<12x32xf32>
    %870 = vector.broadcast %719 : vector<1x32xf32> to vector<12x32xf32>
    %871 = arith.mulf %869, %870 : vector<12x32xf32>
    %872 = vector.broadcast %721 : vector<1x32xf32> to vector<12x32xf32>
    %873 = arith.addf %871, %872 : vector<12x32xf32>
    %874 = arith.truncf %873 : vector<12x32xf32> to vector<12x32xbf16>
    %cst_408 = arith.constant dense<0.000000e+00> : vector<12x32xf32>
    %875 = tpu.matmul %874, %723, %cst_408 {dimension_numbers = #tpu.dot_dimension_numbers<[1], [0], [0], [1], [0, 0, 1, 1], [], []>} : vector<12x32xbf16>, vector<32x32xbf16>, vector<12x32xf32> -> vector<12x32xf32>
    %876 = vector.broadcast %729 : vector<1x32xf32> to vector<12x32xf32>
    %877 = arith.addf %875, %876 : vector<12x32xf32>
    %878 = arith.truncf %374 : vector<16x32xf32> to vector<16x32xbf16>
    %cst_409 = arith.constant dense<0.000000e+00> : vector<16x32xf32>
    %879 = tpu.matmul %878, %725, %cst_409 {dimension_numbers = #tpu.dot_dimension_numbers<[1], [0], [0], [1], [0, 0, 1, 1], [], []>} : vector<16x32xbf16>, vector<32x32xbf16>, vector<16x32xf32> -> vector<16x32xf32>
    %880 = vector.broadcast %731 : vector<1x32xf32> to vector<16x32xf32>
    %881 = arith.addf %879, %880 : vector<16x32xf32>
    %882 = arith.truncf %374 : vector<16x32xf32> to vector<16x32xbf16>
    %cst_410 = arith.constant dense<0.000000e+00> : vector<16x32xf32>
    %883 = tpu.matmul %882, %727, %cst_410 {dimension_numbers = #tpu.dot_dimension_numbers<[1], [0], [0], [1], [0, 0, 1, 1], [], []>} : vector<16x32xbf16>, vector<32x32xbf16>, vector<16x32xf32> -> vector<16x32xf32>
    %884 = vector.broadcast %733 : vector<1x32xf32> to vector<16x32xf32>
    %885 = arith.addf %883, %884 : vector<16x32xf32>
    %886 = vector.extract_strided_slice %877 {offsets = [0, 0], sizes = [12, 8], strides = [1, 1]} : vector<12x32xf32> to vector<12x8xf32>
    %887 = arith.truncf %886 : vector<12x8xf32> to vector<12x8xbf16>
    %888 = vector.extract_strided_slice %881 {offsets = [0, 0], sizes = [16, 8], strides = [1, 1]} : vector<16x32xf32> to vector<16x8xf32>
    %889 = arith.truncf %888 : vector<16x8xf32> to vector<16x8xbf16>
    %890 = vector.extract_strided_slice %885 {offsets = [0, 0], sizes = [16, 8], strides = [1, 1]} : vector<16x32xf32> to vector<16x8xf32>
    %891 = arith.truncf %890 : vector<16x8xf32> to vector<16x8xbf16>
    %cst_411 = arith.constant dense<0.000000e+00> : vector<12x16xf32>
    %892 = tpu.matmul %887, %889, %cst_411 {dimension_numbers = #tpu.dot_dimension_numbers<[1], [1], [0], [0], [0, 0, 1, 0], [], []>} : vector<12x8xbf16>, vector<16x8xbf16>, vector<12x16xf32> -> vector<12x16xf32>
    %893 = arith.addf %892, %2 : vector<12x16xf32>
    %cst_412 = arith.constant dense<0xFF800000> : vector<12xf32>
    %894 = vector.multi_reduction <maximumf>, %893, %cst_412 [1] : vector<12x16xf32> to vector<12xf32>
    %895 = vector.shape_cast %894 : vector<12xf32> to vector<12x1xf32>
    %896 = vector.broadcast %895 : vector<12x1xf32> to vector<12x16xf32>
    %897 = arith.subf %893, %896 : vector<12x16xf32>
    %898 = math.exp %897 : vector<12x16xf32>
    %cst_413 = arith.constant dense<0.000000e+00> : vector<12xf32>
    %899 = vector.multi_reduction <add>, %898, %cst_413 [1] : vector<12x16xf32> to vector<12xf32>
    %900 = vector.shape_cast %899 : vector<12xf32> to vector<12x1xf32>
    %901 = tpu.reciprocal %900 {approx = true} : vector<12x1xf32> -> vector<12x1xf32>
    %902 = vector.broadcast %901 : vector<12x1xf32> to vector<12x16xf32>
    %903 = arith.mulf %898, %902 : vector<12x16xf32>
    %904 = arith.truncf %903 : vector<12x16xf32> to vector<12x16xbf16>
    %cst_414 = arith.constant dense<0.000000e+00> : vector<12x8xf32>
    %905 = tpu.matmul %904, %891, %cst_414 {dimension_numbers = #tpu.dot_dimension_numbers<[1], [0], [0], [1], [0, 0, 1, 1], [], []>} : vector<12x16xbf16>, vector<16x8xbf16>, vector<12x8xf32> -> vector<12x8xf32>
    %906 = vector.extract_strided_slice %877 {offsets = [0, 8], sizes = [12, 8], strides = [1, 1]} : vector<12x32xf32> to vector<12x8xf32>
    %907 = arith.truncf %906 : vector<12x8xf32> to vector<12x8xbf16>
    %908 = vector.extract_strided_slice %881 {offsets = [0, 8], sizes = [16, 8], strides = [1, 1]} : vector<16x32xf32> to vector<16x8xf32>
    %909 = arith.truncf %908 : vector<16x8xf32> to vector<16x8xbf16>
    %910 = vector.extract_strided_slice %885 {offsets = [0, 8], sizes = [16, 8], strides = [1, 1]} : vector<16x32xf32> to vector<16x8xf32>
    %911 = arith.truncf %910 : vector<16x8xf32> to vector<16x8xbf16>
    %cst_415 = arith.constant dense<0.000000e+00> : vector<12x16xf32>
    %912 = tpu.matmul %907, %909, %cst_415 {dimension_numbers = #tpu.dot_dimension_numbers<[1], [1], [0], [0], [0, 0, 1, 0], [], []>} : vector<12x8xbf16>, vector<16x8xbf16>, vector<12x16xf32> -> vector<12x16xf32>
    %913 = arith.addf %912, %2 : vector<12x16xf32>
    %cst_416 = arith.constant dense<0xFF800000> : vector<12xf32>
    %914 = vector.multi_reduction <maximumf>, %913, %cst_416 [1] : vector<12x16xf32> to vector<12xf32>
    %915 = vector.shape_cast %914 : vector<12xf32> to vector<12x1xf32>
    %916 = vector.broadcast %915 : vector<12x1xf32> to vector<12x16xf32>
    %917 = arith.subf %913, %916 : vector<12x16xf32>
    %918 = math.exp %917 : vector<12x16xf32>
    %cst_417 = arith.constant dense<0.000000e+00> : vector<12xf32>
    %919 = vector.multi_reduction <add>, %918, %cst_417 [1] : vector<12x16xf32> to vector<12xf32>
    %920 = vector.shape_cast %919 : vector<12xf32> to vector<12x1xf32>
    %921 = tpu.reciprocal %920 {approx = true} : vector<12x1xf32> -> vector<12x1xf32>
    %922 = vector.broadcast %921 : vector<12x1xf32> to vector<12x16xf32>
    %923 = arith.mulf %918, %922 : vector<12x16xf32>
    %924 = arith.truncf %923 : vector<12x16xf32> to vector<12x16xbf16>
    %cst_418 = arith.constant dense<0.000000e+00> : vector<12x8xf32>
    %925 = tpu.matmul %924, %911, %cst_418 {dimension_numbers = #tpu.dot_dimension_numbers<[1], [0], [0], [1], [0, 0, 1, 1], [], []>} : vector<12x16xbf16>, vector<16x8xbf16>, vector<12x8xf32> -> vector<12x8xf32>
    %926 = vector.extract_strided_slice %877 {offsets = [0, 16], sizes = [12, 8], strides = [1, 1]} : vector<12x32xf32> to vector<12x8xf32>
    %927 = arith.truncf %926 : vector<12x8xf32> to vector<12x8xbf16>
    %928 = vector.extract_strided_slice %881 {offsets = [0, 16], sizes = [16, 8], strides = [1, 1]} : vector<16x32xf32> to vector<16x8xf32>
    %929 = arith.truncf %928 : vector<16x8xf32> to vector<16x8xbf16>
    %930 = vector.extract_strided_slice %885 {offsets = [0, 16], sizes = [16, 8], strides = [1, 1]} : vector<16x32xf32> to vector<16x8xf32>
    %931 = arith.truncf %930 : vector<16x8xf32> to vector<16x8xbf16>
    %cst_419 = arith.constant dense<0.000000e+00> : vector<12x16xf32>
    %932 = tpu.matmul %927, %929, %cst_419 {dimension_numbers = #tpu.dot_dimension_numbers<[1], [1], [0], [0], [0, 0, 1, 0], [], []>} : vector<12x8xbf16>, vector<16x8xbf16>, vector<12x16xf32> -> vector<12x16xf32>
    %933 = arith.addf %932, %2 : vector<12x16xf32>
    %cst_420 = arith.constant dense<0xFF800000> : vector<12xf32>
    %934 = vector.multi_reduction <maximumf>, %933, %cst_420 [1] : vector<12x16xf32> to vector<12xf32>
    %935 = vector.shape_cast %934 : vector<12xf32> to vector<12x1xf32>
    %936 = vector.broadcast %935 : vector<12x1xf32> to vector<12x16xf32>
    %937 = arith.subf %933, %936 : vector<12x16xf32>
    %938 = math.exp %937 : vector<12x16xf32>
    %cst_421 = arith.constant dense<0.000000e+00> : vector<12xf32>
    %939 = vector.multi_reduction <add>, %938, %cst_421 [1] : vector<12x16xf32> to vector<12xf32>
    %940 = vector.shape_cast %939 : vector<12xf32> to vector<12x1xf32>
    %941 = tpu.reciprocal %940 {approx = true} : vector<12x1xf32> -> vector<12x1xf32>
    %942 = vector.broadcast %941 : vector<12x1xf32> to vector<12x16xf32>
    %943 = arith.mulf %938, %942 : vector<12x16xf32>
    %944 = arith.truncf %943 : vector<12x16xf32> to vector<12x16xbf16>
    %cst_422 = arith.constant dense<0.000000e+00> : vector<12x8xf32>
    %945 = tpu.matmul %944, %931, %cst_422 {dimension_numbers = #tpu.dot_dimension_numbers<[1], [0], [0], [1], [0, 0, 1, 1], [], []>} : vector<12x16xbf16>, vector<16x8xbf16>, vector<12x8xf32> -> vector<12x8xf32>
    %946 = vector.extract_strided_slice %877 {offsets = [0, 24], sizes = [12, 8], strides = [1, 1]} : vector<12x32xf32> to vector<12x8xf32>
    %947 = arith.truncf %946 : vector<12x8xf32> to vector<12x8xbf16>
    %948 = vector.extract_strided_slice %881 {offsets = [0, 24], sizes = [16, 8], strides = [1, 1]} : vector<16x32xf32> to vector<16x8xf32>
    %949 = arith.truncf %948 : vector<16x8xf32> to vector<16x8xbf16>
    %950 = vector.extract_strided_slice %885 {offsets = [0, 24], sizes = [16, 8], strides = [1, 1]} : vector<16x32xf32> to vector<16x8xf32>
    %951 = arith.truncf %950 : vector<16x8xf32> to vector<16x8xbf16>
    %cst_423 = arith.constant dense<0.000000e+00> : vector<12x16xf32>
    %952 = tpu.matmul %947, %949, %cst_423 {dimension_numbers = #tpu.dot_dimension_numbers<[1], [1], [0], [0], [0, 0, 1, 0], [], []>} : vector<12x8xbf16>, vector<16x8xbf16>, vector<12x16xf32> -> vector<12x16xf32>
    %953 = arith.addf %952, %2 : vector<12x16xf32>
    %cst_424 = arith.constant dense<0xFF800000> : vector<12xf32>
    %954 = vector.multi_reduction <maximumf>, %953, %cst_424 [1] : vector<12x16xf32> to vector<12xf32>
    %955 = vector.shape_cast %954 : vector<12xf32> to vector<12x1xf32>
    %956 = vector.broadcast %955 : vector<12x1xf32> to vector<12x16xf32>
    %957 = arith.subf %953, %956 : vector<12x16xf32>
    %958 = math.exp %957 : vector<12x16xf32>
    %cst_425 = arith.constant dense<0.000000e+00> : vector<12xf32>
    %959 = vector.multi_reduction <add>, %958, %cst_425 [1] : vector<12x16xf32> to vector<12xf32>
    %960 = vector.shape_cast %959 : vector<12xf32> to vector<12x1xf32>
    %961 = tpu.reciprocal %960 {approx = true} : vector<12x1xf32> -> vector<12x1xf32>
    %962 = vector.broadcast %961 : vector<12x1xf32> to vector<12x16xf32>
    %963 = arith.mulf %958, %962 : vector<12x16xf32>
    %964 = arith.truncf %963 : vector<12x16xf32> to vector<12x16xbf16>
    %cst_426 = arith.constant dense<0.000000e+00> : vector<12x8xf32>
    %965 = tpu.matmul %964, %951, %cst_426 {dimension_numbers = #tpu.dot_dimension_numbers<[1], [0], [0], [1], [0, 0, 1, 1], [], []>} : vector<12x16xbf16>, vector<16x8xbf16>, vector<12x8xf32> -> vector<12x8xf32>
    %966 = tpu.concatenate %905, %925, %945, %965 in 1 : vector<12x8xf32>, vector<12x8xf32>, vector<12x8xf32>, vector<12x8xf32> -> vector<12x32xf32>
    %967 = arith.truncf %966 : vector<12x32xf32> to vector<12x32xbf16>
    %cst_427 = arith.constant dense<0.000000e+00> : vector<12x32xf32>
    %968 = tpu.matmul %967, %735, %cst_427 {dimension_numbers = #tpu.dot_dimension_numbers<[1], [0], [0], [1], [0, 0, 1, 1], [], []>} : vector<12x32xbf16>, vector<32x32xbf16>, vector<12x32xf32> -> vector<12x32xf32>
    %969 = vector.broadcast %737 : vector<1x32xf32> to vector<12x32xf32>
    %970 = arith.addf %968, %969 : vector<12x32xf32>
    %971 = arith.addf %873, %970 : vector<12x32xf32>
    %cst_428 = arith.constant dense<0.000000e+00> : vector<12xf32>
    %972 = vector.multi_reduction <add>, %971, %cst_428 [1] : vector<12x32xf32> to vector<12xf32>
    %973 = vector.shape_cast %972 : vector<12xf32> to vector<12x1xf32>
    %cst_429 = arith.constant 3.200000e+01 : f32
    %974 = vector.broadcast %cst_429 : f32 to vector<12x1xf32>
    %975 = arith.divf %973, %974 : vector<12x1xf32>
    %976 = vector.broadcast %975 : vector<12x1xf32> to vector<12x32xf32>
    %977 = arith.subf %971, %976 : vector<12x32xf32>
    %978 = arith.mulf %977, %977 : vector<12x32xf32>
    %cst_430 = arith.constant dense<0.000000e+00> : vector<12xf32>
    %979 = vector.multi_reduction <add>, %978, %cst_430 [1] : vector<12x32xf32> to vector<12xf32>
    %980 = vector.shape_cast %979 : vector<12xf32> to vector<12x1xf32>
    %cst_431 = arith.constant 3.200000e+01 : f32
    %981 = vector.broadcast %cst_431 : f32 to vector<12x1xf32>
    %982 = arith.divf %980, %981 : vector<12x1xf32>
    %983 = vector.broadcast %975 : vector<12x1xf32> to vector<12x32xf32>
    %984 = arith.subf %971, %983 : vector<12x32xf32>
    %cst_432 = arith.constant 9.99999974E-6 : f32
    %985 = vector.broadcast %cst_432 : f32 to vector<12x1xf32>
    %986 = arith.addf %982, %985 : vector<12x1xf32>
    %987 = math.rsqrt %986 : vector<12x1xf32>
    %988 = vector.broadcast %987 : vector<12x1xf32> to vector<12x32xf32>
    %989 = arith.mulf %984, %988 : vector<12x32xf32>
    %990 = vector.broadcast %739 : vector<1x32xf32> to vector<12x32xf32>
    %991 = arith.mulf %989, %990 : vector<12x32xf32>
    %992 = vector.broadcast %741 : vector<1x32xf32> to vector<12x32xf32>
    %993 = arith.addf %991, %992 : vector<12x32xf32>
    %994 = arith.truncf %993 : vector<12x32xf32> to vector<12x32xbf16>
    %cst_433 = arith.constant dense<0.000000e+00> : vector<12x64xf32>
    %995 = tpu.matmul %994, %743, %cst_433 {dimension_numbers = #tpu.dot_dimension_numbers<[1], [0], [0], [1], [0, 0, 1, 1], [], []>} : vector<12x32xbf16>, vector<32x64xbf16>, vector<12x64xf32> -> vector<12x64xf32>
    %996 = vector.broadcast %745 : vector<1x64xf32> to vector<12x64xf32>
    %997 = arith.addf %995, %996 : vector<12x64xf32>
    %cst_434 = arith.constant 0.000000e+00 : f32
    %998 = vector.broadcast %cst_434 : f32 to vector<12x64xf32>
    %999 = arith.maximumf %997, %998 : vector<12x64xf32>
    %1000 = arith.truncf %999 : vector<12x64xf32> to vector<12x64xbf16>
    %cst_435 = arith.constant dense<0.000000e+00> : vector<12x32xf32>
    %1001 = tpu.matmul %1000, %747, %cst_435 {dimension_numbers = #tpu.dot_dimension_numbers<[1], [0], [0], [1], [0, 0, 1, 1], [], []>} : vector<12x64xbf16>, vector<64x32xbf16>, vector<12x32xf32> -> vector<12x32xf32>
    %1002 = vector.broadcast %749 : vector<1x32xf32> to vector<12x32xf32>
    %1003 = arith.addf %1001, %1002 : vector<12x32xf32>
    %1004 = arith.addf %993, %1003 : vector<12x32xf32>
    %cst_436 = arith.constant dense<0.000000e+00> : vector<12xf32>
    %1005 = vector.multi_reduction <add>, %1004, %cst_436 [1] : vector<12x32xf32> to vector<12xf32>
    %1006 = vector.shape_cast %1005 : vector<12xf32> to vector<12x1xf32>
    %cst_437 = arith.constant 3.200000e+01 : f32
    %1007 = vector.broadcast %cst_437 : f32 to vector<12x1xf32>
    %1008 = arith.divf %1006, %1007 : vector<12x1xf32>
    %1009 = vector.broadcast %1008 : vector<12x1xf32> to vector<12x32xf32>
    %1010 = arith.subf %1004, %1009 : vector<12x32xf32>
    %1011 = arith.mulf %1010, %1010 : vector<12x32xf32>
    %cst_438 = arith.constant dense<0.000000e+00> : vector<12xf32>
    %1012 = vector.multi_reduction <add>, %1011, %cst_438 [1] : vector<12x32xf32> to vector<12xf32>
    %1013 = vector.shape_cast %1012 : vector<12xf32> to vector<12x1xf32>
    %cst_439 = arith.constant 3.200000e+01 : f32
    %1014 = vector.broadcast %cst_439 : f32 to vector<12x1xf32>
    %1015 = arith.divf %1013, %1014 : vector<12x1xf32>
    %1016 = vector.broadcast %1008 : vector<12x1xf32> to vector<12x32xf32>
    %1017 = arith.subf %1004, %1016 : vector<12x32xf32>
    %cst_440 = arith.constant 9.99999974E-6 : f32
    %1018 = vector.broadcast %cst_440 : f32 to vector<12x1xf32>
    %1019 = arith.addf %1015, %1018 : vector<12x1xf32>
    %1020 = math.rsqrt %1019 : vector<12x1xf32>
    %1021 = vector.broadcast %1020 : vector<12x1xf32> to vector<12x32xf32>
    %1022 = arith.mulf %1017, %1021 : vector<12x32xf32>
    %1023 = vector.broadcast %751 : vector<1x32xf32> to vector<12x32xf32>
    %1024 = arith.mulf %1022, %1023 : vector<12x32xf32>
    %1025 = vector.broadcast %753 : vector<1x32xf32> to vector<12x32xf32>
    %1026 = arith.addf %1024, %1025 : vector<12x32xf32>
    %c0_441 = arith.constant 0 : index
    %c0_442 = arith.constant 0 : index
    %1027 = vector.load %arg48[%c0_441, %c0_442] : memref<12x32xf32, #tpu.memory_space<vmem>>, vector<12x32xf32>
    tpu.vector_store %arg48[%c0_441, %c0_442], %1026 {strides = array<i32>} : memref<12x32xf32, #tpu.memory_space<vmem>>, vector<12x32xf32>,
    return
  }
  func.func @transform_0(%arg0: i32) -> (i32, i32) {
    %c0_i32 = arith.constant 0 : i32
    %c0_i32_0 = arith.constant 0 : i32
    %c0_i32_1 = arith.constant 0 : i32
    return %c0_i32, %c0_i32_0 : i32, i32
  }
  func.func @transform_1(%arg0: i32) -> (i32, i32) {
    %c0_i32 = arith.constant 0 : i32
    %c0_i32_0 = arith.constant 0 : i32
    %c0_i32_1 = arith.constant 0 : i32
    return %c0_i32, %c0_i32_0 : i32, i32
  }
  func.func @transform_2(%arg0: i32) -> (i32, i32) {
    %c0_i32 = arith.constant 0 : i32
    %c0_i32_0 = arith.constant 0 : i32
    %c0_i32_1 = arith.constant 0 : i32
    return %c0_i32, %c0_i32_0 : i32, i32
  }
  func.func @transform_3(%arg0: i32) -> (i32, i32) {
    %c0_i32 = arith.constant 0 : i32
    %c0_i32_0 = arith.constant 0 : i32
    %c0_i32_1 = arith.constant 0 : i32
    return %c0_i32, %c0_i32_0 : i32, i32
  }
  func.func @transform_4(%arg0: i32) -> (i32, i32) {
    %c0_i32 = arith.constant 0 : i32
    %c0_i32_0 = arith.constant 0 : i32
    %c0_i32_1 = arith.constant 0 : i32
    return %c0_i32, %c0_i32_0 : i32, i32
  }
  func.func @transform_5(%arg0: i32) -> (i32, i32, i32) {
    %c0_i32 = arith.constant 0 : i32
    %c0_i32_0 = arith.constant 0 : i32
    %c0_i32_1 = arith.constant 0 : i32
    %c0_i32_2 = arith.constant 0 : i32
    return %c0_i32, %c0_i32_0, %c0_i32_1 : i32, i32, i32
  }
  func.func @transform_6(%arg0: i32) -> (i32, i32, i32) {
    %c0_i32 = arith.constant 0 : i32
    %c0_i32_0 = arith.constant 0 : i32
    %c0_i32_1 = arith.constant 0 : i32
    %c0_i32_2 = arith.constant 0 : i32
    return %c0_i32, %c0_i32_0, %c0_i32_1 : i32, i32, i32
  }
  func.func @transform_7(%arg0: i32) -> (i32, i32, i32) {
    %c0_i32 = arith.constant 0 : i32
    %c0_i32_0 = arith.constant 0 : i32
    %c0_i32_1 = arith.constant 0 : i32
    %c0_i32_2 = arith.constant 0 : i32
    return %c0_i32, %c0_i32_0, %c0_i32_1 : i32, i32, i32
  }
  func.func @transform_8(%arg0: i32) -> (i32, i32, i32) {
    %c0_i32 = arith.constant 0 : i32
    %c0_i32_0 = arith.constant 0 : i32
    %c0_i32_1 = arith.constant 0 : i32
    %c0_i32_2 = arith.constant 0 : i32
    return %c0_i32, %c0_i32_0, %c0_i32_1 : i32, i32, i32
  }
  func.func @transform_9(%arg0: i32) -> (i32, i32, i32) {
    %c0_i32 = arith.constant 0 : i32
    %c0_i32_0 = arith.constant 0 : i32
    %c0_i32_1 = arith.constant 0 : i32
    %c0_i32_2 = arith.constant 0 : i32
    return %c0_i32, %c0_i32_0, %c0_i32_1 : i32, i32, i32
  }
  func.func @transform_10(%arg0: i32) -> (i32, i32, i32) {
    %c0_i32 = arith.constant 0 : i32
    %c0_i32_0 = arith.constant 0 : i32
    %c0_i32_1 = arith.constant 0 : i32
    %c0_i32_2 = arith.constant 0 : i32
    return %c0_i32, %c0_i32_0, %c0_i32_1 : i32, i32, i32
  }
  func.func @transform_11(%arg0: i32) -> (i32, i32, i32) {
    %c0_i32 = arith.constant 0 : i32
    %c0_i32_0 = arith.constant 0 : i32
    %c0_i32_1 = arith.constant 0 : i32
    %c0_i32_2 = arith.constant 0 : i32
    return %c0_i32, %c0_i32_0, %c0_i32_1 : i32, i32, i32
  }
  func.func @transform_12(%arg0: i32) -> (i32, i32, i32) {
    %c0_i32 = arith.constant 0 : i32
    %c0_i32_0 = arith.constant 0 : i32
    %c0_i32_1 = arith.constant 0 : i32
    %c0_i32_2 = arith.constant 0 : i32
    return %c0_i32, %c0_i32_0, %c0_i32_1 : i32, i32, i32
  }
  func.func @transform_13(%arg0: i32) -> (i32, i32, i32) {
    %c0_i32 = arith.constant 0 : i32
    %c0_i32_0 = arith.constant 0 : i32
    %c0_i32_1 = arith.constant 0 : i32
    %c0_i32_2 = arith.constant 0 : i32
    return %c0_i32, %c0_i32_0, %c0_i32_1 : i32, i32, i32
  }
  func.func @transform_14(%arg0: i32) -> (i32, i32, i32) {
    %c0_i32 = arith.constant 0 : i32
    %c0_i32_0 = arith.constant 0 : i32
    %c0_i32_1 = arith.constant 0 : i32
    %c0_i32_2 = arith.constant 0 : i32
    return %c0_i32, %c0_i32_0, %c0_i32_1 : i32, i32, i32
  }
  func.func @transform_15(%arg0: i32) -> (i32, i32, i32) {
    %c0_i32 = arith.constant 0 : i32
    %c0_i32_0 = arith.constant 0 : i32
    %c0_i32_1 = arith.constant 0 : i32
    %c0_i32_2 = arith.constant 0 : i32
    return %c0_i32, %c0_i32_0, %c0_i32_1 : i32, i32, i32
  }
  func.func @transform_16(%arg0: i32) -> (i32, i32, i32) {
    %c0_i32 = arith.constant 0 : i32
    %c0_i32_0 = arith.constant 0 : i32
    %c0_i32_1 = arith.constant 0 : i32
    %c0_i32_2 = arith.constant 0 : i32
    return %c0_i32, %c0_i32_0, %c0_i32_1 : i32, i32, i32
  }
  func.func @transform_17(%arg0: i32) -> (i32, i32, i32) {
    %c0_i32 = arith.constant 0 : i32
    %c0_i32_0 = arith.constant 0 : i32
    %c0_i32_1 = arith.constant 0 : i32
    %c0_i32_2 = arith.constant 0 : i32
    return %c0_i32, %c0_i32_0, %c0_i32_1 : i32, i32, i32
  }
  func.func @transform_18(%arg0: i32) -> (i32, i32, i32) {
    %c0_i32 = arith.constant 0 : i32
    %c0_i32_0 = arith.constant 0 : i32
    %c0_i32_1 = arith.constant 0 : i32
    %c0_i32_2 = arith.constant 0 : i32
    return %c0_i32, %c0_i32_0, %c0_i32_1 : i32, i32, i32
  }
  func.func @transform_19(%arg0: i32) -> (i32, i32, i32) {
    %c0_i32 = arith.constant 0 : i32
    %c0_i32_0 = arith.constant 0 : i32
    %c0_i32_1 = arith.constant 0 : i32
    %c0_i32_2 = arith.constant 0 : i32
    return %c0_i32, %c0_i32_0, %c0_i32_1 : i32, i32, i32
  }
  func.func @transform_20(%arg0: i32) -> (i32, i32, i32) {
    %c0_i32 = arith.constant 0 : i32
    %c0_i32_0 = arith.constant 0 : i32
    %c0_i32_1 = arith.constant 0 : i32
    %c0_i32_2 = arith.constant 0 : i32
    return %c0_i32, %c0_i32_0, %c0_i32_1 : i32, i32, i32
  }
  func.func @transform_21(%arg0: i32) -> (i32, i32, i32) {
    %c0_i32 = arith.constant 0 : i32
    %c0_i32_0 = arith.constant 0 : i32
    %c0_i32_1 = arith.constant 0 : i32
    %c0_i32_2 = arith.constant 0 : i32
    return %c0_i32, %c0_i32_0, %c0_i32_1 : i32, i32, i32
  }
  func.func @transform_22(%arg0: i32) -> (i32, i32, i32) {
    %c0_i32 = arith.constant 0 : i32
    %c0_i32_0 = arith.constant 0 : i32
    %c0_i32_1 = arith.constant 0 : i32
    %c0_i32_2 = arith.constant 0 : i32
    return %c0_i32, %c0_i32_0, %c0_i32_1 : i32, i32, i32
  }
  func.func @transform_23(%arg0: i32) -> (i32, i32, i32) {
    %c0_i32 = arith.constant 0 : i32
    %c0_i32_0 = arith.constant 0 : i32
    %c0_i32_1 = arith.constant 0 : i32
    %c0_i32_2 = arith.constant 0 : i32
    return %c0_i32, %c0_i32_0, %c0_i32_1 : i32, i32, i32
  }
  func.func @transform_24(%arg0: i32) -> (i32, i32, i32) {
    %c0_i32 = arith.constant 0 : i32
    %c0_i32_0 = arith.constant 0 : i32
    %c0_i32_1 = arith.constant 0 : i32
    %c0_i32_2 = arith.constant 0 : i32
    return %c0_i32, %c0_i32_0, %c0_i32_1 : i32, i32, i32
  }
  func.func @transform_25(%arg0: i32) -> (i32, i32, i32) {
    %c0_i32 = arith.constant 0 : i32
    %c0_i32_0 = arith.constant 0 : i32
    %c0_i32_1 = arith.constant 0 : i32
    %c0_i32_2 = arith.constant 0 : i32
    return %c0_i32, %c0_i32_0, %c0_i32_1 : i32, i32, i32
  }
  func.func @transform_26(%arg0: i32) -> (i32, i32, i32) {
    %c0_i32 = arith.constant 0 : i32
    %c0_i32_0 = arith.constant 0 : i32
    %c0_i32_1 = arith.constant 0 : i32
    %c0_i32_2 = arith.constant 0 : i32
    return %c0_i32, %c0_i32_0, %c0_i32_1 : i32, i32, i32
  }
  func.func @transform_27(%arg0: i32) -> (i32, i32, i32) {
    %c0_i32 = arith.constant 0 : i32
    %c0_i32_0 = arith.constant 0 : i32
    %c0_i32_1 = arith.constant 0 : i32
    %c0_i32_2 = arith.constant 0 : i32
    return %c0_i32, %c0_i32_0, %c0_i32_1 : i32, i32, i32
  }
  func.func @transform_28(%arg0: i32) -> (i32, i32, i32) {
    %c0_i32 = arith.constant 0 : i32
    %c0_i32_0 = arith.constant 0 : i32
    %c0_i32_1 = arith.constant 0 : i32
    %c0_i32_2 = arith.constant 0 : i32
    return %c0_i32, %c0_i32_0, %c0_i32_1 : i32, i32, i32
  }
  func.func @transform_29(%arg0: i32) -> (i32, i32, i32) {
    %c0_i32 = arith.constant 0 : i32
    %c0_i32_0 = arith.constant 0 : i32
    %c0_i32_1 = arith.constant 0 : i32
    %c0_i32_2 = arith.constant 0 : i32
    return %c0_i32, %c0_i32_0, %c0_i32_1 : i32, i32, i32
  }
  func.func @transform_30(%arg0: i32) -> (i32, i32, i32) {
    %c0_i32 = arith.constant 0 : i32
    %c0_i32_0 = arith.constant 0 : i32
    %c0_i32_1 = arith.constant 0 : i32
    %c0_i32_2 = arith.constant 0 : i32
    return %c0_i32, %c0_i32_0, %c0_i32_1 : i32, i32, i32
  }
  func.func @transform_31(%arg0: i32) -> (i32, i32, i32) {
    %c0_i32 = arith.constant 0 : i32
    %c0_i32_0 = arith.constant 0 : i32
    %c0_i32_1 = arith.constant 0 : i32
    %c0_i32_2 = arith.constant 0 : i32
    return %c0_i32, %c0_i32_0, %c0_i32_1 : i32, i32, i32
  }
  func.func @transform_32(%arg0: i32) -> (i32, i32, i32) {
    %c0_i32 = arith.constant 0 : i32
    %c0_i32_0 = arith.constant 0 : i32
    %c0_i32_1 = arith.constant 0 : i32
    %c0_i32_2 = arith.constant 0 : i32
    return %c0_i32, %c0_i32_0, %c0_i32_1 : i32, i32, i32
  }
  func.func @transform_33(%arg0: i32) -> (i32, i32, i32) {
    %c0_i32 = arith.constant 0 : i32
    %c0_i32_0 = arith.constant 0 : i32
    %c0_i32_1 = arith.constant 0 : i32
    %c0_i32_2 = arith.constant 0 : i32
    return %c0_i32, %c0_i32_0, %c0_i32_1 : i32, i32, i32
  }
  func.func @transform_34(%arg0: i32) -> (i32, i32, i32) {
    %c0_i32 = arith.constant 0 : i32
    %c0_i32_0 = arith.constant 0 : i32
    %c0_i32_1 = arith.constant 0 : i32
    %c0_i32_2 = arith.constant 0 : i32
    return %c0_i32, %c0_i32_0, %c0_i32_1 : i32, i32, i32
  }
  func.func @transform_35(%arg0: i32) -> (i32, i32, i32) {
    %c0_i32 = arith.constant 0 : i32
    %c0_i32_0 = arith.constant 0 : i32
    %c0_i32_1 = arith.constant 0 : i32
    %c0_i32_2 = arith.constant 0 : i32
    return %c0_i32, %c0_i32_0, %c0_i32_1 : i32, i32, i32
  }
  func.func @transform_36(%arg0: i32) -> (i32, i32, i32) {
    %c0_i32 = arith.constant 0 : i32
    %c0_i32_0 = arith.constant 0 : i32
    %c0_i32_1 = arith.constant 0 : i32
    %c0_i32_2 = arith.constant 0 : i32
    return %c0_i32, %c0_i32_0, %c0_i32_1 : i32, i32, i32
  }
  func.func @transform_37(%arg0: i32) -> (i32, i32, i32) {
    %c0_i32 = arith.constant 0 : i32
    %c0_i32_0 = arith.constant 0 : i32
    %c0_i32_1 = arith.constant 0 : i32
    %c0_i32_2 = arith.constant 0 : i32
    return %c0_i32, %c0_i32_0, %c0_i32_1 : i32, i32, i32
  }
  func.func @transform_38(%arg0: i32) -> (i32, i32, i32) {
    %c0_i32 = arith.constant 0 : i32
    %c0_i32_0 = arith.constant 0 : i32
    %c0_i32_1 = arith.constant 0 : i32
    %c0_i32_2 = arith.constant 0 : i32
    return %c0_i32, %c0_i32_0, %c0_i32_1 : i32, i32, i32
  }
  func.func @transform_39(%arg0: i32) -> (i32, i32, i32) {
    %c0_i32 = arith.constant 0 : i32
    %c0_i32_0 = arith.constant 0 : i32
    %c0_i32_1 = arith.constant 0 : i32
    %c0_i32_2 = arith.constant 0 : i32
    return %c0_i32, %c0_i32_0, %c0_i32_1 : i32, i32, i32
  }
  func.func @transform_40(%arg0: i32) -> (i32, i32, i32) {
    %c0_i32 = arith.constant 0 : i32
    %c0_i32_0 = arith.constant 0 : i32
    %c0_i32_1 = arith.constant 0 : i32
    %c0_i32_2 = arith.constant 0 : i32
    return %c0_i32, %c0_i32_0, %c0_i32_1 : i32, i32, i32
  }
  func.func @transform_41(%arg0: i32) -> (i32, i32, i32) {
    %c0_i32 = arith.constant 0 : i32
    %c0_i32_0 = arith.constant 0 : i32
    %c0_i32_1 = arith.constant 0 : i32
    %c0_i32_2 = arith.constant 0 : i32
    return %c0_i32, %c0_i32_0, %c0_i32_1 : i32, i32, i32
  }
  func.func @transform_42(%arg0: i32) -> (i32, i32, i32) {
    %c0_i32 = arith.constant 0 : i32
    %c0_i32_0 = arith.constant 0 : i32
    %c0_i32_1 = arith.constant 0 : i32
    %c0_i32_2 = arith.constant 0 : i32
    return %c0_i32, %c0_i32_0, %c0_i32_1 : i32, i32, i32
  }
  func.func @transform_43(%arg0: i32) -> (i32, i32, i32) {
    %c0_i32 = arith.constant 0 : i32
    %c0_i32_0 = arith.constant 0 : i32
    %c0_i32_1 = arith.constant 0 : i32
    %c0_i32_2 = arith.constant 0 : i32
    return %c0_i32, %c0_i32_0, %c0_i32_1 : i32, i32, i32
  }
  func.func @transform_44(%arg0: i32) -> (i32, i32, i32) {
    %c0_i32 = arith.constant 0 : i32
    %c0_i32_0 = arith.constant 0 : i32
    %c0_i32_1 = arith.constant 0 : i32
    %c0_i32_2 = arith.constant 0 : i32
    return %c0_i32, %c0_i32_0, %c0_i32_1 : i32, i32, i32
  }
  func.func @transform_45(%arg0: i32) -> (i32, i32, i32) {
    %c0_i32 = arith.constant 0 : i32
    %c0_i32_0 = arith.constant 0 : i32
    %c0_i32_1 = arith.constant 0 : i32
    %c0_i32_2 = arith.constant 0 : i32
    return %c0_i32, %c0_i32_0, %c0_i32_1 : i32, i32, i32
  }
  func.func @transform_46(%arg0: i32) -> (i32, i32, i32) {
    %c0_i32 = arith.constant 0 : i32
    %c0_i32_0 = arith.constant 0 : i32
    %c0_i32_1 = arith.constant 0 : i32
    %c0_i32_2 = arith.constant 0 : i32
    return %c0_i32, %c0_i32_0, %c0_i32_1 : i32, i32, i32
  }
  func.func @transform_47(%arg0: i32) -> (i32, i32) {
    %c0_i32 = arith.constant 0 : i32
    %c0_i32_0 = arith.constant 0 : i32
    %c0_i32_1 = arith.constant 0 : i32
    return %c0_i32, %c0_i32_0 : i32, i32
  }
}

</mosaic_0001>

<llo_original>
// kernel: eq.22
$region0: #{eq.22}
  %s0 = inlined_call_operand.vmem [shape: s32[2,8], index: 0, kind: input, shape index: {}]
  %s1 = inlined_call_operand.vmem [shape: s32[16], index: 1, kind: output, shape index: {}]
  $region1: #{eq.22} parent=0
    #allocation0 [shape = 'u8[4096]{0}', space=vmem, size = 0x1000, scoped, tag = 'scoped mem for output reshape']
    #allocation1 [shape = 'u8[4096]{0}', space=vmem, size = 0x1000, scoped, tag = 'scoped mem for input reshape']
    %s3 = sshllo.u32 0, 2
    %v4 = vld [vmem:[%s0] sm:%s3]
    %5 = vst [vmem:[#allocation1] sm:%s3] %v4
    %v6 = vld [vmem:[#allocation1] sm:$0x1]
    %vm7 = vcmask 64512
    %8 = vst.msk [vmem:[#allocation0] sm:$0x1] %vm7, %v6
    %s9 = scalar_lea.vmem [#allocation1], 1
    %v10 = vld [vmem:[%s9] sm:$0x1]
    %11 = vrot.lane.b32.xlu0 %v10, 8
    %v12 = vpop.permute.xlu0 %11
    %vm13 = vcmask 130112
    %14 = vst.msk [vmem:[#allocation0] sm:$0x1] %vm13, %v12
    %s16 = sshllo.u32 0, 1
    %v18 = vld [vmem:[#allocation0] sm:%s16]
    %s19 = sshllo.u32 0, 1
    %20 = vst [vmem:[%s1] sm:%s19] %v18

// kernel: eq.29
$region0: #{eq.29}
  %s0 = inlined_call_operand.vmem [shape: s32[2,6], index: 0, kind: input, shape index: {}]
  %s1 = inlined_call_operand.vmem [shape: s32[12], index: 1, kind: output, shape index: {}]
  $region1: #{eq.29} parent=0
    #allocation0 [shape = 'u8[4096]{0}', space=vmem, size = 0x1000, scoped, tag = 'scoped mem for output reshape']
    #allocation1 [shape = 'u8[4096]{0}', space=vmem, size = 0x1000, scoped, tag = 'scoped mem for input reshape']
    %s3 = sshllo.u32 0, 2
    %v4 = vld [vmem:[%s0] sm:%s3]
    %5 = vst [vmem:[#allocation1] sm:%s3] %v4
    %v6 = vld [vmem:[#allocation1] sm:$0x1]
    %vm7 = vcmask 48128
    %8 = vst.msk [vmem:[#allocation0] sm:$0x1] %vm7, %v6
    %s9 = scalar_lea.vmem [#allocation1], 1
    %v10 = vld [vmem:[%s9] sm:$0x1]
    %11 = vrot.lane.b32.xlu0 %v10, 6
    %v12 = vpop.permute.xlu0 %11
    %vm13 = vcmask 97328
    %14 = vst.msk [vmem:[#allocation0] sm:$0x1] %vm13, %v12
    %s16 = sshllo.u32 0, 1
    %v18 = vld [vmem:[#allocation0] sm:%s16]
    %s19 = sshllo.u32 0, 1
    %20 = vst [vmem:[%s1] sm:%s19] %v18

// kernel: transformer_forward.1
$region0: #{transformer_forward.1}
  #allocation0 [shape = 'u32[]', space=smem, size = 0x4, offset = 0x4, fixed_abs, tag = 'smem constant byte address 0x4 - core index']
  #allocation1 [shape = 'u32[144,128]{1,0:T(1,128)}', space=vmem, size = 0x12000, scoped, tag = 'internal scratch']
  %s0 = inlined_call_operand.smem [shape: u32[48], index: -1, kind: input, shape index: {}]
  %s1 = sld [smem:[%s0]]
  %s2 = scalar_lea.smem %s0, 1
  %s3 = sld [smem:[%s2]]
  %s4 = scalar_lea.smem %s0, 2
  %s5 = sld [smem:[%s4]]
  %s6 = scalar_lea.smem %s0, 3
  %s7 = sld [smem:[%s6]]
  %s8 = scalar_lea.smem %s0, 4
  %s9 = sld [smem:[%s8]]
  %s10 = scalar_lea.smem %s0, 5
  %s11 = sld [smem:[%s10]]
  %s12 = scalar_lea.smem %s0, 6
  %s13 = sld [smem:[%s12]]
  %s14 = scalar_lea.smem %s0, 7
  %s15 = sld [smem:[%s14]]
  %s16 = scalar_lea.smem %s0, 8
  %s17 = sld [smem:[%s16]]
  %s18 = scalar_lea.smem %s0, 9
  %s19 = sld [smem:[%s18]]
  %s20 = scalar_lea.smem %s0, 10
  %s21 = sld [smem:[%s20]]
  %s22 = scalar_lea.smem %s0, 11
  %s23 = sld [smem:[%s22]]
  %s24 = scalar_lea.smem %s0, 12
  %s25 = sld [smem:[%s24]]
  %s26 = scalar_lea.smem %s0, 13
  %s27 = sld [smem:[%s26]]
  %s28 = scalar_lea.smem %s0, 14
  %s29 = sld [smem:[%s28]]
  %s30 = scalar_lea.smem %s0, 15
  %s31 = sld [smem:[%s30]]
  %s32 = scalar_lea.smem %s0, 16
  %s33 = sld [smem:[%s32]]
  %s34 = scalar_lea.smem %s0, 17
  %s35 = sld [smem:[%s34]]
  %s36 = scalar_lea.smem %s0, 18
  %s37 = sld [smem:[%s36]]
  %s38 = scalar_lea.smem %s0, 19
  %s39 = sld [smem:[%s38]]
  %s40 = scalar_lea.smem %s0, 20
  %s41 = sld [smem:[%s40]]
  %s42 = scalar_lea.smem %s0, 21
  %s43 = sld [smem:[%s42]]
  %s44 = scalar_lea.smem %s0, 22
  %s45 = sld [smem:[%s44]]
  %s46 = scalar_lea.smem %s0, 23
  %s47 = sld [smem:[%s46]]
  %s48 = scalar_lea.smem %s0, 24
  %s49 = sld [smem:[%s48]]
  %s50 = scalar_lea.smem %s0, 25
  %s51 = sld [smem:[%s50]]
  %s52 = scalar_lea.smem %s0, 26
  %s53 = sld [smem:[%s52]]
  %s54 = scalar_lea.smem %s0, 27
  %s55 = sld [smem:[%s54]]
  %s56 = scalar_lea.smem %s0, 28
  %s57 = sld [smem:[%s56]]
  %s58 = scalar_lea.smem %s0, 29
  %s59 = sld [smem:[%s58]]
  %s60 = scalar_lea.smem %s0, 30
  %s61 = sld [smem:[%s60]]
  %s62 = scalar_lea.smem %s0, 31
  %s63 = sld [smem:[%s62]]
  %s64 = scalar_lea.smem %s0, 32
  %s65 = sld [smem:[%s64]]
  %s66 = scalar_lea.smem %s0, 33
  %s67 = sld [smem:[%s66]]
  %s68 = scalar_lea.smem %s0, 34
  %s69 = sld [smem:[%s68]]
  %s70 = scalar_lea.smem %s0, 35
  %s71 = sld [smem:[%s70]]
  %s72 = scalar_lea.smem %s0, 36
  %s73 = sld [smem:[%s72]]
  %s74 = scalar_lea.smem %s0, 37
  %s75 = sld [smem:[%s74]]
  %s76 = scalar_lea.smem %s0, 38
  %s77 = sld [smem:[%s76]]
  %s78 = scalar_lea.smem %s0, 39
  %s79 = sld [smem:[%s78]]
  %s80 = scalar_lea.smem %s0, 40
  %s81 = sld [smem:[%s80]]
  %s82 = scalar_lea.smem %s0, 41
  %s83 = sld [smem:[%s82]]
  %s84 = scalar_lea.smem %s0, 42
  %s85 = sld [smem:[%s84]]
  %s86 = scalar_lea.smem %s0, 43
  %s87 = sld [smem:[%s86]]
  %s88 = scalar_lea.smem %s0, 44
  %s89 = sld [smem:[%s88]]
  %s90 = scalar_lea.smem %s0, 45
  %s91 = sld [smem:[%s90]]
  %s92 = scalar_lea.smem %s0, 46
  %s93 = sld [smem:[%s92]]
  %s94 = scalar_lea.smem %s0, 47
  %s95 = sld [smem:[%s94]]
  %s96 = sld [smem:[#allocation0]]
  $region262: #{transformer_forward.1} parent=0
    _
  %s98 = ssub.s32 1, %s96
  %s99 = scalar_select 0, %s98, %s96
  $region1: #{transformer_forward.1} parent=0
    #allocation2 [shape = 'u8[1024]{0}', space=vmem, size = 0x400, scoped, tag = 'input window, operand 26, single buffered']
    #allocation3 [shape = 's32[1]{0}', space=sflag, size = 0x4, scoped, tag = 'scoped memory for transformer_forward.1']
    #allocation4 [shape = 'u8[1024]{0}', space=vmem, size = 0x400, scoped, tag = 'input window, operand 28, single buffered']
    #allocation5 [shape = 's32[1]{0}', space=sflag, size = 0x4, scoped, tag = 'scoped memory for transformer_forward.1']
    #allocation6 [shape = 'u8[1024]{0}', space=vmem, size = 0x400, scoped, tag = 'input window, operand 29, single buffered']
    #allocation7 [shape = 'u8[1024]{0}', space=vmem, size = 0x400, scoped, tag = 'input window, operand 30, single buffered']
    #allocation8 [shape = 's32[1]{0}', space=sflag, size = 0x4, scoped, tag = 'scoped memory for transformer_forward.1']
    #allocation9 [shape = 'u8[1024]{0}', space=vmem, size = 0x400, scoped, tag = 'input window, operand 34, single buffered']
    #allocation10 [shape = 'u8[1024]{0}', space=vmem, size = 0x400, scoped, tag = 'input window, operand 35, single buffered']
    #allocation11 [shape = 's32[1]{0}', space=sflag, size = 0x4, scoped, tag = 'scoped memory for transformer_forward.1']
    #allocation12 [shape = 'u8[1024]{0}', space=vmem, size = 0x400, scoped, tag = 'input window, operand 36, single buffered']
    #allocation13 [shape = 'u8[16384]{0}', space=vmem, size = 0x4000, scoped, tag = 'input window, operand 37, single buffered']
    #allocation14 [shape = 's32[1]{0}', space=sflag, size = 0x4, scoped, tag = 'scoped memory for transformer_forward.1']
    #allocation15 [shape = 'u8[1024]{0}', space=vmem, size = 0x400, scoped, tag = 'input window, operand 38, single buffered']
    #allocation16 [shape = 'u8[1024]{0}', space=vmem, size = 0x400, scoped, tag = 'input window, operand 39, single buffered']
    #allocation17 [shape = 's32[1]{0}', space=sflag, size = 0x4, scoped, tag = 'scoped memory for transformer_forward.1']
    #allocation18 [shape = 'u8[1024]{0}', space=vmem, size = 0x400, scoped, tag = 'input window, operand 40, single buffered']
    #allocation19 [shape = 'u8[16384]{0}', space=vmem, size = 0x4000, scoped, tag = 'input window, operand 41, single buffered']
    #allocation20 [shape = 's32[1]{0}', space=sflag, size = 0x4, scoped, tag = 'scoped memory for transformer_forward.1']
    #allocation21 [shape = 'u8[1024]{0}', space=vmem, size = 0x400, scoped, tag = 'input window, operand 42, single buffered']
    #allocation22 [shape = 'u8[1024]{0}', space=vmem, size = 0x400, scoped, tag = 'input window, operand 44, single buffered']
    #allocation23 [shape = 's32[1]{0}', space=sflag, size = 0x4, scoped, tag = 'scoped memory for transformer_forward.1']
    #allocation24 [shape = 'u8[1024]{0}', space=vmem, size = 0x400, scoped, tag = 'input window, operand 45, single buffered']
    #allocation25 [shape = 'u8[1024]{0}', space=vmem, size = 0x400, scoped, tag = 'input window, operand 46, single buffered']
    #allocation26 [shape = 's32[1]{0}', space=sflag, size = 0x4, scoped, tag = 'scoped memory for transformer_forward.1']
    %100 = vsyncpa [#allocation3], 0
    %101 = vsyncpa [#allocation5], 0
    %102 = vsyncpa [#allocation8], 0
    %103 = vsyncpa [#allocation11], 0
    %104 = vsyncpa [#allocation14], 0
    %105 = vsyncpa [#allocation17], 0
    %106 = vsyncpa [#allocation20], 0
    %107 = vsyncpa [#allocation23], 0
    %108 = vsyncpa [#allocation26], 0
    // Predicated region
    $region2: #{transformer_forward.1} parent=1 // pred_check
      _
    $region3: #{transformer_forward.1} parent=1 // pred_check_branch
      %110 = sbr.rel (0) target = $region5
    $region4: #{transformer_forward.1} parent=1 // pred_region
      _
    $region5: #{transformer_forward.1} parent=1 // pred_fallthru
      _
    // Predicated region
    $region6: #{transformer_forward.1} parent=1 // pred_check
      _
    $region7: #{transformer_forward.1} parent=1 // pred_check_branch
      %112 = sbr.rel (0) target = $region9
    $region8: #{transformer_forward.1} parent=1 // pred_region
      _
    $region9: #{transformer_forward.1} parent=1 // pred_fallthru
      _
    // Predicated region
    $region10: #{transformer_forward.1} parent=1 // pred_check
      _
    $region11: #{transformer_forward.1} parent=1 // pred_check_branch
      %114 = sbr.rel (0) target = $region13
    $region12: #{transformer_forward.1} parent=1 // pred_region
      _
    $region13: #{transformer_forward.1} parent=1 // pred_fallthru
      _
    // Predicated region
    $region14: #{transformer_forward.1} parent=1 // pred_check
      _
    $region15: #{transformer_forward.1} parent=1 // pred_check_branch
      %116 = sbr.rel (0) target = $region17
    $region16: #{transformer_forward.1} parent=1 // pred_region
      _
    $region17: #{transformer_forward.1} parent=1 // pred_fallthru
      _
    // Predicated region
    $region18: #{transformer_forward.1} parent=1 // pred_check
      _
    $region19: #{transformer_forward.1} parent=1 // pred_check_branch
      %118 = sbr.rel (0) target = $region21
    $region20: #{transformer_forward.1} parent=1 // pred_region
      _
    $region21: #{transformer_forward.1} parent=1 // pred_fallthru
      _
    // Predicated region
    $region22: #{transformer_forward.1} parent=1 // pred_check
      _
    $region23: #{transformer_forward.1} parent=1 // pred_check_branch
      %120 = sbr.rel (0) target = $region25
    $region24: #{transformer_forward.1} parent=1 // pred_region
      _
    $region25: #{transformer_forward.1} parent=1 // pred_fallthru
      _
    // Predicated region
    $region26: #{transformer_forward.1} parent=1 // pred_check
      _
    $region27: #{transformer_forward.1} parent=1 // pred_check_branch
      %122 = sbr.rel (0) target = $region29
    $region28: #{transformer_forward.1} parent=1 // pred_region
      _
    $region29: #{transformer_forward.1} parent=1 // pred_fallthru
      _
    // Predicated region
    $region30: #{transformer_forward.1} parent=1 // pred_check
      _
    $region31: #{transformer_forward.1} parent=1 // pred_check_branch
      %124 = sbr.rel (0) target = $region33
    $region32: #{transformer_forward.1} parent=1 // pred_region
      _
    $region33: #{transformer_forward.1} parent=1 // pred_fallthru
      _
    // Predicated region
    $region34: #{transformer_forward.1} parent=1 // pred_check
      _
    $region35: #{transformer_forward.1} parent=1 // pred_check_branch
      %126 = sbr.rel (0) target = $region37
    $region36: #{transformer_forward.1} parent=1 // pred_region
      _
    $region37: #{transformer_forward.1} parent=1 // pred_fallthru
      _
    // Predicated region
    $region38: #{transformer_forward.1} parent=1 // pred_check
      _
    $region39: #{transformer_forward.1} parent=1 // pred_check_branch
      %128 = sbr.rel (0) target = $region41
    $region40: #{transformer_forward.1} parent=1 // pred_region
      _
    $region41: #{transformer_forward.1} parent=1 // pred_fallthru
      _
    // Predicated region
    $region42: #{transformer_forward.1} parent=1 // pred_check
      _
    $region43: #{transformer_forward.1} parent=1 // pred_check_branch
      %130 = sbr.rel (0) target = $region45
    $region44: #{transformer_forward.1} parent=1 // pred_region
      _
    $region45: #{transformer_forward.1} parent=1 // pred_fallthru
      _
    // Predicated region
    $region46: #{transformer_forward.1} parent=1 // pred_check
      _
    $region47: #{transformer_forward.1} parent=1 // pred_check_branch
      %132 = sbr.rel (0) target = $region49
    $region48: #{transformer_forward.1} parent=1 // pred_region
      _
    $region49: #{transformer_forward.1} parent=1 // pred_fallthru
      _
    // Predicated region
    $region50: #{transformer_forward.1} parent=1 // pred_check
      _
    $region51: #{transformer_forward.1} parent=1 // pred_check_branch
      %134 = sbr.rel (0) target = $region53
    $region52: #{transformer_forward.1} parent=1 // pred_region
      _
    $region53: #{transformer_forward.1} parent=1 // pred_fallthru
      _
    // Predicated region
    $region54: #{transformer_forward.1} parent=1 // pred_check
      _
    $region55: #{transformer_forward.1} parent=1 // pred_check_branch
      %136 = sbr.rel (0) target = $region57
    $region56: #{transformer_forward.1} parent=1 // pred_region
      _
    $region57: #{transformer_forward.1} parent=1 // pred_fallthru
      _
    // Predicated region
    $region58: #{transformer_forward.1} parent=1 // pred_check
      _
    $region59: #{transformer_forward.1} parent=1 // pred_check_branch
      %138 = sbr.rel (0) target = $region61
    $region60: #{transformer_forward.1} parent=1 // pred_region
      _
    $region61: #{transformer_forward.1} parent=1 // pred_fallthru
      _
    // Predicated region
    $region62: #{transformer_forward.1} parent=1 // pred_check
      _
    $region63: #{transformer_forward.1} parent=1 // pred_check_branch
      %140 = sbr.rel (0) target = $region65
    $region64: #{transformer_forward.1} parent=1 // pred_region
      _
    $region65: #{transformer_forward.1} parent=1 // pred_fallthru
      _
    // Predicated region
    $region66: #{transformer_forward.1} parent=1 // pred_check
      _
    $region67: #{transformer_forward.1} parent=1 // pred_check_branch
      %142 = sbr.rel (0) target = $region69
    $region68: #{transformer_forward.1} parent=1 // pred_region
      _
    $region69: #{transformer_forward.1} parent=1 // pred_fallthru
      _
    // Predicated region
    $region70: #{transformer_forward.1} parent=1 // pred_check
      _
    $region71: #{transformer_forward.1} parent=1 // pred_check_branch
      %144 = sbr.rel (0) target = $region73
    $region72: #{transformer_forward.1} parent=1 // pred_region
      _
    $region73: #{transformer_forward.1} parent=1 // pred_fallthru
      _
    // Predicated region
    $region74: #{transformer_forward.1} parent=1 // pred_check
      _
    $region75: #{transformer_forward.1} parent=1 // pred_check_branch
      %146 = sbr.rel (0) target = $region77
    $region76: #{transformer_forward.1} parent=1 // pred_region
      _
    $region77: #{transformer_forward.1} parent=1 // pred_fallthru
      _
    // Predicated region
    $region78: #{transformer_forward.1} parent=1 // pred_check
      _
    $region79: #{transformer_forward.1} parent=1 // pred_check_branch
      %148 = sbr.rel (0) target = $region81
    $region80: #{transformer_forward.1} parent=1 // pred_region
      _
    $region81: #{transformer_forward.1} parent=1 // pred_fallthru
      _
    // Predicated region
    $region82: #{transformer_forward.1} parent=1 // pred_check
      _
    $region83: #{transformer_forward.1} parent=1 // pred_check_branch
      %150 = sbr.rel (0) target = $region85
    $region84: #{transformer_forward.1} parent=1 // pred_region
      _
    $region85: #{transformer_forward.1} parent=1 // pred_fallthru
      _
    // Predicated region
    $region86: #{transformer_forward.1} parent=1 // pred_check
      _
    $region87: #{transformer_forward.1} parent=1 // pred_check_branch
      %152 = sbr.rel (0) target = $region89
    $region88: #{transformer_forward.1} parent=1 // pred_region
      _
    $region89: #{transformer_forward.1} parent=1 // pred_fallthru
      _
    // Predicated region
    $region90: #{transformer_forward.1} parent=1 // pred_check
      _
    $region91: #{transformer_forward.1} parent=1 // pred_check_branch
      %154 = sbr.rel (0) target = $region93
    $region92: #{transformer_forward.1} parent=1 // pred_region
      _
    $region93: #{transformer_forward.1} parent=1 // pred_fallthru
      _
    // Predicated region
    $region94: #{transformer_forward.1} parent=1 // pred_check
      _
    $region95: #{transformer_forward.1} parent=1 // pred_check_branch
      %156 = sbr.rel (0) target = $region97
    $region96: #{transformer_forward.1} parent=1 // pred_region
      _
    $region97: #{transformer_forward.1} parent=1 // pred_fallthru
      _
    // Predicated region
    $region98: #{transformer_forward.1} parent=1 // pred_check
      _
    $region99: #{transformer_forward.1} parent=1 // pred_check_branch
      %158 = sbr.rel (0) target = $region101
    $region100: #{transformer_forward.1} parent=1 // pred_region
      _
    $region101: #{transformer_forward.1} parent=1 // pred_fallthru
      _
    // Predicated region
    $region102: #{transformer_forward.1} parent=1 // pred_check
      _
    $region103: #{transformer_forward.1} parent=1 // pred_check_branch
      %160 = sbr.rel (0) target = $region105
    $region104: #{transformer_forward.1} parent=1 // pred_region
      _
    $region105: #{transformer_forward.1} parent=1 // pred_fallthru
      _
    // Predicated region
    $region106: #{transformer_forward.1} parent=1 // pred_check
      _
    $region107: #{transformer_forward.1} parent=1 // pred_check_branch
      %162 = sbr.rel (0) target = $region109
    $region108: #{transformer_forward.1} parent=1 // pred_region
      %s164 = ssub.s32 32, 32
      %165 = vsyncadd [#allocation3], %s164
      %s166 = sshll.u32 [#allocation2], 4
      %s167 = int_to_ptr.vmem [resolvable:$true] %s166
      %172 = dma.hbm_to_vmem [thread:$0]  %s53, 32, %s167, [#allocation3], 16, 16, 1
    $region109: #{transformer_forward.1} parent=1 // pred_fallthru
      _
    // Predicated region
    $region110: #{transformer_forward.1} parent=1 // pred_check
      _
    $region111: #{transformer_forward.1} parent=1 // pred_check_branch
      %174 = sbr.rel (0) target = $region113
    $region112: #{transformer_forward.1} parent=1 // pred_region
      _
    $region113: #{transformer_forward.1} parent=1 // pred_fallthru
      _
    // Predicated region
    $region114: #{transformer_forward.1} parent=1 // pred_check
      _
    $region115: #{transformer_forward.1} parent=1 // pred_check_branch
      %176 = sbr.rel (0) target = $region117
    $region116: #{transformer_forward.1} parent=1 // pred_region
      %s178 = ssub.s32 32, 32
      %179 = vsyncadd [#allocation5], %s178
      %s180 = sshll.u32 [#allocation4], 4
      %s181 = int_to_ptr.vmem [resolvable:$true] %s180
      %186 = dma.hbm_to_vmem [thread:$0]  %s57, 32, %s181, [#allocation5], 16, 16, 1
    $region117: #{transformer_forward.1} parent=1 // pred_fallthru
      _
    // Predicated region
    $region118: #{transformer_forward.1} parent=1 // pred_check
      _
    $region119: #{transformer_forward.1} parent=1 // pred_check_branch
      %188 = sbr.rel (0) target = $region121
    $region120: #{transformer_forward.1} parent=1 // pred_region
      %s190 = ssub.s32 32, 32
      %191 = vsyncadd [#allocation5], %s190
      %s192 = sshll.u32 [#allocation6], 4
      %s193 = int_to_ptr.vmem [resolvable:$true] %s192
      %198 = dma.hbm_to_vmem [thread:$0]  %s59, 32, %s193, [#allocation5], 16, 16, 1
    $region121: #{transformer_forward.1} parent=1 // pred_fallthru
      _
    // Predicated region
    $region122: #{transformer_forward.1} parent=1 // pred_check
      _
    $region123: #{transformer_forward.1} parent=1 // pred_check_branch
      %200 = sbr.rel (0) target = $region125
    $region124: #{transformer_forward.1} parent=1 // pred_region
      %s202 = ssub.s32 32, 32
      %203 = vsyncadd [#allocation8], %s202
      %s204 = sshll.u32 [#allocation7], 4
      %s205 = int_to_ptr.vmem [resolvable:$true] %s204
      %210 = dma.hbm_to_vmem [thread:$0]  %s61, 32, %s205, [#allocation8], 16, 16, 1
    $region125: #{transformer_forward.1} parent=1 // pred_fallthru
      _
    // Predicated region
    $region126: #{transformer_forward.1} parent=1 // pred_check
      _
    $region127: #{transformer_forward.1} parent=1 // pred_check_branch
      %212 = sbr.rel (0) target = $region129
    $region128: #{transformer_forward.1} parent=1 // pred_region
      _
    $region129: #{transformer_forward.1} parent=1 // pred_fallthru
      _
    // Predicated region
    $region130: #{transformer_forward.1} parent=1 // pred_check
      _
    $region131: #{transformer_forward.1} parent=1 // pred_check_branch
      %214 = sbr.rel (0) target = $region133
    $region132: #{transformer_forward.1} parent=1 // pred_region
      _
    $region133: #{transformer_forward.1} parent=1 // pred_fallthru
      _
    // Predicated region
    $region134: #{transformer_forward.1} parent=1 // pred_check
      _
    $region135: #{transformer_forward.1} parent=1 // pred_check_branch
      %216 = sbr.rel (0) target = $region137
    $region136: #{transformer_forward.1} parent=1 // pred_region
      _
    $region137: #{transformer_forward.1} parent=1 // pred_fallthru
      _
    // Predicated region
    $region138: #{transformer_forward.1} parent=1 // pred_check
      _
    $region139: #{transformer_forward.1} parent=1 // pred_check_branch
      %218 = sbr.rel (0) target = $region141
    $region140: #{transformer_forward.1} parent=1 // pred_region
      %s220 = ssub.s32 32, 32
      %221 = vsyncadd [#allocation8], %s220
      %s222 = sshll.u32 [#allocation9], 4
      %s223 = int_to_ptr.vmem [resolvable:$true] %s222
      %228 = dma.hbm_to_vmem [thread:$0]  %s69, 32, %s223, [#allocation8], 16, 16, 1
    $region141: #{transformer_forward.1} parent=1 // pred_fallthru
      _
    // Predicated region
    $region142: #{transformer_forward.1} parent=1 // pred_check
      _
    $region143: #{transformer_forward.1} parent=1 // pred_check_branch
      %230 = sbr.rel (0) target = $region145
    $region144: #{transformer_forward.1} parent=1 // pred_region
      %s232 = ssub.s32 32, 32
      %233 = vsyncadd [#allocation11], %s232
      %s234 = sshll.u32 [#allocation10], 4
      %s235 = int_to_ptr.vmem [resolvable:$true] %s234
      %240 = dma.hbm_to_vmem [thread:$0]  %s71, 32, %s235, [#allocation11], 16, 16, 1
    $region145: #{transformer_forward.1} parent=1 // pred_fallthru
      _
    // Predicated region
    $region146: #{transformer_forward.1} parent=1 // pred_check
      _
    $region147: #{transformer_forward.1} parent=1 // pred_check_branch
      %242 = sbr.rel (0) target = $region149
    $region148: #{transformer_forward.1} parent=1 // pred_region
      %s244 = ssub.s32 32, 32
      %245 = vsyncadd [#allocation11], %s244
      %s246 = sshll.u32 [#allocation12], 4
      %s247 = int_to_ptr.vmem [resolvable:$true] %s246
      %252 = dma.hbm_to_vmem [thread:$0]  %s73, 32, %s247, [#allocation11], 16, 16, 1
    $region149: #{transformer_forward.1} parent=1 // pred_fallthru
      _
    // Predicated region
    $region150: #{transformer_forward.1} parent=1 // pred_check
      _
    $region151: #{transformer_forward.1} parent=1 // pred_check_branch
      %254 = sbr.rel (0) target = $region153
    $region152: #{transformer_forward.1} parent=1 // pred_region
      %s256 = ssub.s32 512, 512
      %257 = vsyncadd [#allocation14], %s256
      %s258 = sshll.u32 [#allocation13], 4
      %s259 = int_to_ptr.vmem [resolvable:$true] %s258
      %264 = dma.hbm_to_vmem [thread:$0]  %s75, 512, %s259, [#allocation14], 64, 64, 4
    $region153: #{transformer_forward.1} parent=1 // pred_fallthru
      _
    // Predicated region
    $region154: #{transformer_forward.1} parent=1 // pred_check
      _
    $region155: #{transformer_forward.1} parent=1 // pred_check_branch
      %266 = sbr.rel (0) target = $region157
    $region156: #{transformer_forward.1} parent=1 // pred_region
      %s268 = ssub.s32 32, 32
      %269 = vsyncadd [#allocation14], %s268
      %s270 = sshll.u32 [#allocation15], 4
      %s271 = int_to_ptr.vmem [resolvable:$true] %s270
      %276 = dma.hbm_to_vmem [thread:$0]  %s77, 32, %s271, [#allocation14], 16, 16, 1
    $region157: #{transformer_forward.1} parent=1 // pred_fallthru
      _
    // Predicated region
    $region158: #{transformer_forward.1} parent=1 // pred_check
      _
    $region159: #{transformer_forward.1} parent=1 // pred_check_branch
      %278 = sbr.rel (0) target = $region161
    $region160: #{transformer_forward.1} parent=1 // pred_region
      %s280 = ssub.s32 32, 32
      %281 = vsyncadd [#allocation17], %s280
      %s282 = sshll.u32 [#allocation16], 4
      %s283 = int_to_ptr.vmem [resolvable:$true] %s282
      %288 = dma.hbm_to_vmem [thread:$0]  %s79, 32, %s283, [#allocation17], 16, 16, 1
    $region161: #{transformer_forward.1} parent=1 // pred_fallthru
      _
    // Predicated region
    $region162: #{transformer_forward.1} parent=1 // pred_check
      _
    $region163: #{transformer_forward.1} parent=1 // pred_check_branch
      %290 = sbr.rel (0) target = $region165
    $region164: #{transformer_forward.1} parent=1 // pred_region
      %s292 = ssub.s32 32, 32
      %293 = vsyncadd [#allocation17], %s292
      %s294 = sshll.u32 [#allocation18], 4
      %s295 = int_to_ptr.vmem [resolvable:$true] %s294
      %300 = dma.hbm_to_vmem [thread:$0]  %s81, 32, %s295, [#allocation17], 16, 16, 1
    $region165: #{transformer_forward.1} parent=1 // pred_fallthru
      _
    // Predicated region
    $region166: #{transformer_forward.1} parent=1 // pred_check
      _
    $region167: #{transformer_forward.1} parent=1 // pred_check_branch
      %302 = sbr.rel (0) target = $region169
    $region168: #{transformer_forward.1} parent=1 // pred_region
      %s304 = ssub.s32 512, 512
      %305 = vsyncadd [#allocation20], %s304
      %s306 = sshll.u32 [#allocation19], 4
      %s307 = int_to_ptr.vmem [resolvable:$true] %s306
      %312 = dma.hbm_to_vmem [thread:$0]  %s83, 512, %s307, [#allocation20], 64, 64, 4
    $region169: #{transformer_forward.1} parent=1 // pred_fallthru
      _
    // Predicated region
    $region170: #{transformer_forward.1} parent=1 // pred_check
      _
    $region171: #{transformer_forward.1} parent=1 // pred_check_branch
      %314 = sbr.rel (0) target = $region173
    $region172: #{transformer_forward.1} parent=1 // pred_region
      %s316 = ssub.s32 32, 32
      %317 = vsyncadd [#allocation20], %s316
      %s318 = sshll.u32 [#allocation21], 4
      %s319 = int_to_ptr.vmem [resolvable:$true] %s318
      %324 = dma.hbm_to_vmem [thread:$0]  %s85, 32, %s319, [#allocation20], 16, 16, 1
    $region173: #{transformer_forward.1} parent=1 // pred_fallthru
      _
    // Predicated region
    $region174: #{transformer_forward.1} parent=1 // pred_check
      _
    $region175: #{transformer_forward.1} parent=1 // pred_check_branch
      %326 = sbr.rel (0) target = $region177
    $region176: #{transformer_forward.1} parent=1 // pred_region
      _
    $region177: #{transformer_forward.1} parent=1 // pred_fallthru
      _
    // Predicated region
    $region178: #{transformer_forward.1} parent=1 // pred_check
      _
    $region179: #{transformer_forward.1} parent=1 // pred_check_branch
      %328 = sbr.rel (0) target = $region181
    $region180: #{transformer_forward.1} parent=1 // pred_region
      %s330 = ssub.s32 32, 32
      %331 = vsyncadd [#allocation23], %s330
      %s332 = sshll.u32 [#allocation22], 4
      %s333 = int_to_ptr.vmem [resolvable:$true] %s332
      %338 = dma.hbm_to_vmem [thread:$0]  %s89, 32, %s333, [#allocation23], 16, 16, 1
    $region181: #{transformer_forward.1} parent=1 // pred_fallthru
      _
    // Predicated region
    $region182: #{transformer_forward.1} parent=1 // pred_check
      _
    $region183: #{transformer_forward.1} parent=1 // pred_check_branch
      %340 = sbr.rel (0) target = $region185
    $region184: #{transformer_forward.1} parent=1 // pred_region
      %s342 = ssub.s32 32, 32
      %343 = vsyncadd [#allocation23], %s342
      %s344 = sshll.u32 [#allocation24], 4
      %s345 = int_to_ptr.vmem [resolvable:$true] %s344
      %350 = dma.hbm_to_vmem [thread:$0]  %s91, 32, %s345, [#allocation23], 16, 16, 1
    $region185: #{transformer_forward.1} parent=1 // pred_fallthru
      _
    // Predicated region
    $region186: #{transformer_forward.1} parent=1 // pred_check
      _
    $region187: #{transformer_forward.1} parent=1 // pred_check_branch
      %352 = sbr.rel (0) target = $region189
    $region188: #{transformer_forward.1} parent=1 // pred_region
      %s354 = ssub.s32 32, 32
      %355 = vsyncadd [#allocation26], %s354
      %s356 = sshll.u32 [#allocation25], 4
      %s357 = int_to_ptr.vmem [resolvable:$true] %s356
      %362 = dma.hbm_to_vmem [thread:$0]  %s93, 32, %s357, [#allocation26], 16, 16, 1
    $region189: #{transformer_forward.1} parent=1 // pred_fallthru
      _
    // Predicated region
    $region190: #{transformer_forward.1} parent=1 // pred_check
      _
    $region191: #{transformer_forward.1} parent=1 // pred_check_branch
      %364 = sbr.rel (0) target = $region193
    $region192: #{transformer_forward.1} parent=1 // pred_region
      %365 = dma.done [#allocation3], 32
    $region193: #{transformer_forward.1} parent=1 // pred_fallthru
      _
    // Predicated region
    $region194: #{transformer_forward.1} parent=1 // pred_check
      _
    $region195: #{transformer_forward.1} parent=1 // pred_check_branch
      %367 = sbr.rel (0) target = $region197
    $region196: #{transformer_forward.1} parent=1 // pred_region
      %368 = dma.done [#allocation5], 32
    $region197: #{transformer_forward.1} parent=1 // pred_fallthru
      _
    // Predicated region
    $region198: #{transformer_forward.1} parent=1 // pred_check
      _
    $region199: #{transformer_forward.1} parent=1 // pred_check_branch
      %370 = sbr.rel (0) target = $region201
    $region200: #{transformer_forward.1} parent=1 // pred_region
      %371 = dma.done [#allocation5], 32
    $region201: #{transformer_forward.1} parent=1 // pred_fallthru
      _
    // Predicated region
    $region202: #{transformer_forward.1} parent=1 // pred_check
      _
    $region203: #{transformer_forward.1} parent=1 // pred_check_branch
      %373 = sbr.rel (0) target = $region205
    $region204: #{transformer_forward.1} parent=1 // pred_region
      %374 = dma.done [#allocation8], 32
    $region205: #{transformer_forward.1} parent=1 // pred_fallthru
      _
    // Predicated region
    $region206: #{transformer_forward.1} parent=1 // pred_check
      _
    $region207: #{transformer_forward.1} parent=1 // pred_check_branch
      %376 = sbr.rel (0) target = $region209
    $region208: #{transformer_forward.1} parent=1 // pred_region
      %377 = dma.done [#allocation8], 32
    $region209: #{transformer_forward.1} parent=1 // pred_fallthru
      _
    // Predicated region
    $region210: #{transformer_forward.1} parent=1 // pred_check
      _
    $region211: #{transformer_forward.1} parent=1 // pred_check_branch
      %379 = sbr.rel (0) target = $region213
    $region212: #{transformer_forward.1} parent=1 // pred_region
      %380 = dma.done [#allocation11], 32
    $region213: #{transformer_forward.1} parent=1 // pred_fallthru
      _
    // Predicated region
    $region214: #{transformer_forward.1} parent=1 // pred_check
      _
    $region215: #{transformer_forward.1} parent=1 // pred_check_branch
      %382 = sbr.rel (0) target = $region217
    $region216: #{transformer_forward.1} parent=1 // pred_region
      %383 = dma.done [#allocation11], 32
    $region217: #{transformer_forward.1} parent=1 // pred_fallthru
      _
    // Predicated region
    $region218: #{transformer_forward.1} parent=1 // pred_check
      _
    $region219: #{transformer_forward.1} parent=1 // pred_check_branch
      %385 = sbr.rel (0) target = $region221
    $region220: #{transformer_forward.1} parent=1 // pred_region
      %386 = dma.done [#allocation14], 512
    $region221: #{transformer_forward.1} parent=1 // pred_fallthru
      _
    // Predicated region
    $region222: #{transformer_forward.1} parent=1 // pred_check
      _
    $region223: #{transformer_forward.1} parent=1 // pred_check_branch
      %388 = sbr.rel (0) target = $region225
    $region224: #{transformer_forward.1} parent=1 // pred_region
      %389 = dma.done [#allocation14], 32
    $region225: #{transformer_forward.1} parent=1 // pred_fallthru
      _
    // Predicated region
    $region226: #{transformer_forward.1} parent=1 // pred_check
      _
    $region227: #{transformer_forward.1} parent=1 // pred_check_branch
      %391 = sbr.rel (0) target = $region229
    $region228: #{transformer_forward.1} parent=1 // pred_region
      %392 = dma.done [#allocation17], 32
    $region229: #{transformer_forward.1} parent=1 // pred_fallthru
      _
    // Predicated region
    $region230: #{transformer_forward.1} parent=1 // pred_check
      _
    $region231: #{transformer_forward.1} parent=1 // pred_check_branch
      %394 = sbr.rel (0) target = $region233
    $region232: #{transformer_forward.1} parent=1 // pred_region
      %395 = dma.done [#allocation17], 32
    $region233: #{transformer_forward.1} parent=1 // pred_fallthru
      _
    // Predicated region
    $region234: #{transformer_forward.1} parent=1 // pred_check
      _
    $region235: #{transformer_forward.1} parent=1 // pred_check_branch
      %397 = sbr.rel (0) target = $region237
    $region236: #{transformer_forward.1} parent=1 // pred_region
      %398 = dma.done [#allocation20], 512
    $region237: #{transformer_forward.1} parent=1 // pred_fallthru
      _
    // Predicated region
    $region238: #{transformer_forward.1} parent=1 // pred_check
      _
    $region239: #{transformer_forward.1} parent=1 // pred_check_branch
      %400 = sbr.rel (0) target = $region241
    $region240: #{transformer_forward.1} parent=1 // pred_region
      %401 = dma.done [#allocation20], 32
    $region241: #{transformer_forward.1} parent=1 // pred_fallthru
      _
    // Predicated region
    $region242: #{transformer_forward.1} parent=1 // pred_check
      _
    $region243: #{transformer_forward.1} parent=1 // pred_check_branch
      %403 = sbr.rel (0) target = $region245
    $region244: #{transformer_forward.1} parent=1 // pred_region
      %404 = dma.done [#allocation23], 32
    $region245: #{transformer_forward.1} parent=1 // pred_fallthru
      _
    // Predicated region
    $region246: #{transformer_forward.1} parent=1 // pred_check
      _
    $region247: #{transformer_forward.1} parent=1 // pred_check_branch
      %406 = sbr.rel (0) target = $region249
    $region248: #{transformer_forward.1} parent=1 // pred_region
      %407 = dma.done [#allocation23], 32
    $region249: #{transformer_forward.1} parent=1 // pred_fallthru
      _
    // Predicated region
    $region250: #{transformer_forward.1} parent=1 // pred_check
      _
    $region251: #{transformer_forward.1} parent=1 // pred_check_branch
      %409 = sbr.rel (0) target = $region253
    $region252: #{transformer_forward.1} parent=1 // pred_region
      %410 = dma.done [#allocation26], 32
    $region253: #{transformer_forward.1} parent=1 // pred_fallthru
      _
    %v412 = vld [vmem:[%s5] sm:$0xff]
    %v413 = vld [vmem:[%s5 + $0x8] sm:$0xff]
    %v414 = vld [vmem:[%s7] sm:$0xff]
    %v415 = vld [vmem:[%s7 + $0x8] sm:$0xf]
    %v416 = vld [vmem:[%s9] sm:$0xff]
    %v417 = vld [vmem:[%s9 + $0x8] sm:$0xf]
    %v418 = vld [vmem:[%s1] sm:$0xf]
    %v419 = vld [vmem:[%s1 + $0x4] sm:$0xf]
    %v420 = vunpack.c.l.bf16 %v418
    %v421 = vunpack.c.l.bf16 %v419
    %v422 = vld [vmem:[%s11] sm:$0xf]
    %v423 = vld [vmem:[%s11 + $0x4] sm:$0xf]
    %v424 = vld [vmem:[%s11 + $0x8] sm:$0xf]
    %v425 = vld [vmem:[%s11 + $0xc] sm:$0xf]
    %v426 = vld [vmem:[%s13] sm:$0xf]
    %v427 = vld [vmem:[%s13 + $0x4] sm:$0xf]
    %v428 = vld [vmem:[%s13 + $0x8] sm:$0xf]
    %v429 = vld [vmem:[%s13 + $0xc] sm:$0xf]
    %v430 = vld [vmem:[%s15] sm:$0xf]
    %v431 = vld [vmem:[%s15 + $0x4] sm:$0xf]
    %v432 = vld [vmem:[%s15 + $0x8] sm:$0xf]
    %v433 = vld [vmem:[%s15 + $0xc] sm:$0xf]
    %v434 = vld [vmem:[%s17] sm:$0x1]
    %v435 = vld [vmem:[%s19] sm:$0x1]
    %v436 = vld [vmem:[%s21] sm:$0x1]
    %v437 = vld [vmem:[%s23] sm:$0xf]
    %v438 = vld [vmem:[%s23 + $0x4] sm:$0xf]
    %v439 = vld [vmem:[%s23 + $0x8] sm:$0xf]
    %v440 = vld [vmem:[%s23 + $0xc] sm:$0xf]
    %v441 = vld [vmem:[%s25] sm:$0x1]
    %v442 = vld [vmem:[%s27] sm:$0x1]
    %v443 = vld [vmem:[%s29] sm:$0x1]
    %v444 = vld [vmem:[%s31] sm:$0xf]
    %v445 = vld [vmem:[%s31 + $0x4] sm:$0xf]
    %v446 = vld [vmem:[%s31 + $0x8] sm:$0xf]
    %v447 = vld [vmem:[%s31 + $0xc] sm:$0xf]
    %v448 = vld [vmem:[%s33] sm:$0x1]
    %v449 = vld [vmem:[%s35] sm:$0xf]
    %v450 = vld [vmem:[%s35 + $0x4] sm:$0xf]
    %v451 = vld [vmem:[%s35 + $0x8] sm:$0xf]
    %v452 = vld [vmem:[%s35 + $0xc] sm:$0xf]
    %v453 = vld [vmem:[%s35 + $0x10] sm:$0xf]
    %v454 = vld [vmem:[%s35 + $0x14] sm:$0xf]
    %v455 = vld [vmem:[%s35 + $0x18] sm:$0xf]
    %v456 = vld [vmem:[%s35 + $0x1c] sm:$0xf]
    %v457 = vld [vmem:[%s37] sm:$0x1]
    %v458 = vld [vmem:[%s39] sm:$0x1]
    %v459 = vld [vmem:[%s41] sm:$0x1]
    %v461 = vlaneseq
    %v462 = vshrl.u32 %v461, 7
    %v463 = vsub.s32 0, %v462
    %v464 = vrot.slane %v434, %v463
    %v468 = vunpack.c.l.b16 %v418
    %v469 = vunpack.c.l.b16 %v419
    %v470 = vpack.c.b16 %v469, %v468
    %v475 = vunpack.c.l.b16 %v422
    %v476 = vunpack.c.l.b16 %v423
    %v477 = vunpack.c.l.b16 %v424
    %v478 = vunpack.c.l.b16 %v425
    %v479 = vpack.c.b16 %v476, %v475
    %v480 = vpack.c.b16 %v478, %v477
    %vm483 = vcmask 261120
    %v485 = vsel %vm483, %v470, 0
    %487 = vmatprep.subr.bf16.mxu0 0
    %488 = vmatpush1.bf16.msra.mxu0 %v479
    %489 = vmatprep.subr.bf16.mxu0 0
    %490 = vmatpush1.bf16.msra.mxu0 %v480
    %491 = vmatprep.subr.bf16.mxu0 0
    %492 = vmatpush1.bf16.msra.mxu0 0
    %493 = vmatprep.subr.bf16.mxu0 0
    %494 = vmatpush1.bf16.msra.mxu0 0
    %495 = vmatprep.subr.bf16.mxu0 0
    %496 = vmatpush1.bf16.msra.mxu0 0
    %497 = vmatprep.subr.bf16.mxu0 0
    %498 = vmatpush1.bf16.msra.mxu0 0
    %499 = vmatprep.subr.bf16.mxu0 0
    %500 = vmatpush1.bf16.msra.mxu0 0
    %501 = vmatprep.subr.bf16.mxu0 0
    %502 = vmatpush1.bf16.msra.mxu0 0
    %503 = vmatprep.subr.bf16.mxu0 0
    %504 = vmatpush1.bf16.msra.mxu0 0
    %505 = vmatprep.subr.bf16.mxu0 0
    %506 = vmatpush1.bf16.msra.mxu0 0
    %507 = vmatprep.subr.bf16.mxu0 0
    %508 = vmatpush1.bf16.msra.mxu0 0
    %509 = vmatprep.subr.bf16.mxu0 0
    %510 = vmatpush1.bf16.msra.mxu0 0
    %511 = vmatprep.subr.bf16.mxu0 0
    %512 = vmatpush1.bf16.msra.mxu0 0
    %513 = vmatprep.subr.bf16.mxu0 0
    %514 = vmatpush1.bf16.msra.mxu0 0
    %515 = vmatprep.subr.bf16.mxu0 0
    %516 = vmatpush1.bf16.msra.mxu0 0
    %517 = vmatprep.subr.bf16.mxu0 0
    %518 = vmatpush1.bf16.msra.mxu0 0
    %519 = vmatprep.mubr.bf16.mxu0 0
    %520 = vmatmul.mubr.bf16.gmra.mrb[0].mxu0 %v485
    %v521 = vpop.f32.mrb[0].mxu0
    %v522 = vadd.f32 %v464, %v521
    %v523 = vpop.f32.mrb[0].mxu0
    %v524 = vpop.f32.mrb[0].mxu0
    %v525 = vadd.f32 %v464, %v524
    %v526 = vpop.f32.mrb[0].mxu0
    %527 = vdwg.mxu0
    %v529 = vlaneseq
    %v530 = vshrl.u32 %v529, 7
    %v531 = vsub.s32 0, %v530
    %v532 = vrot.slane %v435, %v531
    %v538 = vunpack.c.l.b16 %v426
    %v539 = vunpack.c.l.b16 %v427
    %v540 = vunpack.c.l.b16 %v428
    %v541 = vunpack.c.l.b16 %v429
    %v542 = vpack.c.b16 %v539, %v538
    %v543 = vpack.c.b16 %v541, %v540
    %546 = vmatprep.subr.bf16.mxu0 0
    %547 = vmatpush1.bf16.msra.mxu0 %v542
    %548 = vmatprep.subr.bf16.mxu0 0
    %549 = vmatpush1.bf16.msra.mxu0 %v543
    %550 = vmatprep.subr.bf16.mxu0 0
    %551 = vmatpush1.bf16.msra.mxu0 0
    %552 = vmatprep.subr.bf16.mxu0 0
    %553 = vmatpush1.bf16.msra.mxu0 0
    %554 = vmatprep.subr.bf16.mxu0 0
    %555 = vmatpush1.bf16.msra.mxu0 0
    %556 = vmatprep.subr.bf16.mxu0 0
    %557 = vmatpush1.bf16.msra.mxu0 0
    %558 = vmatprep.subr.bf16.mxu0 0
    %559 = vmatpush1.bf16.msra.mxu0 0
    %560 = vmatprep.subr.bf16.mxu0 0
    %561 = vmatpush1.bf16.msra.mxu0 0
    %562 = vmatprep.subr.bf16.mxu0 0
    %563 = vmatpush1.bf16.msra.mxu0 0
    %564 = vmatprep.subr.bf16.mxu0 0
    %565 = vmatpush1.bf16.msra.mxu0 0
    %566 = vmatprep.subr.bf16.mxu0 0
    %567 = vmatpush1.bf16.msra.mxu0 0
    %568 = vmatprep.subr.bf16.mxu0 0
    %569 = vmatpush1.bf16.msra.mxu0 0
    %570 = vmatprep.subr.bf16.mxu0 0
    %571 = vmatpush1.bf16.msra.mxu0 0
    %572 = vmatprep.subr.bf16.mxu0 0
    %573 = vmatpush1.bf16.msra.mxu0 0
    %574 = vmatprep.subr.bf16.mxu0 0
    %575 = vmatpush1.bf16.msra.mxu0 0
    %576 = vmatprep.subr.bf16.mxu0 0
    %577 = vmatpush1.bf16.msra.mxu0 0
    %578 = vmatprep.mubr.bf16.mxu0 0
    %579 = vmatmul.mubr.bf16.gmra.mrb[0].mxu0 %v485
    %v580 = vpop.f32.mrb[0].mxu0
    %v581 = vadd.f32 %v532, %v580
    %v582 = vpop.f32.mrb[0].mxu0
    %v583 = vpop.f32.mrb[0].mxu0
    %v584 = vadd.f32 %v532, %v583
    %v585 = vpop.f32.mrb[0].mxu0
    %586 = vdwg.mxu0
    %v588 = vlaneseq
    %v589 = vshrl.u32 %v588, 7
    %v590 = vsub.s32 0, %v589
    %v591 = vrot.slane %v436, %v590
    %v597 = vunpack.c.l.b16 %v430
    %v598 = vunpack.c.l.b16 %v431
    %v599 = vunpack.c.l.b16 %v432
    %v600 = vunpack.c.l.b16 %v433
    %v601 = vpack.c.b16 %v598, %v597
    %v602 = vpack.c.b16 %v600, %v599
    %605 = vmatprep.subr.bf16.mxu0 0
    %606 = vmatpush1.bf16.msra.mxu0 %v601
    %607 = vmatprep.subr.bf16.mxu0 0
    %608 = vmatpush1.bf16.msra.mxu0 %v602
    %609 = vmatprep.subr.bf16.mxu0 0
    %610 = vmatpush1.bf16.msra.mxu0 0
    %611 = vmatprep.subr.bf16.mxu0 0
    %612 = vmatpush1.bf16.msra.mxu0 0
    %613 = vmatprep.subr.bf16.mxu0 0
    %614 = vmatpush1.bf16.msra.mxu0 0
    %615 = vmatprep.subr.bf16.mxu0 0
    %616 = vmatpush1.bf16.msra.mxu0 0
    %617 = vmatprep.subr.bf16.mxu0 0
    %618 = vmatpush1.bf16.msra.mxu0 0
    %619 = vmatprep.subr.bf16.mxu0 0
    %620 = vmatpush1.bf16.msra.mxu0 0
    %621 = vmatprep.subr.bf16.mxu0 0
    %622 = vmatpush1.bf16.msra.mxu0 0
    %623 = vmatprep.subr.bf16.mxu0 0
    %624 = vmatpush1.bf16.msra.mxu0 0
    %625 = vmatprep.subr.bf16.mxu0 0
    %626 = vmatpush1.bf16.msra.mxu0 0
    %627 = vmatprep.subr.bf16.mxu0 0
    %628 = vmatpush1.bf16.msra.mxu0 0
    %629 = vmatprep.subr.bf16.mxu0 0
    %630 = vmatpush1.bf16.msra.mxu0 0
    %631 = vmatprep.subr.bf16.mxu0 0
    %632 = vmatpush1.bf16.msra.mxu0 0
    %633 = vmatprep.subr.bf16.mxu0 0
    %634 = vmatpush1.bf16.msra.mxu0 0
    %635 = vmatprep.subr.bf16.mxu0 0
    %636 = vmatpush1.bf16.msra.mxu0 0
    %637 = vmatprep.mubr.bf16.mxu0 0
    %638 = vmatmul.mubr.bf16.gmra.mrb[0].mxu0 %v485
    %v639 = vpop.f32.mrb[0].mxu0
    %v640 = vadd.f32 %v591, %v639
    %v641 = vpop.f32.mrb[0].mxu0
    %v642 = vpop.f32.mrb[0].mxu0
    %v643 = vadd.f32 %v591, %v642
    %v644 = vpop.f32.mrb[0].mxu0
    %645 = vdwg.mxu0
    %v646 = vpack.c.bf16 %v525, %v522
    %v647 = vpack.c.bf16 %v584, %v581
    %v648 = vpack.c.bf16 %v643, %v640
    %vm649 = vcmask 64512
    %v651 = vsel %vm649, %v646, 0
    %v654 = vsel %vm649, %v647, 0
    %656 = vmatprep.subr.bf16.mxu0 0
    %657 = vmatpush1.bf16.xpose.msra.mxu0 %v654
    %658 = vmatprep.subr.bf16.mxu0 0
    %659 = vmatpush1.bf16.xpose.msra.mxu0 0
    %660 = vmatprep.subr.bf16.mxu0 0
    %661 = vmatpush1.bf16.xpose.msra.mxu0 0
    %662 = vmatprep.subr.bf16.mxu0 0
    %663 = vmatpush1.bf16.xpose.msra.mxu0 0
    %664 = vmatprep.subr.bf16.mxu0 0
    %665 = vmatpush1.bf16.xpose.msra.mxu0 0
    %666 = vmatprep.subr.bf16.mxu0 0
    %667 = vmatpush1.bf16.xpose.msra.mxu0 0
    %668 = vmatprep.subr.bf16.mxu0 0
    %669 = vmatpush1.bf16.xpose.msra.mxu0 0
    %670 = vmatprep.subr.bf16.mxu0 0
    %671 = vmatpush1.bf16.xpose.msra.mxu0 0
    %672 = vmatprep.subr.bf16.mxu0 0
    %673 = vmatpush1.bf16.xpose.msra.mxu0 0
    %674 = vmatprep.subr.bf16.mxu0 0
    %675 = vmatpush1.bf16.xpose.msra.mxu0 0
    %676 = vmatprep.subr.bf16.mxu0 0
    %677 = vmatpush1.bf16.xpose.msra.mxu0 0
    %678 = vmatprep.subr.bf16.mxu0 0
    %679 = vmatpush1.bf16.xpose.msra.mxu0 0
    %680 = vmatprep.subr.bf16.mxu0 0
    %681 = vmatpush1.bf16.xpose.msra.mxu0 0
    %682 = vmatprep.subr.bf16.mxu0 0
    %683 = vmatpush1.bf16.xpose.msra.mxu0 0
    %684 = vmatprep.subr.bf16.mxu0 0
    %685 = vmatpush1.bf16.xpose.msra.mxu0 0
    %686 = vmatprep.subr.bf16.mxu0 0
    %687 = vmatpush1.bf16.xpose.msra.mxu0 0
    %688 = vmatprep.mubr.bf16.mxu0 0
    %689 = vmatmul.mubr.bf16.gmra.mrb[0].mxu0 %v651
    %v690 = vpop.f32.mrb[0].mxu0
    %v691 = vadd.f32 %v412, %v690
    %v692 = vpop.f32.mrb[0].mxu0
    %v693 = vpop.f32.mrb[0].mxu0
    %v694 = vadd.f32 %v413, %v693
    %v695 = vpop.f32.mrb[0].mxu0
    %696 = vdwg.mxu0
    %vm697 = vcmask 130048
    %v698 = vsel %vm697, %v691, -inf
    %699 = vmax.xlane.f32.xlu0 %v698
    %v700 = vpop.xlane.xlu0 %699
    %v701 = vsel %vm697, %v694, -inf
    %702 = vmax.xlane.f32.xlu0 %v701
    %v703 = vpop.xlane.xlu0 %702
    %v704 = vsub.f32 %v691, %v700
    %v705 = vsub.f32 %v694, %v703
    %v706 = vmul.f32 %v704, 1.442695
    %v707 = vpow.pop %v706
    %v708 = vmul.f32 %v705, 1.442695
    %v709 = vpow.pop %v708
    %v710 = vsel %vm697, %v707, 0.0
    %711 = vadd.xlane.f32.xlu0 %v710
    %v712 = vpop.xlane.xlu0 %711
    %v713 = vsel %vm697, %v709, 0.0
    %714 = vadd.xlane.f32.xlu0 %v713
    %v715 = vpop.xlane.xlu0 %714
    %v716 = vrcp.pop %v712
    %v717 = vrcp.pop %v715
    %v718 = vmul.f32 %v707, %v716
    %v719 = vmul.f32 %v709, %v717
    %v720 = vpack.c.bf16 %v719, %v718
    %v722 = vsel %vm697, %v720, 0
    %724 = vmatprep.subr.bf16.mxu0 0
    %725 = vmatpush1.bf16.msra.mxu0 %v648
    %726 = vmatprep.subr.bf16.mxu0 0
    %727 = vmatpush1.bf16.msra.mxu0 0
    %728 = vmatprep.subr.bf16.mxu0 0
    %729 = vmatpush1.bf16.msra.mxu0 0
    %730 = vmatprep.subr.bf16.mxu0 0
    %731 = vmatpush1.bf16.msra.mxu0 0
    %732 = vmatprep.subr.bf16.mxu0 0
    %733 = vmatpush1.bf16.msra.mxu0 0
    %734 = vmatprep.subr.bf16.mxu0 0
    %735 = vmatpush1.bf16.msra.mxu0 0
    %736 = vmatprep.subr.bf16.mxu0 0
    %737 = vmatpush1.bf16.msra.mxu0 0
    %738 = vmatprep.subr.bf16.mxu0 0
    %739 = vmatpush1.bf16.msra.mxu0 0
    %740 = vmatprep.subr.bf16.mxu0 0
    %741 = vmatpush1.bf16.msra.mxu0 0
    %742 = vmatprep.subr.bf16.mxu0 0
    %743 = vmatpush1.bf16.msra.mxu0 0
    %744 = vmatprep.subr.bf16.mxu0 0
    %745 = vmatpush1.bf16.msra.mxu0 0
    %746 = vmatprep.subr.bf16.mxu0 0
    %747 = vmatpush1.bf16.msra.mxu0 0
    %748 = vmatprep.subr.bf16.mxu0 0
    %749 = vmatpush1.bf16.msra.mxu0 0
    %750 = vmatprep.subr.bf16.mxu0 0
    %751 = vmatpush1.bf16.msra.mxu0 0
    %752 = vmatprep.subr.bf16.mxu0 0
    %753 = vmatpush1.bf16.msra.mxu0 0
    %754 = vmatprep.subr.bf16.mxu0 0
    %755 = vmatpush1.bf16.msra.mxu0 0
    %756 = vmatprep.mubr.bf16.mxu0 0
    %757 = vmatmul.mubr.bf16.gmra.mrb[0].mxu0 %v722
    %v758 = vpop.f32.mrb[0].mxu0
    %v759 = vadd.f32 0.0, %v758
    %v760 = vpop.f32.mrb[0].mxu0
    %v761 = vpop.f32.mrb[0].mxu0
    %v762 = vadd.f32 0.0, %v761
    %v763 = vpop.f32.mrb[0].mxu0
    %764 = vdwg.mxu0
    %766 = vrot.lane.b32.xlu0 %v646, 120
    %v767 = vpop.permute.xlu0 %766
    %769 = vrot.lane.b32.xlu0 %v647, 120
    %v770 = vpop.permute.xlu0 %769
    %v772 = vsel %vm649, %v767, 0
    %v775 = vsel %vm649, %v770, 0
    %777 = vmatprep.subr.bf16.mxu0 0
    %778 = vmatpush1.bf16.xpose.msra.mxu0 %v775
    %779 = vmatprep.subr.bf16.mxu0 0
    %780 = vmatpush1.bf16.xpose.msra.mxu0 0
    %781 = vmatprep.subr.bf16.mxu0 0
    %782 = vmatpush1.bf16.xpose.msra.mxu0 0
    %783 = vmatprep.subr.bf16.mxu0 0
    %784 = vmatpush1.bf16.xpose.msra.mxu0 0
    %785 = vmatprep.subr.bf16.mxu0 0
    %786 = vmatpush1.bf16.xpose.msra.mxu0 0
    %787 = vmatprep.subr.bf16.mxu0 0
    %788 = vmatpush1.bf16.xpose.msra.mxu0 0
    %789 = vmatprep.subr.bf16.mxu0 0
    %790 = vmatpush1.bf16.xpose.msra.mxu0 0
    %791 = vmatprep.subr.bf16.mxu0 0
    %792 = vmatpush1.bf16.xpose.msra.mxu0 0
    %793 = vmatprep.subr.bf16.mxu0 0
    %794 = vmatpush1.bf16.xpose.msra.mxu0 0
    %795 = vmatprep.subr.bf16.mxu0 0
    %796 = vmatpush1.bf16.xpose.msra.mxu0 0
    %797 = vmatprep.subr.bf16.mxu0 0
    %798 = vmatpush1.bf16.xpose.msra.mxu0 0
    %799 = vmatprep.subr.bf16.mxu0 0
    %800 = vmatpush1.bf16.xpose.msra.mxu0 0
    %801 = vmatprep.subr.bf16.mxu0 0
    %802 = vmatpush1.bf16.xpose.msra.mxu0 0
    %803 = vmatprep.subr.bf16.mxu0 0
    %804 = vmatpush1.bf16.xpose.msra.mxu0 0
    %805 = vmatprep.subr.bf16.mxu0 0
    %806 = vmatpush1.bf16.xpose.msra.mxu0 0
    %807 = vmatprep.subr.bf16.mxu0 0
    %808 = vmatpush1.bf16.xpose.msra.mxu0 0
    %809 = vmatprep.mubr.bf16.mxu0 0
    %810 = vmatmul.mubr.bf16.gmra.mrb[0].mxu0 %v772
    %v811 = vpop.f32.mrb[0].mxu0
    %v812 = vadd.f32 %v412, %v811
    %v813 = vpop.f32.mrb[0].mxu0
    %v814 = vpop.f32.mrb[0].mxu0
    %v815 = vadd.f32 %v413, %v814
    %v816 = vpop.f32.mrb[0].mxu0
    %817 = vdwg.mxu0
    %v818 = vsel %vm697, %v812, -inf
    %819 = vmax.xlane.f32.xlu0 %v818
    %v820 = vpop.xlane.xlu0 %819
    %v821 = vsel %vm697, %v815, -inf
    %822 = vmax.xlane.f32.xlu0 %v821
    %v823 = vpop.xlane.xlu0 %822
    %v824 = vsub.f32 %v812, %v820
    %v825 = vsub.f32 %v815, %v823
    %v826 = vmul.f32 %v824, 1.442695
    %v827 = vpow.pop %v826
    %v828 = vmul.f32 %v825, 1.442695
    %v829 = vpow.pop %v828
    %v830 = vsel %vm697, %v827, 0.0
    %831 = vadd.xlane.f32.xlu0 %v830
    %v832 = vpop.xlane.xlu0 %831
    %v833 = vsel %vm697, %v829, 0.0
    %834 = vadd.xlane.f32.xlu0 %v833
    %v835 = vpop.xlane.xlu0 %834
    %v836 = vrcp.pop %v832
    %v837 = vrcp.pop %v835
    %v838 = vmul.f32 %v827, %v836
    %v839 = vmul.f32 %v829, %v837
    %v840 = vpack.c.bf16 %v839, %v838
    %842 = vrot.lane.b32.xlu0 %v648, 120
    %v843 = vpop.permute.xlu0 %842
    %v846 = vsel %vm697, %v840, 0
    %848 = vmatprep.subr.bf16.mxu0 0
    %849 = vmatpush1.bf16.msra.mxu0 %v843
    %850 = vmatprep.subr.bf16.mxu0 0
    %851 = vmatpush1.bf16.msra.mxu0 0
    %852 = vmatprep.subr.bf16.mxu0 0
    %853 = vmatpush1.bf16.msra.mxu0 0
    %854 = vmatprep.subr.bf16.mxu0 0
    %855 = vmatpush1.bf16.msra.mxu0 0
    %856 = vmatprep.subr.bf16.mxu0 0
    %857 = vmatpush1.bf16.msra.mxu0 0
    %858 = vmatprep.subr.bf16.mxu0 0
    %859 = vmatpush1.bf16.msra.mxu0 0
    %860 = vmatprep.subr.bf16.mxu0 0
    %861 = vmatpush1.bf16.msra.mxu0 0
    %862 = vmatprep.subr.bf16.mxu0 0
    %863 = vmatpush1.bf16.msra.mxu0 0
    %864 = vmatprep.subr.bf16.mxu0 0
    %865 = vmatpush1.bf16.msra.mxu0 0
    %866 = vmatprep.subr.bf16.mxu0 0
    %867 = vmatpush1.bf16.msra.mxu0 0
    %868 = vmatprep.subr.bf16.mxu0 0
    %869 = vmatpush1.bf16.msra.mxu0 0
    %870 = vmatprep.subr.bf16.mxu0 0
    %871 = vmatpush1.bf16.msra.mxu0 0
    %872 = vmatprep.subr.bf16.mxu0 0
    %873 = vmatpush1.bf16.msra.mxu0 0
    %874 = vmatprep.subr.bf16.mxu0 0
    %875 = vmatpush1.bf16.msra.mxu0 0
    %876 = vmatprep.subr.bf16.mxu0 0
    %877 = vmatpush1.bf16.msra.mxu0 0
    %878 = vmatprep.subr.bf16.mxu0 0
    %879 = vmatpush1.bf16.msra.mxu0 0
    %880 = vmatprep.mubr.bf16.mxu0 0
    %881 = vmatmul.mubr.bf16.gmra.mrb[0].mxu0 %v846
    %v882 = vpop.f32.mrb[0].mxu0
    %v883 = vadd.f32 0.0, %v882
    %v884 = vpop.f32.mrb[0].mxu0
    %v885 = vpop.f32.mrb[0].mxu0
    %v886 = vadd.f32 0.0, %v885
    %v887 = vpop.f32.mrb[0].mxu0
    %888 = vdwg.mxu0
    %889 = vrot.lane.b32.xlu0 %v646, 112
    %v890 = vpop.permute.xlu0 %889
    %891 = vrot.lane.b32.xlu0 %v647, 112
    %v892 = vpop.permute.xlu0 %891
    %v894 = vsel %vm649, %v890, 0
    %v897 = vsel %vm649, %v892, 0
    %899 = vmatprep.subr.bf16.mxu0 0
    %900 = vmatpush1.bf16.xpose.msra.mxu0 %v897
    %901 = vmatprep.subr.bf16.mxu0 0
    %902 = vmatpush1.bf16.xpose.msra.mxu0 0
    %903 = vmatprep.subr.bf16.mxu0 0
    %904 = vmatpush1.bf16.xpose.msra.mxu0 0
    %905 = vmatprep.subr.bf16.mxu0 0
    %906 = vmatpush1.bf16.xpose.msra.mxu0 0
    %907 = vmatprep.subr.bf16.mxu0 0
    %908 = vmatpush1.bf16.xpose.msra.mxu0 0
    %909 = vmatprep.subr.bf16.mxu0 0
    %910 = vmatpush1.bf16.xpose.msra.mxu0 0
    %911 = vmatprep.subr.bf16.mxu0 0
    %912 = vmatpush1.bf16.xpose.msra.mxu0 0
    %913 = vmatprep.subr.bf16.mxu0 0
    %914 = vmatpush1.bf16.xpose.msra.mxu0 0
    %915 = vmatprep.subr.bf16.mxu0 0
    %916 = vmatpush1.bf16.xpose.msra.mxu0 0
    %917 = vmatprep.subr.bf16.mxu0 0
    %918 = vmatpush1.bf16.xpose.msra.mxu0 0
    %919 = vmatprep.subr.bf16.mxu0 0
    %920 = vmatpush1.bf16.xpose.msra.mxu0 0
    %921 = vmatprep.subr.bf16.mxu0 0
    %922 = vmatpush1.bf16.xpose.msra.mxu0 0
    %923 = vmatprep.subr.bf16.mxu0 0
    %924 = vmatpush1.bf16.xpose.msra.mxu0 0
    %925 = vmatprep.subr.bf16.mxu0 0
    %926 = vmatpush1.bf16.xpose.msra.mxu0 0
    %927 = vmatprep.subr.bf16.mxu0 0
    %928 = vmatpush1.bf16.xpose.msra.mxu0 0
    %929 = vmatprep.subr.bf16.mxu0 0
    %930 = vmatpush1.bf16.xpose.msra.mxu0 0
    %931 = vmatprep.mubr.bf16.mxu0 0
    %932 = vmatmul.mubr.bf16.gmra.mrb[0].mxu0 %v894
    %v933 = vpop.f32.mrb[0].mxu0
    %v934 = vadd.f32 %v412, %v933
    %v935 = vpop.f32.mrb[0].mxu0
    %v936 = vpop.f32.mrb[0].mxu0
    %v937 = vadd.f32 %v413, %v936
    %v938 = vpop.f32.mrb[0].mxu0
    %939 = vdwg.mxu0
    %v940 = vsel %vm697, %v934, -inf
    %941 = vmax.xlane.f32.xlu0 %v940
    %v942 = vpop.xlane.xlu0 %941
    %v943 = vsel %vm697, %v937, -inf
    %944 = vmax.xlane.f32.xlu0 %v943
    %v945 = vpop.xlane.xlu0 %944
    %v946 = vsub.f32 %v934, %v942
    %v947 = vsub.f32 %v937, %v945
    %v948 = vmul.f32 %v946, 1.442695
    %v949 = vpow.pop %v948
    %v950 = vmul.f32 %v947, 1.442695
    %v951 = vpow.pop %v950
    %v952 = vsel %vm697, %v949, 0.0
    %953 = vadd.xlane.f32.xlu0 %v952
    %v954 = vpop.xlane.xlu0 %953
    %v955 = vsel %vm697, %v951, 0.0
    %956 = vadd.xlane.f32.xlu0 %v955
    %v957 = vpop.xlane.xlu0 %956
    %v958 = vrcp.pop %v954
    %v959 = vrcp.pop %v957
    %v960 = vmul.f32 %v949, %v958
    %v961 = vmul.f32 %v951, %v959
    %v962 = vpack.c.bf16 %v961, %v960
    %963 = vrot.lane.b32.xlu0 %v648, 112
    %v964 = vpop.permute.xlu0 %963
    %v967 = vsel %vm697, %v962, 0
    %969 = vmatprep.subr.bf16.mxu0 0
    %970 = vmatpush1.bf16.msra.mxu0 %v964
    %971 = vmatprep.subr.bf16.mxu0 0
    %972 = vmatpush1.bf16.msra.mxu0 0
    %973 = vmatprep.subr.bf16.mxu0 0
    %974 = vmatpush1.bf16.msra.mxu0 0
    %975 = vmatprep.subr.bf16.mxu0 0
    %976 = vmatpush1.bf16.msra.mxu0 0
    %977 = vmatprep.subr.bf16.mxu0 0
    %978 = vmatpush1.bf16.msra.mxu0 0
    %979 = vmatprep.subr.bf16.mxu0 0
    %980 = vmatpush1.bf16.msra.mxu0 0
    %981 = vmatprep.subr.bf16.mxu0 0
    %982 = vmatpush1.bf16.msra.mxu0 0
    %983 = vmatprep.subr.bf16.mxu0 0
    %984 = vmatpush1.bf16.msra.mxu0 0
    %985 = vmatprep.subr.bf16.mxu0 0
    %986 = vmatpush1.bf16.msra.mxu0 0
    %987 = vmatprep.subr.bf16.mxu0 0
    %988 = vmatpush1.bf16.msra.mxu0 0
    %989 = vmatprep.subr.bf16.mxu0 0
    %990 = vmatpush1.bf16.msra.mxu0 0
    %991 = vmatprep.subr.bf16.mxu0 0
    %992 = vmatpush1.bf16.msra.mxu0 0
    %993 = vmatprep.subr.bf16.mxu0 0
    %994 = vmatpush1.bf16.msra.mxu0 0
    %995 = vmatprep.subr.bf16.mxu0 0
    %996 = vmatpush1.bf16.msra.mxu0 0
    %997 = vmatprep.subr.bf16.mxu0 0
    %998 = vmatpush1.bf16.msra.mxu0 0
    %999 = vmatprep.subr.bf16.mxu0 0
    %1000 = vmatpush1.bf16.msra.mxu0 0
    %1001 = vmatprep.mubr.bf16.mxu0 0
    %1002 = vmatmul.mubr.bf16.gmra.mrb[0].mxu0 %v967
    %v1003 = vpop.f32.mrb[0].mxu0
    %v1004 = vadd.f32 0.0, %v1003
    %v1005 = vpop.f32.mrb[0].mxu0
    %v1006 = vpop.f32.mrb[0].mxu0
    %v1007 = vadd.f32 0.0, %v1006
    %v1008 = vpop.f32.mrb[0].mxu0
    %1009 = vdwg.mxu0
    %1010 = vrot.lane.b32.xlu0 %v646, 104
    %v1011 = vpop.permute.xlu0 %1010
    %1012 = vrot.lane.b32.xlu0 %v647, 104
    %v1013 = vpop.permute.xlu0 %1012
    %v1015 = vsel %vm649, %v1011, 0
    %v1018 = vsel %vm649, %v1013, 0
    %1020 = vmatprep.subr.bf16.mxu0 0
    %1021 = vmatpush1.bf16.xpose.msra.mxu0 %v1018
    %1022 = vmatprep.subr.bf16.mxu0 0
    %1023 = vmatpush1.bf16.xpose.msra.mxu0 0
    %1024 = vmatprep.subr.bf16.mxu0 0
    %1025 = vmatpush1.bf16.xpose.msra.mxu0 0
    %1026 = vmatprep.subr.bf16.mxu0 0
    %1027 = vmatpush1.bf16.xpose.msra.mxu0 0
    %1028 = vmatprep.subr.bf16.mxu0 0
    %1029 = vmatpush1.bf16.xpose.msra.mxu0 0
    %1030 = vmatprep.subr.bf16.mxu0 0
    %1031 = vmatpush1.bf16.xpose.msra.mxu0 0
    %1032 = vmatprep.subr.bf16.mxu0 0
    %1033 = vmatpush1.bf16.xpose.msra.mxu0 0
    %1034 = vmatprep.subr.bf16.mxu0 0
    %1035 = vmatpush1.bf16.xpose.msra.mxu0 0
    %1036 = vmatprep.subr.bf16.mxu0 0
    %1037 = vmatpush1.bf16.xpose.msra.mxu0 0
    %1038 = vmatprep.subr.bf16.mxu0 0
    %1039 = vmatpush1.bf16.xpose.msra.mxu0 0
    %1040 = vmatprep.subr.bf16.mxu0 0
    %1041 = vmatpush1.bf16.xpose.msra.mxu0 0
    %1042 = vmatprep.subr.bf16.mxu0 0
    %1043 = vmatpush1.bf16.xpose.msra.mxu0 0
    %1044 = vmatprep.subr.bf16.mxu0 0
    %1045 = vmatpush1.bf16.xpose.msra.mxu0 0
    %1046 = vmatprep.subr.bf16.mxu0 0
    %1047 = vmatpush1.bf16.xpose.msra.mxu0 0
    %1048 = vmatprep.subr.bf16.mxu0 0
    %1049 = vmatpush1.bf16.xpose.msra.mxu0 0
    %1050 = vmatprep.subr.bf16.mxu0 0
    %1051 = vmatpush1.bf16.xpose.msra.mxu0 0
    %1052 = vmatprep.mubr.bf16.mxu0 0
    %1053 = vmatmul.mubr.bf16.gmra.mrb[0].mxu0 %v1015
    %v1054 = vpop.f32.mrb[0].mxu0
    %v1055 = vadd.f32 %v412, %v1054
    %v1056 = vpop.f32.mrb[0].mxu0
    %v1057 = vpop.f32.mrb[0].mxu0
    %v1058 = vadd.f32 %v413, %v1057
    %v1059 = vpop.f32.mrb[0].mxu0
    %1060 = vdwg.mxu0
    %v1061 = vsel %vm697, %v1055, -inf
    %1062 = vmax.xlane.f32.xlu0 %v1061
    %v1063 = vpop.xlane.xlu0 %1062
    %v1064 = vsel %vm697, %v1058, -inf
    %1065 = vmax.xlane.f32.xlu0 %v1064
    %v1066 = vpop.xlane.xlu0 %1065
    %v1067 = vsub.f32 %v1055, %v1063
    %v1068 = vsub.f32 %v1058, %v1066
    %v1069 = vmul.f32 %v1067, 1.442695
    %v1070 = vpow.pop %v1069
    %v1071 = vmul.f32 %v1068, 1.442695
    %v1072 = vpow.pop %v1071
    %v1073 = vsel %vm697, %v1070, 0.0
    %1074 = vadd.xlane.f32.xlu0 %v1073
    %v1075 = vpop.xlane.xlu0 %1074
    %v1076 = vsel %vm697, %v1072, 0.0
    %1077 = vadd.xlane.f32.xlu0 %v1076
    %v1078 = vpop.xlane.xlu0 %1077
    %v1079 = vrcp.pop %v1075
    %v1080 = vrcp.pop %v1078
    %v1081 = vmul.f32 %v1070, %v1079
    %v1082 = vmul.f32 %v1072, %v1080
    %v1083 = vpack.c.bf16 %v1082, %v1081
    %1084 = vrot.lane.b32.xlu0 %v648, 104
    %v1085 = vpop.permute.xlu0 %1084
    %v1088 = vsel %vm697, %v1083, 0
    %1090 = vmatprep.subr.bf16.mxu0 0
    %1091 = vmatpush1.bf16.msra.mxu0 %v1085
    %1092 = vmatprep.subr.bf16.mxu0 0
    %1093 = vmatpush1.bf16.msra.mxu0 0
    %1094 = vmatprep.subr.bf16.mxu0 0
    %1095 = vmatpush1.bf16.msra.mxu0 0
    %1096 = vmatprep.subr.bf16.mxu0 0
    %1097 = vmatpush1.bf16.msra.mxu0 0
    %1098 = vmatprep.subr.bf16.mxu0 0
    %1099 = vmatpush1.bf16.msra.mxu0 0
    %1100 = vmatprep.subr.bf16.mxu0 0
    %1101 = vmatpush1.bf16.msra.mxu0 0
    %1102 = vmatprep.subr.bf16.mxu0 0
    %1103 = vmatpush1.bf16.msra.mxu0 0
    %1104 = vmatprep.subr.bf16.mxu0 0
    %1105 = vmatpush1.bf16.msra.mxu0 0
    %1106 = vmatprep.subr.bf16.mxu0 0
    %1107 = vmatpush1.bf16.msra.mxu0 0
    %1108 = vmatprep.subr.bf16.mxu0 0
    %1109 = vmatpush1.bf16.msra.mxu0 0
    %1110 = vmatprep.subr.bf16.mxu0 0
    %1111 = vmatpush1.bf16.msra.mxu0 0
    %1112 = vmatprep.subr.bf16.mxu0 0
    %1113 = vmatpush1.bf16.msra.mxu0 0
    %1114 = vmatprep.subr.bf16.mxu0 0
    %1115 = vmatpush1.bf16.msra.mxu0 0
    %1116 = vmatprep.subr.bf16.mxu0 0
    %1117 = vmatpush1.bf16.msra.mxu0 0
    %1118 = vmatprep.subr.bf16.mxu0 0
    %1119 = vmatpush1.bf16.msra.mxu0 0
    %1120 = vmatprep.subr.bf16.mxu0 0
    %1121 = vmatpush1.bf16.msra.mxu0 0
    %1122 = vmatprep.mubr.bf16.mxu0 0
    %1123 = vmatmul.mubr.bf16.gmra.mrb[0].mxu0 %v1088
    %v1124 = vpop.f32.mrb[0].mxu0
    %v1125 = vadd.f32 0.0, %v1124
    %v1126 = vpop.f32.mrb[0].mxu0
    %v1127 = vpop.f32.mrb[0].mxu0
    %v1128 = vadd.f32 0.0, %v1127
    %v1129 = vpop.f32.mrb[0].mxu0
    %1130 = vdwg.mxu0
    %1133 = vrot.lane.b32.xlu0 %v883, 8
    %v1134 = vpop.permute.xlu0 %1133
    %1135 = vrot.lane.b32.xlu0 %v886, 8
    %v1136 = vpop.permute.xlu0 %1135
    %1141 = vrot.lane.b32.xlu0 %v1004, 16
    %v1142 = vpop.permute.xlu0 %1141
    %1143 = vrot.lane.b32.xlu0 %v1007, 16
    %v1144 = vpop.permute.xlu0 %1143
    %1149 = vrot.lane.b32.xlu0 %v1125, 24
    %v1150 = vpop.permute.xlu0 %1149
    %1151 = vrot.lane.b32.xlu0 %v1128, 24
    %v1152 = vpop.permute.xlu0 %1151
    %v1155 = vsel %vm649, %v759, %v1134
    %v1156 = vsel %vm649, %v762, %v1136
    %v1157 = vsel %vm697, %v1155, %v1142
    %v1158 = vsel %vm697, %v1156, %v1144
    %vm1159 = vcmask 195584
    %v1160 = vsel %vm1159, %v1157, %v1150
    %v1161 = vsel %vm1159, %v1158, %v1152
    %v1162 = vpack.c.bf16 %v1161, %v1160
    %v1164 = vlaneseq
    %v1165 = vshrl.u32 %v1164, 7
    %v1166 = vsub.s32 0, %v1165
    %v1167 = vrot.slane %v441, %v1166
    %v1173 = vunpack.c.l.b16 %v437
    %v1174 = vunpack.c.l.b16 %v438
    %v1175 = vunpack.c.l.b16 %v439
    %v1176 = vunpack.c.l.b16 %v440
    %v1177 = vpack.c.b16 %v1174, %v1173
    %v1178 = vpack.c.b16 %v1176, %v1175
    %v1182 = vsel %vm483, %v1162, 0
    %1184 = vmatprep.subr.bf16.mxu0 0
    %1185 = vmatpush1.bf16.msra.mxu0 %v1177
    %1186 = vmatprep.subr.bf16.mxu0 0
    %1187 = vmatpush1.bf16.msra.mxu0 %v1178
    %1188 = vmatprep.subr.bf16.mxu0 0
    %1189 = vmatpush1.bf16.msra.mxu0 0
    %1190 = vmatprep.subr.bf16.mxu0 0
    %1191 = vmatpush1.bf16.msra.mxu0 0
    %1192 = vmatprep.subr.bf16.mxu0 0
    %1193 = vmatpush1.bf16.msra.mxu0 0
    %1194 = vmatprep.subr.bf16.mxu0 0
    %1195 = vmatpush1.bf16.msra.mxu0 0
    %1196 = vmatprep.subr.bf16.mxu0 0
    %1197 = vmatpush1.bf16.msra.mxu0 0
    %1198 = vmatprep.subr.bf16.mxu0 0
    %1199 = vmatpush1.bf16.msra.mxu0 0
    %1200 = vmatprep.subr.bf16.mxu0 0
    %1201 = vmatpush1.bf16.msra.mxu0 0
    %1202 = vmatprep.subr.bf16.mxu0 0
    %1203 = vmatpush1.bf16.msra.mxu0 0
    %1204 = vmatprep.subr.bf16.mxu0 0
    %1205 = vmatpush1.bf16.msra.mxu0 0
    %1206 = vmatprep.subr.bf16.mxu0 0
    %1207 = vmatpush1.bf16.msra.mxu0 0
    %1208 = vmatprep.subr.bf16.mxu0 0
    %1209 = vmatpush1.bf16.msra.mxu0 0
    %1210 = vmatprep.subr.bf16.mxu0 0
    %1211 = vmatpush1.bf16.msra.mxu0 0
    %1212 = vmatprep.subr.bf16.mxu0 0
    %1213 = vmatpush1.bf16.msra.mxu0 0
    %1214 = vmatprep.subr.bf16.mxu0 0
    %1215 = vmatpush1.bf16.msra.mxu0 0
    %1216 = vmatprep.mubr.bf16.mxu0 0
    %1217 = vmatmul.mubr.bf16.gmra.mrb[0].mxu0 %v1182
    %v1218 = vpop.f32.mrb[0].mxu0
    %v1219 = vadd.f32 %v1167, %v1218
    %v1220 = vpop.f32.mrb[0].mxu0
    %v1221 = vpop.f32.mrb[0].mxu0
    %v1222 = vadd.f32 %v1167, %v1221
    %v1223 = vpop.f32.mrb[0].mxu0
    %1224 = vdwg.mxu0
    %v1225 = vadd.f32 %v420, %v1219
    %v1226 = vadd.f32 %v421, %v1222
    %v1227 = vsel %vm483, %v1225, 0.0
    %1228 = vadd.xlane.f32.xlu0 %v1227
    %v1229 = vpop.xlane.xlu0 %1228
    %v1230 = vsel %vm483, %v1226, 0.0
    %1231 = vadd.xlane.f32.xlu0 %v1230
    %v1232 = vpop.xlane.xlu0 %1231
    %v1233 = vrcp.pop 32.0
    %v1234 = vmul.f32 %v1229, %v1233
    %v1235 = vmul.f32 %v1232, %v1233
    %v1236 = vsub.f32 %v1225, %v1234
    %v1237 = vsub.f32 %v1226, %v1235
    %v1238 = vmul.f32 %v1236, %v1236
    %v1239 = vmul.f32 %v1237, %v1237
    %v1240 = vsel %vm483, %v1238, 0.0
    %1241 = vadd.xlane.f32.xlu0 %v1240
    %v1242 = vpop.xlane.xlu0 %1241
    %v1243 = vsel %vm483, %v1239, 0.0
    %1244 = vadd.xlane.f32.xlu0 %v1243
    %v1245 = vpop.xlane.xlu0 %1244
    %v1246 = vmul.f32 %v1242, %v1233
    %v1247 = vmul.f32 %v1245, %v1233
    %v1248 = vadd.f32 %v1246, 1e-05
    %v1249 = vadd.f32 %v1247, 1e-05
    %v1250 = vrsqrt.pop %v1248
    %v1251 = vrsqrt.pop %v1249
    %v1252 = vmul.f32 %v1236, %v1250
    %v1253 = vmul.f32 %v1237, %v1251
    %v1255 = vlaneseq
    %v1256 = vshrl.u32 %v1255, 7
    %v1257 = vsub.s32 0, %v1256
    %v1258 = vrot.slane %v442, %v1257
    %v1260 = vmul.f32 %v1252, %v1258
    %v1261 = vmul.f32 %v1253, %v1258
    %v1263 = vlaneseq
    %v1264 = vshrl.u32 %v1263, 7
    %v1265 = vsub.s32 0, %v1264
    %v1266 = vrot.slane %v443, %v1265
    %v1268 = vadd.f32 %v1260, %v1266
    %v1269 = vadd.f32 %v1261, %v1266
    %v1270 = vpack.c.bf16 %v1269, %v1268
    %v1272 = vlaneseq
    %v1273 = vshrl.u32 %v1272, 7
    %v1274 = vsub.s32 0, %v1273
    %v1275 = vrot.slane %v448, %v1274
    %v1281 = vunpack.c.l.b16 %v444
    %v1282 = vunpack.c.l.b16 %v445
    %v1283 = vunpack.c.l.b16 %v446
    %v1284 = vunpack.c.l.b16 %v447
    %v1285 = vpack.c.b16 %v1282, %v1281
    %v1286 = vpack.c.b16 %v1284, %v1283
    %v1290 = vsel %vm483, %v1270, 0
    %1292 = vmatprep.subr.bf16.mxu0 0
    %1293 = vmatpush1.bf16.msra.mxu0 %v1285
    %1294 = vmatprep.subr.bf16.mxu0 0
    %1295 = vmatpush1.bf16.msra.mxu0 %v1286
    %1296 = vmatprep.subr.bf16.mxu0 0
    %1297 = vmatpush1.bf16.msra.mxu0 0
    %1298 = vmatprep.subr.bf16.mxu0 0
    %1299 = vmatpush1.bf16.msra.mxu0 0
    %1300 = vmatprep.subr.bf16.mxu0 0
    %1301 = vmatpush1.bf16.msra.mxu0 0
    %1302 = vmatprep.subr.bf16.mxu0 0
    %1303 = vmatpush1.bf16.msra.mxu0 0
    %1304 = vmatprep.subr.bf16.mxu0 0
    %1305 = vmatpush1.bf16.msra.mxu0 0
    %1306 = vmatprep.subr.bf16.mxu0 0
    %1307 = vmatpush1.bf16.msra.mxu0 0
    %1308 = vmatprep.subr.bf16.mxu0 0
    %1309 = vmatpush1.bf16.msra.mxu0 0
    %1310 = vmatprep.subr.bf16.mxu0 0
    %1311 = vmatpush1.bf16.msra.mxu0 0
    %1312 = vmatprep.subr.bf16.mxu0 0
    %1313 = vmatpush1.bf16.msra.mxu0 0
    %1314 = vmatprep.subr.bf16.mxu0 0
    %1315 = vmatpush1.bf16.msra.mxu0 0
    %1316 = vmatprep.subr.bf16.mxu0 0
    %1317 = vmatpush1.bf16.msra.mxu0 0
    %1318 = vmatprep.subr.bf16.mxu0 0
    %1319 = vmatpush1.bf16.msra.mxu0 0
    %1320 = vmatprep.subr.bf16.mxu0 0
    %1321 = vmatpush1.bf16.msra.mxu0 0
    %1322 = vmatprep.subr.bf16.mxu0 0
    %1323 = vmatpush1.bf16.msra.mxu0 0
    %1324 = vmatprep.mubr.bf16.mxu0 0
    %1325 = vmatmul.mubr.bf16.gmra.mrb[0].mxu0 %v1290
    %v1326 = vpop.f32.mrb[0].mxu0
    %v1327 = vadd.f32 %v1275, %v1326
    %v1328 = vpop.f32.mrb[0].mxu0
    %v1329 = vpop.f32.mrb[0].mxu0
    %v1330 = vadd.f32 %v1275, %v1329
    %v1331 = vpop.f32.mrb[0].mxu0
    %1332 = vdwg.mxu0
    %v1333 = vmax.f32 %v1327, 0.0
    %v1334 = vmax.f32 %v1330, 0.0
    %v1335 = vpack.c.bf16 %v1334, %v1333
    %v1337 = vlaneseq
    %v1338 = vshrl.u32 %v1337, 7
    %v1339 = vsub.s32 0, %v1338
    %v1340 = vrot.slane %v457, %v1339
    %v1350 = vunpack.c.l.b16 %v449
    %v1351 = vunpack.c.l.b16 %v450
    %v1352 = vunpack.c.l.b16 %v451
    %v1353 = vunpack.c.l.b16 %v452
    %v1354 = vunpack.c.l.b16 %v453
    %v1355 = vunpack.c.l.b16 %v454
    %v1356 = vunpack.c.l.b16 %v455
    %v1357 = vunpack.c.l.b16 %v456
    %v1358 = vpack.c.b16 %v1351, %v1350
    %v1359 = vpack.c.b16 %v1353, %v1352
    %v1360 = vpack.c.b16 %v1355, %v1354
    %v1361 = vpack.c.b16 %v1357, %v1356
    %vm1366 = vcmask 523264
    %v1368 = vsel %vm1366, %v1335, 0
    %1370 = vmatprep.subr.bf16.mxu0 0
    %1371 = vmatpush1.bf16.msra.mxu0 %v1358
    %1372 = vmatprep.subr.bf16.mxu0 0
    %1373 = vmatpush1.bf16.msra.mxu0 %v1359
    %1374 = vmatprep.subr.bf16.mxu0 0
    %1375 = vmatpush1.bf16.msra.mxu0 %v1360
    %1376 = vmatprep.subr.bf16.mxu0 0
    %1377 = vmatpush1.bf16.msra.mxu0 %v1361
    %1378 = vmatprep.subr.bf16.mxu0 0
    %1379 = vmatpush1.bf16.msra.mxu0 0
    %1380 = vmatprep.subr.bf16.mxu0 0
    %1381 = vmatpush1.bf16.msra.mxu0 0
    %1382 = vmatprep.subr.bf16.mxu0 0
    %1383 = vmatpush1.bf16.msra.mxu0 0
    %1384 = vmatprep.subr.bf16.mxu0 0
    %1385 = vmatpush1.bf16.msra.mxu0 0
    %1386 = vmatprep.subr.bf16.mxu0 0
    %1387 = vmatpush1.bf16.msra.mxu0 0
    %1388 = vmatprep.subr.bf16.mxu0 0
    %1389 = vmatpush1.bf16.msra.mxu0 0
    %1390 = vmatprep.subr.bf16.mxu0 0
    %1391 = vmatpush1.bf16.msra.mxu0 0
    %1392 = vmatprep.subr.bf16.mxu0 0
    %1393 = vmatpush1.bf16.msra.mxu0 0
    %1394 = vmatprep.subr.bf16.mxu0 0
    %1395 = vmatpush1.bf16.msra.mxu0 0
    %1396 = vmatprep.subr.bf16.mxu0 0
    %1397 = vmatpush1.bf16.msra.mxu0 0
    %1398 = vmatprep.subr.bf16.mxu0 0
    %1399 = vmatpush1.bf16.msra.mxu0 0
    %1400 = vmatprep.subr.bf16.mxu0 0
    %1401 = vmatpush1.bf16.msra.mxu0 0
    %1402 = vmatprep.mubr.bf16.mxu0 0
    %1403 = vmatmul.mubr.bf16.gmra.mrb[0].mxu0 %v1368
    %v1404 = vpop.f32.mrb[0].mxu0
    %v1405 = vadd.f32 %v1340, %v1404
    %v1406 = vpop.f32.mrb[0].mxu0
    %v1407 = vpop.f32.mrb[0].mxu0
    %v1408 = vadd.f32 %v1340, %v1407
    %v1409 = vpop.f32.mrb[0].mxu0
    %1410 = vdwg.mxu0
    %v1411 = vadd.f32 %v1268, %v1405
    %v1412 = vadd.f32 %v1269, %v1408
    %v1413 = vsel %vm483, %v1411, 0.0
    %1414 = vadd.xlane.f32.xlu0 %v1413
    %v1415 = vpop.xlane.xlu0 %1414
    %v1416 = vsel %vm483, %v1412, 0.0
    %1417 = vadd.xlane.f32.xlu0 %v1416
    %v1418 = vpop.xlane.xlu0 %1417
    %v1419 = vmul.f32 %v1415, %v1233
    %v1420 = vmul.f32 %v1418, %v1233
    %v1421 = vsub.f32 %v1411, %v1419
    %v1422 = vsub.f32 %v1412, %v1420
    %v1423 = vmul.f32 %v1421, %v1421
    %v1424 = vmul.f32 %v1422, %v1422
    %v1425 = vsel %vm483, %v1423, 0.0
    %1426 = vadd.xlane.f32.xlu0 %v1425
    %v1427 = vpop.xlane.xlu0 %1426
    %v1428 = vsel %vm483, %v1424, 0.0
    %1429 = vadd.xlane.f32.xlu0 %v1428
    %v1430 = vpop.xlane.xlu0 %1429
    %v1431 = vmul.f32 %v1427, %v1233
    %v1432 = vmul.f32 %v1430, %v1233
    %v1433 = vadd.f32 %v1431, 1e-05
    %v1434 = vadd.f32 %v1432, 1e-05
    %v1435 = vrsqrt.pop %v1433
    %v1436 = vrsqrt.pop %v1434
    %v1437 = vmul.f32 %v1421, %v1435
    %v1438 = vmul.f32 %v1422, %v1436
    %v1440 = vlaneseq
    %v1441 = vshrl.u32 %v1440, 7
    %v1442 = vsub.s32 0, %v1441
    %v1443 = vrot.slane %v458, %v1442
    %v1445 = vmul.f32 %v1437, %v1443
    %v1446 = vmul.f32 %v1438, %v1443
    %v1448 = vlaneseq
    %v1449 = vshrl.u32 %v1448, 7
    %v1450 = vsub.s32 0, %v1449
    %v1451 = vrot.slane %v459, %v1450
    %v1453 = vadd.f32 %v1445, %v1451
    %v1454 = vadd.f32 %v1446, %v1451
    %s1455 = scalar_lea.vmem %s11, 16
    %v1456 = vld [vmem:[%s1455] sm:$0xf]
    %v1457 = vld [vmem:[%s1455 + $0x4] sm:$0xf]
    %v1458 = vld [vmem:[%s1455 + $0x8] sm:$0xf]
    %v1459 = vld [vmem:[%s1455 + $0xc] sm:$0xf]
    %s1460 = scalar_lea.vmem %s13, 16
    %v1461 = vld [vmem:[%s1460] sm:$0xf]
    %v1462 = vld [vmem:[%s1460 + $0x4] sm:$0xf]
    %v1463 = vld [vmem:[%s1460 + $0x8] sm:$0xf]
    %v1464 = vld [vmem:[%s1460 + $0xc] sm:$0xf]
    %s1465 = scalar_lea.vmem %s15, 16
    %v1466 = vld [vmem:[%s1465] sm:$0xf]
    %v1467 = vld [vmem:[%s1465 + $0x4] sm:$0xf]
    %v1468 = vld [vmem:[%s1465 + $0x8] sm:$0xf]
    %v1469 = vld [vmem:[%s1465 + $0xc] sm:$0xf]
    %s1470 = scalar_lea.vmem %s17, 1
    %v1471 = vld [vmem:[%s1470] sm:$0x1]
    %s1472 = scalar_lea.vmem %s19, 1
    %v1473 = vld [vmem:[%s1472] sm:$0x1]
    %s1474 = scalar_lea.vmem %s21, 1
    %v1475 = vld [vmem:[%s1474] sm:$0x1]
    %s1476 = scalar_lea.vmem %s23, 16
    %v1477 = vld [vmem:[%s1476] sm:$0xf]
    %v1478 = vld [vmem:[%s1476 + $0x4] sm:$0xf]
    %v1479 = vld [vmem:[%s1476 + $0x8] sm:$0xf]
    %v1480 = vld [vmem:[%s1476 + $0xc] sm:$0xf]
    %s1481 = scalar_lea.vmem %s25, 1
    %v1482 = vld [vmem:[%s1481] sm:$0x1]
    %s1483 = scalar_lea.vmem %s27, 1
    %v1484 = vld [vmem:[%s1483] sm:$0x1]
    %s1485 = scalar_lea.vmem %s29, 1
    %v1486 = vld [vmem:[%s1485] sm:$0x1]
    %s1487 = scalar_lea.vmem %s31, 16
    %v1488 = vld [vmem:[%s1487] sm:$0xf]
    %v1489 = vld [vmem:[%s1487 + $0x4] sm:$0xf]
    %v1490 = vld [vmem:[%s1487 + $0x8] sm:$0xf]
    %v1491 = vld [vmem:[%s1487 + $0xc] sm:$0xf]
    %s1492 = scalar_lea.vmem %s33, 1
    %v1493 = vld [vmem:[%s1492] sm:$0x1]
    %s1494 = scalar_lea.vmem %s35, 32
    %v1495 = vld [vmem:[%s1494] sm:$0xf]
    %v1496 = vld [vmem:[%s1494 + $0x4] sm:$0xf]
    %v1497 = vld [vmem:[%s1494 + $0x8] sm:$0xf]
    %v1498 = vld [vmem:[%s1494 + $0xc] sm:$0xf]
    %v1499 = vld [vmem:[%s1494 + $0x10] sm:$0xf]
    %v1500 = vld [vmem:[%s1494 + $0x14] sm:$0xf]
    %v1501 = vld [vmem:[%s1494 + $0x18] sm:$0xf]
    %v1502 = vld [vmem:[%s1494 + $0x1c] sm:$0xf]
    %s1503 = scalar_lea.vmem %s37, 1
    %v1504 = vld [vmem:[%s1503] sm:$0x1]
    %s1505 = scalar_lea.vmem %s39, 1
    %v1506 = vld [vmem:[%s1505] sm:$0x1]
    %s1507 = scalar_lea.vmem %s41, 1
    %v1508 = vld [vmem:[%s1507] sm:$0x1]
    %v1509 = vpack.c.bf16 %v1454, %v1453
    %v1511 = vlaneseq
    %v1512 = vshrl.u32 %v1511, 7
    %v1513 = vsub.s32 0, %v1512
    %v1514 = vrot.slane %v1471, %v1513
    %v1520 = vunpack.c.l.b16 %v1456
    %v1521 = vunpack.c.l.b16 %v1457
    %v1522 = vunpack.c.l.b16 %v1458
    %v1523 = vunpack.c.l.b16 %v1459
    %v1524 = vpack.c.b16 %v1521, %v1520
    %v1525 = vpack.c.b16 %v1523, %v1522
    %v1529 = vsel %vm483, %v1509, 0
    %1531 = vmatprep.subr.bf16.mxu0 0
    %1532 = vmatpush1.bf16.msra.mxu0 %v1524
    %1533 = vmatprep.subr.bf16.mxu0 0
    %1534 = vmatpush1.bf16.msra.mxu0 %v1525
    %1535 = vmatprep.subr.bf16.mxu0 0
    %1536 = vmatpush1.bf16.msra.mxu0 0
    %1537 = vmatprep.subr.bf16.mxu0 0
    %1538 = vmatpush1.bf16.msra.mxu0 0
    %1539 = vmatprep.subr.bf16.mxu0 0
    %1540 = vmatpush1.bf16.msra.mxu0 0
    %1541 = vmatprep.subr.bf16.mxu0 0
    %1542 = vmatpush1.bf16.msra.mxu0 0
    %1543 = vmatprep.subr.bf16.mxu0 0
    %1544 = vmatpush1.bf16.msra.mxu0 0
    %1545 = vmatprep.subr.bf16.mxu0 0
    %1546 = vmatpush1.bf16.msra.mxu0 0
    %1547 = vmatprep.subr.bf16.mxu0 0
    %1548 = vmatpush1.bf16.msra.mxu0 0
    %1549 = vmatprep.subr.bf16.mxu0 0
    %1550 = vmatpush1.bf16.msra.mxu0 0
    %1551 = vmatprep.subr.bf16.mxu0 0
    %1552 = vmatpush1.bf16.msra.mxu0 0
    %1553 = vmatprep.subr.bf16.mxu0 0
    %1554 = vmatpush1.bf16.msra.mxu0 0
    %1555 = vmatprep.subr.bf16.mxu0 0
    %1556 = vmatpush1.bf16.msra.mxu0 0
    %1557 = vmatprep.subr.bf16.mxu0 0
    %1558 = vmatpush1.bf16.msra.mxu0 0
    %1559 = vmatprep.subr.bf16.mxu0 0
    %1560 = vmatpush1.bf16.msra.mxu0 0
    %1561 = vmatprep.subr.bf16.mxu0 0
    %1562 = vmatpush1.bf16.msra.mxu0 0
    %1563 = vmatprep.mubr.bf16.mxu0 0
    %1564 = vmatmul.mubr.bf16.gmra.mrb[0].mxu0 %v1529
    %v1565 = vpop.f32.mrb[0].mxu0
    %v1566 = vadd.f32 %v1514, %v1565
    %v1567 = vpop.f32.mrb[0].mxu0
    %v1568 = vpop.f32.mrb[0].mxu0
    %v1569 = vadd.f32 %v1514, %v1568
    %v1570 = vpop.f32.mrb[0].mxu0
    %1571 = vdwg.mxu0
    %v1573 = vlaneseq
    %v1574 = vshrl.u32 %v1573, 7
    %v1575 = vsub.s32 0, %v1574
    %v1576 = vrot.slane %v1473, %v1575
    %v1582 = vunpack.c.l.b16 %v1461
    %v1583 = vunpack.c.l.b16 %v1462
    %v1584 = vunpack.c.l.b16 %v1463
    %v1585 = vunpack.c.l.b16 %v1464
    %v1586 = vpack.c.b16 %v1583, %v1582
    %v1587 = vpack.c.b16 %v1585, %v1584
    %1590 = vmatprep.subr.bf16.mxu0 0
    %1591 = vmatpush1.bf16.msra.mxu0 %v1586
    %1592 = vmatprep.subr.bf16.mxu0 0
    %1593 = vmatpush1.bf16.msra.mxu0 %v1587
    %1594 = vmatprep.subr.bf16.mxu0 0
    %1595 = vmatpush1.bf16.msra.mxu0 0
    %1596 = vmatprep.subr.bf16.mxu0 0
    %1597 = vmatpush1.bf16.msra.mxu0 0
    %1598 = vmatprep.subr.bf16.mxu0 0
    %1599 = vmatpush1.bf16.msra.mxu0 0
    %1600 = vmatprep.subr.bf16.mxu0 0
    %1601 = vmatpush1.bf16.msra.mxu0 0
    %1602 = vmatprep.subr.bf16.mxu0 0
    %1603 = vmatpush1.bf16.msra.mxu0 0
    %1604 = vmatprep.subr.bf16.mxu0 0
    %1605 = vmatpush1.bf16.msra.mxu0 0
    %1606 = vmatprep.subr.bf16.mxu0 0
    %1607 = vmatpush1.bf16.msra.mxu0 0
    %1608 = vmatprep.subr.bf16.mxu0 0
    %1609 = vmatpush1.bf16.msra.mxu0 0
    %1610 = vmatprep.subr.bf16.mxu0 0
    %1611 = vmatpush1.bf16.msra.mxu0 0
    %1612 = vmatprep.subr.bf16.mxu0 0
    %1613 = vmatpush1.bf16.msra.mxu0 0
    %1614 = vmatprep.subr.bf16.mxu0 0
    %1615 = vmatpush1.bf16.msra.mxu0 0
    %1616 = vmatprep.subr.bf16.mxu0 0
    %1617 = vmatpush1.bf16.msra.mxu0 0
    %1618 = vmatprep.subr.bf16.mxu0 0
    %1619 = vmatpush1.bf16.msra.mxu0 0
    %1620 = vmatprep.subr.bf16.mxu0 0
    %1621 = vmatpush1.bf16.msra.mxu0 0
    %1622 = vmatprep.mubr.bf16.mxu0 0
    %1623 = vmatmul.mubr.bf16.gmra.mrb[0].mxu0 %v1529
    %v1624 = vpop.f32.mrb[0].mxu0
    %v1625 = vadd.f32 %v1576, %v1624
    %v1626 = vpop.f32.mrb[0].mxu0
    %v1627 = vpop.f32.mrb[0].mxu0
    %v1628 = vadd.f32 %v1576, %v1627
    %v1629 = vpop.f32.mrb[0].mxu0
    %1630 = vdwg.mxu0
    %v1632 = vlaneseq
    %v1633 = vshrl.u32 %v1632, 7
    %v1634 = vsub.s32 0, %v1633
    %v1635 = vrot.slane %v1475, %v1634
    %v1641 = vunpack.c.l.b16 %v1466
    %v1642 = vunpack.c.l.b16 %v1467
    %v1643 = vunpack.c.l.b16 %v1468
    %v1644 = vunpack.c.l.b16 %v1469
    %v1645 = vpack.c.b16 %v1642, %v1641
    %v1646 = vpack.c.b16 %v1644, %v1643
    %1649 = vmatprep.subr.bf16.mxu0 0
    %1650 = vmatpush1.bf16.msra.mxu0 %v1645
    %1651 = vmatprep.subr.bf16.mxu0 0
    %1652 = vmatpush1.bf16.msra.mxu0 %v1646
    %1653 = vmatprep.subr.bf16.mxu0 0
    %1654 = vmatpush1.bf16.msra.mxu0 0
    %1655 = vmatprep.subr.bf16.mxu0 0
    %1656 = vmatpush1.bf16.msra.mxu0 0
    %1657 = vmatprep.subr.bf16.mxu0 0
    %1658 = vmatpush1.bf16.msra.mxu0 0
    %1659 = vmatprep.subr.bf16.mxu0 0
    %1660 = vmatpush1.bf16.msra.mxu0 0
    %1661 = vmatprep.subr.bf16.mxu0 0
    %1662 = vmatpush1.bf16.msra.mxu0 0
    %1663 = vmatprep.subr.bf16.mxu0 0
    %1664 = vmatpush1.bf16.msra.mxu0 0
    %1665 = vmatprep.subr.bf16.mxu0 0
    %1666 = vmatpush1.bf16.msra.mxu0 0
    %1667 = vmatprep.subr.bf16.mxu0 0
    %1668 = vmatpush1.bf16.msra.mxu0 0
    %1669 = vmatprep.subr.bf16.mxu0 0
    %1670 = vmatpush1.bf16.msra.mxu0 0
    %1671 = vmatprep.subr.bf16.mxu0 0
    %1672 = vmatpush1.bf16.msra.mxu0 0
    %1673 = vmatprep.subr.bf16.mxu0 0
    %1674 = vmatpush1.bf16.msra.mxu0 0
    %1675 = vmatprep.subr.bf16.mxu0 0
    %1676 = vmatpush1.bf16.msra.mxu0 0
    %1677 = vmatprep.subr.bf16.mxu0 0
    %1678 = vmatpush1.bf16.msra.mxu0 0
    %1679 = vmatprep.subr.bf16.mxu0 0
    %1680 = vmatpush1.bf16.msra.mxu0 0
    %1681 = vmatprep.mubr.bf16.mxu0 0
    %1682 = vmatmul.mubr.bf16.gmra.mrb[0].mxu0 %v1529
    %v1683 = vpop.f32.mrb[0].mxu0
    %v1684 = vadd.f32 %v1635, %v1683
    %v1685 = vpop.f32.mrb[0].mxu0
    %v1686 = vpop.f32.mrb[0].mxu0
    %v1687 = vadd.f32 %v1635, %v1686
    %v1688 = vpop.f32.mrb[0].mxu0
    %1689 = vdwg.mxu0
    %v1690 = vpack.c.bf16 %v1569, %v1566
    %v1691 = vpack.c.bf16 %v1628, %v1625
    %v1692 = vpack.c.bf16 %v1687, %v1684
    %v1694 = vsel %vm649, %v1690, 0
    %v1697 = vsel %vm649, %v1691, 0
    %1699 = vmatprep.subr.bf16.mxu0 0
    %1700 = vmatpush1.bf16.xpose.msra.mxu0 %v1697
    %1701 = vmatprep.subr.bf16.mxu0 0
    %1702 = vmatpush1.bf16.xpose.msra.mxu0 0
    %1703 = vmatprep.subr.bf16.mxu0 0
    %1704 = vmatpush1.bf16.xpose.msra.mxu0 0
    %1705 = vmatprep.subr.bf16.mxu0 0
    %1706 = vmatpush1.bf16.xpose.msra.mxu0 0
    %1707 = vmatprep.subr.bf16.mxu0 0
    %1708 = vmatpush1.bf16.xpose.msra.mxu0 0
    %1709 = vmatprep.subr.bf16.mxu0 0
    %1710 = vmatpush1.bf16.xpose.msra.mxu0 0
    %1711 = vmatprep.subr.bf16.mxu0 0
    %1712 = vmatpush1.bf16.xpose.msra.mxu0 0
    %1713 = vmatprep.subr.bf16.mxu0 0
    %1714 = vmatpush1.bf16.xpose.msra.mxu0 0
    %1715 = vmatprep.subr.bf16.mxu0 0
    %1716 = vmatpush1.bf16.xpose.msra.mxu0 0
    %1717 = vmatprep.subr.bf16.mxu0 0
    %1718 = vmatpush1.bf16.xpose.msra.mxu0 0
    %1719 = vmatprep.subr.bf16.mxu0 0
    %1720 = vmatpush1.bf16.xpose.msra.mxu0 0
    %1721 = vmatprep.subr.bf16.mxu0 0
    %1722 = vmatpush1.bf16.xpose.msra.mxu0 0
    %1723 = vmatprep.subr.bf16.mxu0 0
    %1724 = vmatpush1.bf16.xpose.msra.mxu0 0
    %1725 = vmatprep.subr.bf16.mxu0 0
    %1726 = vmatpush1.bf16.xpose.msra.mxu0 0
    %1727 = vmatprep.subr.bf16.mxu0 0
    %1728 = vmatpush1.bf16.xpose.msra.mxu0 0
    %1729 = vmatprep.subr.bf16.mxu0 0
    %1730 = vmatpush1.bf16.xpose.msra.mxu0 0
    %1731 = vmatprep.mubr.bf16.mxu0 0
    %1732 = vmatmul.mubr.bf16.gmra.mrb[0].mxu0 %v1694
    %v1733 = vpop.f32.mrb[0].mxu0
    %v1734 = vadd.f32 %v412, %v1733
    %v1735 = vpop.f32.mrb[0].mxu0
    %v1736 = vpop.f32.mrb[0].mxu0
    %v1737 = vadd.f32 %v413, %v1736
    %v1738 = vpop.f32.mrb[0].mxu0
    %1739 = vdwg.mxu0
    %v1740 = vsel %vm697, %v1734, -inf
    %1741 = vmax.xlane.f32.xlu0 %v1740
    %v1742 = vpop.xlane.xlu0 %1741
    %v1743 = vsel %vm697, %v1737, -inf
    %1744 = vmax.xlane.f32.xlu0 %v1743
    %v1745 = vpop.xlane.xlu0 %1744
    %v1746 = vsub.f32 %v1734, %v1742
    %v1747 = vsub.f32 %v1737, %v1745
    %v1748 = vmul.f32 %v1746, 1.442695
    %v1749 = vpow.pop %v1748
    %v1750 = vmul.f32 %v1747, 1.442695
    %v1751 = vpow.pop %v1750
    %v1752 = vsel %vm697, %v1749, 0.0
    %1753 = vadd.xlane.f32.xlu0 %v1752
    %v1754 = vpop.xlane.xlu0 %1753
    %v1755 = vsel %vm697, %v1751, 0.0
    %1756 = vadd.xlane.f32.xlu0 %v1755
    %v1757 = vpop.xlane.xlu0 %1756
    %v1758 = vrcp.pop %v1754
    %v1759 = vrcp.pop %v1757
    %v1760 = vmul.f32 %v1749, %v1758
    %v1761 = vmul.f32 %v1751, %v1759
    %v1762 = vpack.c.bf16 %v1761, %v1760
    %v1764 = vsel %vm697, %v1762, 0
    %1766 = vmatprep.subr.bf16.mxu0 0
    %1767 = vmatpush1.bf16.msra.mxu0 %v1692
    %1768 = vmatprep.subr.bf16.mxu0 0
    %1769 = vmatpush1.bf16.msra.mxu0 0
    %1770 = vmatprep.subr.bf16.mxu0 0
    %1771 = vmatpush1.bf16.msra.mxu0 0
    %1772 = vmatprep.subr.bf16.mxu0 0
    %1773 = vmatpush1.bf16.msra.mxu0 0
    %1774 = vmatprep.subr.bf16.mxu0 0
    %1775 = vmatpush1.bf16.msra.mxu0 0
    %1776 = vmatprep.subr.bf16.mxu0 0
    %1777 = vmatpush1.bf16.msra.mxu0 0
    %1778 = vmatprep.subr.bf16.mxu0 0
    %1779 = vmatpush1.bf16.msra.mxu0 0
    %1780 = vmatprep.subr.bf16.mxu0 0
    %1781 = vmatpush1.bf16.msra.mxu0 0
    %1782 = vmatprep.subr.bf16.mxu0 0
    %1783 = vmatpush1.bf16.msra.mxu0 0
    %1784 = vmatprep.subr.bf16.mxu0 0
    %1785 = vmatpush1.bf16.msra.mxu0 0
    %1786 = vmatprep.subr.bf16.mxu0 0
    %1787 = vmatpush1.bf16.msra.mxu0 0
    %1788 = vmatprep.subr.bf16.mxu0 0
    %1789 = vmatpush1.bf16.msra.mxu0 0
    %1790 = vmatprep.subr.bf16.mxu0 0
    %1791 = vmatpush1.bf16.msra.mxu0 0
    %1792 = vmatprep.subr.bf16.mxu0 0
    %1793 = vmatpush1.bf16.msra.mxu0 0
    %1794 = vmatprep.subr.bf16.mxu0 0
    %1795 = vmatpush1.bf16.msra.mxu0 0
    %1796 = vmatprep.subr.bf16.mxu0 0
    %1797 = vmatpush1.bf16.msra.mxu0 0
    %1798 = vmatprep.mubr.bf16.mxu0 0
    %1799 = vmatmul.mubr.bf16.gmra.mrb[0].mxu0 %v1764
    %v1800 = vpop.f32.mrb[0].mxu0
    %v1801 = vadd.f32 0.0, %v1800
    %v1802 = vpop.f32.mrb[0].mxu0
    %v1803 = vpop.f32.mrb[0].mxu0
    %v1804 = vadd.f32 0.0, %v1803
    %v1805 = vpop.f32.mrb[0].mxu0
    %1806 = vdwg.mxu0
    %1808 = vrot.lane.b32.xlu0 %v1690, 120
    %v1809 = vpop.permute.xlu0 %1808
    %1811 = vrot.lane.b32.xlu0 %v1691, 120
    %v1812 = vpop.permute.xlu0 %1811
    %v1814 = vsel %vm649, %v1809, 0
    %v1817 = vsel %vm649, %v1812, 0
    %1819 = vmatprep.subr.bf16.mxu0 0
    %1820 = vmatpush1.bf16.xpose.msra.mxu0 %v1817
    %1821 = vmatprep.subr.bf16.mxu0 0
    %1822 = vmatpush1.bf16.xpose.msra.mxu0 0
    %1823 = vmatprep.subr.bf16.mxu0 0
    %1824 = vmatpush1.bf16.xpose.msra.mxu0 0
    %1825 = vmatprep.subr.bf16.mxu0 0
    %1826 = vmatpush1.bf16.xpose.msra.mxu0 0
    %1827 = vmatprep.subr.bf16.mxu0 0
    %1828 = vmatpush1.bf16.xpose.msra.mxu0 0
    %1829 = vmatprep.subr.bf16.mxu0 0
    %1830 = vmatpush1.bf16.xpose.msra.mxu0 0
    %1831 = vmatprep.subr.bf16.mxu0 0
    %1832 = vmatpush1.bf16.xpose.msra.mxu0 0
    %1833 = vmatprep.subr.bf16.mxu0 0
    %1834 = vmatpush1.bf16.xpose.msra.mxu0 0
    %1835 = vmatprep.subr.bf16.mxu0 0
    %1836 = vmatpush1.bf16.xpose.msra.mxu0 0
    %1837 = vmatprep.subr.bf16.mxu0 0
    %1838 = vmatpush1.bf16.xpose.msra.mxu0 0
    %1839 = vmatprep.subr.bf16.mxu0 0
    %1840 = vmatpush1.bf16.xpose.msra.mxu0 0
    %1841 = vmatprep.subr.bf16.mxu0 0
    %1842 = vmatpush1.bf16.xpose.msra.mxu0 0
    %1843 = vmatprep.subr.bf16.mxu0 0
    %1844 = vmatpush1.bf16.xpose.msra.mxu0 0
    %1845 = vmatprep.subr.bf16.mxu0 0
    %1846 = vmatpush1.bf16.xpose.msra.mxu0 0
    %1847 = vmatprep.subr.bf16.mxu0 0
    %1848 = vmatpush1.bf16.xpose.msra.mxu0 0
    %1849 = vmatprep.subr.bf16.mxu0 0
    %1850 = vmatpush1.bf16.xpose.msra.mxu0 0
    %1851 = vmatprep.mubr.bf16.mxu0 0
    %1852 = vmatmul.mubr.bf16.gmra.mrb[0].mxu0 %v1814
    %v1853 = vpop.f32.mrb[0].mxu0
    %v1854 = vadd.f32 %v412, %v1853
    %v1855 = vpop.f32.mrb[0].mxu0
    %v1856 = vpop.f32.mrb[0].mxu0
    %v1857 = vadd.f32 %v413, %v1856
    %v1858 = vpop.f32.mrb[0].mxu0
    %1859 = vdwg.mxu0
    %v1860 = vsel %vm697, %v1854, -inf
    %1861 = vmax.xlane.f32.xlu0 %v1860
    %v1862 = vpop.xlane.xlu0 %1861
    %v1863 = vsel %vm697, %v1857, -inf
    %1864 = vmax.xlane.f32.xlu0 %v1863
    %v1865 = vpop.xlane.xlu0 %1864
    %v1866 = vsub.f32 %v1854, %v1862
    %v1867 = vsub.f32 %v1857, %v1865
    %v1868 = vmul.f32 %v1866, 1.442695
    %v1869 = vpow.pop %v1868
    %v1870 = vmul.f32 %v1867, 1.442695
    %v1871 = vpow.pop %v1870
    %v1872 = vsel %vm697, %v1869, 0.0
    %1873 = vadd.xlane.f32.xlu0 %v1872
    %v1874 = vpop.xlane.xlu0 %1873
    %v1875 = vsel %vm697, %v1871, 0.0
    %1876 = vadd.xlane.f32.xlu0 %v1875
    %v1877 = vpop.xlane.xlu0 %1876
    %v1878 = vrcp.pop %v1874
    %v1879 = vrcp.pop %v1877
    %v1880 = vmul.f32 %v1869, %v1878
    %v1881 = vmul.f32 %v1871, %v1879
    %v1882 = vpack.c.bf16 %v1881, %v1880
    %1884 = vrot.lane.b32.xlu0 %v1692, 120
    %v1885 = vpop.permute.xlu0 %1884
    %v1888 = vsel %vm697, %v1882, 0
    %1890 = vmatprep.subr.bf16.mxu0 0
    %1891 = vmatpush1.bf16.msra.mxu0 %v1885
    %1892 = vmatprep.subr.bf16.mxu0 0
    %1893 = vmatpush1.bf16.msra.mxu0 0
    %1894 = vmatprep.subr.bf16.mxu0 0
    %1895 = vmatpush1.bf16.msra.mxu0 0
    %1896 = vmatprep.subr.bf16.mxu0 0
    %1897 = vmatpush1.bf16.msra.mxu0 0
    %1898 = vmatprep.subr.bf16.mxu0 0
    %1899 = vmatpush1.bf16.msra.mxu0 0
    %1900 = vmatprep.subr.bf16.mxu0 0
    %1901 = vmatpush1.bf16.msra.mxu0 0
    %1902 = vmatprep.subr.bf16.mxu0 0
    %1903 = vmatpush1.bf16.msra.mxu0 0
    %1904 = vmatprep.subr.bf16.mxu0 0
    %1905 = vmatpush1.bf16.msra.mxu0 0
    %1906 = vmatprep.subr.bf16.mxu0 0
    %1907 = vmatpush1.bf16.msra.mxu0 0
    %1908 = vmatprep.subr.bf16.mxu0 0
    %1909 = vmatpush1.bf16.msra.mxu0 0
    %1910 = vmatprep.subr.bf16.mxu0 0
    %1911 = vmatpush1.bf16.msra.mxu0 0
    %1912 = vmatprep.subr.bf16.mxu0 0
    %1913 = vmatpush1.bf16.msra.mxu0 0
    %1914 = vmatprep.subr.bf16.mxu0 0
    %1915 = vmatpush1.bf16.msra.mxu0 0
    %1916 = vmatprep.subr.bf16.mxu0 0
    %1917 = vmatpush1.bf16.msra.mxu0 0
    %1918 = vmatprep.subr.bf16.mxu0 0
    %1919 = vmatpush1.bf16.msra.mxu0 0
    %1920 = vmatprep.subr.bf16.mxu0 0
    %1921 = vmatpush1.bf16.msra.mxu0 0
    %1922 = vmatprep.mubr.bf16.mxu0 0
    %1923 = vmatmul.mubr.bf16.gmra.mrb[0].mxu0 %v1888
    %v1924 = vpop.f32.mrb[0].mxu0
    %v1925 = vadd.f32 0.0, %v1924
    %v1926 = vpop.f32.mrb[0].mxu0
    %v1927 = vpop.f32.mrb[0].mxu0
    %v1928 = vadd.f32 0.0, %v1927
    %v1929 = vpop.f32.mrb[0].mxu0
    %1930 = vdwg.mxu0
    %1931 = vrot.lane.b32.xlu0 %v1690, 112
    %v1932 = vpop.permute.xlu0 %1931
    %1933 = vrot.lane.b32.xlu0 %v1691, 112
    %v1934 = vpop.permute.xlu0 %1933
    %v1936 = vsel %vm649, %v1932, 0
    %v1939 = vsel %vm649, %v1934, 0
    %1941 = vmatprep.subr.bf16.mxu0 0
    %1942 = vmatpush1.bf16.xpose.msra.mxu0 %v1939
    %1943 = vmatprep.subr.bf16.mxu0 0
    %1944 = vmatpush1.bf16.xpose.msra.mxu0 0
    %1945 = vmatprep.subr.bf16.mxu0 0
    %1946 = vmatpush1.bf16.xpose.msra.mxu0 0
    %1947 = vmatprep.subr.bf16.mxu0 0
    %1948 = vmatpush1.bf16.xpose.msra.mxu0 0
    %1949 = vmatprep.subr.bf16.mxu0 0
    %1950 = vmatpush1.bf16.xpose.msra.mxu0 0
    %1951 = vmatprep.subr.bf16.mxu0 0
    %1952 = vmatpush1.bf16.xpose.msra.mxu0 0
    %1953 = vmatprep.subr.bf16.mxu0 0
    %1954 = vmatpush1.bf16.xpose.msra.mxu0 0
    %1955 = vmatprep.subr.bf16.mxu0 0
    %1956 = vmatpush1.bf16.xpose.msra.mxu0 0
    %1957 = vmatprep.subr.bf16.mxu0 0
    %1958 = vmatpush1.bf16.xpose.msra.mxu0 0
    %1959 = vmatprep.subr.bf16.mxu0 0
    %1960 = vmatpush1.bf16.xpose.msra.mxu0 0
    %1961 = vmatprep.subr.bf16.mxu0 0
    %1962 = vmatpush1.bf16.xpose.msra.mxu0 0
    %1963 = vmatprep.subr.bf16.mxu0 0
    %1964 = vmatpush1.bf16.xpose.msra.mxu0 0
    %1965 = vmatprep.subr.bf16.mxu0 0
    %1966 = vmatpush1.bf16.xpose.msra.mxu0 0
    %1967 = vmatprep.subr.bf16.mxu0 0
    %1968 = vmatpush1.bf16.xpose.msra.mxu0 0
    %1969 = vmatprep.subr.bf16.mxu0 0
    %1970 = vmatpush1.bf16.xpose.msra.mxu0 0
    %1971 = vmatprep.subr.bf16.mxu0 0
    %1972 = vmatpush1.bf16.xpose.msra.mxu0 0
    %1973 = vmatprep.mubr.bf16.mxu0 0
    %1974 = vmatmul.mubr.bf16.gmra.mrb[0].mxu0 %v1936
    %v1975 = vpop.f32.mrb[0].mxu0
    %v1976 = vadd.f32 %v412, %v1975
    %v1977 = vpop.f32.mrb[0].mxu0
    %v1978 = vpop.f32.mrb[0].mxu0
    %v1979 = vadd.f32 %v413, %v1978
    %v1980 = vpop.f32.mrb[0].mxu0
    %1981 = vdwg.mxu0
    %v1982 = vsel %vm697, %v1976, -inf
    %1983 = vmax.xlane.f32.xlu0 %v1982
    %v1984 = vpop.xlane.xlu0 %1983
    %v1985 = vsel %vm697, %v1979, -inf
    %1986 = vmax.xlane.f32.xlu0 %v1985
    %v1987 = vpop.xlane.xlu0 %1986
    %v1988 = vsub.f32 %v1976, %v1984
    %v1989 = vsub.f32 %v1979, %v1987
    %v1990 = vmul.f32 %v1988, 1.442695
    %v1991 = vpow.pop %v1990
    %v1992 = vmul.f32 %v1989, 1.442695
    %v1993 = vpow.pop %v1992
    %v1994 = vsel %vm697, %v1991, 0.0
    %1995 = vadd.xlane.f32.xlu0 %v1994
    %v1996 = vpop.xlane.xlu0 %1995
    %v1997 = vsel %vm697, %v1993, 0.0
    %1998 = vadd.xlane.f32.xlu0 %v1997
    %v1999 = vpop.xlane.xlu0 %1998
    %v2000 = vrcp.pop %v1996
    %v2001 = vrcp.pop %v1999
    %v2002 = vmul.f32 %v1991, %v2000
    %v2003 = vmul.f32 %v1993, %v2001
    %v2004 = vpack.c.bf16 %v2003, %v2002
    %2005 = vrot.lane.b32.xlu0 %v1692, 112
    %v2006 = vpop.permute.xlu0 %2005
    %v2009 = vsel %vm697, %v2004, 0
    %2011 = vmatprep.subr.bf16.mxu0 0
    %2012 = vmatpush1.bf16.msra.mxu0 %v2006
    %2013 = vmatprep.subr.bf16.mxu0 0
    %2014 = vmatpush1.bf16.msra.mxu0 0
    %2015 = vmatprep.subr.bf16.mxu0 0
    %2016 = vmatpush1.bf16.msra.mxu0 0
    %2017 = vmatprep.subr.bf16.mxu0 0
    %2018 = vmatpush1.bf16.msra.mxu0 0
    %2019 = vmatprep.subr.bf16.mxu0 0
    %2020 = vmatpush1.bf16.msra.mxu0 0
    %2021 = vmatprep.subr.bf16.mxu0 0
    %2022 = vmatpush1.bf16.msra.mxu0 0
    %2023 = vmatprep.subr.bf16.mxu0 0
    %2024 = vmatpush1.bf16.msra.mxu0 0
    %2025 = vmatprep.subr.bf16.mxu0 0
    %2026 = vmatpush1.bf16.msra.mxu0 0
    %2027 = vmatprep.subr.bf16.mxu0 0
    %2028 = vmatpush1.bf16.msra.mxu0 0
    %2029 = vmatprep.subr.bf16.mxu0 0
    %2030 = vmatpush1.bf16.msra.mxu0 0
    %2031 = vmatprep.subr.bf16.mxu0 0
    %2032 = vmatpush1.bf16.msra.mxu0 0
    %2033 = vmatprep.subr.bf16.mxu0 0
    %2034 = vmatpush1.bf16.msra.mxu0 0
    %2035 = vmatprep.subr.bf16.mxu0 0
    %2036 = vmatpush1.bf16.msra.mxu0 0
    %2037 = vmatprep.subr.bf16.mxu0 0
    %2038 = vmatpush1.bf16.msra.mxu0 0
    %2039 = vmatprep.subr.bf16.mxu0 0
    %2040 = vmatpush1.bf16.msra.mxu0 0
    %2041 = vmatprep.subr.bf16.mxu0 0
    %2042 = vmatpush1.bf16.msra.mxu0 0
    %2043 = vmatprep.mubr.bf16.mxu0 0
    %2044 = vmatmul.mubr.bf16.gmra.mrb[0].mxu0 %v2009
    %v2045 = vpop.f32.mrb[0].mxu0
    %v2046 = vadd.f32 0.0, %v2045
    %v2047 = vpop.f32.mrb[0].mxu0
    %v2048 = vpop.f32.mrb[0].mxu0
    %v2049 = vadd.f32 0.0, %v2048
    %v2050 = vpop.f32.mrb[0].mxu0
    %2051 = vdwg.mxu0
    %2052 = vrot.lane.b32.xlu0 %v1690, 104
    %v2053 = vpop.permute.xlu0 %2052
    %2054 = vrot.lane.b32.xlu0 %v1691, 104
    %v2055 = vpop.permute.xlu0 %2054
    %v2057 = vsel %vm649, %v2053, 0
    %v2060 = vsel %vm649, %v2055, 0
    %2062 = vmatprep.subr.bf16.mxu0 0
    %2063 = vmatpush1.bf16.xpose.msra.mxu0 %v2060
    %2064 = vmatprep.subr.bf16.mxu0 0
    %2065 = vmatpush1.bf16.xpose.msra.mxu0 0
    %2066 = vmatprep.subr.bf16.mxu0 0
    %2067 = vmatpush1.bf16.xpose.msra.mxu0 0
    %2068 = vmatprep.subr.bf16.mxu0 0
    %2069 = vmatpush1.bf16.xpose.msra.mxu0 0
    %2070 = vmatprep.subr.bf16.mxu0 0
    %2071 = vmatpush1.bf16.xpose.msra.mxu0 0
    %2072 = vmatprep.subr.bf16.mxu0 0
    %2073 = vmatpush1.bf16.xpose.msra.mxu0 0
    %2074 = vmatprep.subr.bf16.mxu0 0
    %2075 = vmatpush1.bf16.xpose.msra.mxu0 0
    %2076 = vmatprep.subr.bf16.mxu0 0
    %2077 = vmatpush1.bf16.xpose.msra.mxu0 0
    %2078 = vmatprep.subr.bf16.mxu0 0
    %2079 = vmatpush1.bf16.xpose.msra.mxu0 0
    %2080 = vmatprep.subr.bf16.mxu0 0
    %2081 = vmatpush1.bf16.xpose.msra.mxu0 0
    %2082 = vmatprep.subr.bf16.mxu0 0
    %2083 = vmatpush1.bf16.xpose.msra.mxu0 0
    %2084 = vmatprep.subr.bf16.mxu0 0
    %2085 = vmatpush1.bf16.xpose.msra.mxu0 0
    %2086 = vmatprep.subr.bf16.mxu0 0
    %2087 = vmatpush1.bf16.xpose.msra.mxu0 0
    %2088 = vmatprep.subr.bf16.mxu0 0
    %2089 = vmatpush1.bf16.xpose.msra.mxu0 0
    %2090 = vmatprep.subr.bf16.mxu0 0
    %2091 = vmatpush1.bf16.xpose.msra.mxu0 0
    %2092 = vmatprep.subr.bf16.mxu0 0
    %2093 = vmatpush1.bf16.xpose.msra.mxu0 0
    %2094 = vmatprep.mubr.bf16.mxu0 0
    %2095 = vmatmul.mubr.bf16.gmra.mrb[0].mxu0 %v2057
    %v2096 = vpop.f32.mrb[0].mxu0
    %v2097 = vadd.f32 %v412, %v2096
    %v2098 = vpop.f32.mrb[0].mxu0
    %v2099 = vpop.f32.mrb[0].mxu0
    %v2100 = vadd.f32 %v413, %v2099
    %v2101 = vpop.f32.mrb[0].mxu0
    %2102 = vdwg.mxu0
    %v2103 = vsel %vm697, %v2097, -inf
    %2104 = vmax.xlane.f32.xlu0 %v2103
    %v2105 = vpop.xlane.xlu0 %2104
    %v2106 = vsel %vm697, %v2100, -inf
    %2107 = vmax.xlane.f32.xlu0 %v2106
    %v2108 = vpop.xlane.xlu0 %2107
    %v2109 = vsub.f32 %v2097, %v2105
    %v2110 = vsub.f32 %v2100, %v2108
    %v2111 = vmul.f32 %v2109, 1.442695
    %v2112 = vpow.pop %v2111
    %v2113 = vmul.f32 %v2110, 1.442695
    %v2114 = vpow.pop %v2113
    %v2115 = vsel %vm697, %v2112, 0.0
    %2116 = vadd.xlane.f32.xlu0 %v2115
    %v2117 = vpop.xlane.xlu0 %2116
    %v2118 = vsel %vm697, %v2114, 0.0
    %2119 = vadd.xlane.f32.xlu0 %v2118
    %v2120 = vpop.xlane.xlu0 %2119
    %v2121 = vrcp.pop %v2117
    %v2122 = vrcp.pop %v2120
    %v2123 = vmul.f32 %v2112, %v2121
    %v2124 = vmul.f32 %v2114, %v2122
    %v2125 = vpack.c.bf16 %v2124, %v2123
    %2126 = vrot.lane.b32.xlu0 %v1692, 104
    %v2127 = vpop.permute.xlu0 %2126
    %v2130 = vsel %vm697, %v2125, 0
    %2132 = vmatprep.subr.bf16.mxu0 0
    %2133 = vmatpush1.bf16.msra.mxu0 %v2127
    %2134 = vmatprep.subr.bf16.mxu0 0
    %2135 = vmatpush1.bf16.msra.mxu0 0
    %2136 = vmatprep.subr.bf16.mxu0 0
    %2137 = vmatpush1.bf16.msra.mxu0 0
    %2138 = vmatprep.subr.bf16.mxu0 0
    %2139 = vmatpush1.bf16.msra.mxu0 0
    %2140 = vmatprep.subr.bf16.mxu0 0
    %2141 = vmatpush1.bf16.msra.mxu0 0
    %2142 = vmatprep.subr.bf16.mxu0 0
    %2143 = vmatpush1.bf16.msra.mxu0 0
    %2144 = vmatprep.subr.bf16.mxu0 0
    %2145 = vmatpush1.bf16.msra.mxu0 0
    %2146 = vmatprep.subr.bf16.mxu0 0
    %2147 = vmatpush1.bf16.msra.mxu0 0
    %2148 = vmatprep.subr.bf16.mxu0 0
    %2149 = vmatpush1.bf16.msra.mxu0 0
    %2150 = vmatprep.subr.bf16.mxu0 0
    %2151 = vmatpush1.bf16.msra.mxu0 0
    %2152 = vmatprep.subr.bf16.mxu0 0
    %2153 = vmatpush1.bf16.msra.mxu0 0
    %2154 = vmatprep.subr.bf16.mxu0 0
    %2155 = vmatpush1.bf16.msra.mxu0 0
    %2156 = vmatprep.subr.bf16.mxu0 0
    %2157 = vmatpush1.bf16.msra.mxu0 0
    %2158 = vmatprep.subr.bf16.mxu0 0
    %2159 = vmatpush1.bf16.msra.mxu0 0
    %2160 = vmatprep.subr.bf16.mxu0 0
    %2161 = vmatpush1.bf16.msra.mxu0 0
    %2162 = vmatprep.subr.bf16.mxu0 0
    %2163 = vmatpush1.bf16.msra.mxu0 0
    %2164 = vmatprep.mubr.bf16.mxu0 0
    %2165 = vmatmul.mubr.bf16.gmra.mrb[0].mxu0 %v2130
    %v2166 = vpop.f32.mrb[0].mxu0
    %v2167 = vadd.f32 0.0, %v2166
    %v2168 = vpop.f32.mrb[0].mxu0
    %v2169 = vpop.f32.mrb[0].mxu0
    %v2170 = vadd.f32 0.0, %v2169
    %v2171 = vpop.f32.mrb[0].mxu0
    %2172 = vdwg.mxu0
    %2175 = vrot.lane.b32.xlu0 %v1925, 8
    %v2176 = vpop.permute.xlu0 %2175
    %2177 = vrot.lane.b32.xlu0 %v1928, 8
    %v2178 = vpop.permute.xlu0 %2177
    %2183 = vrot.lane.b32.xlu0 %v2046, 16
    %v2184 = vpop.permute.xlu0 %2183
    %2185 = vrot.lane.b32.xlu0 %v2049, 16
    %v2186 = vpop.permute.xlu0 %2185
    %2191 = vrot.lane.b32.xlu0 %v2167, 24
    %v2192 = vpop.permute.xlu0 %2191
    %2193 = vrot.lane.b32.xlu0 %v2170, 24
    %v2194 = vpop.permute.xlu0 %2193
    %v2197 = vsel %vm649, %v1801, %v2176
    %v2198 = vsel %vm649, %v1804, %v2178
    %v2199 = vsel %vm697, %v2197, %v2184
    %v2200 = vsel %vm697, %v2198, %v2186
    %v2201 = vsel %vm1159, %v2199, %v2192
    %v2202 = vsel %vm1159, %v2200, %v2194
    %v2203 = vpack.c.bf16 %v2202, %v2201
    %v2205 = vlaneseq
    %v2206 = vshrl.u32 %v2205, 7
    %v2207 = vsub.s32 0, %v2206
    %v2208 = vrot.slane %v1482, %v2207
    %v2214 = vunpack.c.l.b16 %v1477
    %v2215 = vunpack.c.l.b16 %v1478
    %v2216 = vunpack.c.l.b16 %v1479
    %v2217 = vunpack.c.l.b16 %v1480
    %v2218 = vpack.c.b16 %v2215, %v2214
    %v2219 = vpack.c.b16 %v2217, %v2216
    %v2223 = vsel %vm483, %v2203, 0
    %2225 = vmatprep.subr.bf16.mxu0 0
    %2226 = vmatpush1.bf16.msra.mxu0 %v2218
    %2227 = vmatprep.subr.bf16.mxu0 0
    %2228 = vmatpush1.bf16.msra.mxu0 %v2219
    %2229 = vmatprep.subr.bf16.mxu0 0
    %2230 = vmatpush1.bf16.msra.mxu0 0
    %2231 = vmatprep.subr.bf16.mxu0 0
    %2232 = vmatpush1.bf16.msra.mxu0 0
    %2233 = vmatprep.subr.bf16.mxu0 0
    %2234 = vmatpush1.bf16.msra.mxu0 0
    %2235 = vmatprep.subr.bf16.mxu0 0
    %2236 = vmatpush1.bf16.msra.mxu0 0
    %2237 = vmatprep.subr.bf16.mxu0 0
    %2238 = vmatpush1.bf16.msra.mxu0 0
    %2239 = vmatprep.subr.bf16.mxu0 0
    %2240 = vmatpush1.bf16.msra.mxu0 0
    %2241 = vmatprep.subr.bf16.mxu0 0
    %2242 = vmatpush1.bf16.msra.mxu0 0
    %2243 = vmatprep.subr.bf16.mxu0 0
    %2244 = vmatpush1.bf16.msra.mxu0 0
    %2245 = vmatprep.subr.bf16.mxu0 0
    %2246 = vmatpush1.bf16.msra.mxu0 0
    %2247 = vmatprep.subr.bf16.mxu0 0
    %2248 = vmatpush1.bf16.msra.mxu0 0
    %2249 = vmatprep.subr.bf16.mxu0 0
    %2250 = vmatpush1.bf16.msra.mxu0 0
    %2251 = vmatprep.subr.bf16.mxu0 0
    %2252 = vmatpush1.bf16.msra.mxu0 0
    %2253 = vmatprep.subr.bf16.mxu0 0
    %2254 = vmatpush1.bf16.msra.mxu0 0
    %2255 = vmatprep.subr.bf16.mxu0 0
    %2256 = vmatpush1.bf16.msra.mxu0 0
    %2257 = vmatprep.mubr.bf16.mxu0 0
    %2258 = vmatmul.mubr.bf16.gmra.mrb[0].mxu0 %v2223
    %v2259 = vpop.f32.mrb[0].mxu0
    %v2260 = vadd.f32 %v2208, %v2259
    %v2261 = vpop.f32.mrb[0].mxu0
    %v2262 = vpop.f32.mrb[0].mxu0
    %v2263 = vadd.f32 %v2208, %v2262
    %v2264 = vpop.f32.mrb[0].mxu0
    %2265 = vdwg.mxu0
    %v2266 = vadd.f32 %v1453, %v2260
    %v2267 = vadd.f32 %v1454, %v2263
    %v2268 = vsel %vm483, %v2266, 0.0
    %2269 = vadd.xlane.f32.xlu0 %v2268
    %v2270 = vpop.xlane.xlu0 %2269
    %v2271 = vsel %vm483, %v2267, 0.0
    %2272 = vadd.xlane.f32.xlu0 %v2271
    %v2273 = vpop.xlane.xlu0 %2272
    %v2274 = vmul.f32 %v2270, %v1233
    %v2275 = vmul.f32 %v2273, %v1233
    %v2276 = vsub.f32 %v2266, %v2274
    %v2277 = vsub.f32 %v2267, %v2275
    %v2278 = vmul.f32 %v2276, %v2276
    %v2279 = vmul.f32 %v2277, %v2277
    %v2280 = vsel %vm483, %v2278, 0.0
    %2281 = vadd.xlane.f32.xlu0 %v2280
    %v2282 = vpop.xlane.xlu0 %2281
    %v2283 = vsel %vm483, %v2279, 0.0
    %2284 = vadd.xlane.f32.xlu0 %v2283
    %v2285 = vpop.xlane.xlu0 %2284
    %v2286 = vmul.f32 %v2282, %v1233
    %v2287 = vmul.f32 %v2285, %v1233
    %v2288 = vadd.f32 %v2286, 1e-05
    %v2289 = vadd.f32 %v2287, 1e-05
    %v2290 = vrsqrt.pop %v2288
    %v2291 = vrsqrt.pop %v2289
    %v2292 = vmul.f32 %v2276, %v2290
    %v2293 = vmul.f32 %v2277, %v2291
    %v2295 = vlaneseq
    %v2296 = vshrl.u32 %v2295, 7
    %v2297 = vsub.s32 0, %v2296
    %v2298 = vrot.slane %v1484, %v2297
    %v2300 = vmul.f32 %v2292, %v2298
    %v2301 = vmul.f32 %v2293, %v2298
    %v2303 = vlaneseq
    %v2304 = vshrl.u32 %v2303, 7
    %v2305 = vsub.s32 0, %v2304
    %v2306 = vrot.slane %v1486, %v2305
    %v2308 = vadd.f32 %v2300, %v2306
    %v2309 = vadd.f32 %v2301, %v2306
    %v2310 = vpack.c.bf16 %v2309, %v2308
    %v2312 = vlaneseq
    %v2313 = vshrl.u32 %v2312, 7
    %v2314 = vsub.s32 0, %v2313
    %v2315 = vrot.slane %v1493, %v2314
    %v2321 = vunpack.c.l.b16 %v1488
    %v2322 = vunpack.c.l.b16 %v1489
    %v2323 = vunpack.c.l.b16 %v1490
    %v2324 = vunpack.c.l.b16 %v1491
    %v2325 = vpack.c.b16 %v2322, %v2321
    %v2326 = vpack.c.b16 %v2324, %v2323
    %v2330 = vsel %vm483, %v2310, 0
    %2332 = vmatprep.subr.bf16.mxu0 0
    %2333 = vmatpush1.bf16.msra.mxu0 %v2325
    %2334 = vmatprep.subr.bf16.mxu0 0
    %2335 = vmatpush1.bf16.msra.mxu0 %v2326
    %2336 = vmatprep.subr.bf16.mxu0 0
    %2337 = vmatpush1.bf16.msra.mxu0 0
    %2338 = vmatprep.subr.bf16.mxu0 0
    %2339 = vmatpush1.bf16.msra.mxu0 0
    %2340 = vmatprep.subr.bf16.mxu0 0
    %2341 = vmatpush1.bf16.msra.mxu0 0
    %2342 = vmatprep.subr.bf16.mxu0 0
    %2343 = vmatpush1.bf16.msra.mxu0 0
    %2344 = vmatprep.subr.bf16.mxu0 0
    %2345 = vmatpush1.bf16.msra.mxu0 0
    %2346 = vmatprep.subr.bf16.mxu0 0
    %2347 = vmatpush1.bf16.msra.mxu0 0
    %2348 = vmatprep.subr.bf16.mxu0 0
    %2349 = vmatpush1.bf16.msra.mxu0 0
    %2350 = vmatprep.subr.bf16.mxu0 0
    %2351 = vmatpush1.bf16.msra.mxu0 0
    %2352 = vmatprep.subr.bf16.mxu0 0
    %2353 = vmatpush1.bf16.msra.mxu0 0
    %2354 = vmatprep.subr.bf16.mxu0 0
    %2355 = vmatpush1.bf16.msra.mxu0 0
    %2356 = vmatprep.subr.bf16.mxu0 0
    %2357 = vmatpush1.bf16.msra.mxu0 0
    %2358 = vmatprep.subr.bf16.mxu0 0
    %2359 = vmatpush1.bf16.msra.mxu0 0
    %2360 = vmatprep.subr.bf16.mxu0 0
    %2361 = vmatpush1.bf16.msra.mxu0 0
    %2362 = vmatprep.subr.bf16.mxu0 0
    %2363 = vmatpush1.bf16.msra.mxu0 0
    %2364 = vmatprep.mubr.bf16.mxu0 0
    %2365 = vmatmul.mubr.bf16.gmra.mrb[0].mxu0 %v2330
    %v2366 = vpop.f32.mrb[0].mxu0
    %v2367 = vadd.f32 %v2315, %v2366
    %v2368 = vpop.f32.mrb[0].mxu0
    %v2369 = vpop.f32.mrb[0].mxu0
    %v2370 = vadd.f32 %v2315, %v2369
    %v2371 = vpop.f32.mrb[0].mxu0
    %2372 = vdwg.mxu0
    %v2373 = vmax.f32 %v2367, 0.0
    %v2374 = vmax.f32 %v2370, 0.0
    %v2375 = vpack.c.bf16 %v2374, %v2373
    %v2377 = vlaneseq
    %v2378 = vshrl.u32 %v2377, 7
    %v2379 = vsub.s32 0, %v2378
    %v2380 = vrot.slane %v1504, %v2379
    %v2390 = vunpack.c.l.b16 %v1495
    %v2391 = vunpack.c.l.b16 %v1496
    %v2392 = vunpack.c.l.b16 %v1497
    %v2393 = vunpack.c.l.b16 %v1498
    %v2394 = vunpack.c.l.b16 %v1499
    %v2395 = vunpack.c.l.b16 %v1500
    %v2396 = vunpack.c.l.b16 %v1501
    %v2397 = vunpack.c.l.b16 %v1502
    %v2398 = vpack.c.b16 %v2391, %v2390
    %v2399 = vpack.c.b16 %v2393, %v2392
    %v2400 = vpack.c.b16 %v2395, %v2394
    %v2401 = vpack.c.b16 %v2397, %v2396
    %v2407 = vsel %vm1366, %v2375, 0
    %2409 = vmatprep.subr.bf16.mxu0 0
    %2410 = vmatpush1.bf16.msra.mxu0 %v2398
    %2411 = vmatprep.subr.bf16.mxu0 0
    %2412 = vmatpush1.bf16.msra.mxu0 %v2399
    %2413 = vmatprep.subr.bf16.mxu0 0
    %2414 = vmatpush1.bf16.msra.mxu0 %v2400
    %2415 = vmatprep.subr.bf16.mxu0 0
    %2416 = vmatpush1.bf16.msra.mxu0 %v2401
    %2417 = vmatprep.subr.bf16.mxu0 0
    %2418 = vmatpush1.bf16.msra.mxu0 0
    %2419 = vmatprep.subr.bf16.mxu0 0
    %2420 = vmatpush1.bf16.msra.mxu0 0
    %2421 = vmatprep.subr.bf16.mxu0 0
    %2422 = vmatpush1.bf16.msra.mxu0 0
    %2423 = vmatprep.subr.bf16.mxu0 0
    %2424 = vmatpush1.bf16.msra.mxu0 0
    %2425 = vmatprep.subr.bf16.mxu0 0
    %2426 = vmatpush1.bf16.msra.mxu0 0
    %2427 = vmatprep.subr.bf16.mxu0 0
    %2428 = vmatpush1.bf16.msra.mxu0 0
    %2429 = vmatprep.subr.bf16.mxu0 0
    %2430 = vmatpush1.bf16.msra.mxu0 0
    %2431 = vmatprep.subr.bf16.mxu0 0
    %2432 = vmatpush1.bf16.msra.mxu0 0
    %2433 = vmatprep.subr.bf16.mxu0 0
    %2434 = vmatpush1.bf16.msra.mxu0 0
    %2435 = vmatprep.subr.bf16.mxu0 0
    %2436 = vmatpush1.bf16.msra.mxu0 0
    %2437 = vmatprep.subr.bf16.mxu0 0
    %2438 = vmatpush1.bf16.msra.mxu0 0
    %2439 = vmatprep.subr.bf16.mxu0 0
    %2440 = vmatpush1.bf16.msra.mxu0 0
    %2441 = vmatprep.mubr.bf16.mxu0 0
    %2442 = vmatmul.mubr.bf16.gmra.mrb[0].mxu0 %v2407
    %v2443 = vpop.f32.mrb[0].mxu0
    %v2444 = vadd.f32 %v2380, %v2443
    %v2445 = vpop.f32.mrb[0].mxu0
    %v2446 = vpop.f32.mrb[0].mxu0
    %v2447 = vadd.f32 %v2380, %v2446
    %v2448 = vpop.f32.mrb[0].mxu0
    %2449 = vdwg.mxu0
    %v2450 = vadd.f32 %v2308, %v2444
    %v2451 = vadd.f32 %v2309, %v2447
    %v2452 = vsel %vm483, %v2450, 0.0
    %2453 = vadd.xlane.f32.xlu0 %v2452
    %v2454 = vpop.xlane.xlu0 %2453
    %v2455 = vsel %vm483, %v2451, 0.0
    %2456 = vadd.xlane.f32.xlu0 %v2455
    %v2457 = vpop.xlane.xlu0 %2456
    %v2458 = vmul.f32 %v2454, %v1233
    %v2459 = vmul.f32 %v2457, %v1233
    %v2460 = vsub.f32 %v2450, %v2458
    %v2461 = vsub.f32 %v2451, %v2459
    %v2462 = vmul.f32 %v2460, %v2460
    %v2463 = vmul.f32 %v2461, %v2461
    %v2464 = vsel %vm483, %v2462, 0.0
    %2465 = vadd.xlane.f32.xlu0 %v2464
    %v2466 = vpop.xlane.xlu0 %2465
    %v2467 = vsel %vm483, %v2463, 0.0
    %2468 = vadd.xlane.f32.xlu0 %v2467
    %v2469 = vpop.xlane.xlu0 %2468
    %v2470 = vmul.f32 %v2466, %v1233
    %v2471 = vmul.f32 %v2469, %v1233
    %v2472 = vadd.f32 %v2470, 1e-05
    %v2473 = vadd.f32 %v2471, 1e-05
    %v2474 = vrsqrt.pop %v2472
    %v2475 = vrsqrt.pop %v2473
    %v2476 = vmul.f32 %v2460, %v2474
    %v2477 = vmul.f32 %v2461, %v2475
    %v2479 = vlaneseq
    %v2480 = vshrl.u32 %v2479, 7
    %v2481 = vsub.s32 0, %v2480
    %v2482 = vrot.slane %v1506, %v2481
    %v2484 = vmul.f32 %v2476, %v2482
    %v2485 = vmul.f32 %v2477, %v2482
    %v2487 = vlaneseq
    %v2488 = vshrl.u32 %v2487, 7
    %v2489 = vsub.s32 0, %v2488
    %v2490 = vrot.slane %v1508, %v2489
    %v2492 = vadd.f32 %v2484, %v2490
    %v2493 = vadd.f32 %v2485, %v2490
    %v2494 = vld [vmem:[%s3] sm:$0xf]
    %v2495 = vld [vmem:[%s3 + $0x4] sm:$0x3]
    %v2496 = vunpack.c.l.bf16 %v2494
    %v2497 = vunpack.c.l.bf16 %v2495
    %v2498 = vld [vmem:[%s43] sm:$0xf]
    %v2499 = vld [vmem:[%s43 + $0x4] sm:$0xf]
    %v2500 = vld [vmem:[%s43 + $0x8] sm:$0xf]
    %v2501 = vld [vmem:[%s43 + $0xc] sm:$0xf]
    %v2502 = vld [vmem:[%s45] sm:$0xf]
    %v2503 = vld [vmem:[%s45 + $0x4] sm:$0xf]
    %v2504 = vld [vmem:[%s45 + $0x8] sm:$0xf]
    %v2505 = vld [vmem:[%s45 + $0xc] sm:$0xf]
    %v2506 = vld [vmem:[%s47] sm:$0xf]
    %v2507 = vld [vmem:[%s47 + $0x4] sm:$0xf]
    %v2508 = vld [vmem:[%s47 + $0x8] sm:$0xf]
    %v2509 = vld [vmem:[%s47 + $0xc] sm:$0xf]
    %v2510 = vld [vmem:[%s49] sm:$0x1]
    %v2511 = vld [vmem:[%s51] sm:$0x1]
    %v2512 = vld [vmem:[#allocation2] sm:$0x1]
    %v2513 = vld [vmem:[%s55] sm:$0xf]
    %v2514 = vld [vmem:[%s55 + $0x4] sm:$0xf]
    %v2515 = vld [vmem:[%s55 + $0x8] sm:$0xf]
    %v2516 = vld [vmem:[%s55 + $0xc] sm:$0xf]
    %v2517 = vld [vmem:[#allocation4] sm:$0x1]
    %v2518 = vld [vmem:[#allocation6] sm:$0x1]
    %v2519 = vld [vmem:[#allocation7] sm:$0x1]
    %v2520 = vld [vmem:[%s63] sm:$0xf]
    %v2521 = vld [vmem:[%s63 + $0x4] sm:$0xf]
    %v2522 = vld [vmem:[%s63 + $0x8] sm:$0xf]
    %v2523 = vld [vmem:[%s63 + $0xc] sm:$0xf]
    %v2524 = vld [vmem:[%s65] sm:$0xf]
    %v2525 = vld [vmem:[%s65 + $0x4] sm:$0xf]
    %v2526 = vld [vmem:[%s65 + $0x8] sm:$0xf]
    %v2527 = vld [vmem:[%s65 + $0xc] sm:$0xf]
    %v2528 = vld [vmem:[%s67] sm:$0xf]
    %v2529 = vld [vmem:[%s67 + $0x4] sm:$0xf]
    %v2530 = vld [vmem:[%s67 + $0x8] sm:$0xf]
    %v2531 = vld [vmem:[%s67 + $0xc] sm:$0xf]
    %v2532 = vld [vmem:[#allocation9] sm:$0x1]
    %v2533 = vld [vmem:[#allocation10] sm:$0x1]
    %v2534 = vld [vmem:[#allocation12] sm:$0x1]
    %v2535 = vld [vmem:[#allocation13] sm:$0xf]
    %v2536 = vld [vmem:[#allocation13 + $0x4] sm:$0xf]
    %v2537 = vld [vmem:[#allocation13 + $0x8] sm:$0xf]
    %v2538 = vld [vmem:[#allocation13 + $0xc] sm:$0xf]
    %v2539 = vld [vmem:[#allocation15] sm:$0x1]
    %v2540 = vld [vmem:[#allocation16] sm:$0x1]
    %v2541 = vld [vmem:[#allocation18] sm:$0x1]
    %v2542 = vld [vmem:[#allocation19] sm:$0xf]
    %v2543 = vld [vmem:[#allocation19 + $0x4] sm:$0xf]
    %v2544 = vld [vmem:[#allocation19 + $0x8] sm:$0xf]
    %v2545 = vld [vmem:[#allocation19 + $0xc] sm:$0xf]
    %v2546 = vld [vmem:[#allocation21] sm:$0x1]
    %v2547 = vld [vmem:[%s87] sm:$0xf]
    %v2548 = vld [vmem:[%s87 + $0x4] sm:$0xf]
    %v2549 = vld [vmem:[%s87 + $0x8] sm:$0xf]
    %v2550 = vld [vmem:[%s87 + $0xc] sm:$0xf]
    %v2551 = vld [vmem:[%s87 + $0x10] sm:$0xf]
    %v2552 = vld [vmem:[%s87 + $0x14] sm:$0xf]
    %v2553 = vld [vmem:[%s87 + $0x18] sm:$0xf]
    %v2554 = vld [vmem:[%s87 + $0x1c] sm:$0xf]
    %v2555 = vld [vmem:[#allocation22] sm:$0x1]
    %v2556 = vld [vmem:[#allocation24] sm:$0x1]
    %v2557 = vld [vmem:[#allocation25] sm:$0x1]
    %v2559 = vlaneseq
    %v2560 = vshrl.u32 %v2559, 7
    %v2561 = vsub.s32 0, %v2560
    %v2562 = vrot.slane %v2510, %v2561
    %v2566 = vunpack.c.l.b16 %v2494
    %v2567 = vunpack.c.l.b16 %v2495
    %v2568 = vpack.c.b16 %v2567, %v2566
    %v2573 = vunpack.c.l.b16 %v2498
    %v2574 = vunpack.c.l.b16 %v2499
    %v2575 = vunpack.c.l.b16 %v2500
    %v2576 = vunpack.c.l.b16 %v2501
    %v2577 = vpack.c.b16 %v2574, %v2573
    %v2578 = vpack.c.b16 %v2576, %v2575
    %v2582 = vsel %vm483, %v2568, 0
    %2584 = vmatprep.subr.bf16.mxu0 0
    %2585 = vmatpush1.bf16.msra.mxu0 %v2577
    %2586 = vmatprep.subr.bf16.mxu0 0
    %2587 = vmatpush1.bf16.msra.mxu0 %v2578
    %2588 = vmatprep.subr.bf16.mxu0 0
    %2589 = vmatpush1.bf16.msra.mxu0 0
    %2590 = vmatprep.subr.bf16.mxu0 0
    %2591 = vmatpush1.bf16.msra.mxu0 0
    %2592 = vmatprep.subr.bf16.mxu0 0
    %2593 = vmatpush1.bf16.msra.mxu0 0
    %2594 = vmatprep.subr.bf16.mxu0 0
    %2595 = vmatpush1.bf16.msra.mxu0 0
    %2596 = vmatprep.subr.bf16.mxu0 0
    %2597 = vmatpush1.bf16.msra.mxu0 0
    %2598 = vmatprep.subr.bf16.mxu0 0
    %2599 = vmatpush1.bf16.msra.mxu0 0
    %2600 = vmatprep.subr.bf16.mxu0 0
    %2601 = vmatpush1.bf16.msra.mxu0 0
    %2602 = vmatprep.subr.bf16.mxu0 0
    %2603 = vmatpush1.bf16.msra.mxu0 0
    %2604 = vmatprep.subr.bf16.mxu0 0
    %2605 = vmatpush1.bf16.msra.mxu0 0
    %2606 = vmatprep.subr.bf16.mxu0 0
    %2607 = vmatpush1.bf16.msra.mxu0 0
    %2608 = vmatprep.subr.bf16.mxu0 0
    %2609 = vmatpush1.bf16.msra.mxu0 0
    %2610 = vmatprep.subr.bf16.mxu0 0
    %2611 = vmatpush1.bf16.msra.mxu0 0
    %2612 = vmatprep.subr.bf16.mxu0 0
    %2613 = vmatpush1.bf16.msra.mxu0 0
    %2614 = vmatprep.subr.bf16.mxu0 0
    %2615 = vmatpush1.bf16.msra.mxu0 0
    %2616 = vmatprep.mubr.bf16.mxu0 0
    %2617 = vmatmul.mubr.bf16.gmra.mrb[0].mxu0 %v2582
    %v2618 = vpop.f32.mrb[0].mxu0
    %v2619 = vadd.f32 %v2562, %v2618
    %v2620 = vpop.f32.mrb[0].mxu0
    %v2621 = vpop.f32.mrb[0].mxu0
    %v2622 = vadd.f32 %v2562, %v2621
    %v2623 = vpop.f32.mrb[0].mxu0
    %2624 = vdwg.mxu0
    %v2626 = vlaneseq
    %v2627 = vshrl.u32 %v2626, 7
    %v2628 = vsub.s32 0, %v2627
    %v2629 = vrot.slane %v2511, %v2628
    %v2635 = vunpack.c.l.b16 %v2502
    %v2636 = vunpack.c.l.b16 %v2503
    %v2637 = vunpack.c.l.b16 %v2504
    %v2638 = vunpack.c.l.b16 %v2505
    %v2639 = vpack.c.b16 %v2636, %v2635
    %v2640 = vpack.c.b16 %v2638, %v2637
    %2643 = vmatprep.subr.bf16.mxu0 0
    %2644 = vmatpush1.bf16.msra.mxu0 %v2639
    %2645 = vmatprep.subr.bf16.mxu0 0
    %2646 = vmatpush1.bf16.msra.mxu0 %v2640
    %2647 = vmatprep.subr.bf16.mxu0 0
    %2648 = vmatpush1.bf16.msra.mxu0 0
    %2649 = vmatprep.subr.bf16.mxu0 0
    %2650 = vmatpush1.bf16.msra.mxu0 0
    %2651 = vmatprep.subr.bf16.mxu0 0
    %2652 = vmatpush1.bf16.msra.mxu0 0
    %2653 = vmatprep.subr.bf16.mxu0 0
    %2654 = vmatpush1.bf16.msra.mxu0 0
    %2655 = vmatprep.subr.bf16.mxu0 0
    %2656 = vmatpush1.bf16.msra.mxu0 0
    %2657 = vmatprep.subr.bf16.mxu0 0
    %2658 = vmatpush1.bf16.msra.mxu0 0
    %2659 = vmatprep.subr.bf16.mxu0 0
    %2660 = vmatpush1.bf16.msra.mxu0 0
    %2661 = vmatprep.subr.bf16.mxu0 0
    %2662 = vmatpush1.bf16.msra.mxu0 0
    %2663 = vmatprep.subr.bf16.mxu0 0
    %2664 = vmatpush1.bf16.msra.mxu0 0
    %2665 = vmatprep.subr.bf16.mxu0 0
    %2666 = vmatpush1.bf16.msra.mxu0 0
    %2667 = vmatprep.subr.bf16.mxu0 0
    %2668 = vmatpush1.bf16.msra.mxu0 0
    %2669 = vmatprep.subr.bf16.mxu0 0
    %2670 = vmatpush1.bf16.msra.mxu0 0
    %2671 = vmatprep.subr.bf16.mxu0 0
    %2672 = vmatpush1.bf16.msra.mxu0 0
    %2673 = vmatprep.subr.bf16.mxu0 0
    %2674 = vmatpush1.bf16.msra.mxu0 0
    %2675 = vmatprep.mubr.bf16.mxu0 0
    %2676 = vmatmul.mubr.bf16.gmra.mrb[0].mxu0 %v2582
    %v2677 = vpop.f32.mrb[0].mxu0
    %v2678 = vadd.f32 %v2629, %v2677
    %v2679 = vpop.f32.mrb[0].mxu0
    %v2680 = vpop.f32.mrb[0].mxu0
    %v2681 = vadd.f32 %v2629, %v2680
    %v2682 = vpop.f32.mrb[0].mxu0
    %2683 = vdwg.mxu0
    %v2685 = vlaneseq
    %v2686 = vshrl.u32 %v2685, 7
    %v2687 = vsub.s32 0, %v2686
    %v2688 = vrot.slane %v2512, %v2687
    %v2694 = vunpack.c.l.b16 %v2506
    %v2695 = vunpack.c.l.b16 %v2507
    %v2696 = vunpack.c.l.b16 %v2508
    %v2697 = vunpack.c.l.b16 %v2509
    %v2698 = vpack.c.b16 %v2695, %v2694
    %v2699 = vpack.c.b16 %v2697, %v2696
    %2702 = vmatprep.subr.bf16.mxu0 0
    %2703 = vmatpush1.bf16.msra.mxu0 %v2698
    %2704 = vmatprep.subr.bf16.mxu0 0
    %2705 = vmatpush1.bf16.msra.mxu0 %v2699
    %2706 = vmatprep.subr.bf16.mxu0 0
    %2707 = vmatpush1.bf16.msra.mxu0 0
    %2708 = vmatprep.subr.bf16.mxu0 0
    %2709 = vmatpush1.bf16.msra.mxu0 0
    %2710 = vmatprep.subr.bf16.mxu0 0
    %2711 = vmatpush1.bf16.msra.mxu0 0
    %2712 = vmatprep.subr.bf16.mxu0 0
    %2713 = vmatpush1.bf16.msra.mxu0 0
    %2714 = vmatprep.subr.bf16.mxu0 0
    %2715 = vmatpush1.bf16.msra.mxu0 0
    %2716 = vmatprep.subr.bf16.mxu0 0
    %2717 = vmatpush1.bf16.msra.mxu0 0
    %2718 = vmatprep.subr.bf16.mxu0 0
    %2719 = vmatpush1.bf16.msra.mxu0 0
    %2720 = vmatprep.subr.bf16.mxu0 0
    %2721 = vmatpush1.bf16.msra.mxu0 0
    %2722 = vmatprep.subr.bf16.mxu0 0
    %2723 = vmatpush1.bf16.msra.mxu0 0
    %2724 = vmatprep.subr.bf16.mxu0 0
    %2725 = vmatpush1.bf16.msra.mxu0 0
    %2726 = vmatprep.subr.bf16.mxu0 0
    %2727 = vmatpush1.bf16.msra.mxu0 0
    %2728 = vmatprep.subr.bf16.mxu0 0
    %2729 = vmatpush1.bf16.msra.mxu0 0
    %2730 = vmatprep.subr.bf16.mxu0 0
    %2731 = vmatpush1.bf16.msra.mxu0 0
    %2732 = vmatprep.subr.bf16.mxu0 0
    %2733 = vmatpush1.bf16.msra.mxu0 0
    %2734 = vmatprep.mubr.bf16.mxu0 0
    %2735 = vmatmul.mubr.bf16.gmra.mrb[0].mxu0 %v2582
    %v2736 = vpop.f32.mrb[0].mxu0
    %v2737 = vadd.f32 %v2688, %v2736
    %v2738 = vpop.f32.mrb[0].mxu0
    %v2739 = vpop.f32.mrb[0].mxu0
    %v2740 = vadd.f32 %v2688, %v2739
    %v2741 = vpop.f32.mrb[0].mxu0
    %2742 = vdwg.mxu0
    %v2743 = vpack.c.bf16 %v2622, %v2619
    %v2744 = vpack.c.bf16 %v2681, %v2678
    %v2745 = vpack.c.bf16 %v2740, %v2737
    %v2747 = vsel %vm649, %v2743, 0
    %v2750 = vsel %vm649, %v2744, 0
    %2752 = vmatprep.subr.bf16.mxu0 0
    %2753 = vmatpush1.bf16.xpose.msra.mxu0 %v2750
    %2754 = vmatprep.subr.bf16.mxu0 0
    %2755 = vmatpush1.bf16.xpose.msra.mxu0 0
    %2756 = vmatprep.subr.bf16.mxu0 0
    %2757 = vmatpush1.bf16.xpose.msra.mxu0 0
    %2758 = vmatprep.subr.bf16.mxu0 0
    %2759 = vmatpush1.bf16.xpose.msra.mxu0 0
    %2760 = vmatprep.subr.bf16.mxu0 0
    %2761 = vmatpush1.bf16.xpose.msra.mxu0 0
    %2762 = vmatprep.subr.bf16.mxu0 0
    %2763 = vmatpush1.bf16.xpose.msra.mxu0 0
    %2764 = vmatprep.subr.bf16.mxu0 0
    %2765 = vmatpush1.bf16.xpose.msra.mxu0 0
    %2766 = vmatprep.subr.bf16.mxu0 0
    %2767 = vmatpush1.bf16.xpose.msra.mxu0 0
    %2768 = vmatprep.subr.bf16.mxu0 0
    %2769 = vmatpush1.bf16.xpose.msra.mxu0 0
    %2770 = vmatprep.subr.bf16.mxu0 0
    %2771 = vmatpush1.bf16.xpose.msra.mxu0 0
    %2772 = vmatprep.subr.bf16.mxu0 0
    %2773 = vmatpush1.bf16.xpose.msra.mxu0 0
    %2774 = vmatprep.subr.bf16.mxu0 0
    %2775 = vmatpush1.bf16.xpose.msra.mxu0 0
    %2776 = vmatprep.subr.bf16.mxu0 0
    %2777 = vmatpush1.bf16.xpose.msra.mxu0 0
    %2778 = vmatprep.subr.bf16.mxu0 0
    %2779 = vmatpush1.bf16.xpose.msra.mxu0 0
    %2780 = vmatprep.subr.bf16.mxu0 0
    %2781 = vmatpush1.bf16.xpose.msra.mxu0 0
    %2782 = vmatprep.subr.bf16.mxu0 0
    %2783 = vmatpush1.bf16.xpose.msra.mxu0 0
    %2784 = vmatprep.mubr.bf16.mxu0 0
    %2785 = vmatmul.mubr.bf16.gmra.mrb[0].mxu0 %v2747
    %v2786 = vpop.f32.mrb[0].mxu0
    %v2787 = vadd.f32 %v414, %v2786
    %v2788 = vpop.f32.mrb[0].mxu0
    %v2789 = vpop.f32.mrb[0].mxu0
    %v2790 = vadd.f32 %v415, %v2789
    %v2791 = vpop.f32.mrb[0].mxu0
    %2792 = vdwg.mxu0
    %vm2793 = vcmask 97280
    %v2794 = vsel %vm2793, %v2787, -inf
    %2795 = vmax.xlane.f32.xlu0 %v2794
    %v2796 = vpop.xlane.xlu0 %2795
    %vm2797 = vcmask 93184
    %v2798 = vsel %vm2797, %v2790, -inf
    %2799 = vmax.xlane.f32.xlu0 %v2798
    %v2800 = vpop.xlane.xlu0 %2799
    %v2801 = vsub.f32 %v2787, %v2796
    %v2802 = vsub.f32 %v2790, %v2800
    %v2803 = vmul.f32 %v2801, 1.442695
    %v2804 = vpow.pop %v2803
    %v2805 = vmul.f32 %v2802, 1.442695
    %v2806 = vpow.pop %v2805
    %v2807 = vsel %vm2793, %v2804, 0.0
    %2808 = vadd.xlane.f32.xlu0 %v2807
    %v2809 = vpop.xlane.xlu0 %2808
    %v2810 = vsel %vm2797, %v2806, 0.0
    %2811 = vadd.xlane.f32.xlu0 %v2810
    %v2812 = vpop.xlane.xlu0 %2811
    %v2813 = vrcp.pop %v2809
    %v2814 = vrcp.pop %v2812
    %v2815 = vmul.f32 %v2804, %v2813
    %v2816 = vmul.f32 %v2806, %v2814
    %v2817 = vpack.c.bf16 %v2816, %v2815
    %v2819 = vsel %vm2793, %v2817, 0
    %vm2821 = vcmask 1045504
    %v2823 = vsel %vm2821, %v2745, 0
    %2825 = vmatprep.subr.bf16.mxu0 0
    %2826 = vmatpush1.bf16.msra.mxu0 %v2823
    %2827 = vmatprep.subr.bf16.mxu0 0
    %2828 = vmatpush1.bf16.msra.mxu0 0
    %2829 = vmatprep.subr.bf16.mxu0 0
    %2830 = vmatpush1.bf16.msra.mxu0 0
    %2831 = vmatprep.subr.bf16.mxu0 0
    %2832 = vmatpush1.bf16.msra.mxu0 0
    %2833 = vmatprep.subr.bf16.mxu0 0
    %2834 = vmatpush1.bf16.msra.mxu0 0
    %2835 = vmatprep.subr.bf16.mxu0 0
    %2836 = vmatpush1.bf16.msra.mxu0 0
    %2837 = vmatprep.subr.bf16.mxu0 0
    %2838 = vmatpush1.bf16.msra.mxu0 0
    %2839 = vmatprep.subr.bf16.mxu0 0
    %2840 = vmatpush1.bf16.msra.mxu0 0
    %2841 = vmatprep.subr.bf16.mxu0 0
    %2842 = vmatpush1.bf16.msra.mxu0 0
    %2843 = vmatprep.subr.bf16.mxu0 0
    %2844 = vmatpush1.bf16.msra.mxu0 0
    %2845 = vmatprep.subr.bf16.mxu0 0
    %2846 = vmatpush1.bf16.msra.mxu0 0
    %2847 = vmatprep.subr.bf16.mxu0 0
    %2848 = vmatpush1.bf16.msra.mxu0 0
    %2849 = vmatprep.subr.bf16.mxu0 0
    %2850 = vmatpush1.bf16.msra.mxu0 0
    %2851 = vmatprep.subr.bf16.mxu0 0
    %2852 = vmatpush1.bf16.msra.mxu0 0
    %2853 = vmatprep.subr.bf16.mxu0 0
    %2854 = vmatpush1.bf16.msra.mxu0 0
    %2855 = vmatprep.subr.bf16.mxu0 0
    %2856 = vmatpush1.bf16.msra.mxu0 0
    %2857 = vmatprep.mubr.bf16.mxu0 0
    %2858 = vmatmul.mubr.bf16.gmra.mrb[0].mxu0 %v2819
    %v2859 = vpop.f32.mrb[0].mxu0
    %v2860 = vadd.f32 0.0, %v2859
    %v2861 = vpop.f32.mrb[0].mxu0
    %v2862 = vpop.f32.mrb[0].mxu0
    %v2863 = vadd.f32 0.0, %v2862
    %v2864 = vpop.f32.mrb[0].mxu0
    %2865 = vdwg.mxu0
    %2867 = vrot.lane.b32.xlu0 %v2743, 120
    %v2868 = vpop.permute.xlu0 %2867
    %2870 = vrot.lane.b32.xlu0 %v2744, 120
    %v2871 = vpop.permute.xlu0 %2870
    %v2873 = vsel %vm649, %v2868, 0
    %v2876 = vsel %vm649, %v2871, 0
    %2878 = vmatprep.subr.bf16.mxu0 0
    %2879 = vmatpush1.bf16.xpose.msra.mxu0 %v2876
    %2880 = vmatprep.subr.bf16.mxu0 0
    %2881 = vmatpush1.bf16.xpose.msra.mxu0 0
    %2882 = vmatprep.subr.bf16.mxu0 0
    %2883 = vmatpush1.bf16.xpose.msra.mxu0 0
    %2884 = vmatprep.subr.bf16.mxu0 0
    %2885 = vmatpush1.bf16.xpose.msra.mxu0 0
    %2886 = vmatprep.subr.bf16.mxu0 0
    %2887 = vmatpush1.bf16.xpose.msra.mxu0 0
    %2888 = vmatprep.subr.bf16.mxu0 0
    %2889 = vmatpush1.bf16.xpose.msra.mxu0 0
    %2890 = vmatprep.subr.bf16.mxu0 0
    %2891 = vmatpush1.bf16.xpose.msra.mxu0 0
    %2892 = vmatprep.subr.bf16.mxu0 0
    %2893 = vmatpush1.bf16.xpose.msra.mxu0 0
    %2894 = vmatprep.subr.bf16.mxu0 0
    %2895 = vmatpush1.bf16.xpose.msra.mxu0 0
    %2896 = vmatprep.subr.bf16.mxu0 0
    %2897 = vmatpush1.bf16.xpose.msra.mxu0 0
    %2898 = vmatprep.subr.bf16.mxu0 0
    %2899 = vmatpush1.bf16.xpose.msra.mxu0 0
    %2900 = vmatprep.subr.bf16.mxu0 0
    %2901 = vmatpush1.bf16.xpose.msra.mxu0 0
    %2902 = vmatprep.subr.bf16.mxu0 0
    %2903 = vmatpush1.bf16.xpose.msra.mxu0 0
    %2904 = vmatprep.subr.bf16.mxu0 0
    %2905 = vmatpush1.bf16.xpose.msra.mxu0 0
    %2906 = vmatprep.subr.bf16.mxu0 0
    %2907 = vmatpush1.bf16.xpose.msra.mxu0 0
    %2908 = vmatprep.subr.bf16.mxu0 0
    %2909 = vmatpush1.bf16.xpose.msra.mxu0 0
    %2910 = vmatprep.mubr.bf16.mxu0 0
    %2911 = vmatmul.mubr.bf16.gmra.mrb[0].mxu0 %v2873
    %v2912 = vpop.f32.mrb[0].mxu0
    %v2913 = vadd.f32 %v414, %v2912
    %v2914 = vpop.f32.mrb[0].mxu0
    %v2915 = vpop.f32.mrb[0].mxu0
    %v2916 = vadd.f32 %v415, %v2915
    %v2917 = vpop.f32.mrb[0].mxu0
    %2918 = vdwg.mxu0
    %v2919 = vsel %vm2793, %v2913, -inf
    %2920 = vmax.xlane.f32.xlu0 %v2919
    %v2921 = vpop.xlane.xlu0 %2920
    %v2922 = vsel %vm2797, %v2916, -inf
    %2923 = vmax.xlane.f32.xlu0 %v2922
    %v2924 = vpop.xlane.xlu0 %2923
    %v2925 = vsub.f32 %v2913, %v2921
    %v2926 = vsub.f32 %v2916, %v2924
    %v2927 = vmul.f32 %v2925, 1.442695
    %v2928 = vpow.pop %v2927
    %v2929 = vmul.f32 %v2926, 1.442695
    %v2930 = vpow.pop %v2929
    %v2931 = vsel %vm2793, %v2928, 0.0
    %2932 = vadd.xlane.f32.xlu0 %v2931
    %v2933 = vpop.xlane.xlu0 %2932
    %v2934 = vsel %vm2797, %v2930, 0.0
    %2935 = vadd.xlane.f32.xlu0 %v2934
    %v2936 = vpop.xlane.xlu0 %2935
    %v2937 = vrcp.pop %v2933
    %v2938 = vrcp.pop %v2936
    %v2939 = vmul.f32 %v2928, %v2937
    %v2940 = vmul.f32 %v2930, %v2938
    %v2941 = vpack.c.bf16 %v2940, %v2939
    %2943 = vrot.lane.b32.xlu0 %v2745, 120
    %v2944 = vpop.permute.xlu0 %2943
    %v2946 = vsel %vm2793, %v2941, 0
    %v2949 = vsel %vm2821, %v2944, 0
    %2951 = vmatprep.subr.bf16.mxu0 0
    %2952 = vmatpush1.bf16.msra.mxu0 %v2949
    %2953 = vmatprep.subr.bf16.mxu0 0
    %2954 = vmatpush1.bf16.msra.mxu0 0
    %2955 = vmatprep.subr.bf16.mxu0 0
    %2956 = vmatpush1.bf16.msra.mxu0 0
    %2957 = vmatprep.subr.bf16.mxu0 0
    %2958 = vmatpush1.bf16.msra.mxu0 0
    %2959 = vmatprep.subr.bf16.mxu0 0
    %2960 = vmatpush1.bf16.msra.mxu0 0
    %2961 = vmatprep.subr.bf16.mxu0 0
    %2962 = vmatpush1.bf16.msra.mxu0 0
    %2963 = vmatprep.subr.bf16.mxu0 0
    %2964 = vmatpush1.bf16.msra.mxu0 0
    %2965 = vmatprep.subr.bf16.mxu0 0
    %2966 = vmatpush1.bf16.msra.mxu0 0
    %2967 = vmatprep.subr.bf16.mxu0 0
    %2968 = vmatpush1.bf16.msra.mxu0 0
    %2969 = vmatprep.subr.bf16.mxu0 0
    %2970 = vmatpush1.bf16.msra.mxu0 0
    %2971 = vmatprep.subr.bf16.mxu0 0
    %2972 = vmatpush1.bf16.msra.mxu0 0
    %2973 = vmatprep.subr.bf16.mxu0 0
    %2974 = vmatpush1.bf16.msra.mxu0 0
    %2975 = vmatprep.subr.bf16.mxu0 0
    %2976 = vmatpush1.bf16.msra.mxu0 0
    %2977 = vmatprep.subr.bf16.mxu0 0
    %2978 = vmatpush1.bf16.msra.mxu0 0
    %2979 = vmatprep.subr.bf16.mxu0 0
    %2980 = vmatpush1.bf16.msra.mxu0 0
    %2981 = vmatprep.subr.bf16.mxu0 0
    %2982 = vmatpush1.bf16.msra.mxu0 0
    %2983 = vmatprep.mubr.bf16.mxu0 0
    %2984 = vmatmul.mubr.bf16.gmra.mrb[0].mxu0 %v2946
    %v2985 = vpop.f32.mrb[0].mxu0
    %v2986 = vadd.f32 0.0, %v2985
    %v2987 = vpop.f32.mrb[0].mxu0
    %v2988 = vpop.f32.mrb[0].mxu0
    %v2989 = vadd.f32 0.0, %v2988
    %v2990 = vpop.f32.mrb[0].mxu0
    %2991 = vdwg.mxu0
    %2992 = vrot.lane.b32.xlu0 %v2743, 112
    %v2993 = vpop.permute.xlu0 %2992
    %2994 = vrot.lane.b32.xlu0 %v2744, 112
    %v2995 = vpop.permute.xlu0 %2994
    %v2997 = vsel %vm649, %v2993, 0
    %v3000 = vsel %vm649, %v2995, 0
    %3002 = vmatprep.subr.bf16.mxu0 0
    %3003 = vmatpush1.bf16.xpose.msra.mxu0 %v3000
    %3004 = vmatprep.subr.bf16.mxu0 0
    %3005 = vmatpush1.bf16.xpose.msra.mxu0 0
    %3006 = vmatprep.subr.bf16.mxu0 0
    %3007 = vmatpush1.bf16.xpose.msra.mxu0 0
    %3008 = vmatprep.subr.bf16.mxu0 0
    %3009 = vmatpush1.bf16.xpose.msra.mxu0 0
    %3010 = vmatprep.subr.bf16.mxu0 0
    %3011 = vmatpush1.bf16.xpose.msra.mxu0 0
    %3012 = vmatprep.subr.bf16.mxu0 0
    %3013 = vmatpush1.bf16.xpose.msra.mxu0 0
    %3014 = vmatprep.subr.bf16.mxu0 0
    %3015 = vmatpush1.bf16.xpose.msra.mxu0 0
    %3016 = vmatprep.subr.bf16.mxu0 0
    %3017 = vmatpush1.bf16.xpose.msra.mxu0 0
    %3018 = vmatprep.subr.bf16.mxu0 0
    %3019 = vmatpush1.bf16.xpose.msra.mxu0 0
    %3020 = vmatprep.subr.bf16.mxu0 0
    %3021 = vmatpush1.bf16.xpose.msra.mxu0 0
    %3022 = vmatprep.subr.bf16.mxu0 0
    %3023 = vmatpush1.bf16.xpose.msra.mxu0 0
    %3024 = vmatprep.subr.bf16.mxu0 0
    %3025 = vmatpush1.bf16.xpose.msra.mxu0 0
    %3026 = vmatprep.subr.bf16.mxu0 0
    %3027 = vmatpush1.bf16.xpose.msra.mxu0 0
    %3028 = vmatprep.subr.bf16.mxu0 0
    %3029 = vmatpush1.bf16.xpose.msra.mxu0 0
    %3030 = vmatprep.subr.bf16.mxu0 0
    %3031 = vmatpush1.bf16.xpose.msra.mxu0 0
    %3032 = vmatprep.subr.bf16.mxu0 0
    %3033 = vmatpush1.bf16.xpose.msra.mxu0 0
    %3034 = vmatprep.mubr.bf16.mxu0 0
    %3035 = vmatmul.mubr.bf16.gmra.mrb[0].mxu0 %v2997
    %v3036 = vpop.f32.mrb[0].mxu0
    %v3037 = vadd.f32 %v414, %v3036
    %v3038 = vpop.f32.mrb[0].mxu0
    %v3039 = vpop.f32.mrb[0].mxu0
    %v3040 = vadd.f32 %v415, %v3039
    %v3041 = vpop.f32.mrb[0].mxu0
    %3042 = vdwg.mxu0
    %v3043 = vsel %vm2793, %v3037, -inf
    %3044 = vmax.xlane.f32.xlu0 %v3043
    %v3045 = vpop.xlane.xlu0 %3044
    %v3046 = vsel %vm2797, %v3040, -inf
    %3047 = vmax.xlane.f32.xlu0 %v3046
    %v3048 = vpop.xlane.xlu0 %3047
    %v3049 = vsub.f32 %v3037, %v3045
    %v3050 = vsub.f32 %v3040, %v3048
    %v3051 = vmul.f32 %v3049, 1.442695
    %v3052 = vpow.pop %v3051
    %v3053 = vmul.f32 %v3050, 1.442695
    %v3054 = vpow.pop %v3053
    %v3055 = vsel %vm2793, %v3052, 0.0
    %3056 = vadd.xlane.f32.xlu0 %v3055
    %v3057 = vpop.xlane.xlu0 %3056
    %v3058 = vsel %vm2797, %v3054, 0.0
    %3059 = vadd.xlane.f32.xlu0 %v3058
    %v3060 = vpop.xlane.xlu0 %3059
    %v3061 = vrcp.pop %v3057
    %v3062 = vrcp.pop %v3060
    %v3063 = vmul.f32 %v3052, %v3061
    %v3064 = vmul.f32 %v3054, %v3062
    %v3065 = vpack.c.bf16 %v3064, %v3063
    %3066 = vrot.lane.b32.xlu0 %v2745, 112
    %v3067 = vpop.permute.xlu0 %3066
    %v3069 = vsel %vm2793, %v3065, 0
    %v3072 = vsel %vm2821, %v3067, 0
    %3074 = vmatprep.subr.bf16.mxu0 0
    %3075 = vmatpush1.bf16.msra.mxu0 %v3072
    %3076 = vmatprep.subr.bf16.mxu0 0
    %3077 = vmatpush1.bf16.msra.mxu0 0
    %3078 = vmatprep.subr.bf16.mxu0 0
    %3079 = vmatpush1.bf16.msra.mxu0 0
    %3080 = vmatprep.subr.bf16.mxu0 0
    %3081 = vmatpush1.bf16.msra.mxu0 0
    %3082 = vmatprep.subr.bf16.mxu0 0
    %3083 = vmatpush1.bf16.msra.mxu0 0
    %3084 = vmatprep.subr.bf16.mxu0 0
    %3085 = vmatpush1.bf16.msra.mxu0 0
    %3086 = vmatprep.subr.bf16.mxu0 0
    %3087 = vmatpush1.bf16.msra.mxu0 0
    %3088 = vmatprep.subr.bf16.mxu0 0
    %3089 = vmatpush1.bf16.msra.mxu0 0
    %3090 = vmatprep.subr.bf16.mxu0 0
    %3091 = vmatpush1.bf16.msra.mxu0 0
    %3092 = vmatprep.subr.bf16.mxu0 0
    %3093 = vmatpush1.bf16.msra.mxu0 0
    %3094 = vmatprep.subr.bf16.mxu0 0
    %3095 = vmatpush1.bf16.msra.mxu0 0
    %3096 = vmatprep.subr.bf16.mxu0 0
    %3097 = vmatpush1.bf16.msra.mxu0 0
    %3098 = vmatprep.subr.bf16.mxu0 0
    %3099 = vmatpush1.bf16.msra.mxu0 0
    %3100 = vmatprep.subr.bf16.mxu0 0
    %3101 = vmatpush1.bf16.msra.mxu0 0
    %3102 = vmatprep.subr.bf16.mxu0 0
    %3103 = vmatpush1.bf16.msra.mxu0 0
    %3104 = vmatprep.subr.bf16.mxu0 0
    %3105 = vmatpush1.bf16.msra.mxu0 0
    %3106 = vmatprep.mubr.bf16.mxu0 0
    %3107 = vmatmul.mubr.bf16.gmra.mrb[0].mxu0 %v3069
    %v3108 = vpop.f32.mrb[0].mxu0
    %v3109 = vadd.f32 0.0, %v3108
    %v3110 = vpop.f32.mrb[0].mxu0
    %v3111 = vpop.f32.mrb[0].mxu0
    %v3112 = vadd.f32 0.0, %v3111
    %v3113 = vpop.f32.mrb[0].mxu0
    %3114 = vdwg.mxu0
    %3115 = vrot.lane.b32.xlu0 %v2743, 104
    %v3116 = vpop.permute.xlu0 %3115
    %3117 = vrot.lane.b32.xlu0 %v2744, 104
    %v3118 = vpop.permute.xlu0 %3117
    %v3120 = vsel %vm649, %v3116, 0
    %v3123 = vsel %vm649, %v3118, 0
    %3125 = vmatprep.subr.bf16.mxu0 0
    %3126 = vmatpush1.bf16.xpose.msra.mxu0 %v3123
    %3127 = vmatprep.subr.bf16.mxu0 0
    %3128 = vmatpush1.bf16.xpose.msra.mxu0 0
    %3129 = vmatprep.subr.bf16.mxu0 0
    %3130 = vmatpush1.bf16.xpose.msra.mxu0 0
    %3131 = vmatprep.subr.bf16.mxu0 0
    %3132 = vmatpush1.bf16.xpose.msra.mxu0 0
    %3133 = vmatprep.subr.bf16.mxu0 0
    %3134 = vmatpush1.bf16.xpose.msra.mxu0 0
    %3135 = vmatprep.subr.bf16.mxu0 0
    %3136 = vmatpush1.bf16.xpose.msra.mxu0 0
    %3137 = vmatprep.subr.bf16.mxu0 0
    %3138 = vmatpush1.bf16.xpose.msra.mxu0 0
    %3139 = vmatprep.subr.bf16.mxu0 0
    %3140 = vmatpush1.bf16.xpose.msra.mxu0 0
    %3141 = vmatprep.subr.bf16.mxu0 0
    %3142 = vmatpush1.bf16.xpose.msra.mxu0 0
    %3143 = vmatprep.subr.bf16.mxu0 0
    %3144 = vmatpush1.bf16.xpose.msra.mxu0 0
    %3145 = vmatprep.subr.bf16.mxu0 0
    %3146 = vmatpush1.bf16.xpose.msra.mxu0 0
    %3147 = vmatprep.subr.bf16.mxu0 0
    %3148 = vmatpush1.bf16.xpose.msra.mxu0 0
    %3149 = vmatprep.subr.bf16.mxu0 0
    %3150 = vmatpush1.bf16.xpose.msra.mxu0 0
    %3151 = vmatprep.subr.bf16.mxu0 0
    %3152 = vmatpush1.bf16.xpose.msra.mxu0 0
    %3153 = vmatprep.subr.bf16.mxu0 0
    %3154 = vmatpush1.bf16.xpose.msra.mxu0 0
    %3155 = vmatprep.subr.bf16.mxu0 0
    %3156 = vmatpush1.bf16.xpose.msra.mxu0 0
    %3157 = vmatprep.mubr.bf16.mxu0 0
    %3158 = vmatmul.mubr.bf16.gmra.mrb[0].mxu0 %v3120
    %v3159 = vpop.f32.mrb[0].mxu0
    %v3160 = vadd.f32 %v414, %v3159
    %v3161 = vpop.f32.mrb[0].mxu0
    %v3162 = vpop.f32.mrb[0].mxu0
    %v3163 = vadd.f32 %v415, %v3162
    %v3164 = vpop.f32.mrb[0].mxu0
    %3165 = vdwg.mxu0
    %v3166 = vsel %vm2793, %v3160, -inf
    %3167 = vmax.xlane.f32.xlu0 %v3166
    %v3168 = vpop.xlane.xlu0 %3167
    %v3169 = vsel %vm2797, %v3163, -inf
    %3170 = vmax.xlane.f32.xlu0 %v3169
    %v3171 = vpop.xlane.xlu0 %3170
    %v3172 = vsub.f32 %v3160, %v3168
    %v3173 = vsub.f32 %v3163, %v3171
    %v3174 = vmul.f32 %v3172, 1.442695
    %v3175 = vpow.pop %v3174
    %v3176 = vmul.f32 %v3173, 1.442695
    %v3177 = vpow.pop %v3176
    %v3178 = vsel %vm2793, %v3175, 0.0
    %3179 = vadd.xlane.f32.xlu0 %v3178
    %v3180 = vpop.xlane.xlu0 %3179
    %v3181 = vsel %vm2797, %v3177, 0.0
    %3182 = vadd.xlane.f32.xlu0 %v3181
    %v3183 = vpop.xlane.xlu0 %3182
    %v3184 = vrcp.pop %v3180
    %v3185 = vrcp.pop %v3183
    %v3186 = vmul.f32 %v3175, %v3184
    %v3187 = vmul.f32 %v3177, %v3185
    %v3188 = vpack.c.bf16 %v3187, %v3186
    %3189 = vrot.lane.b32.xlu0 %v2745, 104
    %v3190 = vpop.permute.xlu0 %3189
    %v3192 = vsel %vm2793, %v3188, 0
    %v3195 = vsel %vm2821, %v3190, 0
    %3197 = vmatprep.subr.bf16.mxu0 0
    %3198 = vmatpush1.bf16.msra.mxu0 %v3195
    %3199 = vmatprep.subr.bf16.mxu0 0
    %3200 = vmatpush1.bf16.msra.mxu0 0
    %3201 = vmatprep.subr.bf16.mxu0 0
    %3202 = vmatpush1.bf16.msra.mxu0 0
    %3203 = vmatprep.subr.bf16.mxu0 0
    %3204 = vmatpush1.bf16.msra.mxu0 0
    %3205 = vmatprep.subr.bf16.mxu0 0
    %3206 = vmatpush1.bf16.msra.mxu0 0
    %3207 = vmatprep.subr.bf16.mxu0 0
    %3208 = vmatpush1.bf16.msra.mxu0 0
    %3209 = vmatprep.subr.bf16.mxu0 0
    %3210 = vmatpush1.bf16.msra.mxu0 0
    %3211 = vmatprep.subr.bf16.mxu0 0
    %3212 = vmatpush1.bf16.msra.mxu0 0
    %3213 = vmatprep.subr.bf16.mxu0 0
    %3214 = vmatpush1.bf16.msra.mxu0 0
    %3215 = vmatprep.subr.bf16.mxu0 0
    %3216 = vmatpush1.bf16.msra.mxu0 0
    %3217 = vmatprep.subr.bf16.mxu0 0
    %3218 = vmatpush1.bf16.msra.mxu0 0
    %3219 = vmatprep.subr.bf16.mxu0 0
    %3220 = vmatpush1.bf16.msra.mxu0 0
    %3221 = vmatprep.subr.bf16.mxu0 0
    %3222 = vmatpush1.bf16.msra.mxu0 0
    %3223 = vmatprep.subr.bf16.mxu0 0
    %3224 = vmatpush1.bf16.msra.mxu0 0
    %3225 = vmatprep.subr.bf16.mxu0 0
    %3226 = vmatpush1.bf16.msra.mxu0 0
    %3227 = vmatprep.subr.bf16.mxu0 0
    %3228 = vmatpush1.bf16.msra.mxu0 0
    %3229 = vmatprep.mubr.bf16.mxu0 0
    %3230 = vmatmul.mubr.bf16.gmra.mrb[0].mxu0 %v3192
    %v3231 = vpop.f32.mrb[0].mxu0
    %v3232 = vadd.f32 0.0, %v3231
    %v3233 = vpop.f32.mrb[0].mxu0
    %v3234 = vpop.f32.mrb[0].mxu0
    %v3235 = vadd.f32 0.0, %v3234
    %v3236 = vpop.f32.mrb[0].mxu0
    %3237 = vdwg.mxu0
    %3240 = vrot.lane.b32.xlu0 %v2986, 8
    %v3241 = vpop.permute.xlu0 %3240
    %3242 = vrot.lane.b32.xlu0 %v2989, 8
    %v3243 = vpop.permute.xlu0 %3242
    %3248 = vrot.lane.b32.xlu0 %v3109, 16
    %v3249 = vpop.permute.xlu0 %3248
    %3250 = vrot.lane.b32.xlu0 %v3112, 16
    %v3251 = vpop.permute.xlu0 %3250
    %3256 = vrot.lane.b32.xlu0 %v3232, 24
    %v3257 = vpop.permute.xlu0 %3256
    %3258 = vrot.lane.b32.xlu0 %v3235, 24
    %v3259 = vpop.permute.xlu0 %3258
    %v3262 = vsel %vm649, %v2860, %v3241
    %v3263 = vsel %vm649, %v2863, %v3243
    %v3264 = vsel %vm697, %v3262, %v3249
    %v3265 = vsel %vm697, %v3263, %v3251
    %v3266 = vsel %vm1159, %v3264, %v3257
    %v3267 = vsel %vm1159, %v3265, %v3259
    %v3268 = vpack.c.bf16 %v3267, %v3266
    %v3270 = vlaneseq
    %v3271 = vshrl.u32 %v3270, 7
    %v3272 = vsub.s32 0, %v3271
    %v3273 = vrot.slane %v2517, %v3272
    %v3279 = vunpack.c.l.b16 %v2513
    %v3280 = vunpack.c.l.b16 %v2514
    %v3281 = vunpack.c.l.b16 %v2515
    %v3282 = vunpack.c.l.b16 %v2516
    %v3283 = vpack.c.b16 %v3280, %v3279
    %v3284 = vpack.c.b16 %v3282, %v3281
    %v3288 = vsel %vm483, %v3268, 0
    %3290 = vmatprep.subr.bf16.mxu0 0
    %3291 = vmatpush1.bf16.msra.mxu0 %v3283
    %3292 = vmatprep.subr.bf16.mxu0 0
    %3293 = vmatpush1.bf16.msra.mxu0 %v3284
    %3294 = vmatprep.subr.bf16.mxu0 0
    %3295 = vmatpush1.bf16.msra.mxu0 0
    %3296 = vmatprep.subr.bf16.mxu0 0
    %3297 = vmatpush1.bf16.msra.mxu0 0
    %3298 = vmatprep.subr.bf16.mxu0 0
    %3299 = vmatpush1.bf16.msra.mxu0 0
    %3300 = vmatprep.subr.bf16.mxu0 0
    %3301 = vmatpush1.bf16.msra.mxu0 0
    %3302 = vmatprep.subr.bf16.mxu0 0
    %3303 = vmatpush1.bf16.msra.mxu0 0
    %3304 = vmatprep.subr.bf16.mxu0 0
    %3305 = vmatpush1.bf16.msra.mxu0 0
    %3306 = vmatprep.subr.bf16.mxu0 0
    %3307 = vmatpush1.bf16.msra.mxu0 0
    %3308 = vmatprep.subr.bf16.mxu0 0
    %3309 = vmatpush1.bf16.msra.mxu0 0
    %3310 = vmatprep.subr.bf16.mxu0 0
    %3311 = vmatpush1.bf16.msra.mxu0 0
    %3312 = vmatprep.subr.bf16.mxu0 0
    %3313 = vmatpush1.bf16.msra.mxu0 0
    %3314 = vmatprep.subr.bf16.mxu0 0
    %3315 = vmatpush1.bf16.msra.mxu0 0
    %3316 = vmatprep.subr.bf16.mxu0 0
    %3317 = vmatpush1.bf16.msra.mxu0 0
    %3318 = vmatprep.subr.bf16.mxu0 0
    %3319 = vmatpush1.bf16.msra.mxu0 0
    %3320 = vmatprep.subr.bf16.mxu0 0
    %3321 = vmatpush1.bf16.msra.mxu0 0
    %3322 = vmatprep.mubr.bf16.mxu0 0
    %3323 = vmatmul.mubr.bf16.gmra.mrb[0].mxu0 %v3288
    %v3324 = vpop.f32.mrb[0].mxu0
    %v3325 = vadd.f32 %v3273, %v3324
    %v3326 = vpop.f32.mrb[0].mxu0
    %v3327 = vpop.f32.mrb[0].mxu0
    %v3328 = vadd.f32 %v3273, %v3327
    %v3329 = vpop.f32.mrb[0].mxu0
    %3330 = vdwg.mxu0
    %v3331 = vadd.f32 %v2496, %v3325
    %v3332 = vadd.f32 %v2497, %v3328
    %v3333 = vsel %vm483, %v3331, 0.0
    %3334 = vadd.xlane.f32.xlu0 %v3333
    %v3335 = vpop.xlane.xlu0 %3334
    %vm3336 = vcmask 257024
    %v3337 = vsel %vm3336, %v3332, 0.0
    %3338 = vadd.xlane.f32.xlu0 %v3337
    %v3339 = vpop.xlane.xlu0 %3338
    %v3340 = vmul.f32 %v3335, %v1233
    %v3341 = vmul.f32 %v3339, %v1233
    %v3342 = vsub.f32 %v3331, %v3340
    %v3343 = vsub.f32 %v3332, %v3341
    %v3344 = vmul.f32 %v3342, %v3342
    %v3345 = vmul.f32 %v3343, %v3343
    %v3346 = vsel %vm483, %v3344, 0.0
    %3347 = vadd.xlane.f32.xlu0 %v3346
    %v3348 = vpop.xlane.xlu0 %3347
    %v3349 = vsel %vm3336, %v3345, 0.0
    %3350 = vadd.xlane.f32.xlu0 %v3349
    %v3351 = vpop.xlane.xlu0 %3350
    %v3352 = vmul.f32 %v3348, %v1233
    %v3353 = vmul.f32 %v3351, %v1233
    %v3354 = vadd.f32 %v3352, 1e-05
    %v3355 = vadd.f32 %v3353, 1e-05
    %v3356 = vrsqrt.pop %v3354
    %v3357 = vrsqrt.pop %v3355
    %v3358 = vmul.f32 %v3342, %v3356
    %v3359 = vmul.f32 %v3343, %v3357
    %v3361 = vlaneseq
    %v3362 = vshrl.u32 %v3361, 7
    %v3363 = vsub.s32 0, %v3362
    %v3364 = vrot.slane %v2518, %v3363
    %v3366 = vmul.f32 %v3358, %v3364
    %v3367 = vmul.f32 %v3359, %v3364
    %v3369 = vlaneseq
    %v3370 = vshrl.u32 %v3369, 7
    %v3371 = vsub.s32 0, %v3370
    %v3372 = vrot.slane %v2519, %v3371
    %v3374 = vadd.f32 %v3366, %v3372
    %v3375 = vadd.f32 %v3367, %v3372
    %v3376 = vpack.c.bf16 %v3375, %v3374
    %v3378 = vlaneseq
    %v3379 = vshrl.u32 %v3378, 7
    %v3380 = vsub.s32 0, %v3379
    %v3381 = vrot.slane %v2532, %v3380
    %v3387 = vunpack.c.l.b16 %v2520
    %v3388 = vunpack.c.l.b16 %v2521
    %v3389 = vunpack.c.l.b16 %v2522
    %v3390 = vunpack.c.l.b16 %v2523
    %v3391 = vpack.c.b16 %v3388, %v3387
    %v3392 = vpack.c.b16 %v3390, %v3389
    %v3396 = vsel %vm483, %v3376, 0
    %3398 = vmatprep.subr.bf16.mxu0 0
    %3399 = vmatpush1.bf16.msra.mxu0 %v3391
    %3400 = vmatprep.subr.bf16.mxu0 0
    %3401 = vmatpush1.bf16.msra.mxu0 %v3392
    %3402 = vmatprep.subr.bf16.mxu0 0
    %3403 = vmatpush1.bf16.msra.mxu0 0
    %3404 = vmatprep.subr.bf16.mxu0 0
    %3405 = vmatpush1.bf16.msra.mxu0 0
    %3406 = vmatprep.subr.bf16.mxu0 0
    %3407 = vmatpush1.bf16.msra.mxu0 0
    %3408 = vmatprep.subr.bf16.mxu0 0
    %3409 = vmatpush1.bf16.msra.mxu0 0
    %3410 = vmatprep.subr.bf16.mxu0 0
    %3411 = vmatpush1.bf16.msra.mxu0 0
    %3412 = vmatprep.subr.bf16.mxu0 0
    %3413 = vmatpush1.bf16.msra.mxu0 0
    %3414 = vmatprep.subr.bf16.mxu0 0
    %3415 = vmatpush1.bf16.msra.mxu0 0
    %3416 = vmatprep.subr.bf16.mxu0 0
    %3417 = vmatpush1.bf16.msra.mxu0 0
    %3418 = vmatprep.subr.bf16.mxu0 0
    %3419 = vmatpush1.bf16.msra.mxu0 0
    %3420 = vmatprep.subr.bf16.mxu0 0
    %3421 = vmatpush1.bf16.msra.mxu0 0
    %3422 = vmatprep.subr.bf16.mxu0 0
    %3423 = vmatpush1.bf16.msra.mxu0 0
    %3424 = vmatprep.subr.bf16.mxu0 0
    %3425 = vmatpush1.bf16.msra.mxu0 0
    %3426 = vmatprep.subr.bf16.mxu0 0
    %3427 = vmatpush1.bf16.msra.mxu0 0
    %3428 = vmatprep.subr.bf16.mxu0 0
    %3429 = vmatpush1.bf16.msra.mxu0 0
    %3430 = vmatprep.mubr.bf16.mxu0 0
    %3431 = vmatmul.mubr.bf16.gmra.mrb[0].mxu0 %v3396
    %v3432 = vpop.f32.mrb[0].mxu0
    %v3433 = vadd.f32 %v3381, %v3432
    %v3434 = vpop.f32.mrb[0].mxu0
    %v3435 = vpop.f32.mrb[0].mxu0
    %v3436 = vadd.f32 %v3381, %v3435
    %v3437 = vpop.f32.mrb[0].mxu0
    %3438 = vdwg.mxu0
    %v3439 = vpack.c.bf16 %v2493, %v2492
    %v3441 = vlaneseq
    %v3442 = vshrl.u32 %v3441, 7
    %v3443 = vsub.s32 0, %v3442
    %v3444 = vrot.slane %v2533, %v3443
    %v3450 = vunpack.c.l.b16 %v2524
    %v3451 = vunpack.c.l.b16 %v2525
    %v3452 = vunpack.c.l.b16 %v2526
    %v3453 = vunpack.c.l.b16 %v2527
    %v3454 = vpack.c.b16 %v3451, %v3450
    %v3455 = vpack.c.b16 %v3453, %v3452
    %v3459 = vsel %vm483, %v3439, 0
    %3461 = vmatprep.subr.bf16.mxu0 0
    %3462 = vmatpush1.bf16.msra.mxu0 %v3454
    %3463 = vmatprep.subr.bf16.mxu0 0
    %3464 = vmatpush1.bf16.msra.mxu0 %v3455
    %3465 = vmatprep.subr.bf16.mxu0 0
    %3466 = vmatpush1.bf16.msra.mxu0 0
    %3467 = vmatprep.subr.bf16.mxu0 0
    %3468 = vmatpush1.bf16.msra.mxu0 0
    %3469 = vmatprep.subr.bf16.mxu0 0
    %3470 = vmatpush1.bf16.msra.mxu0 0
    %3471 = vmatprep.subr.bf16.mxu0 0
    %3472 = vmatpush1.bf16.msra.mxu0 0
    %3473 = vmatprep.subr.bf16.mxu0 0
    %3474 = vmatpush1.bf16.msra.mxu0 0
    %3475 = vmatprep.subr.bf16.mxu0 0
    %3476 = vmatpush1.bf16.msra.mxu0 0
    %3477 = vmatprep.subr.bf16.mxu0 0
    %3478 = vmatpush1.bf16.msra.mxu0 0
    %3479 = vmatprep.subr.bf16.mxu0 0
    %3480 = vmatpush1.bf16.msra.mxu0 0
    %3481 = vmatprep.subr.bf16.mxu0 0
    %3482 = vmatpush1.bf16.msra.mxu0 0
    %3483 = vmatprep.subr.bf16.mxu0 0
    %3484 = vmatpush1.bf16.msra.mxu0 0
    %3485 = vmatprep.subr.bf16.mxu0 0
    %3486 = vmatpush1.bf16.msra.mxu0 0
    %3487 = vmatprep.subr.bf16.mxu0 0
    %3488 = vmatpush1.bf16.msra.mxu0 0
    %3489 = vmatprep.subr.bf16.mxu0 0
    %3490 = vmatpush1.bf16.msra.mxu0 0
    %3491 = vmatprep.subr.bf16.mxu0 0
    %3492 = vmatpush1.bf16.msra.mxu0 0
    %3493 = vmatprep.mubr.bf16.mxu0 0
    %3494 = vmatmul.mubr.bf16.gmra.mrb[0].mxu0 %v3459
    %v3495 = vpop.f32.mrb[0].mxu0
    %v3496 = vadd.f32 %v3444, %v3495
    %v3497 = vpop.f32.mrb[0].mxu0
    %v3498 = vpop.f32.mrb[0].mxu0
    %v3499 = vadd.f32 %v3444, %v3498
    %v3500 = vpop.f32.mrb[0].mxu0
    %3501 = vdwg.mxu0
    %v3503 = vlaneseq
    %v3504 = vshrl.u32 %v3503, 7
    %v3505 = vsub.s32 0, %v3504
    %v3506 = vrot.slane %v2534, %v3505
    %v3512 = vunpack.c.l.b16 %v2528
    %v3513 = vunpack.c.l.b16 %v2529
    %v3514 = vunpack.c.l.b16 %v2530
    %v3515 = vunpack.c.l.b16 %v2531
    %v3516 = vpack.c.b16 %v3513, %v3512
    %v3517 = vpack.c.b16 %v3515, %v3514
    %3520 = vmatprep.subr.bf16.mxu0 0
    %3521 = vmatpush1.bf16.msra.mxu0 %v3516
    %3522 = vmatprep.subr.bf16.mxu0 0
    %3523 = vmatpush1.bf16.msra.mxu0 %v3517
    %3524 = vmatprep.subr.bf16.mxu0 0
    %3525 = vmatpush1.bf16.msra.mxu0 0
    %3526 = vmatprep.subr.bf16.mxu0 0
    %3527 = vmatpush1.bf16.msra.mxu0 0
    %3528 = vmatprep.subr.bf16.mxu0 0
    %3529 = vmatpush1.bf16.msra.mxu0 0
    %3530 = vmatprep.subr.bf16.mxu0 0
    %3531 = vmatpush1.bf16.msra.mxu0 0
    %3532 = vmatprep.subr.bf16.mxu0 0
    %3533 = vmatpush1.bf16.msra.mxu0 0
    %3534 = vmatprep.subr.bf16.mxu0 0
    %3535 = vmatpush1.bf16.msra.mxu0 0
    %3536 = vmatprep.subr.bf16.mxu0 0
    %3537 = vmatpush1.bf16.msra.mxu0 0
    %3538 = vmatprep.subr.bf16.mxu0 0
    %3539 = vmatpush1.bf16.msra.mxu0 0
    %3540 = vmatprep.subr.bf16.mxu0 0
    %3541 = vmatpush1.bf16.msra.mxu0 0
    %3542 = vmatprep.subr.bf16.mxu0 0
    %3543 = vmatpush1.bf16.msra.mxu0 0
    %3544 = vmatprep.subr.bf16.mxu0 0
    %3545 = vmatpush1.bf16.msra.mxu0 0
    %3546 = vmatprep.subr.bf16.mxu0 0
    %3547 = vmatpush1.bf16.msra.mxu0 0
    %3548 = vmatprep.subr.bf16.mxu0 0
    %3549 = vmatpush1.bf16.msra.mxu0 0
    %3550 = vmatprep.subr.bf16.mxu0 0
    %3551 = vmatpush1.bf16.msra.mxu0 0
    %3552 = vmatprep.mubr.bf16.mxu0 0
    %3553 = vmatmul.mubr.bf16.gmra.mrb[0].mxu0 %v3459
    %v3554 = vpop.f32.mrb[0].mxu0
    %v3555 = vadd.f32 %v3506, %v3554
    %v3556 = vpop.f32.mrb[0].mxu0
    %v3557 = vpop.f32.mrb[0].mxu0
    %v3558 = vadd.f32 %v3506, %v3557
    %v3559 = vpop.f32.mrb[0].mxu0
    %3560 = vdwg.mxu0
    %v3561 = vpack.c.bf16 %v3436, %v3433
    %v3562 = vpack.c.bf16 %v3499, %v3496
    %v3563 = vpack.c.bf16 %v3558, %v3555
    %v3565 = vsel %vm649, %v3561, 0
    %v3568 = vsel %vm649, %v3562, 0
    %3570 = vmatprep.subr.bf16.mxu0 0
    %3571 = vmatpush1.bf16.xpose.msra.mxu0 %v3568
    %3572 = vmatprep.subr.bf16.mxu0 0
    %3573 = vmatpush1.bf16.xpose.msra.mxu0 0
    %3574 = vmatprep.subr.bf16.mxu0 0
    %3575 = vmatpush1.bf16.xpose.msra.mxu0 0
    %3576 = vmatprep.subr.bf16.mxu0 0
    %3577 = vmatpush1.bf16.xpose.msra.mxu0 0
    %3578 = vmatprep.subr.bf16.mxu0 0
    %3579 = vmatpush1.bf16.xpose.msra.mxu0 0
    %3580 = vmatprep.subr.bf16.mxu0 0
    %3581 = vmatpush1.bf16.xpose.msra.mxu0 0
    %3582 = vmatprep.subr.bf16.mxu0 0
    %3583 = vmatpush1.bf16.xpose.msra.mxu0 0
    %3584 = vmatprep.subr.bf16.mxu0 0
    %3585 = vmatpush1.bf16.xpose.msra.mxu0 0
    %3586 = vmatprep.subr.bf16.mxu0 0
    %3587 = vmatpush1.bf16.xpose.msra.mxu0 0
    %3588 = vmatprep.subr.bf16.mxu0 0
    %3589 = vmatpush1.bf16.xpose.msra.mxu0 0
    %3590 = vmatprep.subr.bf16.mxu0 0
    %3591 = vmatpush1.bf16.xpose.msra.mxu0 0
    %3592 = vmatprep.subr.bf16.mxu0 0
    %3593 = vmatpush1.bf16.xpose.msra.mxu0 0
    %3594 = vmatprep.subr.bf16.mxu0 0
    %3595 = vmatpush1.bf16.xpose.msra.mxu0 0
    %3596 = vmatprep.subr.bf16.mxu0 0
    %3597 = vmatpush1.bf16.xpose.msra.mxu0 0
    %3598 = vmatprep.subr.bf16.mxu0 0
    %3599 = vmatpush1.bf16.xpose.msra.mxu0 0
    %3600 = vmatprep.subr.bf16.mxu0 0
    %3601 = vmatpush1.bf16.xpose.msra.mxu0 0
    %3602 = vmatprep.mubr.bf16.mxu0 0
    %3603 = vmatmul.mubr.bf16.gmra.mrb[0].mxu0 %v3565
    %v3604 = vpop.f32.mrb[0].mxu0
    %v3605 = vadd.f32 %v416, %v3604
    %v3606 = vpop.f32.mrb[0].mxu0
    %v3607 = vpop.f32.mrb[0].mxu0
    %v3608 = vadd.f32 %v417, %v3607
    %v3609 = vpop.f32.mrb[0].mxu0
    %3610 = vdwg.mxu0
    %v3611 = vsel %vm697, %v3605, -inf
    %3612 = vmax.xlane.f32.xlu0 %v3611
    %v3613 = vpop.xlane.xlu0 %3612
    %vm3614 = vcmask 125952
    %v3615 = vsel %vm3614, %v3608, -inf
    %3616 = vmax.xlane.f32.xlu0 %v3615
    %v3617 = vpop.xlane.xlu0 %3616
    %v3618 = vsub.f32 %v3605, %v3613
    %v3619 = vsub.f32 %v3608, %v3617
    %v3620 = vmul.f32 %v3618, 1.442695
    %v3621 = vpow.pop %v3620
    %v3622 = vmul.f32 %v3619, 1.442695
    %v3623 = vpow.pop %v3622
    %v3624 = vsel %vm697, %v3621, 0.0
    %3625 = vadd.xlane.f32.xlu0 %v3624
    %v3626 = vpop.xlane.xlu0 %3625
    %v3627 = vsel %vm3614, %v3623, 0.0
    %3628 = vadd.xlane.f32.xlu0 %v3627
    %v3629 = vpop.xlane.xlu0 %3628
    %v3630 = vrcp.pop %v3626
    %v3631 = vrcp.pop %v3629
    %v3632 = vmul.f32 %v3621, %v3630
    %v3633 = vmul.f32 %v3623, %v3631
    %v3634 = vpack.c.bf16 %v3633, %v3632
    %v3636 = vsel %vm697, %v3634, 0
    %3638 = vmatprep.subr.bf16.mxu0 0
    %3639 = vmatpush1.bf16.msra.mxu0 %v3563
    %3640 = vmatprep.subr.bf16.mxu0 0
    %3641 = vmatpush1.bf16.msra.mxu0 0
    %3642 = vmatprep.subr.bf16.mxu0 0
    %3643 = vmatpush1.bf16.msra.mxu0 0
    %3644 = vmatprep.subr.bf16.mxu0 0
    %3645 = vmatpush1.bf16.msra.mxu0 0
    %3646 = vmatprep.subr.bf16.mxu0 0
    %3647 = vmatpush1.bf16.msra.mxu0 0
    %3648 = vmatprep.subr.bf16.mxu0 0
    %3649 = vmatpush1.bf16.msra.mxu0 0
    %3650 = vmatprep.subr.bf16.mxu0 0
    %3651 = vmatpush1.bf16.msra.mxu0 0
    %3652 = vmatprep.subr.bf16.mxu0 0
    %3653 = vmatpush1.bf16.msra.mxu0 0
    %3654 = vmatprep.subr.bf16.mxu0 0
    %3655 = vmatpush1.bf16.msra.mxu0 0
    %3656 = vmatprep.subr.bf16.mxu0 0
    %3657 = vmatpush1.bf16.msra.mxu0 0
    %3658 = vmatprep.subr.bf16.mxu0 0
    %3659 = vmatpush1.bf16.msra.mxu0 0
    %3660 = vmatprep.subr.bf16.mxu0 0
    %3661 = vmatpush1.bf16.msra.mxu0 0
    %3662 = vmatprep.subr.bf16.mxu0 0
    %3663 = vmatpush1.bf16.msra.mxu0 0
    %3664 = vmatprep.subr.bf16.mxu0 0
    %3665 = vmatpush1.bf16.msra.mxu0 0
    %3666 = vmatprep.subr.bf16.mxu0 0
    %3667 = vmatpush1.bf16.msra.mxu0 0
    %3668 = vmatprep.subr.bf16.mxu0 0
    %3669 = vmatpush1.bf16.msra.mxu0 0
    %3670 = vmatprep.mubr.bf16.mxu0 0
    %3671 = vmatmul.mubr.bf16.gmra.mrb[0].mxu0 %v3636
    %v3672 = vpop.f32.mrb[0].mxu0
    %v3673 = vadd.f32 0.0, %v3672
    %v3674 = vpop.f32.mrb[0].mxu0
    %v3675 = vpop.f32.mrb[0].mxu0
    %v3676 = vadd.f32 0.0, %v3675
    %v3677 = vpop.f32.mrb[0].mxu0
    %3678 = vdwg.mxu0
    %3680 = vrot.lane.b32.xlu0 %v3561, 120
    %v3681 = vpop.permute.xlu0 %3680
    %3683 = vrot.lane.b32.xlu0 %v3562, 120
    %v3684 = vpop.permute.xlu0 %3683
    %v3686 = vsel %vm649, %v3681, 0
    %v3689 = vsel %vm649, %v3684, 0
    %3691 = vmatprep.subr.bf16.mxu0 0
    %3692 = vmatpush1.bf16.xpose.msra.mxu0 %v3689
    %3693 = vmatprep.subr.bf16.mxu0 0
    %3694 = vmatpush1.bf16.xpose.msra.mxu0 0
    %3695 = vmatprep.subr.bf16.mxu0 0
    %3696 = vmatpush1.bf16.xpose.msra.mxu0 0
    %3697 = vmatprep.subr.bf16.mxu0 0
    %3698 = vmatpush1.bf16.xpose.msra.mxu0 0
    %3699 = vmatprep.subr.bf16.mxu0 0
    %3700 = vmatpush1.bf16.xpose.msra.mxu0 0
    %3701 = vmatprep.subr.bf16.mxu0 0
    %3702 = vmatpush1.bf16.xpose.msra.mxu0 0
    %3703 = vmatprep.subr.bf16.mxu0 0
    %3704 = vmatpush1.bf16.xpose.msra.mxu0 0
    %3705 = vmatprep.subr.bf16.mxu0 0
    %3706 = vmatpush1.bf16.xpose.msra.mxu0 0
    %3707 = vmatprep.subr.bf16.mxu0 0
    %3708 = vmatpush1.bf16.xpose.msra.mxu0 0
    %3709 = vmatprep.subr.bf16.mxu0 0
    %3710 = vmatpush1.bf16.xpose.msra.mxu0 0
    %3711 = vmatprep.subr.bf16.mxu0 0
    %3712 = vmatpush1.bf16.xpose.msra.mxu0 0
    %3713 = vmatprep.subr.bf16.mxu0 0
    %3714 = vmatpush1.bf16.xpose.msra.mxu0 0
    %3715 = vmatprep.subr.bf16.mxu0 0
    %3716 = vmatpush1.bf16.xpose.msra.mxu0 0
    %3717 = vmatprep.subr.bf16.mxu0 0
    %3718 = vmatpush1.bf16.xpose.msra.mxu0 0
    %3719 = vmatprep.subr.bf16.mxu0 0
    %3720 = vmatpush1.bf16.xpose.msra.mxu0 0
    %3721 = vmatprep.subr.bf16.mxu0 0
    %3722 = vmatpush1.bf16.xpose.msra.mxu0 0
    %3723 = vmatprep.mubr.bf16.mxu0 0
    %3724 = vmatmul.mubr.bf16.gmra.mrb[0].mxu0 %v3686
    %v3725 = vpop.f32.mrb[0].mxu0
    %v3726 = vadd.f32 %v416, %v3725
    %v3727 = vpop.f32.mrb[0].mxu0
    %v3728 = vpop.f32.mrb[0].mxu0
    %v3729 = vadd.f32 %v417, %v3728
    %v3730 = vpop.f32.mrb[0].mxu0
    %3731 = vdwg.mxu0
    %v3732 = vsel %vm697, %v3726, -inf
    %3733 = vmax.xlane.f32.xlu0 %v3732
    %v3734 = vpop.xlane.xlu0 %3733
    %v3735 = vsel %vm3614, %v3729, -inf
    %3736 = vmax.xlane.f32.xlu0 %v3735
    %v3737 = vpop.xlane.xlu0 %3736
    %v3738 = vsub.f32 %v3726, %v3734
    %v3739 = vsub.f32 %v3729, %v3737
    %v3740 = vmul.f32 %v3738, 1.442695
    %v3741 = vpow.pop %v3740
    %v3742 = vmul.f32 %v3739, 1.442695
    %v3743 = vpow.pop %v3742
    %v3744 = vsel %vm697, %v3741, 0.0
    %3745 = vadd.xlane.f32.xlu0 %v3744
    %v3746 = vpop.xlane.xlu0 %3745
    %v3747 = vsel %vm3614, %v3743, 0.0
    %3748 = vadd.xlane.f32.xlu0 %v3747
    %v3749 = vpop.xlane.xlu0 %3748
    %v3750 = vrcp.pop %v3746
    %v3751 = vrcp.pop %v3749
    %v3752 = vmul.f32 %v3741, %v3750
    %v3753 = vmul.f32 %v3743, %v3751
    %v3754 = vpack.c.bf16 %v3753, %v3752
    %3756 = vrot.lane.b32.xlu0 %v3563, 120
    %v3757 = vpop.permute.xlu0 %3756
    %v3760 = vsel %vm697, %v3754, 0
    %3762 = vmatprep.subr.bf16.mxu0 0
    %3763 = vmatpush1.bf16.msra.mxu0 %v3757
    %3764 = vmatprep.subr.bf16.mxu0 0
    %3765 = vmatpush1.bf16.msra.mxu0 0
    %3766 = vmatprep.subr.bf16.mxu0 0
    %3767 = vmatpush1.bf16.msra.mxu0 0
    %3768 = vmatprep.subr.bf16.mxu0 0
    %3769 = vmatpush1.bf16.msra.mxu0 0
    %3770 = vmatprep.subr.bf16.mxu0 0
    %3771 = vmatpush1.bf16.msra.mxu0 0
    %3772 = vmatprep.subr.bf16.mxu0 0
    %3773 = vmatpush1.bf16.msra.mxu0 0
    %3774 = vmatprep.subr.bf16.mxu0 0
    %3775 = vmatpush1.bf16.msra.mxu0 0
    %3776 = vmatprep.subr.bf16.mxu0 0
    %3777 = vmatpush1.bf16.msra.mxu0 0
    %3778 = vmatprep.subr.bf16.mxu0 0
    %3779 = vmatpush1.bf16.msra.mxu0 0
    %3780 = vmatprep.subr.bf16.mxu0 0
    %3781 = vmatpush1.bf16.msra.mxu0 0
    %3782 = vmatprep.subr.bf16.mxu0 0
    %3783 = vmatpush1.bf16.msra.mxu0 0
    %3784 = vmatprep.subr.bf16.mxu0 0
    %3785 = vmatpush1.bf16.msra.mxu0 0
    %3786 = vmatprep.subr.bf16.mxu0 0
    %3787 = vmatpush1.bf16.msra.mxu0 0
    %3788 = vmatprep.subr.bf16.mxu0 0
    %3789 = vmatpush1.bf16.msra.mxu0 0
    %3790 = vmatprep.subr.bf16.mxu0 0
    %3791 = vmatpush1.bf16.msra.mxu0 0
    %3792 = vmatprep.subr.bf16.mxu0 0
    %3793 = vmatpush1.bf16.msra.mxu0 0
    %3794 = vmatprep.mubr.bf16.mxu0 0
    %3795 = vmatmul.mubr.bf16.gmra.mrb[0].mxu0 %v3760
    %v3796 = vpop.f32.mrb[0].mxu0
    %v3797 = vadd.f32 0.0, %v3796
    %v3798 = vpop.f32.mrb[0].mxu0
    %v3799 = vpop.f32.mrb[0].mxu0
    %v3800 = vadd.f32 0.0, %v3799
    %v3801 = vpop.f32.mrb[0].mxu0
    %3802 = vdwg.mxu0
    %3803 = vrot.lane.b32.xlu0 %v3561, 112
    %v3804 = vpop.permute.xlu0 %3803
    %3805 = vrot.lane.b32.xlu0 %v3562, 112
    %v3806 = vpop.permute.xlu0 %3805
    %v3808 = vsel %vm649, %v3804, 0
    %v3811 = vsel %vm649, %v3806, 0
    %3813 = vmatprep.subr.bf16.mxu0 0
    %3814 = vmatpush1.bf16.xpose.msra.mxu0 %v3811
    %3815 = vmatprep.subr.bf16.mxu0 0
    %3816 = vmatpush1.bf16.xpose.msra.mxu0 0
    %3817 = vmatprep.subr.bf16.mxu0 0
    %3818 = vmatpush1.bf16.xpose.msra.mxu0 0
    %3819 = vmatprep.subr.bf16.mxu0 0
    %3820 = vmatpush1.bf16.xpose.msra.mxu0 0
    %3821 = vmatprep.subr.bf16.mxu0 0
    %3822 = vmatpush1.bf16.xpose.msra.mxu0 0
    %3823 = vmatprep.subr.bf16.mxu0 0
    %3824 = vmatpush1.bf16.xpose.msra.mxu0 0
    %3825 = vmatprep.subr.bf16.mxu0 0
    %3826 = vmatpush1.bf16.xpose.msra.mxu0 0
    %3827 = vmatprep.subr.bf16.mxu0 0
    %3828 = vmatpush1.bf16.xpose.msra.mxu0 0
    %3829 = vmatprep.subr.bf16.mxu0 0
    %3830 = vmatpush1.bf16.xpose.msra.mxu0 0
    %3831 = vmatprep.subr.bf16.mxu0 0
    %3832 = vmatpush1.bf16.xpose.msra.mxu0 0
    %3833 = vmatprep.subr.bf16.mxu0 0
    %3834 = vmatpush1.bf16.xpose.msra.mxu0 0
    %3835 = vmatprep.subr.bf16.mxu0 0
    %3836 = vmatpush1.bf16.xpose.msra.mxu0 0
    %3837 = vmatprep.subr.bf16.mxu0 0
    %3838 = vmatpush1.bf16.xpose.msra.mxu0 0
    %3839 = vmatprep.subr.bf16.mxu0 0
    %3840 = vmatpush1.bf16.xpose.msra.mxu0 0
    %3841 = vmatprep.subr.bf16.mxu0 0
    %3842 = vmatpush1.bf16.xpose.msra.mxu0 0
    %3843 = vmatprep.subr.bf16.mxu0 0
    %3844 = vmatpush1.bf16.xpose.msra.mxu0 0
    %3845 = vmatprep.mubr.bf16.mxu0 0
    %3846 = vmatmul.mubr.bf16.gmra.mrb[0].mxu0 %v3808
    %v3847 = vpop.f32.mrb[0].mxu0
    %v3848 = vadd.f32 %v416, %v3847
    %v3849 = vpop.f32.mrb[0].mxu0
    %v3850 = vpop.f32.mrb[0].mxu0
    %v3851 = vadd.f32 %v417, %v3850
    %v3852 = vpop.f32.mrb[0].mxu0
    %3853 = vdwg.mxu0
    %v3854 = vsel %vm697, %v3848, -inf
    %3855 = vmax.xlane.f32.xlu0 %v3854
    %v3856 = vpop.xlane.xlu0 %3855
    %v3857 = vsel %vm3614, %v3851, -inf
    %3858 = vmax.xlane.f32.xlu0 %v3857
    %v3859 = vpop.xlane.xlu0 %3858
    %v3860 = vsub.f32 %v3848, %v3856
    %v3861 = vsub.f32 %v3851, %v3859
    %v3862 = vmul.f32 %v3860, 1.442695
    %v3863 = vpow.pop %v3862
    %v3864 = vmul.f32 %v3861, 1.442695
    %v3865 = vpow.pop %v3864
    %v3866 = vsel %vm697, %v3863, 0.0
    %3867 = vadd.xlane.f32.xlu0 %v3866
    %v3868 = vpop.xlane.xlu0 %3867
    %v3869 = vsel %vm3614, %v3865, 0.0
    %3870 = vadd.xlane.f32.xlu0 %v3869
    %v3871 = vpop.xlane.xlu0 %3870
    %v3872 = vrcp.pop %v3868
    %v3873 = vrcp.pop %v3871
    %v3874 = vmul.f32 %v3863, %v3872
    %v3875 = vmul.f32 %v3865, %v3873
    %v3876 = vpack.c.bf16 %v3875, %v3874
    %3877 = vrot.lane.b32.xlu0 %v3563, 112
    %v3878 = vpop.permute.xlu0 %3877
    %v3881 = vsel %vm697, %v3876, 0
    %3883 = vmatprep.subr.bf16.mxu0 0
    %3884 = vmatpush1.bf16.msra.mxu0 %v3878
    %3885 = vmatprep.subr.bf16.mxu0 0
    %3886 = vmatpush1.bf16.msra.mxu0 0
    %3887 = vmatprep.subr.bf16.mxu0 0
    %3888 = vmatpush1.bf16.msra.mxu0 0
    %3889 = vmatprep.subr.bf16.mxu0 0
    %3890 = vmatpush1.bf16.msra.mxu0 0
    %3891 = vmatprep.subr.bf16.mxu0 0
    %3892 = vmatpush1.bf16.msra.mxu0 0
    %3893 = vmatprep.subr.bf16.mxu0 0
    %3894 = vmatpush1.bf16.msra.mxu0 0
    %3895 = vmatprep.subr.bf16.mxu0 0
    %3896 = vmatpush1.bf16.msra.mxu0 0
    %3897 = vmatprep.subr.bf16.mxu0 0
    %3898 = vmatpush1.bf16.msra.mxu0 0
    %3899 = vmatprep.subr.bf16.mxu0 0
    %3900 = vmatpush1.bf16.msra.mxu0 0
    %3901 = vmatprep.subr.bf16.mxu0 0
    %3902 = vmatpush1.bf16.msra.mxu0 0
    %3903 = vmatprep.subr.bf16.mxu0 0
    %3904 = vmatpush1.bf16.msra.mxu0 0
    %3905 = vmatprep.subr.bf16.mxu0 0
    %3906 = vmatpush1.bf16.msra.mxu0 0
    %3907 = vmatprep.subr.bf16.mxu0 0
    %3908 = vmatpush1.bf16.msra.mxu0 0
    %3909 = vmatprep.subr.bf16.mxu0 0
    %3910 = vmatpush1.bf16.msra.mxu0 0
    %3911 = vmatprep.subr.bf16.mxu0 0
    %3912 = vmatpush1.bf16.msra.mxu0 0
    %3913 = vmatprep.subr.bf16.mxu0 0
    %3914 = vmatpush1.bf16.msra.mxu0 0
    %3915 = vmatprep.mubr.bf16.mxu0 0
    %3916 = vmatmul.mubr.bf16.gmra.mrb[0].mxu0 %v3881
    %v3917 = vpop.f32.mrb[0].mxu0
    %v3918 = vadd.f32 0.0, %v3917
    %v3919 = vpop.f32.mrb[0].mxu0
    %v3920 = vpop.f32.mrb[0].mxu0
    %v3921 = vadd.f32 0.0, %v3920
    %v3922 = vpop.f32.mrb[0].mxu0
    %3923 = vdwg.mxu0
    %3924 = vrot.lane.b32.xlu0 %v3561, 104
    %v3925 = vpop.permute.xlu0 %3924
    %3926 = vrot.lane.b32.xlu0 %v3562, 104
    %v3927 = vpop.permute.xlu0 %3926
    %v3929 = vsel %vm649, %v3925, 0
    %v3932 = vsel %vm649, %v3927, 0
    %3934 = vmatprep.subr.bf16.mxu0 0
    %3935 = vmatpush1.bf16.xpose.msra.mxu0 %v3932
    %3936 = vmatprep.subr.bf16.mxu0 0
    %3937 = vmatpush1.bf16.xpose.msra.mxu0 0
    %3938 = vmatprep.subr.bf16.mxu0 0
    %3939 = vmatpush1.bf16.xpose.msra.mxu0 0
    %3940 = vmatprep.subr.bf16.mxu0 0
    %3941 = vmatpush1.bf16.xpose.msra.mxu0 0
    %3942 = vmatprep.subr.bf16.mxu0 0
    %3943 = vmatpush1.bf16.xpose.msra.mxu0 0
    %3944 = vmatprep.subr.bf16.mxu0 0
    %3945 = vmatpush1.bf16.xpose.msra.mxu0 0
    %3946 = vmatprep.subr.bf16.mxu0 0
    %3947 = vmatpush1.bf16.xpose.msra.mxu0 0
    %3948 = vmatprep.subr.bf16.mxu0 0
    %3949 = vmatpush1.bf16.xpose.msra.mxu0 0
    %3950 = vmatprep.subr.bf16.mxu0 0
    %3951 = vmatpush1.bf16.xpose.msra.mxu0 0
    %3952 = vmatprep.subr.bf16.mxu0 0
    %3953 = vmatpush1.bf16.xpose.msra.mxu0 0
    %3954 = vmatprep.subr.bf16.mxu0 0
    %3955 = vmatpush1.bf16.xpose.msra.mxu0 0
    %3956 = vmatprep.subr.bf16.mxu0 0
    %3957 = vmatpush1.bf16.xpose.msra.mxu0 0
    %3958 = vmatprep.subr.bf16.mxu0 0
    %3959 = vmatpush1.bf16.xpose.msra.mxu0 0
    %3960 = vmatprep.subr.bf16.mxu0 0
    %3961 = vmatpush1.bf16.xpose.msra.mxu0 0
    %3962 = vmatprep.subr.bf16.mxu0 0
    %3963 = vmatpush1.bf16.xpose.msra.mxu0 0
    %3964 = vmatprep.subr.bf16.mxu0 0
    %3965 = vmatpush1.bf16.xpose.msra.mxu0 0
    %3966 = vmatprep.mubr.bf16.mxu0 0
    %3967 = vmatmul.mubr.bf16.gmra.mrb[0].mxu0 %v3929
    %v3968 = vpop.f32.mrb[0].mxu0
    %v3969 = vadd.f32 %v416, %v3968
    %v3970 = vpop.f32.mrb[0].mxu0
    %v3971 = vpop.f32.mrb[0].mxu0
    %v3972 = vadd.f32 %v417, %v3971
    %v3973 = vpop.f32.mrb[0].mxu0
    %3974 = vdwg.mxu0
    %v3975 = vsel %vm697, %v3969, -inf
    %3976 = vmax.xlane.f32.xlu0 %v3975
    %v3977 = vpop.xlane.xlu0 %3976
    %v3978 = vsel %vm3614, %v3972, -inf
    %3979 = vmax.xlane.f32.xlu0 %v3978
    %v3980 = vpop.xlane.xlu0 %3979
    %v3981 = vsub.f32 %v3969, %v3977
    %v3982 = vsub.f32 %v3972, %v3980
    %v3983 = vmul.f32 %v3981, 1.442695
    %v3984 = vpow.pop %v3983
    %v3985 = vmul.f32 %v3982, 1.442695
    %v3986 = vpow.pop %v3985
    %v3987 = vsel %vm697, %v3984, 0.0
    %3988 = vadd.xlane.f32.xlu0 %v3987
    %v3989 = vpop.xlane.xlu0 %3988
    %v3990 = vsel %vm3614, %v3986, 0.0
    %3991 = vadd.xlane.f32.xlu0 %v3990
    %v3992 = vpop.xlane.xlu0 %3991
    %v3993 = vrcp.pop %v3989
    %v3994 = vrcp.pop %v3992
    %v3995 = vmul.f32 %v3984, %v3993
    %v3996 = vmul.f32 %v3986, %v3994
    %v3997 = vpack.c.bf16 %v3996, %v3995
    %3998 = vrot.lane.b32.xlu0 %v3563, 104
    %v3999 = vpop.permute.xlu0 %3998
    %v4002 = vsel %vm697, %v3997, 0
    %4004 = vmatprep.subr.bf16.mxu0 0
    %4005 = vmatpush1.bf16.msra.mxu0 %v3999
    %4006 = vmatprep.subr.bf16.mxu0 0
    %4007 = vmatpush1.bf16.msra.mxu0 0
    %4008 = vmatprep.subr.bf16.mxu0 0
    %4009 = vmatpush1.bf16.msra.mxu0 0
    %4010 = vmatprep.subr.bf16.mxu0 0
    %4011 = vmatpush1.bf16.msra.mxu0 0
    %4012 = vmatprep.subr.bf16.mxu0 0
    %4013 = vmatpush1.bf16.msra.mxu0 0
    %4014 = vmatprep.subr.bf16.mxu0 0
    %4015 = vmatpush1.bf16.msra.mxu0 0
    %4016 = vmatprep.subr.bf16.mxu0 0
    %4017 = vmatpush1.bf16.msra.mxu0 0
    %4018 = vmatprep.subr.bf16.mxu0 0
    %4019 = vmatpush1.bf16.msra.mxu0 0
    %4020 = vmatprep.subr.bf16.mxu0 0
    %4021 = vmatpush1.bf16.msra.mxu0 0
    %4022 = vmatprep.subr.bf16.mxu0 0
    %4023 = vmatpush1.bf16.msra.mxu0 0
    %4024 = vmatprep.subr.bf16.mxu0 0
    %4025 = vmatpush1.bf16.msra.mxu0 0
    %4026 = vmatprep.subr.bf16.mxu0 0
    %4027 = vmatpush1.bf16.msra.mxu0 0
    %4028 = vmatprep.subr.bf16.mxu0 0
    %4029 = vmatpush1.bf16.msra.mxu0 0
    %4030 = vmatprep.subr.bf16.mxu0 0
    %4031 = vmatpush1.bf16.msra.mxu0 0
    %4032 = vmatprep.subr.bf16.mxu0 0
    %4033 = vmatpush1.bf16.msra.mxu0 0
    %4034 = vmatprep.subr.bf16.mxu0 0
    %4035 = vmatpush1.bf16.msra.mxu0 0
    %4036 = vmatprep.mubr.bf16.mxu0 0
    %4037 = vmatmul.mubr.bf16.gmra.mrb[0].mxu0 %v4002
    %v4038 = vpop.f32.mrb[0].mxu0
    %v4039 = vadd.f32 0.0, %v4038
    %v4040 = vpop.f32.mrb[0].mxu0
    %v4041 = vpop.f32.mrb[0].mxu0
    %v4042 = vadd.f32 0.0, %v4041
    %v4043 = vpop.f32.mrb[0].mxu0
    %4044 = vdwg.mxu0
    %4047 = vrot.lane.b32.xlu0 %v3797, 8
    %v4048 = vpop.permute.xlu0 %4047
    %4049 = vrot.lane.b32.xlu0 %v3800, 8
    %v4050 = vpop.permute.xlu0 %4049
    %4055 = vrot.lane.b32.xlu0 %v3918, 16
    %v4056 = vpop.permute.xlu0 %4055
    %4057 = vrot.lane.b32.xlu0 %v3921, 16
    %v4058 = vpop.permute.xlu0 %4057
    %4063 = vrot.lane.b32.xlu0 %v4039, 24
    %v4064 = vpop.permute.xlu0 %4063
    %4065 = vrot.lane.b32.xlu0 %v4042, 24
    %v4066 = vpop.permute.xlu0 %4065
    %v4069 = vsel %vm649, %v3673, %v4048
    %v4070 = vsel %vm649, %v3676, %v4050
    %v4071 = vsel %vm697, %v4069, %v4056
    %v4072 = vsel %vm697, %v4070, %v4058
    %v4073 = vsel %vm1159, %v4071, %v4064
    %v4074 = vsel %vm1159, %v4072, %v4066
    %v4075 = vpack.c.bf16 %v4074, %v4073
    %v4077 = vlaneseq
    %v4078 = vshrl.u32 %v4077, 7
    %v4079 = vsub.s32 0, %v4078
    %v4080 = vrot.slane %v2539, %v4079
    %v4086 = vunpack.c.l.b16 %v2535
    %v4087 = vunpack.c.l.b16 %v2536
    %v4088 = vunpack.c.l.b16 %v2537
    %v4089 = vunpack.c.l.b16 %v2538
    %v4090 = vpack.c.b16 %v4087, %v4086
    %v4091 = vpack.c.b16 %v4089, %v4088
    %v4095 = vsel %vm483, %v4075, 0
    %4097 = vmatprep.subr.bf16.mxu0 0
    %4098 = vmatpush1.bf16.msra.mxu0 %v4090
    %4099 = vmatprep.subr.bf16.mxu0 0
    %4100 = vmatpush1.bf16.msra.mxu0 %v4091
    %4101 = vmatprep.subr.bf16.mxu0 0
    %4102 = vmatpush1.bf16.msra.mxu0 0
    %4103 = vmatprep.subr.bf16.mxu0 0
    %4104 = vmatpush1.bf16.msra.mxu0 0
    %4105 = vmatprep.subr.bf16.mxu0 0
    %4106 = vmatpush1.bf16.msra.mxu0 0
    %4107 = vmatprep.subr.bf16.mxu0 0
    %4108 = vmatpush1.bf16.msra.mxu0 0
    %4109 = vmatprep.subr.bf16.mxu0 0
    %4110 = vmatpush1.bf16.msra.mxu0 0
    %4111 = vmatprep.subr.bf16.mxu0 0
    %4112 = vmatpush1.bf16.msra.mxu0 0
    %4113 = vmatprep.subr.bf16.mxu0 0
    %4114 = vmatpush1.bf16.msra.mxu0 0
    %4115 = vmatprep.subr.bf16.mxu0 0
    %4116 = vmatpush1.bf16.msra.mxu0 0
    %4117 = vmatprep.subr.bf16.mxu0 0
    %4118 = vmatpush1.bf16.msra.mxu0 0
    %4119 = vmatprep.subr.bf16.mxu0 0
    %4120 = vmatpush1.bf16.msra.mxu0 0
    %4121 = vmatprep.subr.bf16.mxu0 0
    %4122 = vmatpush1.bf16.msra.mxu0 0
    %4123 = vmatprep.subr.bf16.mxu0 0
    %4124 = vmatpush1.bf16.msra.mxu0 0
    %4125 = vmatprep.subr.bf16.mxu0 0
    %4126 = vmatpush1.bf16.msra.mxu0 0
    %4127 = vmatprep.subr.bf16.mxu0 0
    %4128 = vmatpush1.bf16.msra.mxu0 0
    %4129 = vmatprep.mubr.bf16.mxu0 0
    %4130 = vmatmul.mubr.bf16.gmra.mrb[0].mxu0 %v4095
    %v4131 = vpop.f32.mrb[0].mxu0
    %v4132 = vadd.f32 %v4080, %v4131
    %v4133 = vpop.f32.mrb[0].mxu0
    %v4134 = vpop.f32.mrb[0].mxu0
    %v4135 = vadd.f32 %v4080, %v4134
    %v4136 = vpop.f32.mrb[0].mxu0
    %4137 = vdwg.mxu0
    %v4138 = vadd.f32 %v3374, %v4132
    %v4139 = vadd.f32 %v3375, %v4135
    %v4140 = vsel %vm483, %v4138, 0.0
    %4141 = vadd.xlane.f32.xlu0 %v4140
    %v4142 = vpop.xlane.xlu0 %4141
    %v4143 = vsel %vm3336, %v4139, 0.0
    %4144 = vadd.xlane.f32.xlu0 %v4143
    %v4145 = vpop.xlane.xlu0 %4144
    %v4146 = vmul.f32 %v4142, %v1233
    %v4147 = vmul.f32 %v4145, %v1233
    %v4148 = vsub.f32 %v4138, %v4146
    %v4149 = vsub.f32 %v4139, %v4147
    %v4150 = vmul.f32 %v4148, %v4148
    %v4151 = vmul.f32 %v4149, %v4149
    %v4152 = vsel %vm483, %v4150, 0.0
    %4153 = vadd.xlane.f32.xlu0 %v4152
    %v4154 = vpop.xlane.xlu0 %4153
    %v4155 = vsel %vm3336, %v4151, 0.0
    %4156 = vadd.xlane.f32.xlu0 %v4155
    %v4157 = vpop.xlane.xlu0 %4156
    %v4158 = vmul.f32 %v4154, %v1233
    %v4159 = vmul.f32 %v4157, %v1233
    %v4160 = vadd.f32 %v4158, 1e-05
    %v4161 = vadd.f32 %v4159, 1e-05
    %v4162 = vrsqrt.pop %v4160
    %v4163 = vrsqrt.pop %v4161
    %v4164 = vmul.f32 %v4148, %v4162
    %v4165 = vmul.f32 %v4149, %v4163
    %v4167 = vlaneseq
    %v4168 = vshrl.u32 %v4167, 7
    %v4169 = vsub.s32 0, %v4168
    %v4170 = vrot.slane %v2540, %v4169
    %v4172 = vmul.f32 %v4164, %v4170
    %v4173 = vmul.f32 %v4165, %v4170
    %v4175 = vlaneseq
    %v4176 = vshrl.u32 %v4175, 7
    %v4177 = vsub.s32 0, %v4176
    %v4178 = vrot.slane %v2541, %v4177
    %v4180 = vadd.f32 %v4172, %v4178
    %v4181 = vadd.f32 %v4173, %v4178
    %v4182 = vpack.c.bf16 %v4181, %v4180
    %v4184 = vlaneseq
    %v4185 = vshrl.u32 %v4184, 7
    %v4186 = vsub.s32 0, %v4185
    %v4187 = vrot.slane %v2546, %v4186
    %v4193 = vunpack.c.l.b16 %v2542
    %v4194 = vunpack.c.l.b16 %v2543
    %v4195 = vunpack.c.l.b16 %v2544
    %v4196 = vunpack.c.l.b16 %v2545
    %v4197 = vpack.c.b16 %v4194, %v4193
    %v4198 = vpack.c.b16 %v4196, %v4195
    %v4202 = vsel %vm483, %v4182, 0
    %4204 = vmatprep.subr.bf16.mxu0 0
    %4205 = vmatpush1.bf16.msra.mxu0 %v4197
    %4206 = vmatprep.subr.bf16.mxu0 0
    %4207 = vmatpush1.bf16.msra.mxu0 %v4198
    %4208 = vmatprep.subr.bf16.mxu0 0
    %4209 = vmatpush1.bf16.msra.mxu0 0
    %4210 = vmatprep.subr.bf16.mxu0 0
    %4211 = vmatpush1.bf16.msra.mxu0 0
    %4212 = vmatprep.subr.bf16.mxu0 0
    %4213 = vmatpush1.bf16.msra.mxu0 0
    %4214 = vmatprep.subr.bf16.mxu0 0
    %4215 = vmatpush1.bf16.msra.mxu0 0
    %4216 = vmatprep.subr.bf16.mxu0 0
    %4217 = vmatpush1.bf16.msra.mxu0 0
    %4218 = vmatprep.subr.bf16.mxu0 0
    %4219 = vmatpush1.bf16.msra.mxu0 0
    %4220 = vmatprep.subr.bf16.mxu0 0
    %4221 = vmatpush1.bf16.msra.mxu0 0
    %4222 = vmatprep.subr.bf16.mxu0 0
    %4223 = vmatpush1.bf16.msra.mxu0 0
    %4224 = vmatprep.subr.bf16.mxu0 0
    %4225 = vmatpush1.bf16.msra.mxu0 0
    %4226 = vmatprep.subr.bf16.mxu0 0
    %4227 = vmatpush1.bf16.msra.mxu0 0
    %4228 = vmatprep.subr.bf16.mxu0 0
    %4229 = vmatpush1.bf16.msra.mxu0 0
    %4230 = vmatprep.subr.bf16.mxu0 0
    %4231 = vmatpush1.bf16.msra.mxu0 0
    %4232 = vmatprep.subr.bf16.mxu0 0
    %4233 = vmatpush1.bf16.msra.mxu0 0
    %4234 = vmatprep.subr.bf16.mxu0 0
    %4235 = vmatpush1.bf16.msra.mxu0 0
    %4236 = vmatprep.mubr.bf16.mxu0 0
    %4237 = vmatmul.mubr.bf16.gmra.mrb[0].mxu0 %v4202
    %v4238 = vpop.f32.mrb[0].mxu0
    %v4239 = vadd.f32 %v4187, %v4238
    %v4240 = vpop.f32.mrb[0].mxu0
    %v4241 = vpop.f32.mrb[0].mxu0
    %v4242 = vadd.f32 %v4187, %v4241
    %v4243 = vpop.f32.mrb[0].mxu0
    %4244 = vdwg.mxu0
    %v4245 = vmax.f32 %v4239, 0.0
    %v4246 = vmax.f32 %v4242, 0.0
    %v4247 = vpack.c.bf16 %v4246, %v4245
    %v4249 = vlaneseq
    %v4250 = vshrl.u32 %v4249, 7
    %v4251 = vsub.s32 0, %v4250
    %v4252 = vrot.slane %v2555, %v4251
    %v4262 = vunpack.c.l.b16 %v2547
    %v4263 = vunpack.c.l.b16 %v2548
    %v4264 = vunpack.c.l.b16 %v2549
    %v4265 = vunpack.c.l.b16 %v2550
    %v4266 = vunpack.c.l.b16 %v2551
    %v4267 = vunpack.c.l.b16 %v2552
    %v4268 = vunpack.c.l.b16 %v2553
    %v4269 = vunpack.c.l.b16 %v2554
    %v4270 = vpack.c.b16 %v4263, %v4262
    %v4271 = vpack.c.b16 %v4265, %v4264
    %v4272 = vpack.c.b16 %v4267, %v4266
    %v4273 = vpack.c.b16 %v4269, %v4268
    %v4279 = vsel %vm1366, %v4247, 0
    %4281 = vmatprep.subr.bf16.mxu0 0
    %4282 = vmatpush1.bf16.msra.mxu0 %v4270
    %4283 = vmatprep.subr.bf16.mxu0 0
    %4284 = vmatpush1.bf16.msra.mxu0 %v4271
    %4285 = vmatprep.subr.bf16.mxu0 0
    %4286 = vmatpush1.bf16.msra.mxu0 %v4272
    %4287 = vmatprep.subr.bf16.mxu0 0
    %4288 = vmatpush1.bf16.msra.mxu0 %v4273
    %4289 = vmatprep.subr.bf16.mxu0 0
    %4290 = vmatpush1.bf16.msra.mxu0 0
    %4291 = vmatprep.subr.bf16.mxu0 0
    %4292 = vmatpush1.bf16.msra.mxu0 0
    %4293 = vmatprep.subr.bf16.mxu0 0
    %4294 = vmatpush1.bf16.msra.mxu0 0
    %4295 = vmatprep.subr.bf16.mxu0 0
    %4296 = vmatpush1.bf16.msra.mxu0 0
    %4297 = vmatprep.subr.bf16.mxu0 0
    %4298 = vmatpush1.bf16.msra.mxu0 0
    %4299 = vmatprep.subr.bf16.mxu0 0
    %4300 = vmatpush1.bf16.msra.mxu0 0
    %4301 = vmatprep.subr.bf16.mxu0 0
    %4302 = vmatpush1.bf16.msra.mxu0 0
    %4303 = vmatprep.subr.bf16.mxu0 0
    %4304 = vmatpush1.bf16.msra.mxu0 0
    %4305 = vmatprep.subr.bf16.mxu0 0
    %4306 = vmatpush1.bf16.msra.mxu0 0
    %4307 = vmatprep.subr.bf16.mxu0 0
    %4308 = vmatpush1.bf16.msra.mxu0 0
    %4309 = vmatprep.subr.bf16.mxu0 0
    %4310 = vmatpush1.bf16.msra.mxu0 0
    %4311 = vmatprep.subr.bf16.mxu0 0
    %4312 = vmatpush1.bf16.msra.mxu0 0
    %4313 = vmatprep.mubr.bf16.mxu0 0
    %4314 = vmatmul.mubr.bf16.gmra.mrb[0].mxu0 %v4279
    %v4315 = vpop.f32.mrb[0].mxu0
    %v4316 = vadd.f32 %v4252, %v4315
    %v4317 = vpop.f32.mrb[0].mxu0
    %v4318 = vpop.f32.mrb[0].mxu0
    %v4319 = vadd.f32 %v4252, %v4318
    %v4320 = vpop.f32.mrb[0].mxu0
    %4321 = vdwg.mxu0
    %v4322 = vadd.f32 %v4180, %v4316
    %v4323 = vadd.f32 %v4181, %v4319
    %v4324 = vsel %vm483, %v4322, 0.0
    %4325 = vadd.xlane.f32.xlu0 %v4324
    %v4326 = vpop.xlane.xlu0 %4325
    %v4327 = vsel %vm3336, %v4323, 0.0
    %4328 = vadd.xlane.f32.xlu0 %v4327
    %v4329 = vpop.xlane.xlu0 %4328
    %v4330 = vmul.f32 %v4326, %v1233
    %v4331 = vmul.f32 %v4329, %v1233
    %v4332 = vsub.f32 %v4322, %v4330
    %v4333 = vsub.f32 %v4323, %v4331
    %v4334 = vmul.f32 %v4332, %v4332
    %v4335 = vmul.f32 %v4333, %v4333
    %v4336 = vsel %vm483, %v4334, 0.0
    %4337 = vadd.xlane.f32.xlu0 %v4336
    %v4338 = vpop.xlane.xlu0 %4337
    %v4339 = vsel %vm3336, %v4335, 0.0
    %4340 = vadd.xlane.f32.xlu0 %v4339
    %v4341 = vpop.xlane.xlu0 %4340
    %v4342 = vmul.f32 %v4338, %v1233
    %v4343 = vmul.f32 %v4341, %v1233
    %v4344 = vadd.f32 %v4342, 1e-05
    %v4345 = vadd.f32 %v4343, 1e-05
    %v4346 = vrsqrt.pop %v4344
    %v4347 = vrsqrt.pop %v4345
    %v4348 = vmul.f32 %v4332, %v4346
    %v4349 = vmul.f32 %v4333, %v4347
    %v4351 = vlaneseq
    %v4352 = vshrl.u32 %v4351, 7
    %v4353 = vsub.s32 0, %v4352
    %v4354 = vrot.slane %v2556, %v4353
    %v4356 = vmul.f32 %v4348, %v4354
    %v4357 = vmul.f32 %v4349, %v4354
    %v4359 = vlaneseq
    %v4360 = vshrl.u32 %v4359, 7
    %v4361 = vsub.s32 0, %v4360
    %v4362 = vrot.slane %v2557, %v4361
    %v4364 = vadd.f32 %v4356, %v4362
    %v4365 = vadd.f32 %v4357, %v4362
    %s4366 = scalar_lea.vmem %s43, 16
    %v4367 = vld [vmem:[%s4366] sm:$0xf]
    %v4368 = vld [vmem:[%s4366 + $0x4] sm:$0xf]
    %v4369 = vld [vmem:[%s4366 + $0x8] sm:$0xf]
    %v4370 = vld [vmem:[%s4366 + $0xc] sm:$0xf]
    %s4371 = scalar_lea.vmem %s45, 16
    %v4372 = vld [vmem:[%s4371] sm:$0xf]
    %v4373 = vld [vmem:[%s4371 + $0x4] sm:$0xf]
    %v4374 = vld [vmem:[%s4371 + $0x8] sm:$0xf]
    %v4375 = vld [vmem:[%s4371 + $0xc] sm:$0xf]
    %s4376 = scalar_lea.vmem %s47, 16
    %v4377 = vld [vmem:[%s4376] sm:$0xf]
    %v4378 = vld [vmem:[%s4376 + $0x4] sm:$0xf]
    %v4379 = vld [vmem:[%s4376 + $0x8] sm:$0xf]
    %v4380 = vld [vmem:[%s4376 + $0xc] sm:$0xf]
    %s4381 = scalar_lea.vmem %s49, 1
    %v4382 = vld [vmem:[%s4381] sm:$0x1]
    %s4383 = scalar_lea.vmem %s51, 1
    %v4384 = vld [vmem:[%s4383] sm:$0x1]
    %s4385 = scalar_lea.vmem [#allocation2], 1
    %v4386 = vld [vmem:[%s4385] sm:$0x1]
    %s4387 = scalar_lea.vmem %s55, 16
    %v4388 = vld [vmem:[%s4387] sm:$0xf]
    %v4389 = vld [vmem:[%s4387 + $0x4] sm:$0xf]
    %v4390 = vld [vmem:[%s4387 + $0x8] sm:$0xf]
    %v4391 = vld [vmem:[%s4387 + $0xc] sm:$0xf]
    %s4392 = scalar_lea.vmem [#allocation4], 1
    %v4393 = vld [vmem:[%s4392] sm:$0x1]
    %s4394 = scalar_lea.vmem [#allocation6], 1
    %v4395 = vld [vmem:[%s4394] sm:$0x1]
    %s4396 = scalar_lea.vmem [#allocation7], 1
    %v4397 = vld [vmem:[%s4396] sm:$0x1]
    %s4398 = scalar_lea.vmem %s63, 16
    %v4399 = vld [vmem:[%s4398] sm:$0xf]
    %v4400 = vld [vmem:[%s4398 + $0x4] sm:$0xf]
    %v4401 = vld [vmem:[%s4398 + $0x8] sm:$0xf]
    %v4402 = vld [vmem:[%s4398 + $0xc] sm:$0xf]
    %s4403 = scalar_lea.vmem %s65, 16
    %v4404 = vld [vmem:[%s4403] sm:$0xf]
    %v4405 = vld [vmem:[%s4403 + $0x4] sm:$0xf]
    %v4406 = vld [vmem:[%s4403 + $0x8] sm:$0xf]
    %v4407 = vld [vmem:[%s4403 + $0xc] sm:$0xf]
    %s4408 = scalar_lea.vmem %s67, 16
    %v4409 = vld [vmem:[%s4408] sm:$0xf]
    %v4410 = vld [vmem:[%s4408 + $0x4] sm:$0xf]
    %v4411 = vld [vmem:[%s4408 + $0x8] sm:$0xf]
    %v4412 = vld [vmem:[%s4408 + $0xc] sm:$0xf]
    %s4413 = scalar_lea.vmem [#allocation9], 1
    %v4414 = vld [vmem:[%s4413] sm:$0x1]
    %s4415 = scalar_lea.vmem [#allocation10], 1
    %v4416 = vld [vmem:[%s4415] sm:$0x1]
    %s4417 = scalar_lea.vmem [#allocation12], 1
    %v4418 = vld [vmem:[%s4417] sm:$0x1]
    %s4419 = scalar_lea.vmem [#allocation13], 16
    %v4420 = vld [vmem:[%s4419] sm:$0xf]
    %v4421 = vld [vmem:[%s4419 + $0x4] sm:$0xf]
    %v4422 = vld [vmem:[%s4419 + $0x8] sm:$0xf]
    %v4423 = vld [vmem:[%s4419 + $0xc] sm:$0xf]
    %s4424 = scalar_lea.vmem [#allocation15], 1
    %v4425 = vld [vmem:[%s4424] sm:$0x1]
    %s4426 = scalar_lea.vmem [#allocation16], 1
    %v4427 = vld [vmem:[%s4426] sm:$0x1]
    %s4428 = scalar_lea.vmem [#allocation18], 1
    %v4429 = vld [vmem:[%s4428] sm:$0x1]
    %s4430 = scalar_lea.vmem [#allocation19], 16
    %v4431 = vld [vmem:[%s4430] sm:$0xf]
    %v4432 = vld [vmem:[%s4430 + $0x4] sm:$0xf]
    %v4433 = vld [vmem:[%s4430 + $0x8] sm:$0xf]
    %v4434 = vld [vmem:[%s4430 + $0xc] sm:$0xf]
    %s4435 = scalar_lea.vmem [#allocation21], 1
    %v4436 = vld [vmem:[%s4435] sm:$0x1]
    %s4437 = scalar_lea.vmem %s87, 32
    %v4438 = vld [vmem:[%s4437] sm:$0xf]
    %v4439 = vld [vmem:[%s4437 + $0x4] sm:$0xf]
    %v4440 = vld [vmem:[%s4437 + $0x8] sm:$0xf]
    %v4441 = vld [vmem:[%s4437 + $0xc] sm:$0xf]
    %v4442 = vld [vmem:[%s4437 + $0x10] sm:$0xf]
    %v4443 = vld [vmem:[%s4437 + $0x14] sm:$0xf]
    %v4444 = vld [vmem:[%s4437 + $0x18] sm:$0xf]
    %v4445 = vld [vmem:[%s4437 + $0x1c] sm:$0xf]
    %s4446 = scalar_lea.vmem [#allocation22], 1
    %v4447 = vld [vmem:[%s4446] sm:$0x1]
    %s4448 = scalar_lea.vmem [#allocation24], 1
    %v4449 = vld [vmem:[%s4448] sm:$0x1]
    %s4450 = scalar_lea.vmem [#allocation25], 1
    %v4451 = vld [vmem:[%s4450] sm:$0x1]
    %v4452 = vpack.c.bf16 %v4365, %v4364
    %v4454 = vlaneseq
    %v4455 = vshrl.u32 %v4454, 7
    %v4456 = vsub.s32 0, %v4455
    %v4457 = vrot.slane %v4382, %v4456
    %v4463 = vunpack.c.l.b16 %v4367
    %v4464 = vunpack.c.l.b16 %v4368
    %v4465 = vunpack.c.l.b16 %v4369
    %v4466 = vunpack.c.l.b16 %v4370
    %v4467 = vpack.c.b16 %v4464, %v4463
    %v4468 = vpack.c.b16 %v4466, %v4465
    %v4472 = vsel %vm483, %v4452, 0
    %4474 = vmatprep.subr.bf16.mxu0 0
    %4475 = vmatpush1.bf16.msra.mxu0 %v4467
    %4476 = vmatprep.subr.bf16.mxu0 0
    %4477 = vmatpush1.bf16.msra.mxu0 %v4468
    %4478 = vmatprep.subr.bf16.mxu0 0
    %4479 = vmatpush1.bf16.msra.mxu0 0
    %4480 = vmatprep.subr.bf16.mxu0 0
    %4481 = vmatpush1.bf16.msra.mxu0 0
    %4482 = vmatprep.subr.bf16.mxu0 0
    %4483 = vmatpush1.bf16.msra.mxu0 0
    %4484 = vmatprep.subr.bf16.mxu0 0
    %4485 = vmatpush1.bf16.msra.mxu0 0
    %4486 = vmatprep.subr.bf16.mxu0 0
    %4487 = vmatpush1.bf16.msra.mxu0 0
    %4488 = vmatprep.subr.bf16.mxu0 0
    %4489 = vmatpush1.bf16.msra.mxu0 0
    %4490 = vmatprep.subr.bf16.mxu0 0
    %4491 = vmatpush1.bf16.msra.mxu0 0
    %4492 = vmatprep.subr.bf16.mxu0 0
    %4493 = vmatpush1.bf16.msra.mxu0 0
    %4494 = vmatprep.subr.bf16.mxu0 0
    %4495 = vmatpush1.bf16.msra.mxu0 0
    %4496 = vmatprep.subr.bf16.mxu0 0
    %4497 = vmatpush1.bf16.msra.mxu0 0
    %4498 = vmatprep.subr.bf16.mxu0 0
    %4499 = vmatpush1.bf16.msra.mxu0 0
    %4500 = vmatprep.subr.bf16.mxu0 0
    %4501 = vmatpush1.bf16.msra.mxu0 0
    %4502 = vmatprep.subr.bf16.mxu0 0
    %4503 = vmatpush1.bf16.msra.mxu0 0
    %4504 = vmatprep.subr.bf16.mxu0 0
    %4505 = vmatpush1.bf16.msra.mxu0 0
    %4506 = vmatprep.mubr.bf16.mxu0 0
    %4507 = vmatmul.mubr.bf16.gmra.mrb[0].mxu0 %v4472
    %v4508 = vpop.f32.mrb[0].mxu0
    %v4509 = vadd.f32 %v4457, %v4508
    %v4510 = vpop.f32.mrb[0].mxu0
    %v4511 = vpop.f32.mrb[0].mxu0
    %v4512 = vadd.f32 %v4457, %v4511
    %v4513 = vpop.f32.mrb[0].mxu0
    %4514 = vdwg.mxu0
    %v4516 = vlaneseq
    %v4517 = vshrl.u32 %v4516, 7
    %v4518 = vsub.s32 0, %v4517
    %v4519 = vrot.slane %v4384, %v4518
    %v4525 = vunpack.c.l.b16 %v4372
    %v4526 = vunpack.c.l.b16 %v4373
    %v4527 = vunpack.c.l.b16 %v4374
    %v4528 = vunpack.c.l.b16 %v4375
    %v4529 = vpack.c.b16 %v4526, %v4525
    %v4530 = vpack.c.b16 %v4528, %v4527
    %4533 = vmatprep.subr.bf16.mxu0 0
    %4534 = vmatpush1.bf16.msra.mxu0 %v4529
    %4535 = vmatprep.subr.bf16.mxu0 0
    %4536 = vmatpush1.bf16.msra.mxu0 %v4530
    %4537 = vmatprep.subr.bf16.mxu0 0
    %4538 = vmatpush1.bf16.msra.mxu0 0
    %4539 = vmatprep.subr.bf16.mxu0 0
    %4540 = vmatpush1.bf16.msra.mxu0 0
    %4541 = vmatprep.subr.bf16.mxu0 0
    %4542 = vmatpush1.bf16.msra.mxu0 0
    %4543 = vmatprep.subr.bf16.mxu0 0
    %4544 = vmatpush1.bf16.msra.mxu0 0
    %4545 = vmatprep.subr.bf16.mxu0 0
    %4546 = vmatpush1.bf16.msra.mxu0 0
    %4547 = vmatprep.subr.bf16.mxu0 0
    %4548 = vmatpush1.bf16.msra.mxu0 0
    %4549 = vmatprep.subr.bf16.mxu0 0
    %4550 = vmatpush1.bf16.msra.mxu0 0
    %4551 = vmatprep.subr.bf16.mxu0 0
    %4552 = vmatpush1.bf16.msra.mxu0 0
    %4553 = vmatprep.subr.bf16.mxu0 0
    %4554 = vmatpush1.bf16.msra.mxu0 0
    %4555 = vmatprep.subr.bf16.mxu0 0
    %4556 = vmatpush1.bf16.msra.mxu0 0
    %4557 = vmatprep.subr.bf16.mxu0 0
    %4558 = vmatpush1.bf16.msra.mxu0 0
    %4559 = vmatprep.subr.bf16.mxu0 0
    %4560 = vmatpush1.bf16.msra.mxu0 0
    %4561 = vmatprep.subr.bf16.mxu0 0
    %4562 = vmatpush1.bf16.msra.mxu0 0
    %4563 = vmatprep.subr.bf16.mxu0 0
    %4564 = vmatpush1.bf16.msra.mxu0 0
    %4565 = vmatprep.mubr.bf16.mxu0 0
    %4566 = vmatmul.mubr.bf16.gmra.mrb[0].mxu0 %v4472
    %v4567 = vpop.f32.mrb[0].mxu0
    %v4568 = vadd.f32 %v4519, %v4567
    %v4569 = vpop.f32.mrb[0].mxu0
    %v4570 = vpop.f32.mrb[0].mxu0
    %v4571 = vadd.f32 %v4519, %v4570
    %v4572 = vpop.f32.mrb[0].mxu0
    %4573 = vdwg.mxu0
    %v4575 = vlaneseq
    %v4576 = vshrl.u32 %v4575, 7
    %v4577 = vsub.s32 0, %v4576
    %v4578 = vrot.slane %v4386, %v4577
    %v4584 = vunpack.c.l.b16 %v4377
    %v4585 = vunpack.c.l.b16 %v4378
    %v4586 = vunpack.c.l.b16 %v4379
    %v4587 = vunpack.c.l.b16 %v4380
    %v4588 = vpack.c.b16 %v4585, %v4584
    %v4589 = vpack.c.b16 %v4587, %v4586
    %4592 = vmatprep.subr.bf16.mxu0 0
    %4593 = vmatpush1.bf16.msra.mxu0 %v4588
    %4594 = vmatprep.subr.bf16.mxu0 0
    %4595 = vmatpush1.bf16.msra.mxu0 %v4589
    %4596 = vmatprep.subr.bf16.mxu0 0
    %4597 = vmatpush1.bf16.msra.mxu0 0
    %4598 = vmatprep.subr.bf16.mxu0 0
    %4599 = vmatpush1.bf16.msra.mxu0 0
    %4600 = vmatprep.subr.bf16.mxu0 0
    %4601 = vmatpush1.bf16.msra.mxu0 0
    %4602 = vmatprep.subr.bf16.mxu0 0
    %4603 = vmatpush1.bf16.msra.mxu0 0
    %4604 = vmatprep.subr.bf16.mxu0 0
    %4605 = vmatpush1.bf16.msra.mxu0 0
    %4606 = vmatprep.subr.bf16.mxu0 0
    %4607 = vmatpush1.bf16.msra.mxu0 0
    %4608 = vmatprep.subr.bf16.mxu0 0
    %4609 = vmatpush1.bf16.msra.mxu0 0
    %4610 = vmatprep.subr.bf16.mxu0 0
    %4611 = vmatpush1.bf16.msra.mxu0 0
    %4612 = vmatprep.subr.bf16.mxu0 0
    %4613 = vmatpush1.bf16.msra.mxu0 0
    %4614 = vmatprep.subr.bf16.mxu0 0
    %4615 = vmatpush1.bf16.msra.mxu0 0
    %4616 = vmatprep.subr.bf16.mxu0 0
    %4617 = vmatpush1.bf16.msra.mxu0 0
    %4618 = vmatprep.subr.bf16.mxu0 0
    %4619 = vmatpush1.bf16.msra.mxu0 0
    %4620 = vmatprep.subr.bf16.mxu0 0
    %4621 = vmatpush1.bf16.msra.mxu0 0
    %4622 = vmatprep.subr.bf16.mxu0 0
    %4623 = vmatpush1.bf16.msra.mxu0 0
    %4624 = vmatprep.mubr.bf16.mxu0 0
    %4625 = vmatmul.mubr.bf16.gmra.mrb[0].mxu0 %v4472
    %v4626 = vpop.f32.mrb[0].mxu0
    %v4627 = vadd.f32 %v4578, %v4626
    %v4628 = vpop.f32.mrb[0].mxu0
    %v4629 = vpop.f32.mrb[0].mxu0
    %v4630 = vadd.f32 %v4578, %v4629
    %v4631 = vpop.f32.mrb[0].mxu0
    %4632 = vdwg.mxu0
    %v4633 = vpack.c.bf16 %v4512, %v4509
    %v4634 = vpack.c.bf16 %v4571, %v4568
    %v4635 = vpack.c.bf16 %v4630, %v4627
    %v4637 = vsel %vm649, %v4633, 0
    %v4640 = vsel %vm649, %v4634, 0
    %4642 = vmatprep.subr.bf16.mxu0 0
    %4643 = vmatpush1.bf16.xpose.msra.mxu0 %v4640
    %4644 = vmatprep.subr.bf16.mxu0 0
    %4645 = vmatpush1.bf16.xpose.msra.mxu0 0
    %4646 = vmatprep.subr.bf16.mxu0 0
    %4647 = vmatpush1.bf16.xpose.msra.mxu0 0
    %4648 = vmatprep.subr.bf16.mxu0 0
    %4649 = vmatpush1.bf16.xpose.msra.mxu0 0
    %4650 = vmatprep.subr.bf16.mxu0 0
    %4651 = vmatpush1.bf16.xpose.msra.mxu0 0
    %4652 = vmatprep.subr.bf16.mxu0 0
    %4653 = vmatpush1.bf16.xpose.msra.mxu0 0
    %4654 = vmatprep.subr.bf16.mxu0 0
    %4655 = vmatpush1.bf16.xpose.msra.mxu0 0
    %4656 = vmatprep.subr.bf16.mxu0 0
    %4657 = vmatpush1.bf16.xpose.msra.mxu0 0
    %4658 = vmatprep.subr.bf16.mxu0 0
    %4659 = vmatpush1.bf16.xpose.msra.mxu0 0
    %4660 = vmatprep.subr.bf16.mxu0 0
    %4661 = vmatpush1.bf16.xpose.msra.mxu0 0
    %4662 = vmatprep.subr.bf16.mxu0 0
    %4663 = vmatpush1.bf16.xpose.msra.mxu0 0
    %4664 = vmatprep.subr.bf16.mxu0 0
    %4665 = vmatpush1.bf16.xpose.msra.mxu0 0
    %4666 = vmatprep.subr.bf16.mxu0 0
    %4667 = vmatpush1.bf16.xpose.msra.mxu0 0
    %4668 = vmatprep.subr.bf16.mxu0 0
    %4669 = vmatpush1.bf16.xpose.msra.mxu0 0
    %4670 = vmatprep.subr.bf16.mxu0 0
    %4671 = vmatpush1.bf16.xpose.msra.mxu0 0
    %4672 = vmatprep.subr.bf16.mxu0 0
    %4673 = vmatpush1.bf16.xpose.msra.mxu0 0
    %4674 = vmatprep.mubr.bf16.mxu0 0
    %4675 = vmatmul.mubr.bf16.gmra.mrb[0].mxu0 %v4637
    %v4676 = vpop.f32.mrb[0].mxu0
    %v4677 = vadd.f32 %v414, %v4676
    %v4678 = vpop.f32.mrb[0].mxu0
    %v4679 = vpop.f32.mrb[0].mxu0
    %v4680 = vadd.f32 %v415, %v4679
    %v4681 = vpop.f32.mrb[0].mxu0
    %4682 = vdwg.mxu0
    %v4683 = vsel %vm2793, %v4677, -inf
    %4684 = vmax.xlane.f32.xlu0 %v4683
    %v4685 = vpop.xlane.xlu0 %4684
    %v4686 = vsel %vm2797, %v4680, -inf
    %4687 = vmax.xlane.f32.xlu0 %v4686
    %v4688 = vpop.xlane.xlu0 %4687
    %v4689 = vsub.f32 %v4677, %v4685
    %v4690 = vsub.f32 %v4680, %v4688
    %v4691 = vmul.f32 %v4689, 1.442695
    %v4692 = vpow.pop %v4691
    %v4693 = vmul.f32 %v4690, 1.442695
    %v4694 = vpow.pop %v4693
    %v4695 = vsel %vm2793, %v4692, 0.0
    %4696 = vadd.xlane.f32.xlu0 %v4695
    %v4697 = vpop.xlane.xlu0 %4696
    %v4698 = vsel %vm2797, %v4694, 0.0
    %4699 = vadd.xlane.f32.xlu0 %v4698
    %v4700 = vpop.xlane.xlu0 %4699
    %v4701 = vrcp.pop %v4697
    %v4702 = vrcp.pop %v4700
    %v4703 = vmul.f32 %v4692, %v4701
    %v4704 = vmul.f32 %v4694, %v4702
    %v4705 = vpack.c.bf16 %v4704, %v4703
    %v4707 = vsel %vm2793, %v4705, 0
    %v4710 = vsel %vm2821, %v4635, 0
    %4712 = vmatprep.subr.bf16.mxu0 0
    %4713 = vmatpush1.bf16.msra.mxu0 %v4710
    %4714 = vmatprep.subr.bf16.mxu0 0
    %4715 = vmatpush1.bf16.msra.mxu0 0
    %4716 = vmatprep.subr.bf16.mxu0 0
    %4717 = vmatpush1.bf16.msra.mxu0 0
    %4718 = vmatprep.subr.bf16.mxu0 0
    %4719 = vmatpush1.bf16.msra.mxu0 0
    %4720 = vmatprep.subr.bf16.mxu0 0
    %4721 = vmatpush1.bf16.msra.mxu0 0
    %4722 = vmatprep.subr.bf16.mxu0 0
    %4723 = vmatpush1.bf16.msra.mxu0 0
    %4724 = vmatprep.subr.bf16.mxu0 0
    %4725 = vmatpush1.bf16.msra.mxu0 0
    %4726 = vmatprep.subr.bf16.mxu0 0
    %4727 = vmatpush1.bf16.msra.mxu0 0
    %4728 = vmatprep.subr.bf16.mxu0 0
    %4729 = vmatpush1.bf16.msra.mxu0 0
    %4730 = vmatprep.subr.bf16.mxu0 0
    %4731 = vmatpush1.bf16.msra.mxu0 0
    %4732 = vmatprep.subr.bf16.mxu0 0
    %4733 = vmatpush1.bf16.msra.mxu0 0
    %4734 = vmatprep.subr.bf16.mxu0 0
    %4735 = vmatpush1.bf16.msra.mxu0 0
    %4736 = vmatprep.subr.bf16.mxu0 0
    %4737 = vmatpush1.bf16.msra.mxu0 0
    %4738 = vmatprep.subr.bf16.mxu0 0
    %4739 = vmatpush1.bf16.msra.mxu0 0
    %4740 = vmatprep.subr.bf16.mxu0 0
    %4741 = vmatpush1.bf16.msra.mxu0 0
    %4742 = vmatprep.subr.bf16.mxu0 0
    %4743 = vmatpush1.bf16.msra.mxu0 0
    %4744 = vmatprep.mubr.bf16.mxu0 0
    %4745 = vmatmul.mubr.bf16.gmra.mrb[0].mxu0 %v4707
    %v4746 = vpop.f32.mrb[0].mxu0
    %v4747 = vadd.f32 0.0, %v4746
    %v4748 = vpop.f32.mrb[0].mxu0
    %v4749 = vpop.f32.mrb[0].mxu0
    %v4750 = vadd.f32 0.0, %v4749
    %v4751 = vpop.f32.mrb[0].mxu0
    %4752 = vdwg.mxu0
    %4754 = vrot.lane.b32.xlu0 %v4633, 120
    %v4755 = vpop.permute.xlu0 %4754
    %4757 = vrot.lane.b32.xlu0 %v4634, 120
    %v4758 = vpop.permute.xlu0 %4757
    %v4760 = vsel %vm649, %v4755, 0
    %v4763 = vsel %vm649, %v4758, 0
    %4765 = vmatprep.subr.bf16.mxu0 0
    %4766 = vmatpush1.bf16.xpose.msra.mxu0 %v4763
    %4767 = vmatprep.subr.bf16.mxu0 0
    %4768 = vmatpush1.bf16.xpose.msra.mxu0 0
    %4769 = vmatprep.subr.bf16.mxu0 0
    %4770 = vmatpush1.bf16.xpose.msra.mxu0 0
    %4771 = vmatprep.subr.bf16.mxu0 0
    %4772 = vmatpush1.bf16.xpose.msra.mxu0 0
    %4773 = vmatprep.subr.bf16.mxu0 0
    %4774 = vmatpush1.bf16.xpose.msra.mxu0 0
    %4775 = vmatprep.subr.bf16.mxu0 0
    %4776 = vmatpush1.bf16.xpose.msra.mxu0 0
    %4777 = vmatprep.subr.bf16.mxu0 0
    %4778 = vmatpush1.bf16.xpose.msra.mxu0 0
    %4779 = vmatprep.subr.bf16.mxu0 0
    %4780 = vmatpush1.bf16.xpose.msra.mxu0 0
    %4781 = vmatprep.subr.bf16.mxu0 0
    %4782 = vmatpush1.bf16.xpose.msra.mxu0 0
    %4783 = vmatprep.subr.bf16.mxu0 0
    %4784 = vmatpush1.bf16.xpose.msra.mxu0 0
    %4785 = vmatprep.subr.bf16.mxu0 0
    %4786 = vmatpush1.bf16.xpose.msra.mxu0 0
    %4787 = vmatprep.subr.bf16.mxu0 0
    %4788 = vmatpush1.bf16.xpose.msra.mxu0 0
    %4789 = vmatprep.subr.bf16.mxu0 0
    %4790 = vmatpush1.bf16.xpose.msra.mxu0 0
    %4791 = vmatprep.subr.bf16.mxu0 0
    %4792 = vmatpush1.bf16.xpose.msra.mxu0 0
    %4793 = vmatprep.subr.bf16.mxu0 0
    %4794 = vmatpush1.bf16.xpose.msra.mxu0 0
    %4795 = vmatprep.subr.bf16.mxu0 0
    %4796 = vmatpush1.bf16.xpose.msra.mxu0 0
    %4797 = vmatprep.mubr.bf16.mxu0 0
    %4798 = vmatmul.mubr.bf16.gmra.mrb[0].mxu0 %v4760
    %v4799 = vpop.f32.mrb[0].mxu0
    %v4800 = vadd.f32 %v414, %v4799
    %v4801 = vpop.f32.mrb[0].mxu0
    %v4802 = vpop.f32.mrb[0].mxu0
    %v4803 = vadd.f32 %v415, %v4802
    %v4804 = vpop.f32.mrb[0].mxu0
    %4805 = vdwg.mxu0
    %v4806 = vsel %vm2793, %v4800, -inf
    %4807 = vmax.xlane.f32.xlu0 %v4806
    %v4808 = vpop.xlane.xlu0 %4807
    %v4809 = vsel %vm2797, %v4803, -inf
    %4810 = vmax.xlane.f32.xlu0 %v4809
    %v4811 = vpop.xlane.xlu0 %4810
    %v4812 = vsub.f32 %v4800, %v4808
    %v4813 = vsub.f32 %v4803, %v4811
    %v4814 = vmul.f32 %v4812, 1.442695
    %v4815 = vpow.pop %v4814
    %v4816 = vmul.f32 %v4813, 1.442695
    %v4817 = vpow.pop %v4816
    %v4818 = vsel %vm2793, %v4815, 0.0
    %4819 = vadd.xlane.f32.xlu0 %v4818
    %v4820 = vpop.xlane.xlu0 %4819
    %v4821 = vsel %vm2797, %v4817, 0.0
    %4822 = vadd.xlane.f32.xlu0 %v4821
    %v4823 = vpop.xlane.xlu0 %4822
    %v4824 = vrcp.pop %v4820
    %v4825 = vrcp.pop %v4823
    %v4826 = vmul.f32 %v4815, %v4824
    %v4827 = vmul.f32 %v4817, %v4825
    %v4828 = vpack.c.bf16 %v4827, %v4826
    %4830 = vrot.lane.b32.xlu0 %v4635, 120
    %v4831 = vpop.permute.xlu0 %4830
    %v4833 = vsel %vm2793, %v4828, 0
    %v4836 = vsel %vm2821, %v4831, 0
    %4838 = vmatprep.subr.bf16.mxu0 0
    %4839 = vmatpush1.bf16.msra.mxu0 %v4836
    %4840 = vmatprep.subr.bf16.mxu0 0
    %4841 = vmatpush1.bf16.msra.mxu0 0
    %4842 = vmatprep.subr.bf16.mxu0 0
    %4843 = vmatpush1.bf16.msra.mxu0 0
    %4844 = vmatprep.subr.bf16.mxu0 0
    %4845 = vmatpush1.bf16.msra.mxu0 0
    %4846 = vmatprep.subr.bf16.mxu0 0
    %4847 = vmatpush1.bf16.msra.mxu0 0
    %4848 = vmatprep.subr.bf16.mxu0 0
    %4849 = vmatpush1.bf16.msra.mxu0 0
    %4850 = vmatprep.subr.bf16.mxu0 0
    %4851 = vmatpush1.bf16.msra.mxu0 0
    %4852 = vmatprep.subr.bf16.mxu0 0
    %4853 = vmatpush1.bf16.msra.mxu0 0
    %4854 = vmatprep.subr.bf16.mxu0 0
    %4855 = vmatpush1.bf16.msra.mxu0 0
    %4856 = vmatprep.subr.bf16.mxu0 0
    %4857 = vmatpush1.bf16.msra.mxu0 0
    %4858 = vmatprep.subr.bf16.mxu0 0
    %4859 = vmatpush1.bf16.msra.mxu0 0
    %4860 = vmatprep.subr.bf16.mxu0 0
    %4861 = vmatpush1.bf16.msra.mxu0 0
    %4862 = vmatprep.subr.bf16.mxu0 0
    %4863 = vmatpush1.bf16.msra.mxu0 0
    %4864 = vmatprep.subr.bf16.mxu0 0
    %4865 = vmatpush1.bf16.msra.mxu0 0
    %4866 = vmatprep.subr.bf16.mxu0 0
    %4867 = vmatpush1.bf16.msra.mxu0 0
    %4868 = vmatprep.subr.bf16.mxu0 0
    %4869 = vmatpush1.bf16.msra.mxu0 0
    %4870 = vmatprep.mubr.bf16.mxu0 0
    %4871 = vmatmul.mubr.bf16.gmra.mrb[0].mxu0 %v4833
    %v4872 = vpop.f32.mrb[0].mxu0
    %v4873 = vadd.f32 0.0, %v4872
    %v4874 = vpop.f32.mrb[0].mxu0
    %v4875 = vpop.f32.mrb[0].mxu0
    %v4876 = vadd.f32 0.0, %v4875
    %v4877 = vpop.f32.mrb[0].mxu0
    %4878 = vdwg.mxu0
    %4879 = vrot.lane.b32.xlu0 %v4633, 112
    %v4880 = vpop.permute.xlu0 %4879
    %4881 = vrot.lane.b32.xlu0 %v4634, 112
    %v4882 = vpop.permute.xlu0 %4881
    %v4884 = vsel %vm649, %v4880, 0
    %v4887 = vsel %vm649, %v4882, 0
    %4889 = vmatprep.subr.bf16.mxu0 0
    %4890 = vmatpush1.bf16.xpose.msra.mxu0 %v4887
    %4891 = vmatprep.subr.bf16.mxu0 0
    %4892 = vmatpush1.bf16.xpose.msra.mxu0 0
    %4893 = vmatprep.subr.bf16.mxu0 0
    %4894 = vmatpush1.bf16.xpose.msra.mxu0 0
    %4895 = vmatprep.subr.bf16.mxu0 0
    %4896 = vmatpush1.bf16.xpose.msra.mxu0 0
    %4897 = vmatprep.subr.bf16.mxu0 0
    %4898 = vmatpush1.bf16.xpose.msra.mxu0 0
    %4899 = vmatprep.subr.bf16.mxu0 0
    %4900 = vmatpush1.bf16.xpose.msra.mxu0 0
    %4901 = vmatprep.subr.bf16.mxu0 0
    %4902 = vmatpush1.bf16.xpose.msra.mxu0 0
    %4903 = vmatprep.subr.bf16.mxu0 0
    %4904 = vmatpush1.bf16.xpose.msra.mxu0 0
    %4905 = vmatprep.subr.bf16.mxu0 0
    %4906 = vmatpush1.bf16.xpose.msra.mxu0 0
    %4907 = vmatprep.subr.bf16.mxu0 0
    %4908 = vmatpush1.bf16.xpose.msra.mxu0 0
    %4909 = vmatprep.subr.bf16.mxu0 0
    %4910 = vmatpush1.bf16.xpose.msra.mxu0 0
    %4911 = vmatprep.subr.bf16.mxu0 0
    %4912 = vmatpush1.bf16.xpose.msra.mxu0 0
    %4913 = vmatprep.subr.bf16.mxu0 0
    %4914 = vmatpush1.bf16.xpose.msra.mxu0 0
    %4915 = vmatprep.subr.bf16.mxu0 0
    %4916 = vmatpush1.bf16.xpose.msra.mxu0 0
    %4917 = vmatprep.subr.bf16.mxu0 0
    %4918 = vmatpush1.bf16.xpose.msra.mxu0 0
    %4919 = vmatprep.subr.bf16.mxu0 0
    %4920 = vmatpush1.bf16.xpose.msra.mxu0 0
    %4921 = vmatprep.mubr.bf16.mxu0 0
    %4922 = vmatmul.mubr.bf16.gmra.mrb[0].mxu0 %v4884
    %v4923 = vpop.f32.mrb[0].mxu0
    %v4924 = vadd.f32 %v414, %v4923
    %v4925 = vpop.f32.mrb[0].mxu0
    %v4926 = vpop.f32.mrb[0].mxu0
    %v4927 = vadd.f32 %v415, %v4926
    %v4928 = vpop.f32.mrb[0].mxu0
    %4929 = vdwg.mxu0
    %v4930 = vsel %vm2793, %v4924, -inf
    %4931 = vmax.xlane.f32.xlu0 %v4930
    %v4932 = vpop.xlane.xlu0 %4931
    %v4933 = vsel %vm2797, %v4927, -inf
    %4934 = vmax.xlane.f32.xlu0 %v4933
    %v4935 = vpop.xlane.xlu0 %4934
    %v4936 = vsub.f32 %v4924, %v4932
    %v4937 = vsub.f32 %v4927, %v4935
    %v4938 = vmul.f32 %v4936, 1.442695
    %v4939 = vpow.pop %v4938
    %v4940 = vmul.f32 %v4937, 1.442695
    %v4941 = vpow.pop %v4940
    %v4942 = vsel %vm2793, %v4939, 0.0
    %4943 = vadd.xlane.f32.xlu0 %v4942
    %v4944 = vpop.xlane.xlu0 %4943
    %v4945 = vsel %vm2797, %v4941, 0.0
    %4946 = vadd.xlane.f32.xlu0 %v4945
    %v4947 = vpop.xlane.xlu0 %4946
    %v4948 = vrcp.pop %v4944
    %v4949 = vrcp.pop %v4947
    %v4950 = vmul.f32 %v4939, %v4948
    %v4951 = vmul.f32 %v4941, %v4949
    %v4952 = vpack.c.bf16 %v4951, %v4950
    %4953 = vrot.lane.b32.xlu0 %v4635, 112
    %v4954 = vpop.permute.xlu0 %4953
    %v4956 = vsel %vm2793, %v4952, 0
    %v4959 = vsel %vm2821, %v4954, 0
    %4961 = vmatprep.subr.bf16.mxu0 0
    %4962 = vmatpush1.bf16.msra.mxu0 %v4959
    %4963 = vmatprep.subr.bf16.mxu0 0
    %4964 = vmatpush1.bf16.msra.mxu0 0
    %4965 = vmatprep.subr.bf16.mxu0 0
    %4966 = vmatpush1.bf16.msra.mxu0 0
    %4967 = vmatprep.subr.bf16.mxu0 0
    %4968 = vmatpush1.bf16.msra.mxu0 0
    %4969 = vmatprep.subr.bf16.mxu0 0
    %4970 = vmatpush1.bf16.msra.mxu0 0
    %4971 = vmatprep.subr.bf16.mxu0 0
    %4972 = vmatpush1.bf16.msra.mxu0 0
    %4973 = vmatprep.subr.bf16.mxu0 0
    %4974 = vmatpush1.bf16.msra.mxu0 0
    %4975 = vmatprep.subr.bf16.mxu0 0
    %4976 = vmatpush1.bf16.msra.mxu0 0
    %4977 = vmatprep.subr.bf16.mxu0 0
    %4978 = vmatpush1.bf16.msra.mxu0 0
    %4979 = vmatprep.subr.bf16.mxu0 0
    %4980 = vmatpush1.bf16.msra.mxu0 0
    %4981 = vmatprep.subr.bf16.mxu0 0
    %4982 = vmatpush1.bf16.msra.mxu0 0
    %4983 = vmatprep.subr.bf16.mxu0 0
    %4984 = vmatpush1.bf16.msra.mxu0 0
    %4985 = vmatprep.subr.bf16.mxu0 0
    %4986 = vmatpush1.bf16.msra.mxu0 0
    %4987 = vmatprep.subr.bf16.mxu0 0
    %4988 = vmatpush1.bf16.msra.mxu0 0
    %4989 = vmatprep.subr.bf16.mxu0 0
    %4990 = vmatpush1.bf16.msra.mxu0 0
    %4991 = vmatprep.subr.bf16.mxu0 0
    %4992 = vmatpush1.bf16.msra.mxu0 0
    %4993 = vmatprep.mubr.bf16.mxu0 0
    %4994 = vmatmul.mubr.bf16.gmra.mrb[0].mxu0 %v4956
    %v4995 = vpop.f32.mrb[0].mxu0
    %v4996 = vadd.f32 0.0, %v4995
    %v4997 = vpop.f32.mrb[0].mxu0
    %v4998 = vpop.f32.mrb[0].mxu0
    %v4999 = vadd.f32 0.0, %v4998
    %v5000 = vpop.f32.mrb[0].mxu0
    %5001 = vdwg.mxu0
    %5002 = vrot.lane.b32.xlu0 %v4633, 104
    %v5003 = vpop.permute.xlu0 %5002
    %5004 = vrot.lane.b32.xlu0 %v4634, 104
    %v5005 = vpop.permute.xlu0 %5004
    %v5007 = vsel %vm649, %v5003, 0
    %v5010 = vsel %vm649, %v5005, 0
    %5012 = vmatprep.subr.bf16.mxu0 0
    %5013 = vmatpush1.bf16.xpose.msra.mxu0 %v5010
    %5014 = vmatprep.subr.bf16.mxu0 0
    %5015 = vmatpush1.bf16.xpose.msra.mxu0 0
    %5016 = vmatprep.subr.bf16.mxu0 0
    %5017 = vmatpush1.bf16.xpose.msra.mxu0 0
    %5018 = vmatprep.subr.bf16.mxu0 0
    %5019 = vmatpush1.bf16.xpose.msra.mxu0 0
    %5020 = vmatprep.subr.bf16.mxu0 0
    %5021 = vmatpush1.bf16.xpose.msra.mxu0 0
    %5022 = vmatprep.subr.bf16.mxu0 0
    %5023 = vmatpush1.bf16.xpose.msra.mxu0 0
    %5024 = vmatprep.subr.bf16.mxu0 0
    %5025 = vmatpush1.bf16.xpose.msra.mxu0 0
    %5026 = vmatprep.subr.bf16.mxu0 0
    %5027 = vmatpush1.bf16.xpose.msra.mxu0 0
    %5028 = vmatprep.subr.bf16.mxu0 0
    %5029 = vmatpush1.bf16.xpose.msra.mxu0 0
    %5030 = vmatprep.subr.bf16.mxu0 0
    %5031 = vmatpush1.bf16.xpose.msra.mxu0 0
    %5032 = vmatprep.subr.bf16.mxu0 0
    %5033 = vmatpush1.bf16.xpose.msra.mxu0 0
    %5034 = vmatprep.subr.bf16.mxu0 0
    %5035 = vmatpush1.bf16.xpose.msra.mxu0 0
    %5036 = vmatprep.subr.bf16.mxu0 0
    %5037 = vmatpush1.bf16.xpose.msra.mxu0 0
    %5038 = vmatprep.subr.bf16.mxu0 0
    %5039 = vmatpush1.bf16.xpose.msra.mxu0 0
    %5040 = vmatprep.subr.bf16.mxu0 0
    %5041 = vmatpush1.bf16.xpose.msra.mxu0 0
    %5042 = vmatprep.subr.bf16.mxu0 0
    %5043 = vmatpush1.bf16.xpose.msra.mxu0 0
    %5044 = vmatprep.mubr.bf16.mxu0 0
    %5045 = vmatmul.mubr.bf16.gmra.mrb[0].mxu0 %v5007
    %v5046 = vpop.f32.mrb[0].mxu0
    %v5047 = vadd.f32 %v414, %v5046
    %v5048 = vpop.f32.mrb[0].mxu0
    %v5049 = vpop.f32.mrb[0].mxu0
    %v5050 = vadd.f32 %v415, %v5049
    %v5051 = vpop.f32.mrb[0].mxu0
    %5052 = vdwg.mxu0
    %v5053 = vsel %vm2793, %v5047, -inf
    %5054 = vmax.xlane.f32.xlu0 %v5053
    %v5055 = vpop.xlane.xlu0 %5054
    %v5056 = vsel %vm2797, %v5050, -inf
    %5057 = vmax.xlane.f32.xlu0 %v5056
    %v5058 = vpop.xlane.xlu0 %5057
    %v5059 = vsub.f32 %v5047, %v5055
    %v5060 = vsub.f32 %v5050, %v5058
    %v5061 = vmul.f32 %v5059, 1.442695
    %v5062 = vpow.pop %v5061
    %v5063 = vmul.f32 %v5060, 1.442695
    %v5064 = vpow.pop %v5063
    %v5065 = vsel %vm2793, %v5062, 0.0
    %5066 = vadd.xlane.f32.xlu0 %v5065
    %v5067 = vpop.xlane.xlu0 %5066
    %v5068 = vsel %vm2797, %v5064, 0.0
    %5069 = vadd.xlane.f32.xlu0 %v5068
    %v5070 = vpop.xlane.xlu0 %5069
    %v5071 = vrcp.pop %v5067
    %v5072 = vrcp.pop %v5070
    %v5073 = vmul.f32 %v5062, %v5071
    %v5074 = vmul.f32 %v5064, %v5072
    %v5075 = vpack.c.bf16 %v5074, %v5073
    %5076 = vrot.lane.b32.xlu0 %v4635, 104
    %v5077 = vpop.permute.xlu0 %5076
    %v5079 = vsel %vm2793, %v5075, 0
    %v5082 = vsel %vm2821, %v5077, 0
    %5084 = vmatprep.subr.bf16.mxu0 0
    %5085 = vmatpush1.bf16.msra.mxu0 %v5082
    %5086 = vmatprep.subr.bf16.mxu0 0
    %5087 = vmatpush1.bf16.msra.mxu0 0
    %5088 = vmatprep.subr.bf16.mxu0 0
    %5089 = vmatpush1.bf16.msra.mxu0 0
    %5090 = vmatprep.subr.bf16.mxu0 0
    %5091 = vmatpush1.bf16.msra.mxu0 0
    %5092 = vmatprep.subr.bf16.mxu0 0
    %5093 = vmatpush1.bf16.msra.mxu0 0
    %5094 = vmatprep.subr.bf16.mxu0 0
    %5095 = vmatpush1.bf16.msra.mxu0 0
    %5096 = vmatprep.subr.bf16.mxu0 0
    %5097 = vmatpush1.bf16.msra.mxu0 0
    %5098 = vmatprep.subr.bf16.mxu0 0
    %5099 = vmatpush1.bf16.msra.mxu0 0
    %5100 = vmatprep.subr.bf16.mxu0 0
    %5101 = vmatpush1.bf16.msra.mxu0 0
    %5102 = vmatprep.subr.bf16.mxu0 0
    %5103 = vmatpush1.bf16.msra.mxu0 0
    %5104 = vmatprep.subr.bf16.mxu0 0
    %5105 = vmatpush1.bf16.msra.mxu0 0
    %5106 = vmatprep.subr.bf16.mxu0 0
    %5107 = vmatpush1.bf16.msra.mxu0 0
    %5108 = vmatprep.subr.bf16.mxu0 0
    %5109 = vmatpush1.bf16.msra.mxu0 0
    %5110 = vmatprep.subr.bf16.mxu0 0
    %5111 = vmatpush1.bf16.msra.mxu0 0
    %5112 = vmatprep.subr.bf16.mxu0 0
    %5113 = vmatpush1.bf16.msra.mxu0 0
    %5114 = vmatprep.subr.bf16.mxu0 0
    %5115 = vmatpush1.bf16.msra.mxu0 0
    %5116 = vmatprep.mubr.bf16.mxu0 0
    %5117 = vmatmul.mubr.bf16.gmra.mrb[0].mxu0 %v5079
    %v5118 = vpop.f32.mrb[0].mxu0
    %v5119 = vadd.f32 0.0, %v5118
    %v5120 = vpop.f32.mrb[0].mxu0
    %v5121 = vpop.f32.mrb[0].mxu0
    %v5122 = vadd.f32 0.0, %v5121
    %v5123 = vpop.f32.mrb[0].mxu0
    %5124 = vdwg.mxu0
    %5127 = vrot.lane.b32.xlu0 %v4873, 8
    %v5128 = vpop.permute.xlu0 %5127
    %5129 = vrot.lane.b32.xlu0 %v4876, 8
    %v5130 = vpop.permute.xlu0 %5129
    %5135 = vrot.lane.b32.xlu0 %v4996, 16
    %v5136 = vpop.permute.xlu0 %5135
    %5137 = vrot.lane.b32.xlu0 %v4999, 16
    %v5138 = vpop.permute.xlu0 %5137
    %5143 = vrot.lane.b32.xlu0 %v5119, 24
    %v5144 = vpop.permute.xlu0 %5143
    %5145 = vrot.lane.b32.xlu0 %v5122, 24
    %v5146 = vpop.permute.xlu0 %5145
    %v5149 = vsel %vm649, %v4747, %v5128
    %v5150 = vsel %vm649, %v4750, %v5130
    %v5151 = vsel %vm697, %v5149, %v5136
    %v5152 = vsel %vm697, %v5150, %v5138
    %v5153 = vsel %vm1159, %v5151, %v5144
    %v5154 = vsel %vm1159, %v5152, %v5146
    %v5155 = vpack.c.bf16 %v5154, %v5153
    %v5157 = vlaneseq
    %v5158 = vshrl.u32 %v5157, 7
    %v5159 = vsub.s32 0, %v5158
    %v5160 = vrot.slane %v4393, %v5159
    %v5166 = vunpack.c.l.b16 %v4388
    %v5167 = vunpack.c.l.b16 %v4389
    %v5168 = vunpack.c.l.b16 %v4390
    %v5169 = vunpack.c.l.b16 %v4391
    %v5170 = vpack.c.b16 %v5167, %v5166
    %v5171 = vpack.c.b16 %v5169, %v5168
    %v5175 = vsel %vm483, %v5155, 0
    %5177 = vmatprep.subr.bf16.mxu0 0
    %5178 = vmatpush1.bf16.msra.mxu0 %v5170
    %5179 = vmatprep.subr.bf16.mxu0 0
    %5180 = vmatpush1.bf16.msra.mxu0 %v5171
    %5181 = vmatprep.subr.bf16.mxu0 0
    %5182 = vmatpush1.bf16.msra.mxu0 0
    %5183 = vmatprep.subr.bf16.mxu0 0
    %5184 = vmatpush1.bf16.msra.mxu0 0
    %5185 = vmatprep.subr.bf16.mxu0 0
    %5186 = vmatpush1.bf16.msra.mxu0 0
    %5187 = vmatprep.subr.bf16.mxu0 0
    %5188 = vmatpush1.bf16.msra.mxu0 0
    %5189 = vmatprep.subr.bf16.mxu0 0
    %5190 = vmatpush1.bf16.msra.mxu0 0
    %5191 = vmatprep.subr.bf16.mxu0 0
    %5192 = vmatpush1.bf16.msra.mxu0 0
    %5193 = vmatprep.subr.bf16.mxu0 0
    %5194 = vmatpush1.bf16.msra.mxu0 0
    %5195 = vmatprep.subr.bf16.mxu0 0
    %5196 = vmatpush1.bf16.msra.mxu0 0
    %5197 = vmatprep.subr.bf16.mxu0 0
    %5198 = vmatpush1.bf16.msra.mxu0 0
    %5199 = vmatprep.subr.bf16.mxu0 0
    %5200 = vmatpush1.bf16.msra.mxu0 0
    %5201 = vmatprep.subr.bf16.mxu0 0
    %5202 = vmatpush1.bf16.msra.mxu0 0
    %5203 = vmatprep.subr.bf16.mxu0 0
    %5204 = vmatpush1.bf16.msra.mxu0 0
    %5205 = vmatprep.subr.bf16.mxu0 0
    %5206 = vmatpush1.bf16.msra.mxu0 0
    %5207 = vmatprep.subr.bf16.mxu0 0
    %5208 = vmatpush1.bf16.msra.mxu0 0
    %5209 = vmatprep.mubr.bf16.mxu0 0
    %5210 = vmatmul.mubr.bf16.gmra.mrb[0].mxu0 %v5175
    %v5211 = vpop.f32.mrb[0].mxu0
    %v5212 = vadd.f32 %v5160, %v5211
    %v5213 = vpop.f32.mrb[0].mxu0
    %v5214 = vpop.f32.mrb[0].mxu0
    %v5215 = vadd.f32 %v5160, %v5214
    %v5216 = vpop.f32.mrb[0].mxu0
    %5217 = vdwg.mxu0
    %v5218 = vadd.f32 %v4364, %v5212
    %v5219 = vadd.f32 %v4365, %v5215
    %v5220 = vsel %vm483, %v5218, 0.0
    %5221 = vadd.xlane.f32.xlu0 %v5220
    %v5222 = vpop.xlane.xlu0 %5221
    %v5223 = vsel %vm3336, %v5219, 0.0
    %5224 = vadd.xlane.f32.xlu0 %v5223
    %v5225 = vpop.xlane.xlu0 %5224
    %v5226 = vmul.f32 %v5222, %v1233
    %v5227 = vmul.f32 %v5225, %v1233
    %v5228 = vsub.f32 %v5218, %v5226
    %v5229 = vsub.f32 %v5219, %v5227
    %v5230 = vmul.f32 %v5228, %v5228
    %v5231 = vmul.f32 %v5229, %v5229
    %v5232 = vsel %vm483, %v5230, 0.0
    %5233 = vadd.xlane.f32.xlu0 %v5232
    %v5234 = vpop.xlane.xlu0 %5233
    %v5235 = vsel %vm3336, %v5231, 0.0
    %5236 = vadd.xlane.f32.xlu0 %v5235
    %v5237 = vpop.xlane.xlu0 %5236
    %v5238 = vmul.f32 %v5234, %v1233
    %v5239 = vmul.f32 %v5237, %v1233
    %v5240 = vadd.f32 %v5238, 1e-05
    %v5241 = vadd.f32 %v5239, 1e-05
    %v5242 = vrsqrt.pop %v5240
    %v5243 = vrsqrt.pop %v5241
    %v5244 = vmul.f32 %v5228, %v5242
    %v5245 = vmul.f32 %v5229, %v5243
    %v5247 = vlaneseq
    %v5248 = vshrl.u32 %v5247, 7
    %v5249 = vsub.s32 0, %v5248
    %v5250 = vrot.slane %v4395, %v5249
    %v5252 = vmul.f32 %v5244, %v5250
    %v5253 = vmul.f32 %v5245, %v5250
    %v5255 = vlaneseq
    %v5256 = vshrl.u32 %v5255, 7
    %v5257 = vsub.s32 0, %v5256
    %v5258 = vrot.slane %v4397, %v5257
    %v5260 = vadd.f32 %v5252, %v5258
    %v5261 = vadd.f32 %v5253, %v5258
    %v5262 = vpack.c.bf16 %v5261, %v5260
    %v5264 = vlaneseq
    %v5265 = vshrl.u32 %v5264, 7
    %v5266 = vsub.s32 0, %v5265
    %v5267 = vrot.slane %v4414, %v5266
    %v5273 = vunpack.c.l.b16 %v4399
    %v5274 = vunpack.c.l.b16 %v4400
    %v5275 = vunpack.c.l.b16 %v4401
    %v5276 = vunpack.c.l.b16 %v4402
    %v5277 = vpack.c.b16 %v5274, %v5273
    %v5278 = vpack.c.b16 %v5276, %v5275
    %v5282 = vsel %vm483, %v5262, 0
    %5284 = vmatprep.subr.bf16.mxu0 0
    %5285 = vmatpush1.bf16.msra.mxu0 %v5277
    %5286 = vmatprep.subr.bf16.mxu0 0
    %5287 = vmatpush1.bf16.msra.mxu0 %v5278
    %5288 = vmatprep.subr.bf16.mxu0 0
    %5289 = vmatpush1.bf16.msra.mxu0 0
    %5290 = vmatprep.subr.bf16.mxu0 0
    %5291 = vmatpush1.bf16.msra.mxu0 0
    %5292 = vmatprep.subr.bf16.mxu0 0
    %5293 = vmatpush1.bf16.msra.mxu0 0
    %5294 = vmatprep.subr.bf16.mxu0 0
    %5295 = vmatpush1.bf16.msra.mxu0 0
    %5296 = vmatprep.subr.bf16.mxu0 0
    %5297 = vmatpush1.bf16.msra.mxu0 0
    %5298 = vmatprep.subr.bf16.mxu0 0
    %5299 = vmatpush1.bf16.msra.mxu0 0
    %5300 = vmatprep.subr.bf16.mxu0 0
    %5301 = vmatpush1.bf16.msra.mxu0 0
    %5302 = vmatprep.subr.bf16.mxu0 0
    %5303 = vmatpush1.bf16.msra.mxu0 0
    %5304 = vmatprep.subr.bf16.mxu0 0
    %5305 = vmatpush1.bf16.msra.mxu0 0
    %5306 = vmatprep.subr.bf16.mxu0 0
    %5307 = vmatpush1.bf16.msra.mxu0 0
    %5308 = vmatprep.subr.bf16.mxu0 0
    %5309 = vmatpush1.bf16.msra.mxu0 0
    %5310 = vmatprep.subr.bf16.mxu0 0
    %5311 = vmatpush1.bf16.msra.mxu0 0
    %5312 = vmatprep.subr.bf16.mxu0 0
    %5313 = vmatpush1.bf16.msra.mxu0 0
    %5314 = vmatprep.subr.bf16.mxu0 0
    %5315 = vmatpush1.bf16.msra.mxu0 0
    %5316 = vmatprep.mubr.bf16.mxu0 0
    %5317 = vmatmul.mubr.bf16.gmra.mrb[0].mxu0 %v5282
    %v5318 = vpop.f32.mrb[0].mxu0
    %v5319 = vadd.f32 %v5267, %v5318
    %v5320 = vpop.f32.mrb[0].mxu0
    %v5321 = vpop.f32.mrb[0].mxu0
    %v5322 = vadd.f32 %v5267, %v5321
    %v5323 = vpop.f32.mrb[0].mxu0
    %5324 = vdwg.mxu0
    %v5326 = vlaneseq
    %v5327 = vshrl.u32 %v5326, 7
    %v5328 = vsub.s32 0, %v5327
    %v5329 = vrot.slane %v4416, %v5328
    %v5335 = vunpack.c.l.b16 %v4404
    %v5336 = vunpack.c.l.b16 %v4405
    %v5337 = vunpack.c.l.b16 %v4406
    %v5338 = vunpack.c.l.b16 %v4407
    %v5339 = vpack.c.b16 %v5336, %v5335
    %v5340 = vpack.c.b16 %v5338, %v5337
    %5343 = vmatprep.subr.bf16.mxu0 0
    %5344 = vmatpush1.bf16.msra.mxu0 %v5339
    %5345 = vmatprep.subr.bf16.mxu0 0
    %5346 = vmatpush1.bf16.msra.mxu0 %v5340
    %5347 = vmatprep.subr.bf16.mxu0 0
    %5348 = vmatpush1.bf16.msra.mxu0 0
    %5349 = vmatprep.subr.bf16.mxu0 0
    %5350 = vmatpush1.bf16.msra.mxu0 0
    %5351 = vmatprep.subr.bf16.mxu0 0
    %5352 = vmatpush1.bf16.msra.mxu0 0
    %5353 = vmatprep.subr.bf16.mxu0 0
    %5354 = vmatpush1.bf16.msra.mxu0 0
    %5355 = vmatprep.subr.bf16.mxu0 0
    %5356 = vmatpush1.bf16.msra.mxu0 0
    %5357 = vmatprep.subr.bf16.mxu0 0
    %5358 = vmatpush1.bf16.msra.mxu0 0
    %5359 = vmatprep.subr.bf16.mxu0 0
    %5360 = vmatpush1.bf16.msra.mxu0 0
    %5361 = vmatprep.subr.bf16.mxu0 0
    %5362 = vmatpush1.bf16.msra.mxu0 0
    %5363 = vmatprep.subr.bf16.mxu0 0
    %5364 = vmatpush1.bf16.msra.mxu0 0
    %5365 = vmatprep.subr.bf16.mxu0 0
    %5366 = vmatpush1.bf16.msra.mxu0 0
    %5367 = vmatprep.subr.bf16.mxu0 0
    %5368 = vmatpush1.bf16.msra.mxu0 0
    %5369 = vmatprep.subr.bf16.mxu0 0
    %5370 = vmatpush1.bf16.msra.mxu0 0
    %5371 = vmatprep.subr.bf16.mxu0 0
    %5372 = vmatpush1.bf16.msra.mxu0 0
    %5373 = vmatprep.subr.bf16.mxu0 0
    %5374 = vmatpush1.bf16.msra.mxu0 0
    %5375 = vmatprep.mubr.bf16.mxu0 0
    %5376 = vmatmul.mubr.bf16.gmra.mrb[0].mxu0 %v3459
    %v5377 = vpop.f32.mrb[0].mxu0
    %v5378 = vadd.f32 %v5329, %v5377
    %v5379 = vpop.f32.mrb[0].mxu0
    %v5380 = vpop.f32.mrb[0].mxu0
    %v5381 = vadd.f32 %v5329, %v5380
    %v5382 = vpop.f32.mrb[0].mxu0
    %5383 = vdwg.mxu0
    %v5385 = vlaneseq
    %v5386 = vshrl.u32 %v5385, 7
    %v5387 = vsub.s32 0, %v5386
    %v5388 = vrot.slane %v4418, %v5387
    %v5394 = vunpack.c.l.b16 %v4409
    %v5395 = vunpack.c.l.b16 %v4410
    %v5396 = vunpack.c.l.b16 %v4411
    %v5397 = vunpack.c.l.b16 %v4412
    %v5398 = vpack.c.b16 %v5395, %v5394
    %v5399 = vpack.c.b16 %v5397, %v5396
    %5402 = vmatprep.subr.bf16.mxu0 0
    %5403 = vmatpush1.bf16.msra.mxu0 %v5398
    %5404 = vmatprep.subr.bf16.mxu0 0
    %5405 = vmatpush1.bf16.msra.mxu0 %v5399
    %5406 = vmatprep.subr.bf16.mxu0 0
    %5407 = vmatpush1.bf16.msra.mxu0 0
    %5408 = vmatprep.subr.bf16.mxu0 0
    %5409 = vmatpush1.bf16.msra.mxu0 0
    %5410 = vmatprep.subr.bf16.mxu0 0
    %5411 = vmatpush1.bf16.msra.mxu0 0
    %5412 = vmatprep.subr.bf16.mxu0 0
    %5413 = vmatpush1.bf16.msra.mxu0 0
    %5414 = vmatprep.subr.bf16.mxu0 0
    %5415 = vmatpush1.bf16.msra.mxu0 0
    %5416 = vmatprep.subr.bf16.mxu0 0
    %5417 = vmatpush1.bf16.msra.mxu0 0
    %5418 = vmatprep.subr.bf16.mxu0 0
    %5419 = vmatpush1.bf16.msra.mxu0 0
    %5420 = vmatprep.subr.bf16.mxu0 0
    %5421 = vmatpush1.bf16.msra.mxu0 0
    %5422 = vmatprep.subr.bf16.mxu0 0
    %5423 = vmatpush1.bf16.msra.mxu0 0
    %5424 = vmatprep.subr.bf16.mxu0 0
    %5425 = vmatpush1.bf16.msra.mxu0 0
    %5426 = vmatprep.subr.bf16.mxu0 0
    %5427 = vmatpush1.bf16.msra.mxu0 0
    %5428 = vmatprep.subr.bf16.mxu0 0
    %5429 = vmatpush1.bf16.msra.mxu0 0
    %5430 = vmatprep.subr.bf16.mxu0 0
    %5431 = vmatpush1.bf16.msra.mxu0 0
    %5432 = vmatprep.subr.bf16.mxu0 0
    %5433 = vmatpush1.bf16.msra.mxu0 0
    %5434 = vmatprep.mubr.bf16.mxu0 0
    %5435 = vmatmul.mubr.bf16.gmra.mrb[0].mxu0 %v3459
    %v5436 = vpop.f32.mrb[0].mxu0
    %v5437 = vadd.f32 %v5388, %v5436
    %v5438 = vpop.f32.mrb[0].mxu0
    %v5439 = vpop.f32.mrb[0].mxu0
    %v5440 = vadd.f32 %v5388, %v5439
    %v5441 = vpop.f32.mrb[0].mxu0
    %5442 = vdwg.mxu0
    %v5443 = vpack.c.bf16 %v5322, %v5319
    %v5444 = vpack.c.bf16 %v5381, %v5378
    %v5445 = vpack.c.bf16 %v5440, %v5437
    %v5447 = vsel %vm649, %v5443, 0
    %v5450 = vsel %vm649, %v5444, 0
    %5452 = vmatprep.subr.bf16.mxu0 0
    %5453 = vmatpush1.bf16.xpose.msra.mxu0 %v5450
    %5454 = vmatprep.subr.bf16.mxu0 0
    %5455 = vmatpush1.bf16.xpose.msra.mxu0 0
    %5456 = vmatprep.subr.bf16.mxu0 0
    %5457 = vmatpush1.bf16.xpose.msra.mxu0 0
    %5458 = vmatprep.subr.bf16.mxu0 0
    %5459 = vmatpush1.bf16.xpose.msra.mxu0 0
    %5460 = vmatprep.subr.bf16.mxu0 0
    %5461 = vmatpush1.bf16.xpose.msra.mxu0 0
    %5462 = vmatprep.subr.bf16.mxu0 0
    %5463 = vmatpush1.bf16.xpose.msra.mxu0 0
    %5464 = vmatprep.subr.bf16.mxu0 0
    %5465 = vmatpush1.bf16.xpose.msra.mxu0 0
    %5466 = vmatprep.subr.bf16.mxu0 0
    %5467 = vmatpush1.bf16.xpose.msra.mxu0 0
    %5468 = vmatprep.subr.bf16.mxu0 0
    %5469 = vmatpush1.bf16.xpose.msra.mxu0 0
    %5470 = vmatprep.subr.bf16.mxu0 0
    %5471 = vmatpush1.bf16.xpose.msra.mxu0 0
    %5472 = vmatprep.subr.bf16.mxu0 0
    %5473 = vmatpush1.bf16.xpose.msra.mxu0 0
    %5474 = vmatprep.subr.bf16.mxu0 0
    %5475 = vmatpush1.bf16.xpose.msra.mxu0 0
    %5476 = vmatprep.subr.bf16.mxu0 0
    %5477 = vmatpush1.bf16.xpose.msra.mxu0 0
    %5478 = vmatprep.subr.bf16.mxu0 0
    %5479 = vmatpush1.bf16.xpose.msra.mxu0 0
    %5480 = vmatprep.subr.bf16.mxu0 0
    %5481 = vmatpush1.bf16.xpose.msra.mxu0 0
    %5482 = vmatprep.subr.bf16.mxu0 0
    %5483 = vmatpush1.bf16.xpose.msra.mxu0 0
    %5484 = vmatprep.mubr.bf16.mxu0 0
    %5485 = vmatmul.mubr.bf16.gmra.mrb[0].mxu0 %v5447
    %v5486 = vpop.f32.mrb[0].mxu0
    %v5487 = vadd.f32 %v416, %v5486
    %v5488 = vpop.f32.mrb[0].mxu0
    %v5489 = vpop.f32.mrb[0].mxu0
    %v5490 = vadd.f32 %v417, %v5489
    %v5491 = vpop.f32.mrb[0].mxu0
    %5492 = vdwg.mxu0
    %v5493 = vsel %vm697, %v5487, -inf
    %5494 = vmax.xlane.f32.xlu0 %v5493
    %v5495 = vpop.xlane.xlu0 %5494
    %v5496 = vsel %vm3614, %v5490, -inf
    %5497 = vmax.xlane.f32.xlu0 %v5496
    %v5498 = vpop.xlane.xlu0 %5497
    %v5499 = vsub.f32 %v5487, %v5495
    %v5500 = vsub.f32 %v5490, %v5498
    %v5501 = vmul.f32 %v5499, 1.442695
    %v5502 = vpow.pop %v5501
    %v5503 = vmul.f32 %v5500, 1.442695
    %v5504 = vpow.pop %v5503
    %v5505 = vsel %vm697, %v5502, 0.0
    %5506 = vadd.xlane.f32.xlu0 %v5505
    %v5507 = vpop.xlane.xlu0 %5506
    %v5508 = vsel %vm3614, %v5504, 0.0
    %5509 = vadd.xlane.f32.xlu0 %v5508
    %v5510 = vpop.xlane.xlu0 %5509
    %v5511 = vrcp.pop %v5507
    %v5512 = vrcp.pop %v5510
    %v5513 = vmul.f32 %v5502, %v5511
    %v5514 = vmul.f32 %v5504, %v5512
    %v5515 = vpack.c.bf16 %v5514, %v5513
    %v5517 = vsel %vm697, %v5515, 0
    %5519 = vmatprep.subr.bf16.mxu0 0
    %5520 = vmatpush1.bf16.msra.mxu0 %v5445
    %5521 = vmatprep.subr.bf16.mxu0 0
    %5522 = vmatpush1.bf16.msra.mxu0 0
    %5523 = vmatprep.subr.bf16.mxu0 0
    %5524 = vmatpush1.bf16.msra.mxu0 0
    %5525 = vmatprep.subr.bf16.mxu0 0
    %5526 = vmatpush1.bf16.msra.mxu0 0
    %5527 = vmatprep.subr.bf16.mxu0 0
    %5528 = vmatpush1.bf16.msra.mxu0 0
    %5529 = vmatprep.subr.bf16.mxu0 0
    %5530 = vmatpush1.bf16.msra.mxu0 0
    %5531 = vmatprep.subr.bf16.mxu0 0
    %5532 = vmatpush1.bf16.msra.mxu0 0
    %5533 = vmatprep.subr.bf16.mxu0 0
    %5534 = vmatpush1.bf16.msra.mxu0 0
    %5535 = vmatprep.subr.bf16.mxu0 0
    %5536 = vmatpush1.bf16.msra.mxu0 0
    %5537 = vmatprep.subr.bf16.mxu0 0
    %5538 = vmatpush1.bf16.msra.mxu0 0
    %5539 = vmatprep.subr.bf16.mxu0 0
    %5540 = vmatpush1.bf16.msra.mxu0 0
    %5541 = vmatprep.subr.bf16.mxu0 0
    %5542 = vmatpush1.bf16.msra.mxu0 0
    %5543 = vmatprep.subr.bf16.mxu0 0
    %5544 = vmatpush1.bf16.msra.mxu0 0
    %5545 = vmatprep.subr.bf16.mxu0 0
    %5546 = vmatpush1.bf16.msra.mxu0 0
    %5547 = vmatprep.subr.bf16.mxu0 0
    %5548 = vmatpush1.bf16.msra.mxu0 0
    %5549 = vmatprep.subr.bf16.mxu0 0
    %5550 = vmatpush1.bf16.msra.mxu0 0
    %5551 = vmatprep.mubr.bf16.mxu0 0
    %5552 = vmatmul.mubr.bf16.gmra.mrb[0].mxu0 %v5517
    %v5553 = vpop.f32.mrb[0].mxu0
    %v5554 = vadd.f32 0.0, %v5553
    %v5555 = vpop.f32.mrb[0].mxu0
    %v5556 = vpop.f32.mrb[0].mxu0
    %v5557 = vadd.f32 0.0, %v5556
    %v5558 = vpop.f32.mrb[0].mxu0
    %5559 = vdwg.mxu0
    %5561 = vrot.lane.b32.xlu0 %v5443, 120
    %v5562 = vpop.permute.xlu0 %5561
    %5564 = vrot.lane.b32.xlu0 %v5444, 120
    %v5565 = vpop.permute.xlu0 %5564
    %v5567 = vsel %vm649, %v5562, 0
    %v5570 = vsel %vm649, %v5565, 0
    %5572 = vmatprep.subr.bf16.mxu0 0
    %5573 = vmatpush1.bf16.xpose.msra.mxu0 %v5570
    %5574 = vmatprep.subr.bf16.mxu0 0
    %5575 = vmatpush1.bf16.xpose.msra.mxu0 0
    %5576 = vmatprep.subr.bf16.mxu0 0
    %5577 = vmatpush1.bf16.xpose.msra.mxu0 0
    %5578 = vmatprep.subr.bf16.mxu0 0
    %5579 = vmatpush1.bf16.xpose.msra.mxu0 0
    %5580 = vmatprep.subr.bf16.mxu0 0
    %5581 = vmatpush1.bf16.xpose.msra.mxu0 0
    %5582 = vmatprep.subr.bf16.mxu0 0
    %5583 = vmatpush1.bf16.xpose.msra.mxu0 0
    %5584 = vmatprep.subr.bf16.mxu0 0
    %5585 = vmatpush1.bf16.xpose.msra.mxu0 0
    %5586 = vmatprep.subr.bf16.mxu0 0
    %5587 = vmatpush1.bf16.xpose.msra.mxu0 0
    %5588 = vmatprep.subr.bf16.mxu0 0
    %5589 = vmatpush1.bf16.xpose.msra.mxu0 0
    %5590 = vmatprep.subr.bf16.mxu0 0
    %5591 = vmatpush1.bf16.xpose.msra.mxu0 0
    %5592 = vmatprep.subr.bf16.mxu0 0
    %5593 = vmatpush1.bf16.xpose.msra.mxu0 0
    %5594 = vmatprep.subr.bf16.mxu0 0
    %5595 = vmatpush1.bf16.xpose.msra.mxu0 0
    %5596 = vmatprep.subr.bf16.mxu0 0
    %5597 = vmatpush1.bf16.xpose.msra.mxu0 0
    %5598 = vmatprep.subr.bf16.mxu0 0
    %5599 = vmatpush1.bf16.xpose.msra.mxu0 0
    %5600 = vmatprep.subr.bf16.mxu0 0
    %5601 = vmatpush1.bf16.xpose.msra.mxu0 0
    %5602 = vmatprep.subr.bf16.mxu0 0
    %5603 = vmatpush1.bf16.xpose.msra.mxu0 0
    %5604 = vmatprep.mubr.bf16.mxu0 0
    %5605 = vmatmul.mubr.bf16.gmra.mrb[0].mxu0 %v5567
    %v5606 = vpop.f32.mrb[0].mxu0
    %v5607 = vadd.f32 %v416, %v5606
    %v5608 = vpop.f32.mrb[0].mxu0
    %v5609 = vpop.f32.mrb[0].mxu0
    %v5610 = vadd.f32 %v417, %v5609
    %v5611 = vpop.f32.mrb[0].mxu0
    %5612 = vdwg.mxu0
    %v5613 = vsel %vm697, %v5607, -inf
    %5614 = vmax.xlane.f32.xlu0 %v5613
    %v5615 = vpop.xlane.xlu0 %5614
    %v5616 = vsel %vm3614, %v5610, -inf
    %5617 = vmax.xlane.f32.xlu0 %v5616
    %v5618 = vpop.xlane.xlu0 %5617
    %v5619 = vsub.f32 %v5607, %v5615
    %v5620 = vsub.f32 %v5610, %v5618
    %v5621 = vmul.f32 %v5619, 1.442695
    %v5622 = vpow.pop %v5621
    %v5623 = vmul.f32 %v5620, 1.442695
    %v5624 = vpow.pop %v5623
    %v5625 = vsel %vm697, %v5622, 0.0
    %5626 = vadd.xlane.f32.xlu0 %v5625
    %v5627 = vpop.xlane.xlu0 %5626
    %v5628 = vsel %vm3614, %v5624, 0.0
    %5629 = vadd.xlane.f32.xlu0 %v5628
    %v5630 = vpop.xlane.xlu0 %5629
    %v5631 = vrcp.pop %v5627
    %v5632 = vrcp.pop %v5630
    %v5633 = vmul.f32 %v5622, %v5631
    %v5634 = vmul.f32 %v5624, %v5632
    %v5635 = vpack.c.bf16 %v5634, %v5633
    %5637 = vrot.lane.b32.xlu0 %v5445, 120
    %v5638 = vpop.permute.xlu0 %5637
    %v5641 = vsel %vm697, %v5635, 0
    %5643 = vmatprep.subr.bf16.mxu0 0
    %5644 = vmatpush1.bf16.msra.mxu0 %v5638
    %5645 = vmatprep.subr.bf16.mxu0 0
    %5646 = vmatpush1.bf16.msra.mxu0 0
    %5647 = vmatprep.subr.bf16.mxu0 0
    %5648 = vmatpush1.bf16.msra.mxu0 0
    %5649 = vmatprep.subr.bf16.mxu0 0
    %5650 = vmatpush1.bf16.msra.mxu0 0
    %5651 = vmatprep.subr.bf16.mxu0 0
    %5652 = vmatpush1.bf16.msra.mxu0 0
    %5653 = vmatprep.subr.bf16.mxu0 0
    %5654 = vmatpush1.bf16.msra.mxu0 0
    %5655 = vmatprep.subr.bf16.mxu0 0
    %5656 = vmatpush1.bf16.msra.mxu0 0
    %5657 = vmatprep.subr.bf16.mxu0 0
    %5658 = vmatpush1.bf16.msra.mxu0 0
    %5659 = vmatprep.subr.bf16.mxu0 0
    %5660 = vmatpush1.bf16.msra.mxu0 0
    %5661 = vmatprep.subr.bf16.mxu0 0
    %5662 = vmatpush1.bf16.msra.mxu0 0
    %5663 = vmatprep.subr.bf16.mxu0 0
    %5664 = vmatpush1.bf16.msra.mxu0 0
    %5665 = vmatprep.subr.bf16.mxu0 0
    %5666 = vmatpush1.bf16.msra.mxu0 0
    %5667 = vmatprep.subr.bf16.mxu0 0
    %5668 = vmatpush1.bf16.msra.mxu0 0
    %5669 = vmatprep.subr.bf16.mxu0 0
    %5670 = vmatpush1.bf16.msra.mxu0 0
    %5671 = vmatprep.subr.bf16.mxu0 0
    %5672 = vmatpush1.bf16.msra.mxu0 0
    %5673 = vmatprep.subr.bf16.mxu0 0
    %5674 = vmatpush1.bf16.msra.mxu0 0
    %5675 = vmatprep.mubr.bf16.mxu0 0
    %5676 = vmatmul.mubr.bf16.gmra.mrb[0].mxu0 %v5641
    %v5677 = vpop.f32.mrb[0].mxu0
    %v5678 = vadd.f32 0.0, %v5677
    %v5679 = vpop.f32.mrb[0].mxu0
    %v5680 = vpop.f32.mrb[0].mxu0
    %v5681 = vadd.f32 0.0, %v5680
    %v5682 = vpop.f32.mrb[0].mxu0
    %5683 = vdwg.mxu0
    %5684 = vrot.lane.b32.xlu0 %v5443, 112
    %v5685 = vpop.permute.xlu0 %5684
    %5686 = vrot.lane.b32.xlu0 %v5444, 112
    %v5687 = vpop.permute.xlu0 %5686
    %v5689 = vsel %vm649, %v5685, 0
    %v5692 = vsel %vm649, %v5687, 0
    %5694 = vmatprep.subr.bf16.mxu0 0
    %5695 = vmatpush1.bf16.xpose.msra.mxu0 %v5692
    %5696 = vmatprep.subr.bf16.mxu0 0
    %5697 = vmatpush1.bf16.xpose.msra.mxu0 0
    %5698 = vmatprep.subr.bf16.mxu0 0
    %5699 = vmatpush1.bf16.xpose.msra.mxu0 0
    %5700 = vmatprep.subr.bf16.mxu0 0
    %5701 = vmatpush1.bf16.xpose.msra.mxu0 0
    %5702 = vmatprep.subr.bf16.mxu0 0
    %5703 = vmatpush1.bf16.xpose.msra.mxu0 0
    %5704 = vmatprep.subr.bf16.mxu0 0
    %5705 = vmatpush1.bf16.xpose.msra.mxu0 0
    %5706 = vmatprep.subr.bf16.mxu0 0
    %5707 = vmatpush1.bf16.xpose.msra.mxu0 0
    %5708 = vmatprep.subr.bf16.mxu0 0
    %5709 = vmatpush1.bf16.xpose.msra.mxu0 0
    %5710 = vmatprep.subr.bf16.mxu0 0
    %5711 = vmatpush1.bf16.xpose.msra.mxu0 0
    %5712 = vmatprep.subr.bf16.mxu0 0
    %5713 = vmatpush1.bf16.xpose.msra.mxu0 0
    %5714 = vmatprep.subr.bf16.mxu0 0
    %5715 = vmatpush1.bf16.xpose.msra.mxu0 0
    %5716 = vmatprep.subr.bf16.mxu0 0
    %5717 = vmatpush1.bf16.xpose.msra.mxu0 0
    %5718 = vmatprep.subr.bf16.mxu0 0
    %5719 = vmatpush1.bf16.xpose.msra.mxu0 0
    %5720 = vmatprep.subr.bf16.mxu0 0
    %5721 = vmatpush1.bf16.xpose.msra.mxu0 0
    %5722 = vmatprep.subr.bf16.mxu0 0
    %5723 = vmatpush1.bf16.xpose.msra.mxu0 0
    %5724 = vmatprep.subr.bf16.mxu0 0
    %5725 = vmatpush1.bf16.xpose.msra.mxu0 0
    %5726 = vmatprep.mubr.bf16.mxu0 0
    %5727 = vmatmul.mubr.bf16.gmra.mrb[0].mxu0 %v5689
    %v5728 = vpop.f32.mrb[0].mxu0
    %v5729 = vadd.f32 %v416, %v5728
    %v5730 = vpop.f32.mrb[0].mxu0
    %v5731 = vpop.f32.mrb[0].mxu0
    %v5732 = vadd.f32 %v417, %v5731
    %v5733 = vpop.f32.mrb[0].mxu0
    %5734 = vdwg.mxu0
    %v5735 = vsel %vm697, %v5729, -inf
    %5736 = vmax.xlane.f32.xlu0 %v5735
    %v5737 = vpop.xlane.xlu0 %5736
    %v5738 = vsel %vm3614, %v5732, -inf
    %5739 = vmax.xlane.f32.xlu0 %v5738
    %v5740 = vpop.xlane.xlu0 %5739
    %v5741 = vsub.f32 %v5729, %v5737
    %v5742 = vsub.f32 %v5732, %v5740
    %v5743 = vmul.f32 %v5741, 1.442695
    %v5744 = vpow.pop %v5743
    %v5745 = vmul.f32 %v5742, 1.442695
    %v5746 = vpow.pop %v5745
    %v5747 = vsel %vm697, %v5744, 0.0
    %5748 = vadd.xlane.f32.xlu0 %v5747
    %v5749 = vpop.xlane.xlu0 %5748
    %v5750 = vsel %vm3614, %v5746, 0.0
    %5751 = vadd.xlane.f32.xlu0 %v5750
    %v5752 = vpop.xlane.xlu0 %5751
    %v5753 = vrcp.pop %v5749
    %v5754 = vrcp.pop %v5752
    %v5755 = vmul.f32 %v5744, %v5753
    %v5756 = vmul.f32 %v5746, %v5754
    %v5757 = vpack.c.bf16 %v5756, %v5755
    %5758 = vrot.lane.b32.xlu0 %v5445, 112
    %v5759 = vpop.permute.xlu0 %5758
    %v5762 = vsel %vm697, %v5757, 0
    %5764 = vmatprep.subr.bf16.mxu0 0
    %5765 = vmatpush1.bf16.msra.mxu0 %v5759
    %5766 = vmatprep.subr.bf16.mxu0 0
    %5767 = vmatpush1.bf16.msra.mxu0 0
    %5768 = vmatprep.subr.bf16.mxu0 0
    %5769 = vmatpush1.bf16.msra.mxu0 0
    %5770 = vmatprep.subr.bf16.mxu0 0
    %5771 = vmatpush1.bf16.msra.mxu0 0
    %5772 = vmatprep.subr.bf16.mxu0 0
    %5773 = vmatpush1.bf16.msra.mxu0 0
    %5774 = vmatprep.subr.bf16.mxu0 0
    %5775 = vmatpush1.bf16.msra.mxu0 0
    %5776 = vmatprep.subr.bf16.mxu0 0
    %5777 = vmatpush1.bf16.msra.mxu0 0
    %5778 = vmatprep.subr.bf16.mxu0 0
    %5779 = vmatpush1.bf16.msra.mxu0 0
    %5780 = vmatprep.subr.bf16.mxu0 0
    %5781 = vmatpush1.bf16.msra.mxu0 0
    %5782 = vmatprep.subr.bf16.mxu0 0
    %5783 = vmatpush1.bf16.msra.mxu0 0
    %5784 = vmatprep.subr.bf16.mxu0 0
    %5785 = vmatpush1.bf16.msra.mxu0 0
    %5786 = vmatprep.subr.bf16.mxu0 0
    %5787 = vmatpush1.bf16.msra.mxu0 0
    %5788 = vmatprep.subr.bf16.mxu0 0
    %5789 = vmatpush1.bf16.msra.mxu0 0
    %5790 = vmatprep.subr.bf16.mxu0 0
    %5791 = vmatpush1.bf16.msra.mxu0 0
    %5792 = vmatprep.subr.bf16.mxu0 0
    %5793 = vmatpush1.bf16.msra.mxu0 0
    %5794 = vmatprep.subr.bf16.mxu0 0
    %5795 = vmatpush1.bf16.msra.mxu0 0
    %5796 = vmatprep.mubr.bf16.mxu0 0
    %5797 = vmatmul.mubr.bf16.gmra.mrb[0].mxu0 %v5762
    %v5798 = vpop.f32.mrb[0].mxu0
    %v5799 = vadd.f32 0.0, %v5798
    %v5800 = vpop.f32.mrb[0].mxu0
    %v5801 = vpop.f32.mrb[0].mxu0
    %v5802 = vadd.f32 0.0, %v5801
    %v5803 = vpop.f32.mrb[0].mxu0
    %5804 = vdwg.mxu0
    %5805 = vrot.lane.b32.xlu0 %v5443, 104
    %v5806 = vpop.permute.xlu0 %5805
    %5807 = vrot.lane.b32.xlu0 %v5444, 104
    %v5808 = vpop.permute.xlu0 %5807
    %v5810 = vsel %vm649, %v5806, 0
    %v5813 = vsel %vm649, %v5808, 0
    %5815 = vmatprep.subr.bf16.mxu0 0
    %5816 = vmatpush1.bf16.xpose.msra.mxu0 %v5813
    %5817 = vmatprep.subr.bf16.mxu0 0
    %5818 = vmatpush1.bf16.xpose.msra.mxu0 0
    %5819 = vmatprep.subr.bf16.mxu0 0
    %5820 = vmatpush1.bf16.xpose.msra.mxu0 0
    %5821 = vmatprep.subr.bf16.mxu0 0
    %5822 = vmatpush1.bf16.xpose.msra.mxu0 0
    %5823 = vmatprep.subr.bf16.mxu0 0
    %5824 = vmatpush1.bf16.xpose.msra.mxu0 0
    %5825 = vmatprep.subr.bf16.mxu0 0
    %5826 = vmatpush1.bf16.xpose.msra.mxu0 0
    %5827 = vmatprep.subr.bf16.mxu0 0
    %5828 = vmatpush1.bf16.xpose.msra.mxu0 0
    %5829 = vmatprep.subr.bf16.mxu0 0
    %5830 = vmatpush1.bf16.xpose.msra.mxu0 0
    %5831 = vmatprep.subr.bf16.mxu0 0
    %5832 = vmatpush1.bf16.xpose.msra.mxu0 0
    %5833 = vmatprep.subr.bf16.mxu0 0
    %5834 = vmatpush1.bf16.xpose.msra.mxu0 0
    %5835 = vmatprep.subr.bf16.mxu0 0
    %5836 = vmatpush1.bf16.xpose.msra.mxu0 0
    %5837 = vmatprep.subr.bf16.mxu0 0
    %5838 = vmatpush1.bf16.xpose.msra.mxu0 0
    %5839 = vmatprep.subr.bf16.mxu0 0
    %5840 = vmatpush1.bf16.xpose.msra.mxu0 0
    %5841 = vmatprep.subr.bf16.mxu0 0
    %5842 = vmatpush1.bf16.xpose.msra.mxu0 0
    %5843 = vmatprep.subr.bf16.mxu0 0
    %5844 = vmatpush1.bf16.xpose.msra.mxu0 0
    %5845 = vmatprep.subr.bf16.mxu0 0
    %5846 = vmatpush1.bf16.xpose.msra.mxu0 0
    %5847 = vmatprep.mubr.bf16.mxu0 0
    %5848 = vmatmul.mubr.bf16.gmra.mrb[0].mxu0 %v5810
    %v5849 = vpop.f32.mrb[0].mxu0
    %v5850 = vadd.f32 %v416, %v5849
    %v5851 = vpop.f32.mrb[0].mxu0
    %v5852 = vpop.f32.mrb[0].mxu0
    %v5853 = vadd.f32 %v417, %v5852
    %v5854 = vpop.f32.mrb[0].mxu0
    %5855 = vdwg.mxu0
    %v5856 = vsel %vm697, %v5850, -inf
    %5857 = vmax.xlane.f32.xlu0 %v5856
    %v5858 = vpop.xlane.xlu0 %5857
    %v5859 = vsel %vm3614, %v5853, -inf
    %5860 = vmax.xlane.f32.xlu0 %v5859
    %v5861 = vpop.xlane.xlu0 %5860
    %v5862 = vsub.f32 %v5850, %v5858
    %v5863 = vsub.f32 %v5853, %v5861
    %v5864 = vmul.f32 %v5862, 1.442695
    %v5865 = vpow.pop %v5864
    %v5866 = vmul.f32 %v5863, 1.442695
    %v5867 = vpow.pop %v5866
    %v5868 = vsel %vm697, %v5865, 0.0
    %5869 = vadd.xlane.f32.xlu0 %v5868
    %v5870 = vpop.xlane.xlu0 %5869
    %v5871 = vsel %vm3614, %v5867, 0.0
    %5872 = vadd.xlane.f32.xlu0 %v5871
    %v5873 = vpop.xlane.xlu0 %5872
    %v5874 = vrcp.pop %v5870
    %v5875 = vrcp.pop %v5873
    %v5876 = vmul.f32 %v5865, %v5874
    %v5877 = vmul.f32 %v5867, %v5875
    %v5878 = vpack.c.bf16 %v5877, %v5876
    %5879 = vrot.lane.b32.xlu0 %v5445, 104
    %v5880 = vpop.permute.xlu0 %5879
    %v5883 = vsel %vm697, %v5878, 0
    %5885 = vmatprep.subr.bf16.mxu0 0
    %5886 = vmatpush1.bf16.msra.mxu0 %v5880
    %5887 = vmatprep.subr.bf16.mxu0 0
    %5888 = vmatpush1.bf16.msra.mxu0 0
    %5889 = vmatprep.subr.bf16.mxu0 0
    %5890 = vmatpush1.bf16.msra.mxu0 0
    %5891 = vmatprep.subr.bf16.mxu0 0
    %5892 = vmatpush1.bf16.msra.mxu0 0
    %5893 = vmatprep.subr.bf16.mxu0 0
    %5894 = vmatpush1.bf16.msra.mxu0 0
    %5895 = vmatprep.subr.bf16.mxu0 0
    %5896 = vmatpush1.bf16.msra.mxu0 0
    %5897 = vmatprep.subr.bf16.mxu0 0
    %5898 = vmatpush1.bf16.msra.mxu0 0
    %5899 = vmatprep.subr.bf16.mxu0 0
    %5900 = vmatpush1.bf16.msra.mxu0 0
    %5901 = vmatprep.subr.bf16.mxu0 0
    %5902 = vmatpush1.bf16.msra.mxu0 0
    %5903 = vmatprep.subr.bf16.mxu0 0
    %5904 = vmatpush1.bf16.msra.mxu0 0
    %5905 = vmatprep.subr.bf16.mxu0 0
    %5906 = vmatpush1.bf16.msra.mxu0 0
    %5907 = vmatprep.subr.bf16.mxu0 0
    %5908 = vmatpush1.bf16.msra.mxu0 0
    %5909 = vmatprep.subr.bf16.mxu0 0
    %5910 = vmatpush1.bf16.msra.mxu0 0
    %5911 = vmatprep.subr.bf16.mxu0 0
    %5912 = vmatpush1.bf16.msra.mxu0 0
    %5913 = vmatprep.subr.bf16.mxu0 0
    %5914 = vmatpush1.bf16.msra.mxu0 0
    %5915 = vmatprep.subr.bf16.mxu0 0
    %5916 = vmatpush1.bf16.msra.mxu0 0
    %5917 = vmatprep.mubr.bf16.mxu0 0
    %5918 = vmatmul.mubr.bf16.gmra.mrb[0].mxu0 %v5883
    %v5919 = vpop.f32.mrb[0].mxu0
    %v5920 = vadd.f32 0.0, %v5919
    %v5921 = vpop.f32.mrb[0].mxu0
    %v5922 = vpop.f32.mrb[0].mxu0
    %v5923 = vadd.f32 0.0, %v5922
    %v5924 = vpop.f32.mrb[0].mxu0
    %5925 = vdwg.mxu0
    %5928 = vrot.lane.b32.xlu0 %v5678, 8
    %v5929 = vpop.permute.xlu0 %5928
    %5930 = vrot.lane.b32.xlu0 %v5681, 8
    %v5931 = vpop.permute.xlu0 %5930
    %5936 = vrot.lane.b32.xlu0 %v5799, 16
    %v5937 = vpop.permute.xlu0 %5936
    %5938 = vrot.lane.b32.xlu0 %v5802, 16
    %v5939 = vpop.permute.xlu0 %5938
    %5944 = vrot.lane.b32.xlu0 %v5920, 24
    %v5945 = vpop.permute.xlu0 %5944
    %5946 = vrot.lane.b32.xlu0 %v5923, 24
    %v5947 = vpop.permute.xlu0 %5946
    %v5950 = vsel %vm649, %v5554, %v5929
    %v5951 = vsel %vm649, %v5557, %v5931
    %v5952 = vsel %vm697, %v5950, %v5937
    %v5953 = vsel %vm697, %v5951, %v5939
    %v5954 = vsel %vm1159, %v5952, %v5945
    %v5955 = vsel %vm1159, %v5953, %v5947
    %v5956 = vpack.c.bf16 %v5955, %v5954
    %v5958 = vlaneseq
    %v5959 = vshrl.u32 %v5958, 7
    %v5960 = vsub.s32 0, %v5959
    %v5961 = vrot.slane %v4425, %v5960
    %v5967 = vunpack.c.l.b16 %v4420
    %v5968 = vunpack.c.l.b16 %v4421
    %v5969 = vunpack.c.l.b16 %v4422
    %v5970 = vunpack.c.l.b16 %v4423
    %v5971 = vpack.c.b16 %v5968, %v5967
    %v5972 = vpack.c.b16 %v5970, %v5969
    %v5976 = vsel %vm483, %v5956, 0
    %5978 = vmatprep.subr.bf16.mxu0 0
    %5979 = vmatpush1.bf16.msra.mxu0 %v5971
    %5980 = vmatprep.subr.bf16.mxu0 0
    %5981 = vmatpush1.bf16.msra.mxu0 %v5972
    %5982 = vmatprep.subr.bf16.mxu0 0
    %5983 = vmatpush1.bf16.msra.mxu0 0
    %5984 = vmatprep.subr.bf16.mxu0 0
    %5985 = vmatpush1.bf16.msra.mxu0 0
    %5986 = vmatprep.subr.bf16.mxu0 0
    %5987 = vmatpush1.bf16.msra.mxu0 0
    %5988 = vmatprep.subr.bf16.mxu0 0
    %5989 = vmatpush1.bf16.msra.mxu0 0
    %5990 = vmatprep.subr.bf16.mxu0 0
    %5991 = vmatpush1.bf16.msra.mxu0 0
    %5992 = vmatprep.subr.bf16.mxu0 0
    %5993 = vmatpush1.bf16.msra.mxu0 0
    %5994 = vmatprep.subr.bf16.mxu0 0
    %5995 = vmatpush1.bf16.msra.mxu0 0
    %5996 = vmatprep.subr.bf16.mxu0 0
    %5997 = vmatpush1.bf16.msra.mxu0 0
    %5998 = vmatprep.subr.bf16.mxu0 0
    %5999 = vmatpush1.bf16.msra.mxu0 0
    %6000 = vmatprep.subr.bf16.mxu0 0
    %6001 = vmatpush1.bf16.msra.mxu0 0
    %6002 = vmatprep.subr.bf16.mxu0 0
    %6003 = vmatpush1.bf16.msra.mxu0 0
    %6004 = vmatprep.subr.bf16.mxu0 0
    %6005 = vmatpush1.bf16.msra.mxu0 0
    %6006 = vmatprep.subr.bf16.mxu0 0
    %6007 = vmatpush1.bf16.msra.mxu0 0
    %6008 = vmatprep.subr.bf16.mxu0 0
    %6009 = vmatpush1.bf16.msra.mxu0 0
    %6010 = vmatprep.mubr.bf16.mxu0 0
    %6011 = vmatmul.mubr.bf16.gmra.mrb[0].mxu0 %v5976
    %v6012 = vpop.f32.mrb[0].mxu0
    %v6013 = vadd.f32 %v5961, %v6012
    %v6014 = vpop.f32.mrb[0].mxu0
    %v6015 = vpop.f32.mrb[0].mxu0
    %v6016 = vadd.f32 %v5961, %v6015
    %v6017 = vpop.f32.mrb[0].mxu0
    %6018 = vdwg.mxu0
    %v6019 = vadd.f32 %v5260, %v6013
    %v6020 = vadd.f32 %v5261, %v6016
    %v6021 = vsel %vm483, %v6019, 0.0
    %6022 = vadd.xlane.f32.xlu0 %v6021
    %v6023 = vpop.xlane.xlu0 %6022
    %v6024 = vsel %vm3336, %v6020, 0.0
    %6025 = vadd.xlane.f32.xlu0 %v6024
    %v6026 = vpop.xlane.xlu0 %6025
    %v6027 = vmul.f32 %v6023, %v1233
    %v6028 = vmul.f32 %v6026, %v1233
    %v6029 = vsub.f32 %v6019, %v6027
    %v6030 = vsub.f32 %v6020, %v6028
    %v6031 = vmul.f32 %v6029, %v6029
    %v6032 = vmul.f32 %v6030, %v6030
    %v6033 = vsel %vm483, %v6031, 0.0
    %6034 = vadd.xlane.f32.xlu0 %v6033
    %v6035 = vpop.xlane.xlu0 %6034
    %v6036 = vsel %vm3336, %v6032, 0.0
    %6037 = vadd.xlane.f32.xlu0 %v6036
    %v6038 = vpop.xlane.xlu0 %6037
    %v6039 = vmul.f32 %v6035, %v1233
    %v6040 = vmul.f32 %v6038, %v1233
    %v6041 = vadd.f32 %v6039, 1e-05
    %v6042 = vadd.f32 %v6040, 1e-05
    %v6043 = vrsqrt.pop %v6041
    %v6044 = vrsqrt.pop %v6042
    %v6045 = vmul.f32 %v6029, %v6043
    %v6046 = vmul.f32 %v6030, %v6044
    %v6048 = vlaneseq
    %v6049 = vshrl.u32 %v6048, 7
    %v6050 = vsub.s32 0, %v6049
    %v6051 = vrot.slane %v4427, %v6050
    %v6053 = vmul.f32 %v6045, %v6051
    %v6054 = vmul.f32 %v6046, %v6051
    %v6056 = vlaneseq
    %v6057 = vshrl.u32 %v6056, 7
    %v6058 = vsub.s32 0, %v6057
    %v6059 = vrot.slane %v4429, %v6058
    %v6061 = vadd.f32 %v6053, %v6059
    %v6062 = vadd.f32 %v6054, %v6059
    %v6063 = vpack.c.bf16 %v6062, %v6061
    %v6065 = vlaneseq
    %v6066 = vshrl.u32 %v6065, 7
    %v6067 = vsub.s32 0, %v6066
    %v6068 = vrot.slane %v4436, %v6067
    %v6074 = vunpack.c.l.b16 %v4431
    %v6075 = vunpack.c.l.b16 %v4432
    %v6076 = vunpack.c.l.b16 %v4433
    %v6077 = vunpack.c.l.b16 %v4434
    %v6078 = vpack.c.b16 %v6075, %v6074
    %v6079 = vpack.c.b16 %v6077, %v6076
    %v6083 = vsel %vm483, %v6063, 0
    %6085 = vmatprep.subr.bf16.mxu0 0
    %6086 = vmatpush1.bf16.msra.mxu0 %v6078
    %6087 = vmatprep.subr.bf16.mxu0 0
    %6088 = vmatpush1.bf16.msra.mxu0 %v6079
    %6089 = vmatprep.subr.bf16.mxu0 0
    %6090 = vmatpush1.bf16.msra.mxu0 0
    %6091 = vmatprep.subr.bf16.mxu0 0
    %6092 = vmatpush1.bf16.msra.mxu0 0
    %6093 = vmatprep.subr.bf16.mxu0 0
    %6094 = vmatpush1.bf16.msra.mxu0 0
    %6095 = vmatprep.subr.bf16.mxu0 0
    %6096 = vmatpush1.bf16.msra.mxu0 0
    %6097 = vmatprep.subr.bf16.mxu0 0
    %6098 = vmatpush1.bf16.msra.mxu0 0
    %6099 = vmatprep.subr.bf16.mxu0 0
    %6100 = vmatpush1.bf16.msra.mxu0 0
    %6101 = vmatprep.subr.bf16.mxu0 0
    %6102 = vmatpush1.bf16.msra.mxu0 0
    %6103 = vmatprep.subr.bf16.mxu0 0
    %6104 = vmatpush1.bf16.msra.mxu0 0
    %6105 = vmatprep.subr.bf16.mxu0 0
    %6106 = vmatpush1.bf16.msra.mxu0 0
    %6107 = vmatprep.subr.bf16.mxu0 0
    %6108 = vmatpush1.bf16.msra.mxu0 0
    %6109 = vmatprep.subr.bf16.mxu0 0
    %6110 = vmatpush1.bf16.msra.mxu0 0
    %6111 = vmatprep.subr.bf16.mxu0 0
    %6112 = vmatpush1.bf16.msra.mxu0 0
    %6113 = vmatprep.subr.bf16.mxu0 0
    %6114 = vmatpush1.bf16.msra.mxu0 0
    %6115 = vmatprep.subr.bf16.mxu0 0
    %6116 = vmatpush1.bf16.msra.mxu0 0
    %6117 = vmatprep.mubr.bf16.mxu0 0
    %6118 = vmatmul.mubr.bf16.gmra.mrb[0].mxu0 %v6083
    %v6119 = vpop.f32.mrb[0].mxu0
    %v6120 = vadd.f32 %v6068, %v6119
    %v6121 = vpop.f32.mrb[0].mxu0
    %v6122 = vpop.f32.mrb[0].mxu0
    %v6123 = vadd.f32 %v6068, %v6122
    %v6124 = vpop.f32.mrb[0].mxu0
    %6125 = vdwg.mxu0
    %v6126 = vmax.f32 %v6120, 0.0
    %v6127 = vmax.f32 %v6123, 0.0
    %v6128 = vpack.c.bf16 %v6127, %v6126
    %v6130 = vlaneseq
    %v6131 = vshrl.u32 %v6130, 7
    %v6132 = vsub.s32 0, %v6131
    %v6133 = vrot.slane %v4447, %v6132
    %v6143 = vunpack.c.l.b16 %v4438
    %v6144 = vunpack.c.l.b16 %v4439
    %v6145 = vunpack.c.l.b16 %v4440
    %v6146 = vunpack.c.l.b16 %v4441
    %v6147 = vunpack.c.l.b16 %v4442
    %v6148 = vunpack.c.l.b16 %v4443
    %v6149 = vunpack.c.l.b16 %v4444
    %v6150 = vunpack.c.l.b16 %v4445
    %v6151 = vpack.c.b16 %v6144, %v6143
    %v6152 = vpack.c.b16 %v6146, %v6145
    %v6153 = vpack.c.b16 %v6148, %v6147
    %v6154 = vpack.c.b16 %v6150, %v6149
    %v6160 = vsel %vm1366, %v6128, 0
    %6162 = vmatprep.subr.bf16.mxu0 0
    %6163 = vmatpush1.bf16.msra.mxu0 %v6151
    %6164 = vmatprep.subr.bf16.mxu0 0
    %6165 = vmatpush1.bf16.msra.mxu0 %v6152
    %6166 = vmatprep.subr.bf16.mxu0 0
    %6167 = vmatpush1.bf16.msra.mxu0 %v6153
    %6168 = vmatprep.subr.bf16.mxu0 0
    %6169 = vmatpush1.bf16.msra.mxu0 %v6154
    %6170 = vmatprep.subr.bf16.mxu0 0
    %6171 = vmatpush1.bf16.msra.mxu0 0
    %6172 = vmatprep.subr.bf16.mxu0 0
    %6173 = vmatpush1.bf16.msra.mxu0 0
    %6174 = vmatprep.subr.bf16.mxu0 0
    %6175 = vmatpush1.bf16.msra.mxu0 0
    %6176 = vmatprep.subr.bf16.mxu0 0
    %6177 = vmatpush1.bf16.msra.mxu0 0
    %6178 = vmatprep.subr.bf16.mxu0 0
    %6179 = vmatpush1.bf16.msra.mxu0 0
    %6180 = vmatprep.subr.bf16.mxu0 0
    %6181 = vmatpush1.bf16.msra.mxu0 0
    %6182 = vmatprep.subr.bf16.mxu0 0
    %6183 = vmatpush1.bf16.msra.mxu0 0
    %6184 = vmatprep.subr.bf16.mxu0 0
    %6185 = vmatpush1.bf16.msra.mxu0 0
    %6186 = vmatprep.subr.bf16.mxu0 0
    %6187 = vmatpush1.bf16.msra.mxu0 0
    %6188 = vmatprep.subr.bf16.mxu0 0
    %6189 = vmatpush1.bf16.msra.mxu0 0
    %6190 = vmatprep.subr.bf16.mxu0 0
    %6191 = vmatpush1.bf16.msra.mxu0 0
    %6192 = vmatprep.subr.bf16.mxu0 0
    %6193 = vmatpush1.bf16.msra.mxu0 0
    %6194 = vmatprep.mubr.bf16.mxu0 0
    %6195 = vmatmul.mubr.bf16.gmra.mrb[0].mxu0 %v6160
    %v6196 = vpop.f32.mrb[0].mxu0
    %v6197 = vadd.f32 %v6133, %v6196
    %v6198 = vpop.f32.mrb[0].mxu0
    %v6199 = vpop.f32.mrb[0].mxu0
    %v6200 = vadd.f32 %v6133, %v6199
    %v6201 = vpop.f32.mrb[0].mxu0
    %6202 = vdwg.mxu0
    %v6203 = vadd.f32 %v6061, %v6197
    %v6204 = vadd.f32 %v6062, %v6200
    %v6205 = vsel %vm483, %v6203, 0.0
    %6206 = vadd.xlane.f32.xlu0 %v6205
    %v6207 = vpop.xlane.xlu0 %6206
    %v6208 = vsel %vm3336, %v6204, 0.0
    %6209 = vadd.xlane.f32.xlu0 %v6208
    %v6210 = vpop.xlane.xlu0 %6209
    %v6211 = vmul.f32 %v6207, %v1233
    %v6212 = vmul.f32 %v6210, %v1233
    %v6213 = vsub.f32 %v6203, %v6211
    %v6214 = vsub.f32 %v6204, %v6212
    %v6215 = vmul.f32 %v6213, %v6213
    %v6216 = vmul.f32 %v6214, %v6214
    %v6217 = vsel %vm483, %v6215, 0.0
    %6218 = vadd.xlane.f32.xlu0 %v6217
    %v6219 = vpop.xlane.xlu0 %6218
    %v6220 = vsel %vm3336, %v6216, 0.0
    %6221 = vadd.xlane.f32.xlu0 %v6220
    %v6222 = vpop.xlane.xlu0 %6221
    %v6223 = vmul.f32 %v6219, %v1233
    %v6224 = vmul.f32 %v6222, %v1233
    %v6225 = vadd.f32 %v6223, 1e-05
    %v6226 = vadd.f32 %v6224, 1e-05
    %v6227 = vrsqrt.pop %v6225
    %v6228 = vrsqrt.pop %v6226
    %v6229 = vmul.f32 %v6213, %v6227
    %v6230 = vmul.f32 %v6214, %v6228
    %v6232 = vlaneseq
    %v6233 = vshrl.u32 %v6232, 7
    %v6234 = vsub.s32 0, %v6233
    %v6235 = vrot.slane %v4449, %v6234
    %v6237 = vmul.f32 %v6229, %v6235
    %v6238 = vmul.f32 %v6230, %v6235
    %v6240 = vlaneseq
    %v6241 = vshrl.u32 %v6240, 7
    %v6242 = vsub.s32 0, %v6241
    %v6243 = vrot.slane %v4451, %v6242
    %v6245 = vadd.f32 %v6237, %v6243
    %v6246 = vadd.f32 %v6238, %v6243
    %6247 = vst.msk [vmem:[%s95] sm:$0xff] %vm483, %v6245
    %6248 = vst.msk [vmem:[%s95 + $0x8] sm:$0xf] %vm3336, %v6246
    // Predicated region
    $region254: #{transformer_forward.1} parent=1 // pred_check
      _
    $region255: #{transformer_forward.1} parent=1 // pred_check_branch
      %6250 = sbr.rel (0) target = $region257
    $region256: #{transformer_forward.1} parent=1 // pred_region
      _
    $region257: #{transformer_forward.1} parent=1 // pred_fallthru
      _
    // Predicated region
    $region258: #{transformer_forward.1} parent=1 // pred_check
      _
    $region259: #{transformer_forward.1} parent=1 // pred_check_branch
      %6252 = sbr.rel (0) target = $region261
    $region260: #{transformer_forward.1} parent=1 // pred_region
      _
    $region261: #{transformer_forward.1} parent=1 // pred_fallthru
      _
    %6253 = vsyncpa [#allocation3], 1
    %6254 = vsyncpa [#allocation5], 1
    %6255 = vsyncpa [#allocation8], 1
    %6256 = vsyncpa [#allocation11], 1
    %6257 = vsyncpa [#allocation14], 1
    %6258 = vsyncpa [#allocation17], 1
    %6259 = vsyncpa [#allocation20], 1
    %6260 = vsyncpa [#allocation23], 1
    %6261 = vsyncpa [#allocation26], 1

</llo_original>
